<compile_context>
chip_gen: v7x
topology: tpu7x:2x2x1
jax: 0.10.0
libtpu: 0.0.40
codegen_flags: <defaults>
</compile_context>

<pallas_src>
import functools

import jax
import jax.numpy as jnp
from jax.experimental import pallas as pl
from jax.experimental.pallas import tpu as pltpu


# --------------------------------------------------------------------------------------
# Pallas kernel helpers
# --------------------------------------------------------------------------------------

def _layernorm(x, g, b, eps=1e-5):
    mu = jnp.mean(x, axis=-1, keepdims=True)
    var = jnp.mean((x - mu) ** 2, axis=-1, keepdims=True)
    return (x - mu) * jax.lax.rsqrt(var + eps) * g + b


def _shift_rows(a, j):
    """result[m] = a[(m + j) % M]; two static row slices + one sublane concat (== jnp.roll)."""
    m = a.shape[0]
    jj = j % m
    if jj == 0:
        return a
    return jnp.concatenate([a[jj:], a[:jj]], axis=0)


def _banded_attention(q, k, v, pos, n_tok, scale):
    """Block-diagonal attention over sequences of n_tok consecutive rows, computed as
    2*n_tok-1 relative-offset score columns (VPU multiply + lane reduce) instead of a dense
    masked (M, M) score matrix.  `pos` is the (M, 1) within-sequence row position."""
    offs = list(range(-(n_tok - 1), n_tok))
    s_list = []
    for j in offs:
        kj = _shift_rows(k, j)
        sj = jnp.sum(q * kj, axis=-1, keepdims=True) * scale              # (M, 1)
        valid = jnp.logical_and(pos + j >= 0, pos + j < n_tok)
        s_list.append(jnp.where(valid, sj, -1e30))
    m_max = s_list[0]
    for sj in s_list[1:]:
        m_max = jnp.maximum(m_max, sj)
    p_list = [jnp.exp(sj - m_max) for sj in s_list]                        # invalid -> exactly 0
    denom = p_list[0]
    for pj in p_list[1:]:
        denom = denom + pj
    inv = pl.reciprocal(denom, approx=True)
    out = (p_list[0] * inv) * _shift_rows(v, offs[0])
    for j, pj in zip(offs[1:], p_list[1:]):
        out = out + (pj * inv) * _shift_rows(v, j)
    return out


def _dense_attention(q, k, v, same_seq, scale):
    """Masked dense attention fallback (used when n_tok is large)."""
    dots = jax.lax.dot_general(
        q.astype(jnp.bfloat16), k.astype(jnp.bfloat16),
        (((1,), (1,)), ((), ())),
        preferred_element_type=jnp.float32) * scale                        # (M, M)
    if same_seq is not None:
        dots = jnp.where(same_seq, dots, -1e30)    # single mask; exp underflows to exact 0
    dots = dots - jnp.max(dots, axis=-1, keepdims=True)
    p = jnp.exp(dots)
    attn = p * pl.reciprocal(jnp.sum(p, axis=-1, keepdims=True), approx=True)
    return jnp.dot(attn.astype(jnp.bfloat16), v.astype(jnp.bfloat16),
                   preferred_element_type=jnp.float32)


# --------------------------------------------------------------------------------------
# Fused transformer kernel (all `depth` layers, optional fused pooling epilogue)
# --------------------------------------------------------------------------------------

def transformer_kernel(x_ref,
                       ln1g_ref, ln1b_ref, wq_ref, wk_ref, wv_ref, wo_ref, bo_ref,
                       ln2g_ref, ln2b_ref, w1_ref, b1_ref, w2_ref, b2_ref,
                       o_ref, *,
                       depth, heads, dim_head, n_tok, apply_relu,
                       pool, pool_span, lane_dense_out):
    """Full transformer stack for one tile of independent sequences, flattened to (M, C)
    with M = n_sequences_in_tile * n_tok."""
    M, C = x_ref.shape
    scale = dim_head ** -0.5
    n_seq = M // n_tok
    use_banded = (n_seq > 1) and (n_tok <= 8)
    is_pow2 = (n_tok & (n_tok - 1)) == 0

    x = x_ref[...].astype(jnp.float32)
    if apply_relu:                                       # fused emb_relu1 / emb_relu2
        x = jnp.maximum(x, 0.0)

    pos = None
    same_seq = None
    if n_seq > 1:
        row = jax.lax.broadcasted_iota(jnp.int32, (M, 1), 0)
        if is_pow2:                                      # power-of-two n_tok -> shift / and
            sh = n_tok.bit_length() - 1
            pos = jnp.bitwise_and(row, n_tok - 1)
            if not use_banded:
                col = jax.lax.broadcasted_iota(jnp.int32, (1, M), 1)
                same_seq = jnp.right_shift(row, sh) == jnp.right_shift(col, sh)
        else:
            pos = row % n_tok
            if not use_banded:
                col = jax.lax.broadcasted_iota(jnp.int32, (1, M), 1)
                same_seq = (row // n_tok) == (col // n_tok)

    for li in range(depth):                              # static unroll; weights stay in VMEM
        # ---- attention sub-layer (PreNorm) ----
        xn = _layernorm(x, ln1g_ref[li], ln1b_ref[li]).astype(jnp.bfloat16)
        attn_out = jnp.zeros((M, C), jnp.float32)
        for h in range(heads):                           # per-head weights: no qkv lane slicing
            q = jnp.dot(xn, wq_ref[li, h], preferred_element_type=jnp.float32)
            k = jnp.dot(xn, wk_ref[li, h], preferred_element_type=jnp.float32)
            v = jnp.dot(xn, wv_ref[li, h], preferred_element_type=jnp.float32)
            if use_banded:
                av = _banded_attention(q, k, v, pos, n_tok, scale)
            else:
                av = _dense_attention(q, k, v, same_seq, scale)
            attn_out = attn_out + jnp.dot(av.astype(jnp.bfloat16), wo_ref[li, h],
                                          preferred_element_type=jnp.float32)
        x = x + attn_out + bo_ref[li]

        # ---- feed-forward sub-layer (PreNorm) ----
        xn2 = _layernorm(x, ln2g_ref[li], ln2b_ref[li]).astype(jnp.bfloat16)
        h1 = jnp.dot(xn2, w1_ref[li], preferred_element_type=jnp.float32) + b1_ref[li]
        # TODO(synk): PyTorch nn.GELU defaults to exact erf-GELU; tanh-approx GELU used here
        #             (erf lowering is not guaranteed in Mosaic).
        h1 = jax.nn.gelu(h1, approximate=True)
        ff = jnp.dot(h1.astype(jnp.bfloat16), w2_ref[li],
                     preferred_element_type=jnp.float32) + b2_ref[li]
        x = x + ff

    if pool:
        # fused adaptive_max_pool1d(.., 1) over the n_tok tokens of each sequence, jointly
        # with the 8-way group max of the reference (pool_span contiguous rows per output row).
        x = jnp.max(x.reshape(M // pool_span, pool_span, C), axis=1)

    if lane_dense_out:
        # Pack C(<128)-wide rows into 128-wide lanes so the final store is not a masked vst.
        per = 128 // C
        rows = x.shape[0]
        slabs = []
        for s in range(rows // per):
            pieces = [x[s * per + i:s * per + i + 1, :] for i in range(per)]
            slabs.append(jnp.concatenate(pieces, axis=1))
        x = slabs[0] if len(slabs) == 1 else jnp.concatenate(slabs, axis=0)

    o_ref[...] = x.astype(o_ref.dtype)


# --------------------------------------------------------------------------------------
# Pallas-call wrapper
# --------------------------------------------------------------------------------------

_PARAM_ORDER = ('ln1_g', 'ln1_b', 'wq', 'wk', 'wv', 'wo', 'bo',
                'ln2_g', 'ln2_b', 'w1', 'b1', 'w2', 'b2')


def _const_index_map(nd):
    return lambda r: (0,) * nd


def run_transformer(x, params, *, heads, dim_head, input_relu, pool,
                    pool_groups=1, row_blocks=None):
    """x: (R, n, C).  Returns (R, n, C) if pool=False, else (R // pool_groups, C)
    (max over the n tokens of each sequence and over pool_groups consecutive sequences)."""
    R, n, C = x.shape
    depth = params['wq'].shape[0]
    if pool:
        assert R % pool_groups == 0

    # Per perf review: a 2-way "parallel" row split only pays on v7x's two TensorCores and
    # only when each block keeps real work (>= 256 rows); single block otherwise
    # (always on v5e / v6e at these sizes).
    if row_blocks is None:
        row_blocks = 2 if (R * n) // 2 >= 256 else 1
    nb = max(1, int(row_blocks))

    def _block_ok(nb_):
        if nb_ == 1:
            return True
        if R % nb_:
            return False
        TR_ = R // nb_
        if pool and TR_ % pool_groups:
            return False
        M_ = TR_ * n
        orb_ = TR_ // pool_groups if pool else M_
        return (M_ % 8 == 0) and (orb_ % 8 == 0)

    while nb > 1 and not _block_ok(nb):
        nb -= 1

    TR = R // nb
    M = TR * n
    pool_span = n * pool_groups
    out_rows_blk = TR // pool_groups if pool else M
    out_rows = out_rows_blk * nb

    lane_dense = (C < 128 and 128 % C == 0 and (out_rows_blk * C) % 128 == 0
                  and out_rows_blk <= 64
                  and (nb == 1 or ((out_rows_blk * C) // 128) % 8 == 0))
    blk_out_rows = (out_rows_blk * C) // 128 if lane_dense else out_rows_blk
    out_cols = 128 if lane_dense else C

    x2 = x.reshape(R * n, C).astype(jnp.bfloat16)        # activations shipped as bf16

    kern = functools.partial(transformer_kernel, depth=depth, heads=heads,
                             dim_head=dim_head, n_tok=n, apply_relu=input_relu,
                             pool=pool, pool_span=pool_span, lane_dense_out=lane_dense)

    # Grid-invariant weight blocks: single-buffer them when there is more than one grid step
    # so the depth-stacked weights are not needlessly double-buffered in VMEM.
    wkw = dict(pipeline_mode=pl.Buffered(1)) if nb > 1 else {}
    in_specs = [pl.BlockSpec((M, C), lambda r: (r, 0))]
    for name in _PARAM_ORDER:
        p = params[name]
        in_specs.append(pl.BlockSpec(p.shape, _const_index_map(p.ndim), **wkw))

    out = pl.pallas_call(
        kern,
        out_shape=jax.ShapeDtypeStruct((blk_out_rows * nb, out_cols), jnp.float32),
        grid_spec=pltpu.PrefetchScalarGridSpec(
            num_scalar_prefetch=0,
            grid=(nb,),
            in_specs=in_specs,
            out_specs=pl.BlockSpec((blk_out_rows, out_cols), lambda r: (r, 0))),
        compiler_params=pltpu.CompilerParams(
            dimension_semantics=("parallel",),
            vmem_limit_bytes=32 * 1024 * 1024),
    )(x2, *(params[name] for name in _PARAM_ORDER))

    out = out.reshape(out_rows, C)       # free row-major un-pack of the lane-dense slab
    return out if pool else out.reshape(R, n, C)


# --------------------------------------------------------------------------------------
# Tube embedding (P4DConv, in_planes=0, mlp=[dim], no BN/act, op='+', max/max pooling)
# --------------------------------------------------------------------------------------

def tube_embedding(pts, w, b, cfg):
    """pts: (B, T, N, 3) -> xyzs (B, L, Np, 3), features (B, L, Np, dim), anchor_idx (B, L, Np)."""
    B, T, N, _ = pts.shape
    tks = cfg['temporal_kernel_size']
    half = tks // 2
    tstride = cfg['temporal_stride']
    sstride = cfg['spatial_stride']
    K = cfg['nsamples']
    pad_lo, pad_hi = cfg['temporal_padding']

    # temporal padding (replicate first / last frame)
    xp = jnp.concatenate(
        [jnp.repeat(pts[:, :1], pad_lo, axis=1), pts, jnp.repeat(pts[:, -1:], pad_hi, axis=1)],
        axis=1)
    Tp = T + pad_lo + pad_hi
    anchor_frames = list(range(half, Tp - half, tstride))
    L = len(anchor_frames)
    Np = N // sstride

    # TODO(synk): furthest-point-sampling + radius ball-query (pointnet2 CUDA ops) have no clean
    #             Pallas equivalent; replaced by deterministic strided anchor sampling + kNN grouping.
    anchor_sel = jnp.arange(0, N, sstride)

    xyz_list, disp_list = [], []
    for t in anchor_frames:
        anchor_xyz = xp[:, t][:, anchor_sel, :]                         # (B, Np, 3)
        frame_disps = []
        for i in range(t - half, t + half + 1):
            neigh = xp[:, i]                                            # (B, N, 3)
            d2 = jnp.sum((anchor_xyz[:, :, None, :] - neigh[:, None, :, :]) ** 2, axis=-1)
            _, idx = jax.lax.top_k(-d2, K)                              # (B, Np, K)
            gathered = jax.vmap(lambda nb_, ix: nb_[ix])(neigh, idx)    # (B, Np, K, 3)
            xyz_disp = gathered - anchor_xyz[:, :, None, :]
            t_disp = jnp.full((B, Np, K, 1), float(i - t), jnp.float32)
            frame_disps.append(jnp.concatenate([xyz_disp, t_disp], axis=-1))
        disp_list.append(jnp.stack(frame_disps, axis=2))                # (B, Np, kt, K, 4)
        xyz_list.append(anchor_xyz)

    disp = jnp.stack(disp_list, axis=1)                                 # (B, L, Np, kt, K, 4)
    xyzs = jnp.stack(xyz_list, axis=1)                                  # (B, L, Np, 3)
    anchor_idx = jnp.broadcast_to(anchor_sel[None, None, :], (B, L, Np)).astype(jnp.int32)

    # Per perf review: the 4->dim 1x1 conv + joint (temporal x spatial) max is 4 FMAs over
    # ~24 KB; let XLA fuse it instead of a Pallas launch with a lane-sparse (*, 4) operand.
    features = jnp.max(disp @ w + b, axis=(3, 4))                       # (B, L, Np, dim)
    return xyzs, features, anchor_idx


# --------------------------------------------------------------------------------------
# Full forward pass
# --------------------------------------------------------------------------------------

def primitive_transformer_forward(inp, segment_feature, params, cfg):
    del segment_feature  # unused in the reference forward as well
    xyzs, features, anchor_idx = tube_embedding(inp, params['tube_w'], params['tube_b'], cfg)
    B, L, Np, C = features.shape
    del anchor_idx       # converted to long but never used by the reference forward

    # xyzts (computed as in the reference; not part of the returned values)
    ts = jnp.broadcast_to(jnp.arange(1, L + 1, dtype=jnp.float32)[None, :, None, None],
                          (B, L, Np, 1))
    _xyzts = jnp.concatenate([xyzs, ts], axis=-1).reshape(B, L * Np, 4)

    features_flat = features.reshape(B, L * Np, C)
    xyzts_before = features_flat

    group = 8                                   # hard-coded group size in the reference reshape
    assert Np % group == 0, "reference reshape (B*L*8, -1, C) requires Np % 8 == 0"
    n_pt = Np // group

    # per-primitive transformer: emb_relu1 + transformer1 + adaptive_max_pool1d over tokens
    # + the 8-way group max, all fused into ONE pallas_call -> (B*L, C).
    point_feat = features_flat.reshape(B * L * group, n_pt, C)
    anchor_feature = run_transformer(point_feat, params['t1'], heads=cfg['heads'],
                                     dim_head=cfg['dim_head'], input_relu=True,
                                     pool=True, pool_groups=group)
    anchor_feature = anchor_feature.reshape(B, L, C)

    # anchor-level transformer (emb_relu2 fused into the kernel)
    output = run_transformer(anchor_feature, params['t2'], heads=cfg['heads'],
                             dim_head=cfg['dim_head'], input_relu=True, pool=False)
    return output, xyzts_before


# --------------------------------------------------------------------------------------
# Deterministic parameter init (layer weights stacked along a leading depth axis, per head)
# --------------------------------------------------------------------------------------

def init_transformer_params(key, depth, dim, heads, dim_head, mlp_dim):
    key, k0, k1, k2, k3, k4, k5 = jax.random.split(key, 7)

    def w(k, shape):
        # bf16 storage halves DMA bytes / doubles MXU rate; accumulation stays f32 in-kernel.
        return (0.05 * jax.random.normal(k, shape, jnp.float32)).astype(jnp.bfloat16)

    params = dict(
        ln1_g=jnp.ones((depth, 1, dim), jnp.float32),
        ln1_b=jnp.zeros((depth, 1, dim), jnp.float32),
        wq=w(k0, (depth, heads, dim, dim_head)),
        wk=w(k1, (depth, heads, dim, dim_head)),
        wv=w(k2, (depth, heads, dim, dim_head)),
        wo=w(k3, (depth, heads, dim_head, dim)),
        bo=jnp.zeros((depth, 1, dim), jnp.float32),
        ln2_g=jnp.ones((depth, 1, dim), jnp.float32),
        ln2_b=jnp.zeros((depth, 1, dim), jnp.float32),
        w1=w(k4, (depth, dim, mlp_dim)),
        b1=jnp.zeros((depth, 1, mlp_dim), jnp.float32),
        w2=w(k5, (depth, mlp_dim, dim)),
        b2=jnp.zeros((depth, 1, dim), jnp.float32),
    )
    return key, params


if __name__ == "__main__":
    cfg = dict(radius=0.9, nsamples=8, spatial_stride=4, temporal_kernel_size=3,
               temporal_stride=2, temporal_padding=(1, 1), emb_relu=True,
               dim=32, depth=2, heads=2, dim_head=16, mlp_dim=64, num_classes=10)

    B, T, N = 2, 4, 64                       # small shapes; Np = N // spatial_stride = 16
    key = jax.random.PRNGKey(0)
    key, k_in, k_seg, k_tw, kp = jax.random.split(key, 5)

    inp = jax.random.normal(k_in, (B, T, N, 3), jnp.float32)
    segment_feature = jax.random.normal(k_seg, (B, 48, 16), jnp.float32)   # unused (as in reference)

    params = {
        'tube_w': 0.1 * jax.random.normal(k_tw, (4, cfg['dim']), jnp.float32),
        'tube_b': jnp.zeros((cfg['dim'],), jnp.float32),
    }
    kp, params['t1'] = init_transformer_params(kp, cfg['depth'], cfg['dim'],
                                               cfg['heads'], cfg['dim_head'], cfg['mlp_dim'])
    kp, params['t2'] = init_transformer_params(kp, cfg['depth'], cfg['dim'],
                                               cfg['heads'], cfg['dim_head'], cfg['mlp_dim'])

    fwd = jax.jit(functools.partial(primitive_transformer_forward, cfg=cfg))
    output, xyzts_before = fwd(inp, segment_feature, params)
    output = jax.block_until_ready(output)
    xyzts_before = jax.block_until_ready(xyzts_before)

    L = 2
    Np = N // cfg['spatial_stride']
    assert output.shape == (B, L, cfg['dim'])
    assert xyzts_before.shape == (B, L * Np, cfg['dim'])
    assert jnp.all(jnp.isfinite(output)) and jnp.all(jnp.isfinite(xyzts_before))
    print("KERNEL_OK")
</pallas_src>

<mosaic_0001>
module attributes {stable_mosaic.version = 11 : i64} {
  func.func @transformer_kernel(%arg0: i32, %arg1: memref<64x32xbf16, #tpu.memory_space<vmem>>, %arg2: memref<2x1x32xf32, #tpu.memory_space<vmem>>, %arg3: memref<2x1x32xf32, #tpu.memory_space<vmem>>, %arg4: memref<2x2x32x16xbf16, #tpu.memory_space<vmem>>, %arg5: memref<2x2x32x16xbf16, #tpu.memory_space<vmem>>, %arg6: memref<2x2x32x16xbf16, #tpu.memory_space<vmem>>, %arg7: memref<2x2x16x32xbf16, #tpu.memory_space<vmem>>, %arg8: memref<2x1x32xf32, #tpu.memory_space<vmem>>, %arg9: memref<2x1x32xf32, #tpu.memory_space<vmem>>, %arg10: memref<2x1x32xf32, #tpu.memory_space<vmem>>, %arg11: memref<2x32x64xbf16, #tpu.memory_space<vmem>>, %arg12: memref<2x1x64xf32, #tpu.memory_space<vmem>>, %arg13: memref<2x64x32xbf16, #tpu.memory_space<vmem>>, %arg14: memref<2x1x32xf32, #tpu.memory_space<vmem>>, %arg15: memref<1x128xf32, #tpu.memory_space<vmem>>) attributes {dimension_semantics = [#tpu.dimension_semantics<parallel>], iteration_bounds = array<i64: 1>, scalar_prefetch = 0 : i64, scratch_operands = 0 : i64, tpu.core_type = #tpu.core_type<tc>, window_params = [{transform_indices = @transform_0, window_bounds = array<i64: 64, 32>}, {pipeline_mode = #tpu.pipeline_mode<synchronous>, transform_indices = @transform_1, window_bounds = array<i64: 2, 1, 32>}, {pipeline_mode = #tpu.pipeline_mode<synchronous>, transform_indices = @transform_2, window_bounds = array<i64: 2, 1, 32>}, {pipeline_mode = #tpu.pipeline_mode<synchronous>, transform_indices = @transform_3, window_bounds = array<i64: 2, 2, 32, 16>}, {pipeline_mode = #tpu.pipeline_mode<synchronous>, transform_indices = @transform_4, window_bounds = array<i64: 2, 2, 32, 16>}, {pipeline_mode = #tpu.pipeline_mode<synchronous>, transform_indices = @transform_5, window_bounds = array<i64: 2, 2, 32, 16>}, {pipeline_mode = #tpu.pipeline_mode<synchronous>, transform_indices = @transform_6, window_bounds = array<i64: 2, 2, 16, 32>}, {pipeline_mode = #tpu.pipeline_mode<synchronous>, transform_indices = @transform_7, window_bounds = array<i64: 2, 1, 32>}, {pipeline_mode = #tpu.pipeline_mode<synchronous>, transform_indices = @transform_8, window_bounds = array<i64: 2, 1, 32>}, {pipeline_mode = #tpu.pipeline_mode<synchronous>, transform_indices = @transform_9, window_bounds = array<i64: 2, 1, 32>}, {pipeline_mode = #tpu.pipeline_mode<synchronous>, transform_indices = @transform_10, window_bounds = array<i64: 2, 32, 64>}, {pipeline_mode = #tpu.pipeline_mode<synchronous>, transform_indices = @transform_11, window_bounds = array<i64: 2, 1, 64>}, {pipeline_mode = #tpu.pipeline_mode<synchronous>, transform_indices = @transform_12, window_bounds = array<i64: 2, 64, 32>}, {pipeline_mode = #tpu.pipeline_mode<synchronous>, transform_indices = @transform_13, window_bounds = array<i64: 2, 1, 32>}, {transform_indices = @transform_14, window_bounds = array<i64: 1, 128>}]} {
    %c0 = arith.constant 0 : index
    %c0_0 = arith.constant 0 : index
    %0 = vector.load %arg1[%c0, %c0_0] : memref<64x32xbf16, #tpu.memory_space<vmem>>, vector<64x32xbf16>
    %1 = arith.extf %0 : vector<64x32xbf16> to vector<64x32xf32>
    %cst = arith.constant 0.000000e+00 : f32
    %2 = vector.broadcast %cst : f32 to vector<64x32xf32>
    %3 = arith.maximumf %1, %2 : vector<64x32xf32>
    %4 = tpu.iota {dimensions = array<i32: 0>} : vector<64x1xi32>
    %c1_i32 = arith.constant 1 : i32
    %5 = vector.broadcast %c1_i32 : i32 to vector<64x1xi32>
    %6 = arith.andi %4, %5 : vector<64x1xi32>
    %c0_1 = arith.constant 0 : index
    %c0_2 = arith.constant 0 : index
    %c0_3 = arith.constant 0 : index
    %7 = vector.load %arg2[%c0_1, %c0_2, %c0_3] : memref<2x1x32xf32, #tpu.memory_space<vmem>>, vector<1x1x32xf32>
    %8 = vector.shape_cast %7 : vector<1x1x32xf32> to vector<1x32xf32>
    %c0_4 = arith.constant 0 : index
    %c0_5 = arith.constant 0 : index
    %c0_6 = arith.constant 0 : index
    %9 = vector.load %arg3[%c0_4, %c0_5, %c0_6] : memref<2x1x32xf32, #tpu.memory_space<vmem>>, vector<1x1x32xf32>
    %10 = vector.shape_cast %9 : vector<1x1x32xf32> to vector<1x32xf32>
    %cst_7 = arith.constant dense<0.000000e+00> : vector<64xf32>
    %11 = vector.multi_reduction <add>, %3, %cst_7 [1] : vector<64x32xf32> to vector<64xf32>
    %12 = vector.shape_cast %11 : vector<64xf32> to vector<64x1xf32>
    %cst_8 = arith.constant 3.200000e+01 : f32
    %13 = vector.broadcast %cst_8 : f32 to vector<64x1xf32>
    %14 = arith.divf %12, %13 : vector<64x1xf32>
    %15 = vector.broadcast %14 : vector<64x1xf32> to vector<64x32xf32>
    %16 = arith.subf %3, %15 : vector<64x32xf32>
    %17 = arith.mulf %16, %16 : vector<64x32xf32>
    %cst_9 = arith.constant dense<0.000000e+00> : vector<64xf32>
    %18 = vector.multi_reduction <add>, %17, %cst_9 [1] : vector<64x32xf32> to vector<64xf32>
    %19 = vector.shape_cast %18 : vector<64xf32> to vector<64x1xf32>
    %cst_10 = arith.constant 3.200000e+01 : f32
    %20 = vector.broadcast %cst_10 : f32 to vector<64x1xf32>
    %21 = arith.divf %19, %20 : vector<64x1xf32>
    %22 = vector.broadcast %14 : vector<64x1xf32> to vector<64x32xf32>
    %23 = arith.subf %3, %22 : vector<64x32xf32>
    %cst_11 = arith.constant 9.99999974E-6 : f32
    %24 = vector.broadcast %cst_11 : f32 to vector<64x1xf32>
    %25 = arith.addf %21, %24 : vector<64x1xf32>
    %26 = math.rsqrt %25 : vector<64x1xf32>
    %27 = vector.broadcast %26 : vector<64x1xf32> to vector<64x32xf32>
    %28 = arith.mulf %23, %27 : vector<64x32xf32>
    %29 = vector.broadcast %8 : vector<1x32xf32> to vector<64x32xf32>
    %30 = arith.mulf %28, %29 : vector<64x32xf32>
    %31 = vector.broadcast %10 : vector<1x32xf32> to vector<64x32xf32>
    %32 = arith.addf %30, %31 : vector<64x32xf32>
    %33 = arith.truncf %32 : vector<64x32xf32> to vector<64x32xbf16>
    %cst_12 = arith.constant 0.000000e+00 : f32
    %34 = vector.broadcast %cst_12 : f32 to vector<64x32xf32>
    %c0_13 = arith.constant 0 : index
    %c0_14 = arith.constant 0 : index
    %c0_15 = arith.constant 0 : index
    %c0_16 = arith.constant 0 : index
    %35 = vector.load %arg4[%c0_13, %c0_14, %c0_15, %c0_16] : memref<2x2x32x16xbf16, #tpu.memory_space<vmem>>, vector<1x1x32x16xbf16>
    %36 = vector.shape_cast %35 : vector<1x1x32x16xbf16> to vector<32x16xbf16>
    %cst_17 = arith.constant dense<0.000000e+00> : vector<64x16xf32>
    %37 = tpu.matmul %33, %36, %cst_17 {dimension_numbers = #tpu.dot_dimension_numbers<[1], [0], [0], [1], [0, 0, 1, 1], [], []>} : vector<64x32xbf16>, vector<32x16xbf16>, vector<64x16xf32> -> vector<64x16xf32>
    %c0_18 = arith.constant 0 : index
    %c0_19 = arith.constant 0 : index
    %c0_20 = arith.constant 0 : index
    %c0_21 = arith.constant 0 : index
    %38 = vector.load %arg5[%c0_18, %c0_19, %c0_20, %c0_21] : memref<2x2x32x16xbf16, #tpu.memory_space<vmem>>, vector<1x1x32x16xbf16>
    %39 = vector.shape_cast %38 : vector<1x1x32x16xbf16> to vector<32x16xbf16>
    %cst_22 = arith.constant dense<0.000000e+00> : vector<64x16xf32>
    %40 = tpu.matmul %33, %39, %cst_22 {dimension_numbers = #tpu.dot_dimension_numbers<[1], [0], [0], [1], [0, 0, 1, 1], [], []>} : vector<64x32xbf16>, vector<32x16xbf16>, vector<64x16xf32> -> vector<64x16xf32>
    %c0_23 = arith.constant 0 : index
    %c0_24 = arith.constant 0 : index
    %c0_25 = arith.constant 0 : index
    %c0_26 = arith.constant 0 : index
    %41 = vector.load %arg6[%c0_23, %c0_24, %c0_25, %c0_26] : memref<2x2x32x16xbf16, #tpu.memory_space<vmem>>, vector<1x1x32x16xbf16>
    %42 = vector.shape_cast %41 : vector<1x1x32x16xbf16> to vector<32x16xbf16>
    %cst_27 = arith.constant dense<0.000000e+00> : vector<64x16xf32>
    %43 = tpu.matmul %33, %42, %cst_27 {dimension_numbers = #tpu.dot_dimension_numbers<[1], [0], [0], [1], [0, 0, 1, 1], [], []>} : vector<64x32xbf16>, vector<32x16xbf16>, vector<64x16xf32> -> vector<64x16xf32>
    %44 = vector.extract_strided_slice %40 {offsets = [63, 0], sizes = [1, 16], strides = [1, 1]} : vector<64x16xf32> to vector<1x16xf32>
    %45 = vector.extract_strided_slice %40 {offsets = [0, 0], sizes = [63, 16], strides = [1, 1]} : vector<64x16xf32> to vector<63x16xf32>
    %46 = tpu.concatenate %44, %45 in 0 : vector<1x16xf32>, vector<63x16xf32> -> vector<64x16xf32>
    %47 = arith.mulf %37, %46 : vector<64x16xf32>
    %cst_28 = arith.constant dense<0.000000e+00> : vector<64xf32>
    %48 = vector.multi_reduction <add>, %47, %cst_28 [1] : vector<64x16xf32> to vector<64xf32>
    %49 = vector.shape_cast %48 : vector<64xf32> to vector<64x1xf32>
    %cst_29 = arith.constant 2.500000e-01 : f32
    %50 = vector.broadcast %cst_29 : f32 to vector<64x1xf32>
    %51 = arith.mulf %49, %50 : vector<64x1xf32>
    %c-1_i32 = arith.constant -1 : i32
    %52 = vector.broadcast %c-1_i32 : i32 to vector<64x1xi32>
    %53 = arith.addi %6, %52 : vector<64x1xi32>
    %c0_i32 = arith.constant 0 : i32
    %54 = vector.broadcast %c0_i32 : i32 to vector<64x1xi32>
    %55 = arith.cmpi sge, %53, %54 : vector<64x1xi32>
    %c-1_i32_30 = arith.constant -1 : i32
    %56 = vector.broadcast %c-1_i32_30 : i32 to vector<64x1xi32>
    %57 = arith.addi %6, %56 : vector<64x1xi32>
    %c2_i32 = arith.constant 2 : i32
    %58 = vector.broadcast %c2_i32 : i32 to vector<64x1xi32>
    %59 = arith.cmpi slt, %57, %58 : vector<64x1xi32>
    %60 = arith.andi %55, %59 : vector<64x1xi1>
    %cst_31 = arith.constant -1.000000e+30 : f32
    %61 = vector.broadcast %cst_31 : f32 to vector<64x1xf32>
    %62 = arith.select %60, %51, %61 : vector<64x1xi1>, vector<64x1xf32>
    %63 = arith.mulf %37, %40 : vector<64x16xf32>
    %cst_32 = arith.constant dense<0.000000e+00> : vector<64xf32>
    %64 = vector.multi_reduction <add>, %63, %cst_32 [1] : vector<64x16xf32> to vector<64xf32>
    %65 = vector.shape_cast %64 : vector<64xf32> to vector<64x1xf32>
    %cst_33 = arith.constant 2.500000e-01 : f32
    %66 = vector.broadcast %cst_33 : f32 to vector<64x1xf32>
    %67 = arith.mulf %65, %66 : vector<64x1xf32>
    %c0_i32_34 = arith.constant 0 : i32
    %68 = vector.broadcast %c0_i32_34 : i32 to vector<64x1xi32>
    %69 = arith.addi %6, %68 : vector<64x1xi32>
    %c0_i32_35 = arith.constant 0 : i32
    %70 = vector.broadcast %c0_i32_35 : i32 to vector<64x1xi32>
    %71 = arith.cmpi sge, %69, %70 : vector<64x1xi32>
    %c0_i32_36 = arith.constant 0 : i32
    %72 = vector.broadcast %c0_i32_36 : i32 to vector<64x1xi32>
    %73 = arith.addi %6, %72 : vector<64x1xi32>
    %c2_i32_37 = arith.constant 2 : i32
    %74 = vector.broadcast %c2_i32_37 : i32 to vector<64x1xi32>
    %75 = arith.cmpi slt, %73, %74 : vector<64x1xi32>
    %76 = arith.andi %71, %75 : vector<64x1xi1>
    %cst_38 = arith.constant -1.000000e+30 : f32
    %77 = vector.broadcast %cst_38 : f32 to vector<64x1xf32>
    %78 = arith.select %76, %67, %77 : vector<64x1xi1>, vector<64x1xf32>
    %79 = vector.extract_strided_slice %40 {offsets = [1, 0], sizes = [63, 16], strides = [1, 1]} : vector<64x16xf32> to vector<63x16xf32>
    %80 = vector.extract_strided_slice %40 {offsets = [0, 0], sizes = [1, 16], strides = [1, 1]} : vector<64x16xf32> to vector<1x16xf32>
    %81 = tpu.concatenate %79, %80 in 0 : vector<63x16xf32>, vector<1x16xf32> -> vector<64x16xf32>
    %82 = arith.mulf %37, %81 : vector<64x16xf32>
    %cst_39 = arith.constant dense<0.000000e+00> : vector<64xf32>
    %83 = vector.multi_reduction <add>, %82, %cst_39 [1] : vector<64x16xf32> to vector<64xf32>
    %84 = vector.shape_cast %83 : vector<64xf32> to vector<64x1xf32>
    %cst_40 = arith.constant 2.500000e-01 : f32
    %85 = vector.broadcast %cst_40 : f32 to vector<64x1xf32>
    %86 = arith.mulf %84, %85 : vector<64x1xf32>
    %c1_i32_41 = arith.constant 1 : i32
    %87 = vector.broadcast %c1_i32_41 : i32 to vector<64x1xi32>
    %88 = arith.addi %6, %87 : vector<64x1xi32>
    %c0_i32_42 = arith.constant 0 : i32
    %89 = vector.broadcast %c0_i32_42 : i32 to vector<64x1xi32>
    %90 = arith.cmpi sge, %88, %89 : vector<64x1xi32>
    %c1_i32_43 = arith.constant 1 : i32
    %91 = vector.broadcast %c1_i32_43 : i32 to vector<64x1xi32>
    %92 = arith.addi %6, %91 : vector<64x1xi32>
    %c2_i32_44 = arith.constant 2 : i32
    %93 = vector.broadcast %c2_i32_44 : i32 to vector<64x1xi32>
    %94 = arith.cmpi slt, %92, %93 : vector<64x1xi32>
    %95 = arith.andi %90, %94 : vector<64x1xi1>
    %cst_45 = arith.constant -1.000000e+30 : f32
    %96 = vector.broadcast %cst_45 : f32 to vector<64x1xf32>
    %97 = arith.select %95, %86, %96 : vector<64x1xi1>, vector<64x1xf32>
    %98 = arith.maximumf %62, %78 : vector<64x1xf32>
    %99 = arith.maximumf %98, %97 : vector<64x1xf32>
    %100 = arith.subf %62, %99 : vector<64x1xf32>
    %101 = math.exp %100 : vector<64x1xf32>
    %102 = arith.subf %78, %99 : vector<64x1xf32>
    %103 = math.exp %102 : vector<64x1xf32>
    %104 = arith.subf %97, %99 : vector<64x1xf32>
    %105 = math.exp %104 : vector<64x1xf32>
    %106 = arith.addf %101, %103 : vector<64x1xf32>
    %107 = arith.addf %106, %105 : vector<64x1xf32>
    %108 = tpu.reciprocal %107 {approx = true} : vector<64x1xf32> -> vector<64x1xf32>
    %109 = arith.mulf %101, %108 : vector<64x1xf32>
    %110 = vector.extract_strided_slice %43 {offsets = [63, 0], sizes = [1, 16], strides = [1, 1]} : vector<64x16xf32> to vector<1x16xf32>
    %111 = vector.extract_strided_slice %43 {offsets = [0, 0], sizes = [63, 16], strides = [1, 1]} : vector<64x16xf32> to vector<63x16xf32>
    %112 = tpu.concatenate %110, %111 in 0 : vector<1x16xf32>, vector<63x16xf32> -> vector<64x16xf32>
    %113 = vector.broadcast %109 : vector<64x1xf32> to vector<64x16xf32>
    %114 = arith.mulf %113, %112 : vector<64x16xf32>
    %115 = arith.mulf %103, %108 : vector<64x1xf32>
    %116 = vector.broadcast %115 : vector<64x1xf32> to vector<64x16xf32>
    %117 = arith.mulf %116, %43 : vector<64x16xf32>
    %118 = arith.addf %114, %117 : vector<64x16xf32>
    %119 = arith.mulf %105, %108 : vector<64x1xf32>
    %120 = vector.extract_strided_slice %43 {offsets = [1, 0], sizes = [63, 16], strides = [1, 1]} : vector<64x16xf32> to vector<63x16xf32>
    %121 = vector.extract_strided_slice %43 {offsets = [0, 0], sizes = [1, 16], strides = [1, 1]} : vector<64x16xf32> to vector<1x16xf32>
    %122 = tpu.concatenate %120, %121 in 0 : vector<63x16xf32>, vector<1x16xf32> -> vector<64x16xf32>
    %123 = vector.broadcast %119 : vector<64x1xf32> to vector<64x16xf32>
    %124 = arith.mulf %123, %122 : vector<64x16xf32>
    %125 = arith.addf %118, %124 : vector<64x16xf32>
    %126 = arith.truncf %125 : vector<64x16xf32> to vector<64x16xbf16>
    %c0_46 = arith.constant 0 : index
    %c0_47 = arith.constant 0 : index
    %c0_48 = arith.constant 0 : index
    %c0_49 = arith.constant 0 : index
    %127 = vector.load %arg7[%c0_46, %c0_47, %c0_48, %c0_49] : memref<2x2x16x32xbf16, #tpu.memory_space<vmem>>, vector<1x1x16x32xbf16>
    %128 = vector.shape_cast %127 : vector<1x1x16x32xbf16> to vector<16x32xbf16>
    %cst_50 = arith.constant dense<0.000000e+00> : vector<64x32xf32>
    %129 = tpu.matmul %126, %128, %cst_50 {dimension_numbers = #tpu.dot_dimension_numbers<[1], [0], [0], [1], [0, 0, 1, 1], [], []>} : vector<64x16xbf16>, vector<16x32xbf16>, vector<64x32xf32> -> vector<64x32xf32>
    %130 = arith.addf %34, %129 : vector<64x32xf32>
    %c0_51 = arith.constant 0 : index
    %c1 = arith.constant 1 : index
    %c0_52 = arith.constant 0 : index
    %c0_53 = arith.constant 0 : index
    %131 = vector.load %arg4[%c0_51, %c1, %c0_52, %c0_53] : memref<2x2x32x16xbf16, #tpu.memory_space<vmem>>, vector<1x1x32x16xbf16>
    %132 = vector.shape_cast %131 : vector<1x1x32x16xbf16> to vector<32x16xbf16>
    %cst_54 = arith.constant dense<0.000000e+00> : vector<64x16xf32>
    %133 = tpu.matmul %33, %132, %cst_54 {dimension_numbers = #tpu.dot_dimension_numbers<[1], [0], [0], [1], [0, 0, 1, 1], [], []>} : vector<64x32xbf16>, vector<32x16xbf16>, vector<64x16xf32> -> vector<64x16xf32>
    %c0_55 = arith.constant 0 : index
    %c1_56 = arith.constant 1 : index
    %c0_57 = arith.constant 0 : index
    %c0_58 = arith.constant 0 : index
    %134 = vector.load %arg5[%c0_55, %c1_56, %c0_57, %c0_58] : memref<2x2x32x16xbf16, #tpu.memory_space<vmem>>, vector<1x1x32x16xbf16>
    %135 = vector.shape_cast %134 : vector<1x1x32x16xbf16> to vector<32x16xbf16>
    %cst_59 = arith.constant dense<0.000000e+00> : vector<64x16xf32>
    %136 = tpu.matmul %33, %135, %cst_59 {dimension_numbers = #tpu.dot_dimension_numbers<[1], [0], [0], [1], [0, 0, 1, 1], [], []>} : vector<64x32xbf16>, vector<32x16xbf16>, vector<64x16xf32> -> vector<64x16xf32>
    %c0_60 = arith.constant 0 : index
    %c1_61 = arith.constant 1 : index
    %c0_62 = arith.constant 0 : index
    %c0_63 = arith.constant 0 : index
    %137 = vector.load %arg6[%c0_60, %c1_61, %c0_62, %c0_63] : memref<2x2x32x16xbf16, #tpu.memory_space<vmem>>, vector<1x1x32x16xbf16>
    %138 = vector.shape_cast %137 : vector<1x1x32x16xbf16> to vector<32x16xbf16>
    %cst_64 = arith.constant dense<0.000000e+00> : vector<64x16xf32>
    %139 = tpu.matmul %33, %138, %cst_64 {dimension_numbers = #tpu.dot_dimension_numbers<[1], [0], [0], [1], [0, 0, 1, 1], [], []>} : vector<64x32xbf16>, vector<32x16xbf16>, vector<64x16xf32> -> vector<64x16xf32>
    %140 = vector.extract_strided_slice %136 {offsets = [63, 0], sizes = [1, 16], strides = [1, 1]} : vector<64x16xf32> to vector<1x16xf32>
    %141 = vector.extract_strided_slice %136 {offsets = [0, 0], sizes = [63, 16], strides = [1, 1]} : vector<64x16xf32> to vector<63x16xf32>
    %142 = tpu.concatenate %140, %141 in 0 : vector<1x16xf32>, vector<63x16xf32> -> vector<64x16xf32>
    %143 = arith.mulf %133, %142 : vector<64x16xf32>
    %cst_65 = arith.constant dense<0.000000e+00> : vector<64xf32>
    %144 = vector.multi_reduction <add>, %143, %cst_65 [1] : vector<64x16xf32> to vector<64xf32>
    %145 = vector.shape_cast %144 : vector<64xf32> to vector<64x1xf32>
    %cst_66 = arith.constant 2.500000e-01 : f32
    %146 = vector.broadcast %cst_66 : f32 to vector<64x1xf32>
    %147 = arith.mulf %145, %146 : vector<64x1xf32>
    %c-1_i32_67 = arith.constant -1 : i32
    %148 = vector.broadcast %c-1_i32_67 : i32 to vector<64x1xi32>
    %149 = arith.addi %6, %148 : vector<64x1xi32>
    %c0_i32_68 = arith.constant 0 : i32
    %150 = vector.broadcast %c0_i32_68 : i32 to vector<64x1xi32>
    %151 = arith.cmpi sge, %149, %150 : vector<64x1xi32>
    %c-1_i32_69 = arith.constant -1 : i32
    %152 = vector.broadcast %c-1_i32_69 : i32 to vector<64x1xi32>
    %153 = arith.addi %6, %152 : vector<64x1xi32>
    %c2_i32_70 = arith.constant 2 : i32
    %154 = vector.broadcast %c2_i32_70 : i32 to vector<64x1xi32>
    %155 = arith.cmpi slt, %153, %154 : vector<64x1xi32>
    %156 = arith.andi %151, %155 : vector<64x1xi1>
    %cst_71 = arith.constant -1.000000e+30 : f32
    %157 = vector.broadcast %cst_71 : f32 to vector<64x1xf32>
    %158 = arith.select %156, %147, %157 : vector<64x1xi1>, vector<64x1xf32>
    %159 = arith.mulf %133, %136 : vector<64x16xf32>
    %cst_72 = arith.constant dense<0.000000e+00> : vector<64xf32>
    %160 = vector.multi_reduction <add>, %159, %cst_72 [1] : vector<64x16xf32> to vector<64xf32>
    %161 = vector.shape_cast %160 : vector<64xf32> to vector<64x1xf32>
    %cst_73 = arith.constant 2.500000e-01 : f32
    %162 = vector.broadcast %cst_73 : f32 to vector<64x1xf32>
    %163 = arith.mulf %161, %162 : vector<64x1xf32>
    %c0_i32_74 = arith.constant 0 : i32
    %164 = vector.broadcast %c0_i32_74 : i32 to vector<64x1xi32>
    %165 = arith.addi %6, %164 : vector<64x1xi32>
    %c0_i32_75 = arith.constant 0 : i32
    %166 = vector.broadcast %c0_i32_75 : i32 to vector<64x1xi32>
    %167 = arith.cmpi sge, %165, %166 : vector<64x1xi32>
    %c0_i32_76 = arith.constant 0 : i32
    %168 = vector.broadcast %c0_i32_76 : i32 to vector<64x1xi32>
    %169 = arith.addi %6, %168 : vector<64x1xi32>
    %c2_i32_77 = arith.constant 2 : i32
    %170 = vector.broadcast %c2_i32_77 : i32 to vector<64x1xi32>
    %171 = arith.cmpi slt, %169, %170 : vector<64x1xi32>
    %172 = arith.andi %167, %171 : vector<64x1xi1>
    %cst_78 = arith.constant -1.000000e+30 : f32
    %173 = vector.broadcast %cst_78 : f32 to vector<64x1xf32>
    %174 = arith.select %172, %163, %173 : vector<64x1xi1>, vector<64x1xf32>
    %175 = vector.extract_strided_slice %136 {offsets = [1, 0], sizes = [63, 16], strides = [1, 1]} : vector<64x16xf32> to vector<63x16xf32>
    %176 = vector.extract_strided_slice %136 {offsets = [0, 0], sizes = [1, 16], strides = [1, 1]} : vector<64x16xf32> to vector<1x16xf32>
    %177 = tpu.concatenate %175, %176 in 0 : vector<63x16xf32>, vector<1x16xf32> -> vector<64x16xf32>
    %178 = arith.mulf %133, %177 : vector<64x16xf32>
    %cst_79 = arith.constant dense<0.000000e+00> : vector<64xf32>
    %179 = vector.multi_reduction <add>, %178, %cst_79 [1] : vector<64x16xf32> to vector<64xf32>
    %180 = vector.shape_cast %179 : vector<64xf32> to vector<64x1xf32>
    %cst_80 = arith.constant 2.500000e-01 : f32
    %181 = vector.broadcast %cst_80 : f32 to vector<64x1xf32>
    %182 = arith.mulf %180, %181 : vector<64x1xf32>
    %c1_i32_81 = arith.constant 1 : i32
    %183 = vector.broadcast %c1_i32_81 : i32 to vector<64x1xi32>
    %184 = arith.addi %6, %183 : vector<64x1xi32>
    %c0_i32_82 = arith.constant 0 : i32
    %185 = vector.broadcast %c0_i32_82 : i32 to vector<64x1xi32>
    %186 = arith.cmpi sge, %184, %185 : vector<64x1xi32>
    %c1_i32_83 = arith.constant 1 : i32
    %187 = vector.broadcast %c1_i32_83 : i32 to vector<64x1xi32>
    %188 = arith.addi %6, %187 : vector<64x1xi32>
    %c2_i32_84 = arith.constant 2 : i32
    %189 = vector.broadcast %c2_i32_84 : i32 to vector<64x1xi32>
    %190 = arith.cmpi slt, %188, %189 : vector<64x1xi32>
    %191 = arith.andi %186, %190 : vector<64x1xi1>
    %cst_85 = arith.constant -1.000000e+30 : f32
    %192 = vector.broadcast %cst_85 : f32 to vector<64x1xf32>
    %193 = arith.select %191, %182, %192 : vector<64x1xi1>, vector<64x1xf32>
    %194 = arith.maximumf %158, %174 : vector<64x1xf32>
    %195 = arith.maximumf %194, %193 : vector<64x1xf32>
    %196 = arith.subf %158, %195 : vector<64x1xf32>
    %197 = math.exp %196 : vector<64x1xf32>
    %198 = arith.subf %174, %195 : vector<64x1xf32>
    %199 = math.exp %198 : vector<64x1xf32>
    %200 = arith.subf %193, %195 : vector<64x1xf32>
    %201 = math.exp %200 : vector<64x1xf32>
    %202 = arith.addf %197, %199 : vector<64x1xf32>
    %203 = arith.addf %202, %201 : vector<64x1xf32>
    %204 = tpu.reciprocal %203 {approx = true} : vector<64x1xf32> -> vector<64x1xf32>
    %205 = arith.mulf %197, %204 : vector<64x1xf32>
    %206 = vector.extract_strided_slice %139 {offsets = [63, 0], sizes = [1, 16], strides = [1, 1]} : vector<64x16xf32> to vector<1x16xf32>
    %207 = vector.extract_strided_slice %139 {offsets = [0, 0], sizes = [63, 16], strides = [1, 1]} : vector<64x16xf32> to vector<63x16xf32>
    %208 = tpu.concatenate %206, %207 in 0 : vector<1x16xf32>, vector<63x16xf32> -> vector<64x16xf32>
    %209 = vector.broadcast %205 : vector<64x1xf32> to vector<64x16xf32>
    %210 = arith.mulf %209, %208 : vector<64x16xf32>
    %211 = arith.mulf %199, %204 : vector<64x1xf32>
    %212 = vector.broadcast %211 : vector<64x1xf32> to vector<64x16xf32>
    %213 = arith.mulf %212, %139 : vector<64x16xf32>
    %214 = arith.addf %210, %213 : vector<64x16xf32>
    %215 = arith.mulf %201, %204 : vector<64x1xf32>
    %216 = vector.extract_strided_slice %139 {offsets = [1, 0], sizes = [63, 16], strides = [1, 1]} : vector<64x16xf32> to vector<63x16xf32>
    %217 = vector.extract_strided_slice %139 {offsets = [0, 0], sizes = [1, 16], strides = [1, 1]} : vector<64x16xf32> to vector<1x16xf32>
    %218 = tpu.concatenate %216, %217 in 0 : vector<63x16xf32>, vector<1x16xf32> -> vector<64x16xf32>
    %219 = vector.broadcast %215 : vector<64x1xf32> to vector<64x16xf32>
    %220 = arith.mulf %219, %218 : vector<64x16xf32>
    %221 = arith.addf %214, %220 : vector<64x16xf32>
    %222 = arith.truncf %221 : vector<64x16xf32> to vector<64x16xbf16>
    %c0_86 = arith.constant 0 : index
    %c1_87 = arith.constant 1 : index
    %c0_88 = arith.constant 0 : index
    %c0_89 = arith.constant 0 : index
    %223 = vector.load %arg7[%c0_86, %c1_87, %c0_88, %c0_89] : memref<2x2x16x32xbf16, #tpu.memory_space<vmem>>, vector<1x1x16x32xbf16>
    %224 = vector.shape_cast %223 : vector<1x1x16x32xbf16> to vector<16x32xbf16>
    %cst_90 = arith.constant dense<0.000000e+00> : vector<64x32xf32>
    %225 = tpu.matmul %222, %224, %cst_90 {dimension_numbers = #tpu.dot_dimension_numbers<[1], [0], [0], [1], [0, 0, 1, 1], [], []>} : vector<64x16xbf16>, vector<16x32xbf16>, vector<64x32xf32> -> vector<64x32xf32>
    %226 = arith.addf %130, %225 : vector<64x32xf32>
    %227 = arith.addf %3, %226 : vector<64x32xf32>
    %c0_91 = arith.constant 0 : index
    %c0_92 = arith.constant 0 : index
    %c0_93 = arith.constant 0 : index
    %228 = vector.load %arg8[%c0_91, %c0_92, %c0_93] : memref<2x1x32xf32, #tpu.memory_space<vmem>>, vector<1x1x32xf32>
    %229 = vector.shape_cast %228 : vector<1x1x32xf32> to vector<1x32xf32>
    %230 = vector.broadcast %229 : vector<1x32xf32> to vector<64x32xf32>
    %231 = arith.addf %227, %230 : vector<64x32xf32>
    %c0_94 = arith.constant 0 : index
    %c0_95 = arith.constant 0 : index
    %c0_96 = arith.constant 0 : index
    %232 = vector.load %arg9[%c0_94, %c0_95, %c0_96] : memref<2x1x32xf32, #tpu.memory_space<vmem>>, vector<1x1x32xf32>
    %233 = vector.shape_cast %232 : vector<1x1x32xf32> to vector<1x32xf32>
    %c0_97 = arith.constant 0 : index
    %c0_98 = arith.constant 0 : index
    %c0_99 = arith.constant 0 : index
    %234 = vector.load %arg10[%c0_97, %c0_98, %c0_99] : memref<2x1x32xf32, #tpu.memory_space<vmem>>, vector<1x1x32xf32>
    %235 = vector.shape_cast %234 : vector<1x1x32xf32> to vector<1x32xf32>
    %cst_100 = arith.constant dense<0.000000e+00> : vector<64xf32>
    %236 = vector.multi_reduction <add>, %231, %cst_100 [1] : vector<64x32xf32> to vector<64xf32>
    %237 = vector.shape_cast %236 : vector<64xf32> to vector<64x1xf32>
    %cst_101 = arith.constant 3.200000e+01 : f32
    %238 = vector.broadcast %cst_101 : f32 to vector<64x1xf32>
    %239 = arith.divf %237, %238 : vector<64x1xf32>
    %240 = vector.broadcast %239 : vector<64x1xf32> to vector<64x32xf32>
    %241 = arith.subf %231, %240 : vector<64x32xf32>
    %242 = arith.mulf %241, %241 : vector<64x32xf32>
    %cst_102 = arith.constant dense<0.000000e+00> : vector<64xf32>
    %243 = vector.multi_reduction <add>, %242, %cst_102 [1] : vector<64x32xf32> to vector<64xf32>
    %244 = vector.shape_cast %243 : vector<64xf32> to vector<64x1xf32>
    %cst_103 = arith.constant 3.200000e+01 : f32
    %245 = vector.broadcast %cst_103 : f32 to vector<64x1xf32>
    %246 = arith.divf %244, %245 : vector<64x1xf32>
    %247 = vector.broadcast %239 : vector<64x1xf32> to vector<64x32xf32>
    %248 = arith.subf %231, %247 : vector<64x32xf32>
    %cst_104 = arith.constant 9.99999974E-6 : f32
    %249 = vector.broadcast %cst_104 : f32 to vector<64x1xf32>
    %250 = arith.addf %246, %249 : vector<64x1xf32>
    %251 = math.rsqrt %250 : vector<64x1xf32>
    %252 = vector.broadcast %251 : vector<64x1xf32> to vector<64x32xf32>
    %253 = arith.mulf %248, %252 : vector<64x32xf32>
    %254 = vector.broadcast %233 : vector<1x32xf32> to vector<64x32xf32>
    %255 = arith.mulf %253, %254 : vector<64x32xf32>
    %256 = vector.broadcast %235 : vector<1x32xf32> to vector<64x32xf32>
    %257 = arith.addf %255, %256 : vector<64x32xf32>
    %258 = arith.truncf %257 : vector<64x32xf32> to vector<64x32xbf16>
    %c0_105 = arith.constant 0 : index
    %c0_106 = arith.constant 0 : index
    %c0_107 = arith.constant 0 : index
    %259 = vector.load %arg11[%c0_105, %c0_106, %c0_107] : memref<2x32x64xbf16, #tpu.memory_space<vmem>>, vector<1x32x64xbf16>
    %260 = vector.shape_cast %259 : vector<1x32x64xbf16> to vector<32x64xbf16>
    %cst_108 = arith.constant dense<0.000000e+00> : vector<64x64xf32>
    %261 = tpu.matmul %258, %260, %cst_108 {dimension_numbers = #tpu.dot_dimension_numbers<[1], [0], [0], [1], [0, 0, 1, 1], [], []>} : vector<64x32xbf16>, vector<32x64xbf16>, vector<64x64xf32> -> vector<64x64xf32>
    %c0_109 = arith.constant 0 : index
    %c0_110 = arith.constant 0 : index
    %c0_111 = arith.constant 0 : index
    %262 = vector.load %arg12[%c0_109, %c0_110, %c0_111] : memref<2x1x64xf32, #tpu.memory_space<vmem>>, vector<1x1x64xf32>
    %263 = vector.shape_cast %262 : vector<1x1x64xf32> to vector<1x64xf32>
    %264 = vector.broadcast %263 : vector<1x64xf32> to vector<64x64xf32>
    %265 = arith.addf %261, %264 : vector<64x64xf32>
    %266 = arith.mulf %265, %265 : vector<64x64xf32>
    %267 = arith.mulf %265, %266 : vector<64x64xf32>
    %cst_112 = arith.constant 4.471500e-02 : f32
    %268 = vector.broadcast %cst_112 : f32 to vector<64x64xf32>
    %269 = arith.mulf %268, %267 : vector<64x64xf32>
    %270 = arith.addf %265, %269 : vector<64x64xf32>
    %cst_113 = arith.constant 0.797884583 : f32
    %271 = vector.broadcast %cst_113 : f32 to vector<64x64xf32>
    %272 = arith.mulf %271, %270 : vector<64x64xf32>
    %273 = math.tanh %272 : vector<64x64xf32>
    %cst_114 = arith.constant 1.000000e+00 : f32
    %274 = vector.broadcast %cst_114 : f32 to vector<64x64xf32>
    %275 = arith.addf %274, %273 : vector<64x64xf32>
    %cst_115 = arith.constant 5.000000e-01 : f32
    %276 = vector.broadcast %cst_115 : f32 to vector<64x64xf32>
    %277 = arith.mulf %276, %275 : vector<64x64xf32>
    %278 = arith.mulf %265, %277 : vector<64x64xf32>
    %279 = arith.truncf %278 : vector<64x64xf32> to vector<64x64xbf16>
    %c0_116 = arith.constant 0 : index
    %c0_117 = arith.constant 0 : index
    %c0_118 = arith.constant 0 : index
    %280 = vector.load %arg13[%c0_116, %c0_117, %c0_118] : memref<2x64x32xbf16, #tpu.memory_space<vmem>>, vector<1x64x32xbf16>
    %281 = vector.shape_cast %280 : vector<1x64x32xbf16> to vector<64x32xbf16>
    %cst_119 = arith.constant dense<0.000000e+00> : vector<64x32xf32>
    %282 = tpu.matmul %279, %281, %cst_119 {dimension_numbers = #tpu.dot_dimension_numbers<[1], [0], [0], [1], [0, 0, 1, 1], [], []>} : vector<64x64xbf16>, vector<64x32xbf16>, vector<64x32xf32> -> vector<64x32xf32>
    %c0_120 = arith.constant 0 : index
    %c0_121 = arith.constant 0 : index
    %c0_122 = arith.constant 0 : index
    %283 = vector.load %arg14[%c0_120, %c0_121, %c0_122] : memref<2x1x32xf32, #tpu.memory_space<vmem>>, vector<1x1x32xf32>
    %284 = vector.shape_cast %283 : vector<1x1x32xf32> to vector<1x32xf32>
    %285 = vector.broadcast %284 : vector<1x32xf32> to vector<64x32xf32>
    %286 = arith.addf %282, %285 : vector<64x32xf32>
    %287 = arith.addf %231, %286 : vector<64x32xf32>
    %c1_123 = arith.constant 1 : index
    %c0_124 = arith.constant 0 : index
    %c0_125 = arith.constant 0 : index
    %288 = vector.load %arg2[%c1_123, %c0_124, %c0_125] : memref<2x1x32xf32, #tpu.memory_space<vmem>>, vector<1x1x32xf32>
    %289 = vector.shape_cast %288 : vector<1x1x32xf32> to vector<1x32xf32>
    %c1_126 = arith.constant 1 : index
    %c0_127 = arith.constant 0 : index
    %c0_128 = arith.constant 0 : index
    %290 = vector.load %arg3[%c1_126, %c0_127, %c0_128] : memref<2x1x32xf32, #tpu.memory_space<vmem>>, vector<1x1x32xf32>
    %291 = vector.shape_cast %290 : vector<1x1x32xf32> to vector<1x32xf32>
    %cst_129 = arith.constant dense<0.000000e+00> : vector<64xf32>
    %292 = vector.multi_reduction <add>, %287, %cst_129 [1] : vector<64x32xf32> to vector<64xf32>
    %293 = vector.shape_cast %292 : vector<64xf32> to vector<64x1xf32>
    %cst_130 = arith.constant 3.200000e+01 : f32
    %294 = vector.broadcast %cst_130 : f32 to vector<64x1xf32>
    %295 = arith.divf %293, %294 : vector<64x1xf32>
    %296 = vector.broadcast %295 : vector<64x1xf32> to vector<64x32xf32>
    %297 = arith.subf %287, %296 : vector<64x32xf32>
    %298 = arith.mulf %297, %297 : vector<64x32xf32>
    %cst_131 = arith.constant dense<0.000000e+00> : vector<64xf32>
    %299 = vector.multi_reduction <add>, %298, %cst_131 [1] : vector<64x32xf32> to vector<64xf32>
    %300 = vector.shape_cast %299 : vector<64xf32> to vector<64x1xf32>
    %cst_132 = arith.constant 3.200000e+01 : f32
    %301 = vector.broadcast %cst_132 : f32 to vector<64x1xf32>
    %302 = arith.divf %300, %301 : vector<64x1xf32>
    %303 = vector.broadcast %295 : vector<64x1xf32> to vector<64x32xf32>
    %304 = arith.subf %287, %303 : vector<64x32xf32>
    %cst_133 = arith.constant 9.99999974E-6 : f32
    %305 = vector.broadcast %cst_133 : f32 to vector<64x1xf32>
    %306 = arith.addf %302, %305 : vector<64x1xf32>
    %307 = math.rsqrt %306 : vector<64x1xf32>
    %308 = vector.broadcast %307 : vector<64x1xf32> to vector<64x32xf32>
    %309 = arith.mulf %304, %308 : vector<64x32xf32>
    %310 = vector.broadcast %289 : vector<1x32xf32> to vector<64x32xf32>
    %311 = arith.mulf %309, %310 : vector<64x32xf32>
    %312 = vector.broadcast %291 : vector<1x32xf32> to vector<64x32xf32>
    %313 = arith.addf %311, %312 : vector<64x32xf32>
    %314 = arith.truncf %313 : vector<64x32xf32> to vector<64x32xbf16>
    %cst_134 = arith.constant 0.000000e+00 : f32
    %315 = vector.broadcast %cst_134 : f32 to vector<64x32xf32>
    %c1_135 = arith.constant 1 : index
    %c0_136 = arith.constant 0 : index
    %c0_137 = arith.constant 0 : index
    %c0_138 = arith.constant 0 : index
    %316 = vector.load %arg4[%c1_135, %c0_136, %c0_137, %c0_138] : memref<2x2x32x16xbf16, #tpu.memory_space<vmem>>, vector<1x1x32x16xbf16>
    %317 = vector.shape_cast %316 : vector<1x1x32x16xbf16> to vector<32x16xbf16>
    %cst_139 = arith.constant dense<0.000000e+00> : vector<64x16xf32>
    %318 = tpu.matmul %314, %317, %cst_139 {dimension_numbers = #tpu.dot_dimension_numbers<[1], [0], [0], [1], [0, 0, 1, 1], [], []>} : vector<64x32xbf16>, vector<32x16xbf16>, vector<64x16xf32> -> vector<64x16xf32>
    %c1_140 = arith.constant 1 : index
    %c0_141 = arith.constant 0 : index
    %c0_142 = arith.constant 0 : index
    %c0_143 = arith.constant 0 : index
    %319 = vector.load %arg5[%c1_140, %c0_141, %c0_142, %c0_143] : memref<2x2x32x16xbf16, #tpu.memory_space<vmem>>, vector<1x1x32x16xbf16>
    %320 = vector.shape_cast %319 : vector<1x1x32x16xbf16> to vector<32x16xbf16>
    %cst_144 = arith.constant dense<0.000000e+00> : vector<64x16xf32>
    %321 = tpu.matmul %314, %320, %cst_144 {dimension_numbers = #tpu.dot_dimension_numbers<[1], [0], [0], [1], [0, 0, 1, 1], [], []>} : vector<64x32xbf16>, vector<32x16xbf16>, vector<64x16xf32> -> vector<64x16xf32>
    %c1_145 = arith.constant 1 : index
    %c0_146 = arith.constant 0 : index
    %c0_147 = arith.constant 0 : index
    %c0_148 = arith.constant 0 : index
    %322 = vector.load %arg6[%c1_145, %c0_146, %c0_147, %c0_148] : memref<2x2x32x16xbf16, #tpu.memory_space<vmem>>, vector<1x1x32x16xbf16>
    %323 = vector.shape_cast %322 : vector<1x1x32x16xbf16> to vector<32x16xbf16>
    %cst_149 = arith.constant dense<0.000000e+00> : vector<64x16xf32>
    %324 = tpu.matmul %314, %323, %cst_149 {dimension_numbers = #tpu.dot_dimension_numbers<[1], [0], [0], [1], [0, 0, 1, 1], [], []>} : vector<64x32xbf16>, vector<32x16xbf16>, vector<64x16xf32> -> vector<64x16xf32>
    %325 = vector.extract_strided_slice %321 {offsets = [63, 0], sizes = [1, 16], strides = [1, 1]} : vector<64x16xf32> to vector<1x16xf32>
    %326 = vector.extract_strided_slice %321 {offsets = [0, 0], sizes = [63, 16], strides = [1, 1]} : vector<64x16xf32> to vector<63x16xf32>
    %327 = tpu.concatenate %325, %326 in 0 : vector<1x16xf32>, vector<63x16xf32> -> vector<64x16xf32>
    %328 = arith.mulf %318, %327 : vector<64x16xf32>
    %cst_150 = arith.constant dense<0.000000e+00> : vector<64xf32>
    %329 = vector.multi_reduction <add>, %328, %cst_150 [1] : vector<64x16xf32> to vector<64xf32>
    %330 = vector.shape_cast %329 : vector<64xf32> to vector<64x1xf32>
    %cst_151 = arith.constant 2.500000e-01 : f32
    %331 = vector.broadcast %cst_151 : f32 to vector<64x1xf32>
    %332 = arith.mulf %330, %331 : vector<64x1xf32>
    %c-1_i32_152 = arith.constant -1 : i32
    %333 = vector.broadcast %c-1_i32_152 : i32 to vector<64x1xi32>
    %334 = arith.addi %6, %333 : vector<64x1xi32>
    %c0_i32_153 = arith.constant 0 : i32
    %335 = vector.broadcast %c0_i32_153 : i32 to vector<64x1xi32>
    %336 = arith.cmpi sge, %334, %335 : vector<64x1xi32>
    %c-1_i32_154 = arith.constant -1 : i32
    %337 = vector.broadcast %c-1_i32_154 : i32 to vector<64x1xi32>
    %338 = arith.addi %6, %337 : vector<64x1xi32>
    %c2_i32_155 = arith.constant 2 : i32
    %339 = vector.broadcast %c2_i32_155 : i32 to vector<64x1xi32>
    %340 = arith.cmpi slt, %338, %339 : vector<64x1xi32>
    %341 = arith.andi %336, %340 : vector<64x1xi1>
    %cst_156 = arith.constant -1.000000e+30 : f32
    %342 = vector.broadcast %cst_156 : f32 to vector<64x1xf32>
    %343 = arith.select %341, %332, %342 : vector<64x1xi1>, vector<64x1xf32>
    %344 = arith.mulf %318, %321 : vector<64x16xf32>
    %cst_157 = arith.constant dense<0.000000e+00> : vector<64xf32>
    %345 = vector.multi_reduction <add>, %344, %cst_157 [1] : vector<64x16xf32> to vector<64xf32>
    %346 = vector.shape_cast %345 : vector<64xf32> to vector<64x1xf32>
    %cst_158 = arith.constant 2.500000e-01 : f32
    %347 = vector.broadcast %cst_158 : f32 to vector<64x1xf32>
    %348 = arith.mulf %346, %347 : vector<64x1xf32>
    %c0_i32_159 = arith.constant 0 : i32
    %349 = vector.broadcast %c0_i32_159 : i32 to vector<64x1xi32>
    %350 = arith.addi %6, %349 : vector<64x1xi32>
    %c0_i32_160 = arith.constant 0 : i32
    %351 = vector.broadcast %c0_i32_160 : i32 to vector<64x1xi32>
    %352 = arith.cmpi sge, %350, %351 : vector<64x1xi32>
    %c0_i32_161 = arith.constant 0 : i32
    %353 = vector.broadcast %c0_i32_161 : i32 to vector<64x1xi32>
    %354 = arith.addi %6, %353 : vector<64x1xi32>
    %c2_i32_162 = arith.constant 2 : i32
    %355 = vector.broadcast %c2_i32_162 : i32 to vector<64x1xi32>
    %356 = arith.cmpi slt, %354, %355 : vector<64x1xi32>
    %357 = arith.andi %352, %356 : vector<64x1xi1>
    %cst_163 = arith.constant -1.000000e+30 : f32
    %358 = vector.broadcast %cst_163 : f32 to vector<64x1xf32>
    %359 = arith.select %357, %348, %358 : vector<64x1xi1>, vector<64x1xf32>
    %360 = vector.extract_strided_slice %321 {offsets = [1, 0], sizes = [63, 16], strides = [1, 1]} : vector<64x16xf32> to vector<63x16xf32>
    %361 = vector.extract_strided_slice %321 {offsets = [0, 0], sizes = [1, 16], strides = [1, 1]} : vector<64x16xf32> to vector<1x16xf32>
    %362 = tpu.concatenate %360, %361 in 0 : vector<63x16xf32>, vector<1x16xf32> -> vector<64x16xf32>
    %363 = arith.mulf %318, %362 : vector<64x16xf32>
    %cst_164 = arith.constant dense<0.000000e+00> : vector<64xf32>
    %364 = vector.multi_reduction <add>, %363, %cst_164 [1] : vector<64x16xf32> to vector<64xf32>
    %365 = vector.shape_cast %364 : vector<64xf32> to vector<64x1xf32>
    %cst_165 = arith.constant 2.500000e-01 : f32
    %366 = vector.broadcast %cst_165 : f32 to vector<64x1xf32>
    %367 = arith.mulf %365, %366 : vector<64x1xf32>
    %c1_i32_166 = arith.constant 1 : i32
    %368 = vector.broadcast %c1_i32_166 : i32 to vector<64x1xi32>
    %369 = arith.addi %6, %368 : vector<64x1xi32>
    %c0_i32_167 = arith.constant 0 : i32
    %370 = vector.broadcast %c0_i32_167 : i32 to vector<64x1xi32>
    %371 = arith.cmpi sge, %369, %370 : vector<64x1xi32>
    %c1_i32_168 = arith.constant 1 : i32
    %372 = vector.broadcast %c1_i32_168 : i32 to vector<64x1xi32>
    %373 = arith.addi %6, %372 : vector<64x1xi32>
    %c2_i32_169 = arith.constant 2 : i32
    %374 = vector.broadcast %c2_i32_169 : i32 to vector<64x1xi32>
    %375 = arith.cmpi slt, %373, %374 : vector<64x1xi32>
    %376 = arith.andi %371, %375 : vector<64x1xi1>
    %cst_170 = arith.constant -1.000000e+30 : f32
    %377 = vector.broadcast %cst_170 : f32 to vector<64x1xf32>
    %378 = arith.select %376, %367, %377 : vector<64x1xi1>, vector<64x1xf32>
    %379 = arith.maximumf %343, %359 : vector<64x1xf32>
    %380 = arith.maximumf %379, %378 : vector<64x1xf32>
    %381 = arith.subf %343, %380 : vector<64x1xf32>
    %382 = math.exp %381 : vector<64x1xf32>
    %383 = arith.subf %359, %380 : vector<64x1xf32>
    %384 = math.exp %383 : vector<64x1xf32>
    %385 = arith.subf %378, %380 : vector<64x1xf32>
    %386 = math.exp %385 : vector<64x1xf32>
    %387 = arith.addf %382, %384 : vector<64x1xf32>
    %388 = arith.addf %387, %386 : vector<64x1xf32>
    %389 = tpu.reciprocal %388 {approx = true} : vector<64x1xf32> -> vector<64x1xf32>
    %390 = arith.mulf %382, %389 : vector<64x1xf32>
    %391 = vector.extract_strided_slice %324 {offsets = [63, 0], sizes = [1, 16], strides = [1, 1]} : vector<64x16xf32> to vector<1x16xf32>
    %392 = vector.extract_strided_slice %324 {offsets = [0, 0], sizes = [63, 16], strides = [1, 1]} : vector<64x16xf32> to vector<63x16xf32>
    %393 = tpu.concatenate %391, %392 in 0 : vector<1x16xf32>, vector<63x16xf32> -> vector<64x16xf32>
    %394 = vector.broadcast %390 : vector<64x1xf32> to vector<64x16xf32>
    %395 = arith.mulf %394, %393 : vector<64x16xf32>
    %396 = arith.mulf %384, %389 : vector<64x1xf32>
    %397 = vector.broadcast %396 : vector<64x1xf32> to vector<64x16xf32>
    %398 = arith.mulf %397, %324 : vector<64x16xf32>
    %399 = arith.addf %395, %398 : vector<64x16xf32>
    %400 = arith.mulf %386, %389 : vector<64x1xf32>
    %401 = vector.extract_strided_slice %324 {offsets = [1, 0], sizes = [63, 16], strides = [1, 1]} : vector<64x16xf32> to vector<63x16xf32>
    %402 = vector.extract_strided_slice %324 {offsets = [0, 0], sizes = [1, 16], strides = [1, 1]} : vector<64x16xf32> to vector<1x16xf32>
    %403 = tpu.concatenate %401, %402 in 0 : vector<63x16xf32>, vector<1x16xf32> -> vector<64x16xf32>
    %404 = vector.broadcast %400 : vector<64x1xf32> to vector<64x16xf32>
    %405 = arith.mulf %404, %403 : vector<64x16xf32>
    %406 = arith.addf %399, %405 : vector<64x16xf32>
    %407 = arith.truncf %406 : vector<64x16xf32> to vector<64x16xbf16>
    %c1_171 = arith.constant 1 : index
    %c0_172 = arith.constant 0 : index
    %c0_173 = arith.constant 0 : index
    %c0_174 = arith.constant 0 : index
    %408 = vector.load %arg7[%c1_171, %c0_172, %c0_173, %c0_174] : memref<2x2x16x32xbf16, #tpu.memory_space<vmem>>, vector<1x1x16x32xbf16>
    %409 = vector.shape_cast %408 : vector<1x1x16x32xbf16> to vector<16x32xbf16>
    %cst_175 = arith.constant dense<0.000000e+00> : vector<64x32xf32>
    %410 = tpu.matmul %407, %409, %cst_175 {dimension_numbers = #tpu.dot_dimension_numbers<[1], [0], [0], [1], [0, 0, 1, 1], [], []>} : vector<64x16xbf16>, vector<16x32xbf16>, vector<64x32xf32> -> vector<64x32xf32>
    %411 = arith.addf %315, %410 : vector<64x32xf32>
    %c1_176 = arith.constant 1 : index
    %c1_177 = arith.constant 1 : index
    %c0_178 = arith.constant 0 : index
    %c0_179 = arith.constant 0 : index
    %412 = vector.load %arg4[%c1_176, %c1_177, %c0_178, %c0_179] : memref<2x2x32x16xbf16, #tpu.memory_space<vmem>>, vector<1x1x32x16xbf16>
    %413 = vector.shape_cast %412 : vector<1x1x32x16xbf16> to vector<32x16xbf16>
    %cst_180 = arith.constant dense<0.000000e+00> : vector<64x16xf32>
    %414 = tpu.matmul %314, %413, %cst_180 {dimension_numbers = #tpu.dot_dimension_numbers<[1], [0], [0], [1], [0, 0, 1, 1], [], []>} : vector<64x32xbf16>, vector<32x16xbf16>, vector<64x16xf32> -> vector<64x16xf32>
    %c1_181 = arith.constant 1 : index
    %c1_182 = arith.constant 1 : index
    %c0_183 = arith.constant 0 : index
    %c0_184 = arith.constant 0 : index
    %415 = vector.load %arg5[%c1_181, %c1_182, %c0_183, %c0_184] : memref<2x2x32x16xbf16, #tpu.memory_space<vmem>>, vector<1x1x32x16xbf16>
    %416 = vector.shape_cast %415 : vector<1x1x32x16xbf16> to vector<32x16xbf16>
    %cst_185 = arith.constant dense<0.000000e+00> : vector<64x16xf32>
    %417 = tpu.matmul %314, %416, %cst_185 {dimension_numbers = #tpu.dot_dimension_numbers<[1], [0], [0], [1], [0, 0, 1, 1], [], []>} : vector<64x32xbf16>, vector<32x16xbf16>, vector<64x16xf32> -> vector<64x16xf32>
    %c1_186 = arith.constant 1 : index
    %c1_187 = arith.constant 1 : index
    %c0_188 = arith.constant 0 : index
    %c0_189 = arith.constant 0 : index
    %418 = vector.load %arg6[%c1_186, %c1_187, %c0_188, %c0_189] : memref<2x2x32x16xbf16, #tpu.memory_space<vmem>>, vector<1x1x32x16xbf16>
    %419 = vector.shape_cast %418 : vector<1x1x32x16xbf16> to vector<32x16xbf16>
    %cst_190 = arith.constant dense<0.000000e+00> : vector<64x16xf32>
    %420 = tpu.matmul %314, %419, %cst_190 {dimension_numbers = #tpu.dot_dimension_numbers<[1], [0], [0], [1], [0, 0, 1, 1], [], []>} : vector<64x32xbf16>, vector<32x16xbf16>, vector<64x16xf32> -> vector<64x16xf32>
    %421 = vector.extract_strided_slice %417 {offsets = [63, 0], sizes = [1, 16], strides = [1, 1]} : vector<64x16xf32> to vector<1x16xf32>
    %422 = vector.extract_strided_slice %417 {offsets = [0, 0], sizes = [63, 16], strides = [1, 1]} : vector<64x16xf32> to vector<63x16xf32>
    %423 = tpu.concatenate %421, %422 in 0 : vector<1x16xf32>, vector<63x16xf32> -> vector<64x16xf32>
    %424 = arith.mulf %414, %423 : vector<64x16xf32>
    %cst_191 = arith.constant dense<0.000000e+00> : vector<64xf32>
    %425 = vector.multi_reduction <add>, %424, %cst_191 [1] : vector<64x16xf32> to vector<64xf32>
    %426 = vector.shape_cast %425 : vector<64xf32> to vector<64x1xf32>
    %cst_192 = arith.constant 2.500000e-01 : f32
    %427 = vector.broadcast %cst_192 : f32 to vector<64x1xf32>
    %428 = arith.mulf %426, %427 : vector<64x1xf32>
    %c-1_i32_193 = arith.constant -1 : i32
    %429 = vector.broadcast %c-1_i32_193 : i32 to vector<64x1xi32>
    %430 = arith.addi %6, %429 : vector<64x1xi32>
    %c0_i32_194 = arith.constant 0 : i32
    %431 = vector.broadcast %c0_i32_194 : i32 to vector<64x1xi32>
    %432 = arith.cmpi sge, %430, %431 : vector<64x1xi32>
    %c-1_i32_195 = arith.constant -1 : i32
    %433 = vector.broadcast %c-1_i32_195 : i32 to vector<64x1xi32>
    %434 = arith.addi %6, %433 : vector<64x1xi32>
    %c2_i32_196 = arith.constant 2 : i32
    %435 = vector.broadcast %c2_i32_196 : i32 to vector<64x1xi32>
    %436 = arith.cmpi slt, %434, %435 : vector<64x1xi32>
    %437 = arith.andi %432, %436 : vector<64x1xi1>
    %cst_197 = arith.constant -1.000000e+30 : f32
    %438 = vector.broadcast %cst_197 : f32 to vector<64x1xf32>
    %439 = arith.select %437, %428, %438 : vector<64x1xi1>, vector<64x1xf32>
    %440 = arith.mulf %414, %417 : vector<64x16xf32>
    %cst_198 = arith.constant dense<0.000000e+00> : vector<64xf32>
    %441 = vector.multi_reduction <add>, %440, %cst_198 [1] : vector<64x16xf32> to vector<64xf32>
    %442 = vector.shape_cast %441 : vector<64xf32> to vector<64x1xf32>
    %cst_199 = arith.constant 2.500000e-01 : f32
    %443 = vector.broadcast %cst_199 : f32 to vector<64x1xf32>
    %444 = arith.mulf %442, %443 : vector<64x1xf32>
    %c0_i32_200 = arith.constant 0 : i32
    %445 = vector.broadcast %c0_i32_200 : i32 to vector<64x1xi32>
    %446 = arith.addi %6, %445 : vector<64x1xi32>
    %c0_i32_201 = arith.constant 0 : i32
    %447 = vector.broadcast %c0_i32_201 : i32 to vector<64x1xi32>
    %448 = arith.cmpi sge, %446, %447 : vector<64x1xi32>
    %c0_i32_202 = arith.constant 0 : i32
    %449 = vector.broadcast %c0_i32_202 : i32 to vector<64x1xi32>
    %450 = arith.addi %6, %449 : vector<64x1xi32>
    %c2_i32_203 = arith.constant 2 : i32
    %451 = vector.broadcast %c2_i32_203 : i32 to vector<64x1xi32>
    %452 = arith.cmpi slt, %450, %451 : vector<64x1xi32>
    %453 = arith.andi %448, %452 : vector<64x1xi1>
    %cst_204 = arith.constant -1.000000e+30 : f32
    %454 = vector.broadcast %cst_204 : f32 to vector<64x1xf32>
    %455 = arith.select %453, %444, %454 : vector<64x1xi1>, vector<64x1xf32>
    %456 = vector.extract_strided_slice %417 {offsets = [1, 0], sizes = [63, 16], strides = [1, 1]} : vector<64x16xf32> to vector<63x16xf32>
    %457 = vector.extract_strided_slice %417 {offsets = [0, 0], sizes = [1, 16], strides = [1, 1]} : vector<64x16xf32> to vector<1x16xf32>
    %458 = tpu.concatenate %456, %457 in 0 : vector<63x16xf32>, vector<1x16xf32> -> vector<64x16xf32>
    %459 = arith.mulf %414, %458 : vector<64x16xf32>
    %cst_205 = arith.constant dense<0.000000e+00> : vector<64xf32>
    %460 = vector.multi_reduction <add>, %459, %cst_205 [1] : vector<64x16xf32> to vector<64xf32>
    %461 = vector.shape_cast %460 : vector<64xf32> to vector<64x1xf32>
    %cst_206 = arith.constant 2.500000e-01 : f32
    %462 = vector.broadcast %cst_206 : f32 to vector<64x1xf32>
    %463 = arith.mulf %461, %462 : vector<64x1xf32>
    %c1_i32_207 = arith.constant 1 : i32
    %464 = vector.broadcast %c1_i32_207 : i32 to vector<64x1xi32>
    %465 = arith.addi %6, %464 : vector<64x1xi32>
    %c0_i32_208 = arith.constant 0 : i32
    %466 = vector.broadcast %c0_i32_208 : i32 to vector<64x1xi32>
    %467 = arith.cmpi sge, %465, %466 : vector<64x1xi32>
    %c1_i32_209 = arith.constant 1 : i32
    %468 = vector.broadcast %c1_i32_209 : i32 to vector<64x1xi32>
    %469 = arith.addi %6, %468 : vector<64x1xi32>
    %c2_i32_210 = arith.constant 2 : i32
    %470 = vector.broadcast %c2_i32_210 : i32 to vector<64x1xi32>
    %471 = arith.cmpi slt, %469, %470 : vector<64x1xi32>
    %472 = arith.andi %467, %471 : vector<64x1xi1>
    %cst_211 = arith.constant -1.000000e+30 : f32
    %473 = vector.broadcast %cst_211 : f32 to vector<64x1xf32>
    %474 = arith.select %472, %463, %473 : vector<64x1xi1>, vector<64x1xf32>
    %475 = arith.maximumf %439, %455 : vector<64x1xf32>
    %476 = arith.maximumf %475, %474 : vector<64x1xf32>
    %477 = arith.subf %439, %476 : vector<64x1xf32>
    %478 = math.exp %477 : vector<64x1xf32>
    %479 = arith.subf %455, %476 : vector<64x1xf32>
    %480 = math.exp %479 : vector<64x1xf32>
    %481 = arith.subf %474, %476 : vector<64x1xf32>
    %482 = math.exp %481 : vector<64x1xf32>
    %483 = arith.addf %478, %480 : vector<64x1xf32>
    %484 = arith.addf %483, %482 : vector<64x1xf32>
    %485 = tpu.reciprocal %484 {approx = true} : vector<64x1xf32> -> vector<64x1xf32>
    %486 = arith.mulf %478, %485 : vector<64x1xf32>
    %487 = vector.extract_strided_slice %420 {offsets = [63, 0], sizes = [1, 16], strides = [1, 1]} : vector<64x16xf32> to vector<1x16xf32>
    %488 = vector.extract_strided_slice %420 {offsets = [0, 0], sizes = [63, 16], strides = [1, 1]} : vector<64x16xf32> to vector<63x16xf32>
    %489 = tpu.concatenate %487, %488 in 0 : vector<1x16xf32>, vector<63x16xf32> -> vector<64x16xf32>
    %490 = vector.broadcast %486 : vector<64x1xf32> to vector<64x16xf32>
    %491 = arith.mulf %490, %489 : vector<64x16xf32>
    %492 = arith.mulf %480, %485 : vector<64x1xf32>
    %493 = vector.broadcast %492 : vector<64x1xf32> to vector<64x16xf32>
    %494 = arith.mulf %493, %420 : vector<64x16xf32>
    %495 = arith.addf %491, %494 : vector<64x16xf32>
    %496 = arith.mulf %482, %485 : vector<64x1xf32>
    %497 = vector.extract_strided_slice %420 {offsets = [1, 0], sizes = [63, 16], strides = [1, 1]} : vector<64x16xf32> to vector<63x16xf32>
    %498 = vector.extract_strided_slice %420 {offsets = [0, 0], sizes = [1, 16], strides = [1, 1]} : vector<64x16xf32> to vector<1x16xf32>
    %499 = tpu.concatenate %497, %498 in 0 : vector<63x16xf32>, vector<1x16xf32> -> vector<64x16xf32>
    %500 = vector.broadcast %496 : vector<64x1xf32> to vector<64x16xf32>
    %501 = arith.mulf %500, %499 : vector<64x16xf32>
    %502 = arith.addf %495, %501 : vector<64x16xf32>
    %503 = arith.truncf %502 : vector<64x16xf32> to vector<64x16xbf16>
    %c1_212 = arith.constant 1 : index
    %c1_213 = arith.constant 1 : index
    %c0_214 = arith.constant 0 : index
    %c0_215 = arith.constant 0 : index
    %504 = vector.load %arg7[%c1_212, %c1_213, %c0_214, %c0_215] : memref<2x2x16x32xbf16, #tpu.memory_space<vmem>>, vector<1x1x16x32xbf16>
    %505 = vector.shape_cast %504 : vector<1x1x16x32xbf16> to vector<16x32xbf16>
    %cst_216 = arith.constant dense<0.000000e+00> : vector<64x32xf32>
    %506 = tpu.matmul %503, %505, %cst_216 {dimension_numbers = #tpu.dot_dimension_numbers<[1], [0], [0], [1], [0, 0, 1, 1], [], []>} : vector<64x16xbf16>, vector<16x32xbf16>, vector<64x32xf32> -> vector<64x32xf32>
    %507 = arith.addf %411, %506 : vector<64x32xf32>
    %508 = arith.addf %287, %507 : vector<64x32xf32>
    %c1_217 = arith.constant 1 : index
    %c0_218 = arith.constant 0 : index
    %c0_219 = arith.constant 0 : index
    %509 = vector.load %arg8[%c1_217, %c0_218, %c0_219] : memref<2x1x32xf32, #tpu.memory_space<vmem>>, vector<1x1x32xf32>
    %510 = vector.shape_cast %509 : vector<1x1x32xf32> to vector<1x32xf32>
    %511 = vector.broadcast %510 : vector<1x32xf32> to vector<64x32xf32>
    %512 = arith.addf %508, %511 : vector<64x32xf32>
    %c1_220 = arith.constant 1 : index
    %c0_221 = arith.constant 0 : index
    %c0_222 = arith.constant 0 : index
    %513 = vector.load %arg9[%c1_220, %c0_221, %c0_222] : memref<2x1x32xf32, #tpu.memory_space<vmem>>, vector<1x1x32xf32>
    %514 = vector.shape_cast %513 : vector<1x1x32xf32> to vector<1x32xf32>
    %c1_223 = arith.constant 1 : index
    %c0_224 = arith.constant 0 : index
    %c0_225 = arith.constant 0 : index
    %515 = vector.load %arg10[%c1_223, %c0_224, %c0_225] : memref<2x1x32xf32, #tpu.memory_space<vmem>>, vector<1x1x32xf32>
    %516 = vector.shape_cast %515 : vector<1x1x32xf32> to vector<1x32xf32>
    %cst_226 = arith.constant dense<0.000000e+00> : vector<64xf32>
    %517 = vector.multi_reduction <add>, %512, %cst_226 [1] : vector<64x32xf32> to vector<64xf32>
    %518 = vector.shape_cast %517 : vector<64xf32> to vector<64x1xf32>
    %cst_227 = arith.constant 3.200000e+01 : f32
    %519 = vector.broadcast %cst_227 : f32 to vector<64x1xf32>
    %520 = arith.divf %518, %519 : vector<64x1xf32>
    %521 = vector.broadcast %520 : vector<64x1xf32> to vector<64x32xf32>
    %522 = arith.subf %512, %521 : vector<64x32xf32>
    %523 = arith.mulf %522, %522 : vector<64x32xf32>
    %cst_228 = arith.constant dense<0.000000e+00> : vector<64xf32>
    %524 = vector.multi_reduction <add>, %523, %cst_228 [1] : vector<64x32xf32> to vector<64xf32>
    %525 = vector.shape_cast %524 : vector<64xf32> to vector<64x1xf32>
    %cst_229 = arith.constant 3.200000e+01 : f32
    %526 = vector.broadcast %cst_229 : f32 to vector<64x1xf32>
    %527 = arith.divf %525, %526 : vector<64x1xf32>
    %528 = vector.broadcast %520 : vector<64x1xf32> to vector<64x32xf32>
    %529 = arith.subf %512, %528 : vector<64x32xf32>
    %cst_230 = arith.constant 9.99999974E-6 : f32
    %530 = vector.broadcast %cst_230 : f32 to vector<64x1xf32>
    %531 = arith.addf %527, %530 : vector<64x1xf32>
    %532 = math.rsqrt %531 : vector<64x1xf32>
    %533 = vector.broadcast %532 : vector<64x1xf32> to vector<64x32xf32>
    %534 = arith.mulf %529, %533 : vector<64x32xf32>
    %535 = vector.broadcast %514 : vector<1x32xf32> to vector<64x32xf32>
    %536 = arith.mulf %534, %535 : vector<64x32xf32>
    %537 = vector.broadcast %516 : vector<1x32xf32> to vector<64x32xf32>
    %538 = arith.addf %536, %537 : vector<64x32xf32>
    %539 = arith.truncf %538 : vector<64x32xf32> to vector<64x32xbf16>
    %c1_231 = arith.constant 1 : index
    %c0_232 = arith.constant 0 : index
    %c0_233 = arith.constant 0 : index
    %540 = vector.load %arg11[%c1_231, %c0_232, %c0_233] : memref<2x32x64xbf16, #tpu.memory_space<vmem>>, vector<1x32x64xbf16>
    %541 = vector.shape_cast %540 : vector<1x32x64xbf16> to vector<32x64xbf16>
    %cst_234 = arith.constant dense<0.000000e+00> : vector<64x64xf32>
    %542 = tpu.matmul %539, %541, %cst_234 {dimension_numbers = #tpu.dot_dimension_numbers<[1], [0], [0], [1], [0, 0, 1, 1], [], []>} : vector<64x32xbf16>, vector<32x64xbf16>, vector<64x64xf32> -> vector<64x64xf32>
    %c1_235 = arith.constant 1 : index
    %c0_236 = arith.constant 0 : index
    %c0_237 = arith.constant 0 : index
    %543 = vector.load %arg12[%c1_235, %c0_236, %c0_237] : memref<2x1x64xf32, #tpu.memory_space<vmem>>, vector<1x1x64xf32>
    %544 = vector.shape_cast %543 : vector<1x1x64xf32> to vector<1x64xf32>
    %545 = vector.broadcast %544 : vector<1x64xf32> to vector<64x64xf32>
    %546 = arith.addf %542, %545 : vector<64x64xf32>
    %547 = arith.mulf %546, %546 : vector<64x64xf32>
    %548 = arith.mulf %546, %547 : vector<64x64xf32>
    %cst_238 = arith.constant 4.471500e-02 : f32
    %549 = vector.broadcast %cst_238 : f32 to vector<64x64xf32>
    %550 = arith.mulf %549, %548 : vector<64x64xf32>
    %551 = arith.addf %546, %550 : vector<64x64xf32>
    %cst_239 = arith.constant 0.797884583 : f32
    %552 = vector.broadcast %cst_239 : f32 to vector<64x64xf32>
    %553 = arith.mulf %552, %551 : vector<64x64xf32>
    %554 = math.tanh %553 : vector<64x64xf32>
    %cst_240 = arith.constant 1.000000e+00 : f32
    %555 = vector.broadcast %cst_240 : f32 to vector<64x64xf32>
    %556 = arith.addf %555, %554 : vector<64x64xf32>
    %cst_241 = arith.constant 5.000000e-01 : f32
    %557 = vector.broadcast %cst_241 : f32 to vector<64x64xf32>
    %558 = arith.mulf %557, %556 : vector<64x64xf32>
    %559 = arith.mulf %546, %558 : vector<64x64xf32>
    %560 = arith.truncf %559 : vector<64x64xf32> to vector<64x64xbf16>
    %c1_242 = arith.constant 1 : index
    %c0_243 = arith.constant 0 : index
    %c0_244 = arith.constant 0 : index
    %561 = vector.load %arg13[%c1_242, %c0_243, %c0_244] : memref<2x64x32xbf16, #tpu.memory_space<vmem>>, vector<1x64x32xbf16>
    %562 = vector.shape_cast %561 : vector<1x64x32xbf16> to vector<64x32xbf16>
    %cst_245 = arith.constant dense<0.000000e+00> : vector<64x32xf32>
    %563 = tpu.matmul %560, %562, %cst_245 {dimension_numbers = #tpu.dot_dimension_numbers<[1], [0], [0], [1], [0, 0, 1, 1], [], []>} : vector<64x64xbf16>, vector<64x32xbf16>, vector<64x32xf32> -> vector<64x32xf32>
    %c1_246 = arith.constant 1 : index
    %c0_247 = arith.constant 0 : index
    %c0_248 = arith.constant 0 : index
    %564 = vector.load %arg14[%c1_246, %c0_247, %c0_248] : memref<2x1x32xf32, #tpu.memory_space<vmem>>, vector<1x1x32xf32>
    %565 = vector.shape_cast %564 : vector<1x1x32xf32> to vector<1x32xf32>
    %566 = vector.broadcast %565 : vector<1x32xf32> to vector<64x32xf32>
    %567 = arith.addf %563, %566 : vector<64x32xf32>
    %568 = arith.addf %512, %567 : vector<64x32xf32>
    %569 = vector.shape_cast %568 : vector<64x32xf32> to vector<4x16x32xf32>
    %cst_249 = arith.constant dense<0xFF800000> : vector<4x32xf32>
    %570 = vector.multi_reduction <maximumf>, %569, %cst_249 [1] : vector<4x16x32xf32> to vector<4x32xf32>
    %571 = vector.extract_strided_slice %570 {offsets = [0, 0], sizes = [1, 32], strides = [1, 1]} : vector<4x32xf32> to vector<1x32xf32>
    %572 = vector.extract_strided_slice %570 {offsets = [1, 0], sizes = [1, 32], strides = [1, 1]} : vector<4x32xf32> to vector<1x32xf32>
    %573 = vector.extract_strided_slice %570 {offsets = [2, 0], sizes = [1, 32], strides = [1, 1]} : vector<4x32xf32> to vector<1x32xf32>
    %574 = vector.extract_strided_slice %570 {offsets = [3, 0], sizes = [1, 32], strides = [1, 1]} : vector<4x32xf32> to vector<1x32xf32>
    %575 = tpu.concatenate %571, %572, %573, %574 in 1 : vector<1x32xf32>, vector<1x32xf32>, vector<1x32xf32>, vector<1x32xf32> -> vector<1x128xf32>
    %c0_250 = arith.constant 0 : index
    %c0_251 = arith.constant 0 : index
    %576 = vector.load %arg15[%c0_250, %c0_251] : memref<1x128xf32, #tpu.memory_space<vmem>>, vector<1x128xf32>
    tpu.vector_store %arg15[%c0_250, %c0_251], %575 {strides = array<i32>} : memref<1x128xf32, #tpu.memory_space<vmem>>, vector<1x128xf32>,
    return
  }
  func.func @transform_0(%arg0: i32) -> (i32, i32) {
    %c0_i32 = arith.constant 0 : i32
    %c0_i32_0 = arith.constant 0 : i32
    return %arg0, %c0_i32 : i32, i32
  }
  func.func @transform_1(%arg0: i32) -> (i32, i32, i32) {
    %c0_i32 = arith.constant 0 : i32
    %c0_i32_0 = arith.constant 0 : i32
    %c0_i32_1 = arith.constant 0 : i32
    %c0_i32_2 = arith.constant 0 : i32
    return %c0_i32, %c0_i32_0, %c0_i32_1 : i32, i32, i32
  }
  func.func @transform_2(%arg0: i32) -> (i32, i32, i32) {
    %c0_i32 = arith.constant 0 : i32
    %c0_i32_0 = arith.constant 0 : i32
    %c0_i32_1 = arith.constant 0 : i32
    %c0_i32_2 = arith.constant 0 : i32
    return %c0_i32, %c0_i32_0, %c0_i32_1 : i32, i32, i32
  }
  func.func @transform_3(%arg0: i32) -> (i32, i32, i32, i32) {
    %c0_i32 = arith.constant 0 : i32
    %c0_i32_0 = arith.constant 0 : i32
    %c0_i32_1 = arith.constant 0 : i32
    %c0_i32_2 = arith.constant 0 : i32
    %c0_i32_3 = arith.constant 0 : i32
    return %c0_i32, %c0_i32_0, %c0_i32_1, %c0_i32_2 : i32, i32, i32, i32
  }
  func.func @transform_4(%arg0: i32) -> (i32, i32, i32, i32) {
    %c0_i32 = arith.constant 0 : i32
    %c0_i32_0 = arith.constant 0 : i32
    %c0_i32_1 = arith.constant 0 : i32
    %c0_i32_2 = arith.constant 0 : i32
    %c0_i32_3 = arith.constant 0 : i32
    return %c0_i32, %c0_i32_0, %c0_i32_1, %c0_i32_2 : i32, i32, i32, i32
  }
  func.func @transform_5(%arg0: i32) -> (i32, i32, i32, i32) {
    %c0_i32 = arith.constant 0 : i32
    %c0_i32_0 = arith.constant 0 : i32
    %c0_i32_1 = arith.constant 0 : i32
    %c0_i32_2 = arith.constant 0 : i32
    %c0_i32_3 = arith.constant 0 : i32
    return %c0_i32, %c0_i32_0, %c0_i32_1, %c0_i32_2 : i32, i32, i32, i32
  }
  func.func @transform_6(%arg0: i32) -> (i32, i32, i32, i32) {
    %c0_i32 = arith.constant 0 : i32
    %c0_i32_0 = arith.constant 0 : i32
    %c0_i32_1 = arith.constant 0 : i32
    %c0_i32_2 = arith.constant 0 : i32
    %c0_i32_3 = arith.constant 0 : i32
    return %c0_i32, %c0_i32_0, %c0_i32_1, %c0_i32_2 : i32, i32, i32, i32
  }
  func.func @transform_7(%arg0: i32) -> (i32, i32, i32) {
    %c0_i32 = arith.constant 0 : i32
    %c0_i32_0 = arith.constant 0 : i32
    %c0_i32_1 = arith.constant 0 : i32
    %c0_i32_2 = arith.constant 0 : i32
    return %c0_i32, %c0_i32_0, %c0_i32_1 : i32, i32, i32
  }
  func.func @transform_8(%arg0: i32) -> (i32, i32, i32) {
    %c0_i32 = arith.constant 0 : i32
    %c0_i32_0 = arith.constant 0 : i32
    %c0_i32_1 = arith.constant 0 : i32
    %c0_i32_2 = arith.constant 0 : i32
    return %c0_i32, %c0_i32_0, %c0_i32_1 : i32, i32, i32
  }
  func.func @transform_9(%arg0: i32) -> (i32, i32, i32) {
    %c0_i32 = arith.constant 0 : i32
    %c0_i32_0 = arith.constant 0 : i32
    %c0_i32_1 = arith.constant 0 : i32
    %c0_i32_2 = arith.constant 0 : i32
    return %c0_i32, %c0_i32_0, %c0_i32_1 : i32, i32, i32
  }
  func.func @transform_10(%arg0: i32) -> (i32, i32, i32) {
    %c0_i32 = arith.constant 0 : i32
    %c0_i32_0 = arith.constant 0 : i32
    %c0_i32_1 = arith.constant 0 : i32
    %c0_i32_2 = arith.constant 0 : i32
    return %c0_i32, %c0_i32_0, %c0_i32_1 : i32, i32, i32
  }
  func.func @transform_11(%arg0: i32) -> (i32, i32, i32) {
    %c0_i32 = arith.constant 0 : i32
    %c0_i32_0 = arith.constant 0 : i32
    %c0_i32_1 = arith.constant 0 : i32
    %c0_i32_2 = arith.constant 0 : i32
    return %c0_i32, %c0_i32_0, %c0_i32_1 : i32, i32, i32
  }
  func.func @transform_12(%arg0: i32) -> (i32, i32, i32) {
    %c0_i32 = arith.constant 0 : i32
    %c0_i32_0 = arith.constant 0 : i32
    %c0_i32_1 = arith.constant 0 : i32
    %c0_i32_2 = arith.constant 0 : i32
    return %c0_i32, %c0_i32_0, %c0_i32_1 : i32, i32, i32
  }
  func.func @transform_13(%arg0: i32) -> (i32, i32, i32) {
    %c0_i32 = arith.constant 0 : i32
    %c0_i32_0 = arith.constant 0 : i32
    %c0_i32_1 = arith.constant 0 : i32
    %c0_i32_2 = arith.constant 0 : i32
    return %c0_i32, %c0_i32_0, %c0_i32_1 : i32, i32, i32
  }
  func.func @transform_14(%arg0: i32) -> (i32, i32) {
    %c0_i32 = arith.constant 0 : i32
    %c0_i32_0 = arith.constant 0 : i32
    return %arg0, %c0_i32 : i32, i32
  }
}

module attributes {stable_mosaic.version = 11 : i64} {
  func.func @transformer_kernel(%arg0: i32, %arg1: memref<4x32xbf16, #tpu.memory_space<vmem>>, %arg2: memref<2x1x32xf32, #tpu.memory_space<vmem>>, %arg3: memref<2x1x32xf32, #tpu.memory_space<vmem>>, %arg4: memref<2x2x32x16xbf16, #tpu.memory_space<vmem>>, %arg5: memref<2x2x32x16xbf16, #tpu.memory_space<vmem>>, %arg6: memref<2x2x32x16xbf16, #tpu.memory_space<vmem>>, %arg7: memref<2x2x16x32xbf16, #tpu.memory_space<vmem>>, %arg8: memref<2x1x32xf32, #tpu.memory_space<vmem>>, %arg9: memref<2x1x32xf32, #tpu.memory_space<vmem>>, %arg10: memref<2x1x32xf32, #tpu.memory_space<vmem>>, %arg11: memref<2x32x64xbf16, #tpu.memory_space<vmem>>, %arg12: memref<2x1x64xf32, #tpu.memory_space<vmem>>, %arg13: memref<2x64x32xbf16, #tpu.memory_space<vmem>>, %arg14: memref<2x1x32xf32, #tpu.memory_space<vmem>>, %arg15: memref<1x128xf32, #tpu.memory_space<vmem>>) attributes {dimension_semantics = [#tpu.dimension_semantics<parallel>], iteration_bounds = array<i64: 1>, scalar_prefetch = 0 : i64, scratch_operands = 0 : i64, tpu.core_type = #tpu.core_type<tc>, window_params = [{transform_indices = @transform_0, window_bounds = array<i64: 4, 32>}, {pipeline_mode = #tpu.pipeline_mode<synchronous>, transform_indices = @transform_1, window_bounds = array<i64: 2, 1, 32>}, {pipeline_mode = #tpu.pipeline_mode<synchronous>, transform_indices = @transform_2, window_bounds = array<i64: 2, 1, 32>}, {pipeline_mode = #tpu.pipeline_mode<synchronous>, transform_indices = @transform_3, window_bounds = array<i64: 2, 2, 32, 16>}, {pipeline_mode = #tpu.pipeline_mode<synchronous>, transform_indices = @transform_4, window_bounds = array<i64: 2, 2, 32, 16>}, {pipeline_mode = #tpu.pipeline_mode<synchronous>, transform_indices = @transform_5, window_bounds = array<i64: 2, 2, 32, 16>}, {pipeline_mode = #tpu.pipeline_mode<synchronous>, transform_indices = @transform_6, window_bounds = array<i64: 2, 2, 16, 32>}, {pipeline_mode = #tpu.pipeline_mode<synchronous>, transform_indices = @transform_7, window_bounds = array<i64: 2, 1, 32>}, {pipeline_mode = #tpu.pipeline_mode<synchronous>, transform_indices = @transform_8, window_bounds = array<i64: 2, 1, 32>}, {pipeline_mode = #tpu.pipeline_mode<synchronous>, transform_indices = @transform_9, window_bounds = array<i64: 2, 1, 32>}, {pipeline_mode = #tpu.pipeline_mode<synchronous>, transform_indices = @transform_10, window_bounds = array<i64: 2, 32, 64>}, {pipeline_mode = #tpu.pipeline_mode<synchronous>, transform_indices = @transform_11, window_bounds = array<i64: 2, 1, 64>}, {pipeline_mode = #tpu.pipeline_mode<synchronous>, transform_indices = @transform_12, window_bounds = array<i64: 2, 64, 32>}, {pipeline_mode = #tpu.pipeline_mode<synchronous>, transform_indices = @transform_13, window_bounds = array<i64: 2, 1, 32>}, {transform_indices = @transform_14, window_bounds = array<i64: 1, 128>}]} {
    %c0 = arith.constant 0 : index
    %c0_0 = arith.constant 0 : index
    %0 = vector.load %arg1[%c0, %c0_0] : memref<4x32xbf16, #tpu.memory_space<vmem>>, vector<4x32xbf16>
    %1 = arith.extf %0 : vector<4x32xbf16> to vector<4x32xf32>
    %cst = arith.constant 0.000000e+00 : f32
    %2 = vector.broadcast %cst : f32 to vector<4x32xf32>
    %3 = arith.maximumf %1, %2 : vector<4x32xf32>
    %4 = tpu.iota {dimensions = array<i32: 0>} : vector<4x1xi32>
    %c1_i32 = arith.constant 1 : i32
    %5 = vector.broadcast %c1_i32 : i32 to vector<4x1xi32>
    %6 = arith.andi %4, %5 : vector<4x1xi32>
    %c0_1 = arith.constant 0 : index
    %c0_2 = arith.constant 0 : index
    %c0_3 = arith.constant 0 : index
    %7 = vector.load %arg2[%c0_1, %c0_2, %c0_3] : memref<2x1x32xf32, #tpu.memory_space<vmem>>, vector<1x1x32xf32>
    %8 = vector.shape_cast %7 : vector<1x1x32xf32> to vector<1x32xf32>
    %c0_4 = arith.constant 0 : index
    %c0_5 = arith.constant 0 : index
    %c0_6 = arith.constant 0 : index
    %9 = vector.load %arg3[%c0_4, %c0_5, %c0_6] : memref<2x1x32xf32, #tpu.memory_space<vmem>>, vector<1x1x32xf32>
    %10 = vector.shape_cast %9 : vector<1x1x32xf32> to vector<1x32xf32>
    %cst_7 = arith.constant dense<0.000000e+00> : vector<4xf32>
    %11 = vector.multi_reduction <add>, %3, %cst_7 [1] : vector<4x32xf32> to vector<4xf32>
    %12 = vector.shape_cast %11 : vector<4xf32> to vector<4x1xf32>
    %cst_8 = arith.constant 3.200000e+01 : f32
    %13 = vector.broadcast %cst_8 : f32 to vector<4x1xf32>
    %14 = arith.divf %12, %13 : vector<4x1xf32>
    %15 = vector.broadcast %14 : vector<4x1xf32> to vector<4x32xf32>
    %16 = arith.subf %3, %15 : vector<4x32xf32>
    %17 = arith.mulf %16, %16 : vector<4x32xf32>
    %cst_9 = arith.constant dense<0.000000e+00> : vector<4xf32>
    %18 = vector.multi_reduction <add>, %17, %cst_9 [1] : vector<4x32xf32> to vector<4xf32>
    %19 = vector.shape_cast %18 : vector<4xf32> to vector<4x1xf32>
    %cst_10 = arith.constant 3.200000e+01 : f32
    %20 = vector.broadcast %cst_10 : f32 to vector<4x1xf32>
    %21 = arith.divf %19, %20 : vector<4x1xf32>
    %22 = vector.broadcast %14 : vector<4x1xf32> to vector<4x32xf32>
    %23 = arith.subf %3, %22 : vector<4x32xf32>
    %cst_11 = arith.constant 9.99999974E-6 : f32
    %24 = vector.broadcast %cst_11 : f32 to vector<4x1xf32>
    %25 = arith.addf %21, %24 : vector<4x1xf32>
    %26 = math.rsqrt %25 : vector<4x1xf32>
    %27 = vector.broadcast %26 : vector<4x1xf32> to vector<4x32xf32>
    %28 = arith.mulf %23, %27 : vector<4x32xf32>
    %29 = vector.broadcast %8 : vector<1x32xf32> to vector<4x32xf32>
    %30 = arith.mulf %28, %29 : vector<4x32xf32>
    %31 = vector.broadcast %10 : vector<1x32xf32> to vector<4x32xf32>
    %32 = arith.addf %30, %31 : vector<4x32xf32>
    %33 = arith.truncf %32 : vector<4x32xf32> to vector<4x32xbf16>
    %cst_12 = arith.constant 0.000000e+00 : f32
    %34 = vector.broadcast %cst_12 : f32 to vector<4x32xf32>
    %c0_13 = arith.constant 0 : index
    %c0_14 = arith.constant 0 : index
    %c0_15 = arith.constant 0 : index
    %c0_16 = arith.constant 0 : index
    %35 = vector.load %arg4[%c0_13, %c0_14, %c0_15, %c0_16] : memref<2x2x32x16xbf16, #tpu.memory_space<vmem>>, vector<1x1x32x16xbf16>
    %36 = vector.shape_cast %35 : vector<1x1x32x16xbf16> to vector<32x16xbf16>
    %cst_17 = arith.constant dense<0.000000e+00> : vector<4x16xf32>
    %37 = tpu.matmul %33, %36, %cst_17 {dimension_numbers = #tpu.dot_dimension_numbers<[1], [0], [0], [1], [0, 0, 1, 1], [], []>} : vector<4x32xbf16>, vector<32x16xbf16>, vector<4x16xf32> -> vector<4x16xf32>
    %c0_18 = arith.constant 0 : index
    %c0_19 = arith.constant 0 : index
    %c0_20 = arith.constant 0 : index
    %c0_21 = arith.constant 0 : index
    %38 = vector.load %arg5[%c0_18, %c0_19, %c0_20, %c0_21] : memref<2x2x32x16xbf16, #tpu.memory_space<vmem>>, vector<1x1x32x16xbf16>
    %39 = vector.shape_cast %38 : vector<1x1x32x16xbf16> to vector<32x16xbf16>
    %cst_22 = arith.constant dense<0.000000e+00> : vector<4x16xf32>
    %40 = tpu.matmul %33, %39, %cst_22 {dimension_numbers = #tpu.dot_dimension_numbers<[1], [0], [0], [1], [0, 0, 1, 1], [], []>} : vector<4x32xbf16>, vector<32x16xbf16>, vector<4x16xf32> -> vector<4x16xf32>
    %c0_23 = arith.constant 0 : index
    %c0_24 = arith.constant 0 : index
    %c0_25 = arith.constant 0 : index
    %c0_26 = arith.constant 0 : index
    %41 = vector.load %arg6[%c0_23, %c0_24, %c0_25, %c0_26] : memref<2x2x32x16xbf16, #tpu.memory_space<vmem>>, vector<1x1x32x16xbf16>
    %42 = vector.shape_cast %41 : vector<1x1x32x16xbf16> to vector<32x16xbf16>
    %cst_27 = arith.constant dense<0.000000e+00> : vector<4x16xf32>
    %43 = tpu.matmul %33, %42, %cst_27 {dimension_numbers = #tpu.dot_dimension_numbers<[1], [0], [0], [1], [0, 0, 1, 1], [], []>} : vector<4x32xbf16>, vector<32x16xbf16>, vector<4x16xf32> -> vector<4x16xf32>
    %44 = vector.extract_strided_slice %40 {offsets = [3, 0], sizes = [1, 16], strides = [1, 1]} : vector<4x16xf32> to vector<1x16xf32>
    %45 = vector.extract_strided_slice %40 {offsets = [0, 0], sizes = [3, 16], strides = [1, 1]} : vector<4x16xf32> to vector<3x16xf32>
    %46 = tpu.concatenate %44, %45 in 0 : vector<1x16xf32>, vector<3x16xf32> -> vector<4x16xf32>
    %47 = arith.mulf %37, %46 : vector<4x16xf32>
    %cst_28 = arith.constant dense<0.000000e+00> : vector<4xf32>
    %48 = vector.multi_reduction <add>, %47, %cst_28 [1] : vector<4x16xf32> to vector<4xf32>
    %49 = vector.shape_cast %48 : vector<4xf32> to vector<4x1xf32>
    %cst_29 = arith.constant 2.500000e-01 : f32
    %50 = vector.broadcast %cst_29 : f32 to vector<4x1xf32>
    %51 = arith.mulf %49, %50 : vector<4x1xf32>
    %c-1_i32 = arith.constant -1 : i32
    %52 = vector.broadcast %c-1_i32 : i32 to vector<4x1xi32>
    %53 = arith.addi %6, %52 : vector<4x1xi32>
    %c0_i32 = arith.constant 0 : i32
    %54 = vector.broadcast %c0_i32 : i32 to vector<4x1xi32>
    %55 = arith.cmpi sge, %53, %54 : vector<4x1xi32>
    %c-1_i32_30 = arith.constant -1 : i32
    %56 = vector.broadcast %c-1_i32_30 : i32 to vector<4x1xi32>
    %57 = arith.addi %6, %56 : vector<4x1xi32>
    %c2_i32 = arith.constant 2 : i32
    %58 = vector.broadcast %c2_i32 : i32 to vector<4x1xi32>
    %59 = arith.cmpi slt, %57, %58 : vector<4x1xi32>
    %60 = arith.andi %55, %59 : vector<4x1xi1>
    %cst_31 = arith.constant -1.000000e+30 : f32
    %61 = vector.broadcast %cst_31 : f32 to vector<4x1xf32>
    %62 = arith.select %60, %51, %61 : vector<4x1xi1>, vector<4x1xf32>
    %63 = arith.mulf %37, %40 : vector<4x16xf32>
    %cst_32 = arith.constant dense<0.000000e+00> : vector<4xf32>
    %64 = vector.multi_reduction <add>, %63, %cst_32 [1] : vector<4x16xf32> to vector<4xf32>
    %65 = vector.shape_cast %64 : vector<4xf32> to vector<4x1xf32>
    %cst_33 = arith.constant 2.500000e-01 : f32
    %66 = vector.broadcast %cst_33 : f32 to vector<4x1xf32>
    %67 = arith.mulf %65, %66 : vector<4x1xf32>
    %c0_i32_34 = arith.constant 0 : i32
    %68 = vector.broadcast %c0_i32_34 : i32 to vector<4x1xi32>
    %69 = arith.addi %6, %68 : vector<4x1xi32>
    %c0_i32_35 = arith.constant 0 : i32
    %70 = vector.broadcast %c0_i32_35 : i32 to vector<4x1xi32>
    %71 = arith.cmpi sge, %69, %70 : vector<4x1xi32>
    %c0_i32_36 = arith.constant 0 : i32
    %72 = vector.broadcast %c0_i32_36 : i32 to vector<4x1xi32>
    %73 = arith.addi %6, %72 : vector<4x1xi32>
    %c2_i32_37 = arith.constant 2 : i32
    %74 = vector.broadcast %c2_i32_37 : i32 to vector<4x1xi32>
    %75 = arith.cmpi slt, %73, %74 : vector<4x1xi32>
    %76 = arith.andi %71, %75 : vector<4x1xi1>
    %cst_38 = arith.constant -1.000000e+30 : f32
    %77 = vector.broadcast %cst_38 : f32 to vector<4x1xf32>
    %78 = arith.select %76, %67, %77 : vector<4x1xi1>, vector<4x1xf32>
    %79 = vector.extract_strided_slice %40 {offsets = [1, 0], sizes = [3, 16], strides = [1, 1]} : vector<4x16xf32> to vector<3x16xf32>
    %80 = vector.extract_strided_slice %40 {offsets = [0, 0], sizes = [1, 16], strides = [1, 1]} : vector<4x16xf32> to vector<1x16xf32>
    %81 = tpu.concatenate %79, %80 in 0 : vector<3x16xf32>, vector<1x16xf32> -> vector<4x16xf32>
    %82 = arith.mulf %37, %81 : vector<4x16xf32>
    %cst_39 = arith.constant dense<0.000000e+00> : vector<4xf32>
    %83 = vector.multi_reduction <add>, %82, %cst_39 [1] : vector<4x16xf32> to vector<4xf32>
    %84 = vector.shape_cast %83 : vector<4xf32> to vector<4x1xf32>
    %cst_40 = arith.constant 2.500000e-01 : f32
    %85 = vector.broadcast %cst_40 : f32 to vector<4x1xf32>
    %86 = arith.mulf %84, %85 : vector<4x1xf32>
    %c1_i32_41 = arith.constant 1 : i32
    %87 = vector.broadcast %c1_i32_41 : i32 to vector<4x1xi32>
    %88 = arith.addi %6, %87 : vector<4x1xi32>
    %c0_i32_42 = arith.constant 0 : i32
    %89 = vector.broadcast %c0_i32_42 : i32 to vector<4x1xi32>
    %90 = arith.cmpi sge, %88, %89 : vector<4x1xi32>
    %c1_i32_43 = arith.constant 1 : i32
    %91 = vector.broadcast %c1_i32_43 : i32 to vector<4x1xi32>
    %92 = arith.addi %6, %91 : vector<4x1xi32>
    %c2_i32_44 = arith.constant 2 : i32
    %93 = vector.broadcast %c2_i32_44 : i32 to vector<4x1xi32>
    %94 = arith.cmpi slt, %92, %93 : vector<4x1xi32>
    %95 = arith.andi %90, %94 : vector<4x1xi1>
    %cst_45 = arith.constant -1.000000e+30 : f32
    %96 = vector.broadcast %cst_45 : f32 to vector<4x1xf32>
    %97 = arith.select %95, %86, %96 : vector<4x1xi1>, vector<4x1xf32>
    %98 = arith.maximumf %62, %78 : vector<4x1xf32>
    %99 = arith.maximumf %98, %97 : vector<4x1xf32>
    %100 = arith.subf %62, %99 : vector<4x1xf32>
    %101 = math.exp %100 : vector<4x1xf32>
    %102 = arith.subf %78, %99 : vector<4x1xf32>
    %103 = math.exp %102 : vector<4x1xf32>
    %104 = arith.subf %97, %99 : vector<4x1xf32>
    %105 = math.exp %104 : vector<4x1xf32>
    %106 = arith.addf %101, %103 : vector<4x1xf32>
    %107 = arith.addf %106, %105 : vector<4x1xf32>
    %108 = tpu.reciprocal %107 {approx = true} : vector<4x1xf32> -> vector<4x1xf32>
    %109 = arith.mulf %101, %108 : vector<4x1xf32>
    %110 = vector.extract_strided_slice %43 {offsets = [3, 0], sizes = [1, 16], strides = [1, 1]} : vector<4x16xf32> to vector<1x16xf32>
    %111 = vector.extract_strided_slice %43 {offsets = [0, 0], sizes = [3, 16], strides = [1, 1]} : vector<4x16xf32> to vector<3x16xf32>
    %112 = tpu.concatenate %110, %111 in 0 : vector<1x16xf32>, vector<3x16xf32> -> vector<4x16xf32>
    %113 = vector.broadcast %109 : vector<4x1xf32> to vector<4x16xf32>
    %114 = arith.mulf %113, %112 : vector<4x16xf32>
    %115 = arith.mulf %103, %108 : vector<4x1xf32>
    %116 = vector.broadcast %115 : vector<4x1xf32> to vector<4x16xf32>
    %117 = arith.mulf %116, %43 : vector<4x16xf32>
    %118 = arith.addf %114, %117 : vector<4x16xf32>
    %119 = arith.mulf %105, %108 : vector<4x1xf32>
    %120 = vector.extract_strided_slice %43 {offsets = [1, 0], sizes = [3, 16], strides = [1, 1]} : vector<4x16xf32> to vector<3x16xf32>
    %121 = vector.extract_strided_slice %43 {offsets = [0, 0], sizes = [1, 16], strides = [1, 1]} : vector<4x16xf32> to vector<1x16xf32>
    %122 = tpu.concatenate %120, %121 in 0 : vector<3x16xf32>, vector<1x16xf32> -> vector<4x16xf32>
    %123 = vector.broadcast %119 : vector<4x1xf32> to vector<4x16xf32>
    %124 = arith.mulf %123, %122 : vector<4x16xf32>
    %125 = arith.addf %118, %124 : vector<4x16xf32>
    %126 = arith.truncf %125 : vector<4x16xf32> to vector<4x16xbf16>
    %c0_46 = arith.constant 0 : index
    %c0_47 = arith.constant 0 : index
    %c0_48 = arith.constant 0 : index
    %c0_49 = arith.constant 0 : index
    %127 = vector.load %arg7[%c0_46, %c0_47, %c0_48, %c0_49] : memref<2x2x16x32xbf16, #tpu.memory_space<vmem>>, vector<1x1x16x32xbf16>
    %128 = vector.shape_cast %127 : vector<1x1x16x32xbf16> to vector<16x32xbf16>
    %cst_50 = arith.constant dense<0.000000e+00> : vector<4x32xf32>
    %129 = tpu.matmul %126, %128, %cst_50 {dimension_numbers = #tpu.dot_dimension_numbers<[1], [0], [0], [1], [0, 0, 1, 1], [], []>} : vector<4x16xbf16>, vector<16x32xbf16>, vector<4x32xf32> -> vector<4x32xf32>
    %130 = arith.addf %34, %129 : vector<4x32xf32>
    %c0_51 = arith.constant 0 : index
    %c1 = arith.constant 1 : index
    %c0_52 = arith.constant 0 : index
    %c0_53 = arith.constant 0 : index
    %131 = vector.load %arg4[%c0_51, %c1, %c0_52, %c0_53] : memref<2x2x32x16xbf16, #tpu.memory_space<vmem>>, vector<1x1x32x16xbf16>
    %132 = vector.shape_cast %131 : vector<1x1x32x16xbf16> to vector<32x16xbf16>
    %cst_54 = arith.constant dense<0.000000e+00> : vector<4x16xf32>
    %133 = tpu.matmul %33, %132, %cst_54 {dimension_numbers = #tpu.dot_dimension_numbers<[1], [0], [0], [1], [0, 0, 1, 1], [], []>} : vector<4x32xbf16>, vector<32x16xbf16>, vector<4x16xf32> -> vector<4x16xf32>
    %c0_55 = arith.constant 0 : index
    %c1_56 = arith.constant 1 : index
    %c0_57 = arith.constant 0 : index
    %c0_58 = arith.constant 0 : index
    %134 = vector.load %arg5[%c0_55, %c1_56, %c0_57, %c0_58] : memref<2x2x32x16xbf16, #tpu.memory_space<vmem>>, vector<1x1x32x16xbf16>
    %135 = vector.shape_cast %134 : vector<1x1x32x16xbf16> to vector<32x16xbf16>
    %cst_59 = arith.constant dense<0.000000e+00> : vector<4x16xf32>
    %136 = tpu.matmul %33, %135, %cst_59 {dimension_numbers = #tpu.dot_dimension_numbers<[1], [0], [0], [1], [0, 0, 1, 1], [], []>} : vector<4x32xbf16>, vector<32x16xbf16>, vector<4x16xf32> -> vector<4x16xf32>
    %c0_60 = arith.constant 0 : index
    %c1_61 = arith.constant 1 : index
    %c0_62 = arith.constant 0 : index
    %c0_63 = arith.constant 0 : index
    %137 = vector.load %arg6[%c0_60, %c1_61, %c0_62, %c0_63] : memref<2x2x32x16xbf16, #tpu.memory_space<vmem>>, vector<1x1x32x16xbf16>
    %138 = vector.shape_cast %137 : vector<1x1x32x16xbf16> to vector<32x16xbf16>
    %cst_64 = arith.constant dense<0.000000e+00> : vector<4x16xf32>
    %139 = tpu.matmul %33, %138, %cst_64 {dimension_numbers = #tpu.dot_dimension_numbers<[1], [0], [0], [1], [0, 0, 1, 1], [], []>} : vector<4x32xbf16>, vector<32x16xbf16>, vector<4x16xf32> -> vector<4x16xf32>
    %140 = vector.extract_strided_slice %136 {offsets = [3, 0], sizes = [1, 16], strides = [1, 1]} : vector<4x16xf32> to vector<1x16xf32>
    %141 = vector.extract_strided_slice %136 {offsets = [0, 0], sizes = [3, 16], strides = [1, 1]} : vector<4x16xf32> to vector<3x16xf32>
    %142 = tpu.concatenate %140, %141 in 0 : vector<1x16xf32>, vector<3x16xf32> -> vector<4x16xf32>
    %143 = arith.mulf %133, %142 : vector<4x16xf32>
    %cst_65 = arith.constant dense<0.000000e+00> : vector<4xf32>
    %144 = vector.multi_reduction <add>, %143, %cst_65 [1] : vector<4x16xf32> to vector<4xf32>
    %145 = vector.shape_cast %144 : vector<4xf32> to vector<4x1xf32>
    %cst_66 = arith.constant 2.500000e-01 : f32
    %146 = vector.broadcast %cst_66 : f32 to vector<4x1xf32>
    %147 = arith.mulf %145, %146 : vector<4x1xf32>
    %c-1_i32_67 = arith.constant -1 : i32
    %148 = vector.broadcast %c-1_i32_67 : i32 to vector<4x1xi32>
    %149 = arith.addi %6, %148 : vector<4x1xi32>
    %c0_i32_68 = arith.constant 0 : i32
    %150 = vector.broadcast %c0_i32_68 : i32 to vector<4x1xi32>
    %151 = arith.cmpi sge, %149, %150 : vector<4x1xi32>
    %c-1_i32_69 = arith.constant -1 : i32
    %152 = vector.broadcast %c-1_i32_69 : i32 to vector<4x1xi32>
    %153 = arith.addi %6, %152 : vector<4x1xi32>
    %c2_i32_70 = arith.constant 2 : i32
    %154 = vector.broadcast %c2_i32_70 : i32 to vector<4x1xi32>
    %155 = arith.cmpi slt, %153, %154 : vector<4x1xi32>
    %156 = arith.andi %151, %155 : vector<4x1xi1>
    %cst_71 = arith.constant -1.000000e+30 : f32
    %157 = vector.broadcast %cst_71 : f32 to vector<4x1xf32>
    %158 = arith.select %156, %147, %157 : vector<4x1xi1>, vector<4x1xf32>
    %159 = arith.mulf %133, %136 : vector<4x16xf32>
    %cst_72 = arith.constant dense<0.000000e+00> : vector<4xf32>
    %160 = vector.multi_reduction <add>, %159, %cst_72 [1] : vector<4x16xf32> to vector<4xf32>
    %161 = vector.shape_cast %160 : vector<4xf32> to vector<4x1xf32>
    %cst_73 = arith.constant 2.500000e-01 : f32
    %162 = vector.broadcast %cst_73 : f32 to vector<4x1xf32>
    %163 = arith.mulf %161, %162 : vector<4x1xf32>
    %c0_i32_74 = arith.constant 0 : i32
    %164 = vector.broadcast %c0_i32_74 : i32 to vector<4x1xi32>
    %165 = arith.addi %6, %164 : vector<4x1xi32>
    %c0_i32_75 = arith.constant 0 : i32
    %166 = vector.broadcast %c0_i32_75 : i32 to vector<4x1xi32>
    %167 = arith.cmpi sge, %165, %166 : vector<4x1xi32>
    %c0_i32_76 = arith.constant 0 : i32
    %168 = vector.broadcast %c0_i32_76 : i32 to vector<4x1xi32>
    %169 = arith.addi %6, %168 : vector<4x1xi32>
    %c2_i32_77 = arith.constant 2 : i32
    %170 = vector.broadcast %c2_i32_77 : i32 to vector<4x1xi32>
    %171 = arith.cmpi slt, %169, %170 : vector<4x1xi32>
    %172 = arith.andi %167, %171 : vector<4x1xi1>
    %cst_78 = arith.constant -1.000000e+30 : f32
    %173 = vector.broadcast %cst_78 : f32 to vector<4x1xf32>
    %174 = arith.select %172, %163, %173 : vector<4x1xi1>, vector<4x1xf32>
    %175 = vector.extract_strided_slice %136 {offsets = [1, 0], sizes = [3, 16], strides = [1, 1]} : vector<4x16xf32> to vector<3x16xf32>
    %176 = vector.extract_strided_slice %136 {offsets = [0, 0], sizes = [1, 16], strides = [1, 1]} : vector<4x16xf32> to vector<1x16xf32>
    %177 = tpu.concatenate %175, %176 in 0 : vector<3x16xf32>, vector<1x16xf32> -> vector<4x16xf32>
    %178 = arith.mulf %133, %177 : vector<4x16xf32>
    %cst_79 = arith.constant dense<0.000000e+00> : vector<4xf32>
    %179 = vector.multi_reduction <add>, %178, %cst_79 [1] : vector<4x16xf32> to vector<4xf32>
    %180 = vector.shape_cast %179 : vector<4xf32> to vector<4x1xf32>
    %cst_80 = arith.constant 2.500000e-01 : f32
    %181 = vector.broadcast %cst_80 : f32 to vector<4x1xf32>
    %182 = arith.mulf %180, %181 : vector<4x1xf32>
    %c1_i32_81 = arith.constant 1 : i32
    %183 = vector.broadcast %c1_i32_81 : i32 to vector<4x1xi32>
    %184 = arith.addi %6, %183 : vector<4x1xi32>
    %c0_i32_82 = arith.constant 0 : i32
    %185 = vector.broadcast %c0_i32_82 : i32 to vector<4x1xi32>
    %186 = arith.cmpi sge, %184, %185 : vector<4x1xi32>
    %c1_i32_83 = arith.constant 1 : i32
    %187 = vector.broadcast %c1_i32_83 : i32 to vector<4x1xi32>
    %188 = arith.addi %6, %187 : vector<4x1xi32>
    %c2_i32_84 = arith.constant 2 : i32
    %189 = vector.broadcast %c2_i32_84 : i32 to vector<4x1xi32>
    %190 = arith.cmpi slt, %188, %189 : vector<4x1xi32>
    %191 = arith.andi %186, %190 : vector<4x1xi1>
    %cst_85 = arith.constant -1.000000e+30 : f32
    %192 = vector.broadcast %cst_85 : f32 to vector<4x1xf32>
    %193 = arith.select %191, %182, %192 : vector<4x1xi1>, vector<4x1xf32>
    %194 = arith.maximumf %158, %174 : vector<4x1xf32>
    %195 = arith.maximumf %194, %193 : vector<4x1xf32>
    %196 = arith.subf %158, %195 : vector<4x1xf32>
    %197 = math.exp %196 : vector<4x1xf32>
    %198 = arith.subf %174, %195 : vector<4x1xf32>
    %199 = math.exp %198 : vector<4x1xf32>
    %200 = arith.subf %193, %195 : vector<4x1xf32>
    %201 = math.exp %200 : vector<4x1xf32>
    %202 = arith.addf %197, %199 : vector<4x1xf32>
    %203 = arith.addf %202, %201 : vector<4x1xf32>
    %204 = tpu.reciprocal %203 {approx = true} : vector<4x1xf32> -> vector<4x1xf32>
    %205 = arith.mulf %197, %204 : vector<4x1xf32>
    %206 = vector.extract_strided_slice %139 {offsets = [3, 0], sizes = [1, 16], strides = [1, 1]} : vector<4x16xf32> to vector<1x16xf32>
    %207 = vector.extract_strided_slice %139 {offsets = [0, 0], sizes = [3, 16], strides = [1, 1]} : vector<4x16xf32> to vector<3x16xf32>
    %208 = tpu.concatenate %206, %207 in 0 : vector<1x16xf32>, vector<3x16xf32> -> vector<4x16xf32>
    %209 = vector.broadcast %205 : vector<4x1xf32> to vector<4x16xf32>
    %210 = arith.mulf %209, %208 : vector<4x16xf32>
    %211 = arith.mulf %199, %204 : vector<4x1xf32>
    %212 = vector.broadcast %211 : vector<4x1xf32> to vector<4x16xf32>
    %213 = arith.mulf %212, %139 : vector<4x16xf32>
    %214 = arith.addf %210, %213 : vector<4x16xf32>
    %215 = arith.mulf %201, %204 : vector<4x1xf32>
    %216 = vector.extract_strided_slice %139 {offsets = [1, 0], sizes = [3, 16], strides = [1, 1]} : vector<4x16xf32> to vector<3x16xf32>
    %217 = vector.extract_strided_slice %139 {offsets = [0, 0], sizes = [1, 16], strides = [1, 1]} : vector<4x16xf32> to vector<1x16xf32>
    %218 = tpu.concatenate %216, %217 in 0 : vector<3x16xf32>, vector<1x16xf32> -> vector<4x16xf32>
    %219 = vector.broadcast %215 : vector<4x1xf32> to vector<4x16xf32>
    %220 = arith.mulf %219, %218 : vector<4x16xf32>
    %221 = arith.addf %214, %220 : vector<4x16xf32>
    %222 = arith.truncf %221 : vector<4x16xf32> to vector<4x16xbf16>
    %c0_86 = arith.constant 0 : index
    %c1_87 = arith.constant 1 : index
    %c0_88 = arith.constant 0 : index
    %c0_89 = arith.constant 0 : index
    %223 = vector.load %arg7[%c0_86, %c1_87, %c0_88, %c0_89] : memref<2x2x16x32xbf16, #tpu.memory_space<vmem>>, vector<1x1x16x32xbf16>
    %224 = vector.shape_cast %223 : vector<1x1x16x32xbf16> to vector<16x32xbf16>
    %cst_90 = arith.constant dense<0.000000e+00> : vector<4x32xf32>
    %225 = tpu.matmul %222, %224, %cst_90 {dimension_numbers = #tpu.dot_dimension_numbers<[1], [0], [0], [1], [0, 0, 1, 1], [], []>} : vector<4x16xbf16>, vector<16x32xbf16>, vector<4x32xf32> -> vector<4x32xf32>
    %226 = arith.addf %130, %225 : vector<4x32xf32>
    %227 = arith.addf %3, %226 : vector<4x32xf32>
    %c0_91 = arith.constant 0 : index
    %c0_92 = arith.constant 0 : index
    %c0_93 = arith.constant 0 : index
    %228 = vector.load %arg8[%c0_91, %c0_92, %c0_93] : memref<2x1x32xf32, #tpu.memory_space<vmem>>, vector<1x1x32xf32>
    %229 = vector.shape_cast %228 : vector<1x1x32xf32> to vector<1x32xf32>
    %230 = vector.broadcast %229 : vector<1x32xf32> to vector<4x32xf32>
    %231 = arith.addf %227, %230 : vector<4x32xf32>
    %c0_94 = arith.constant 0 : index
    %c0_95 = arith.constant 0 : index
    %c0_96 = arith.constant 0 : index
    %232 = vector.load %arg9[%c0_94, %c0_95, %c0_96] : memref<2x1x32xf32, #tpu.memory_space<vmem>>, vector<1x1x32xf32>
    %233 = vector.shape_cast %232 : vector<1x1x32xf32> to vector<1x32xf32>
    %c0_97 = arith.constant 0 : index
    %c0_98 = arith.constant 0 : index
    %c0_99 = arith.constant 0 : index
    %234 = vector.load %arg10[%c0_97, %c0_98, %c0_99] : memref<2x1x32xf32, #tpu.memory_space<vmem>>, vector<1x1x32xf32>
    %235 = vector.shape_cast %234 : vector<1x1x32xf32> to vector<1x32xf32>
    %cst_100 = arith.constant dense<0.000000e+00> : vector<4xf32>
    %236 = vector.multi_reduction <add>, %231, %cst_100 [1] : vector<4x32xf32> to vector<4xf32>
    %237 = vector.shape_cast %236 : vector<4xf32> to vector<4x1xf32>
    %cst_101 = arith.constant 3.200000e+01 : f32
    %238 = vector.broadcast %cst_101 : f32 to vector<4x1xf32>
    %239 = arith.divf %237, %238 : vector<4x1xf32>
    %240 = vector.broadcast %239 : vector<4x1xf32> to vector<4x32xf32>
    %241 = arith.subf %231, %240 : vector<4x32xf32>
    %242 = arith.mulf %241, %241 : vector<4x32xf32>
    %cst_102 = arith.constant dense<0.000000e+00> : vector<4xf32>
    %243 = vector.multi_reduction <add>, %242, %cst_102 [1] : vector<4x32xf32> to vector<4xf32>
    %244 = vector.shape_cast %243 : vector<4xf32> to vector<4x1xf32>
    %cst_103 = arith.constant 3.200000e+01 : f32
    %245 = vector.broadcast %cst_103 : f32 to vector<4x1xf32>
    %246 = arith.divf %244, %245 : vector<4x1xf32>
    %247 = vector.broadcast %239 : vector<4x1xf32> to vector<4x32xf32>
    %248 = arith.subf %231, %247 : vector<4x32xf32>
    %cst_104 = arith.constant 9.99999974E-6 : f32
    %249 = vector.broadcast %cst_104 : f32 to vector<4x1xf32>
    %250 = arith.addf %246, %249 : vector<4x1xf32>
    %251 = math.rsqrt %250 : vector<4x1xf32>
    %252 = vector.broadcast %251 : vector<4x1xf32> to vector<4x32xf32>
    %253 = arith.mulf %248, %252 : vector<4x32xf32>
    %254 = vector.broadcast %233 : vector<1x32xf32> to vector<4x32xf32>
    %255 = arith.mulf %253, %254 : vector<4x32xf32>
    %256 = vector.broadcast %235 : vector<1x32xf32> to vector<4x32xf32>
    %257 = arith.addf %255, %256 : vector<4x32xf32>
    %258 = arith.truncf %257 : vector<4x32xf32> to vector<4x32xbf16>
    %c0_105 = arith.constant 0 : index
    %c0_106 = arith.constant 0 : index
    %c0_107 = arith.constant 0 : index
    %259 = vector.load %arg11[%c0_105, %c0_106, %c0_107] : memref<2x32x64xbf16, #tpu.memory_space<vmem>>, vector<1x32x64xbf16>
    %260 = vector.shape_cast %259 : vector<1x32x64xbf16> to vector<32x64xbf16>
    %cst_108 = arith.constant dense<0.000000e+00> : vector<4x64xf32>
    %261 = tpu.matmul %258, %260, %cst_108 {dimension_numbers = #tpu.dot_dimension_numbers<[1], [0], [0], [1], [0, 0, 1, 1], [], []>} : vector<4x32xbf16>, vector<32x64xbf16>, vector<4x64xf32> -> vector<4x64xf32>
    %c0_109 = arith.constant 0 : index
    %c0_110 = arith.constant 0 : index
    %c0_111 = arith.constant 0 : index
    %262 = vector.load %arg12[%c0_109, %c0_110, %c0_111] : memref<2x1x64xf32, #tpu.memory_space<vmem>>, vector<1x1x64xf32>
    %263 = vector.shape_cast %262 : vector<1x1x64xf32> to vector<1x64xf32>
    %264 = vector.broadcast %263 : vector<1x64xf32> to vector<4x64xf32>
    %265 = arith.addf %261, %264 : vector<4x64xf32>
    %266 = arith.mulf %265, %265 : vector<4x64xf32>
    %267 = arith.mulf %265, %266 : vector<4x64xf32>
    %cst_112 = arith.constant 4.471500e-02 : f32
    %268 = vector.broadcast %cst_112 : f32 to vector<4x64xf32>
    %269 = arith.mulf %268, %267 : vector<4x64xf32>
    %270 = arith.addf %265, %269 : vector<4x64xf32>
    %cst_113 = arith.constant 0.797884583 : f32
    %271 = vector.broadcast %cst_113 : f32 to vector<4x64xf32>
    %272 = arith.mulf %271, %270 : vector<4x64xf32>
    %273 = math.tanh %272 : vector<4x64xf32>
    %cst_114 = arith.constant 1.000000e+00 : f32
    %274 = vector.broadcast %cst_114 : f32 to vector<4x64xf32>
    %275 = arith.addf %274, %273 : vector<4x64xf32>
    %cst_115 = arith.constant 5.000000e-01 : f32
    %276 = vector.broadcast %cst_115 : f32 to vector<4x64xf32>
    %277 = arith.mulf %276, %275 : vector<4x64xf32>
    %278 = arith.mulf %265, %277 : vector<4x64xf32>
    %279 = arith.truncf %278 : vector<4x64xf32> to vector<4x64xbf16>
    %c0_116 = arith.constant 0 : index
    %c0_117 = arith.constant 0 : index
    %c0_118 = arith.constant 0 : index
    %280 = vector.load %arg13[%c0_116, %c0_117, %c0_118] : memref<2x64x32xbf16, #tpu.memory_space<vmem>>, vector<1x64x32xbf16>
    %281 = vector.shape_cast %280 : vector<1x64x32xbf16> to vector<64x32xbf16>
    %cst_119 = arith.constant dense<0.000000e+00> : vector<4x32xf32>
    %282 = tpu.matmul %279, %281, %cst_119 {dimension_numbers = #tpu.dot_dimension_numbers<[1], [0], [0], [1], [0, 0, 1, 1], [], []>} : vector<4x64xbf16>, vector<64x32xbf16>, vector<4x32xf32> -> vector<4x32xf32>
    %c0_120 = arith.constant 0 : index
    %c0_121 = arith.constant 0 : index
    %c0_122 = arith.constant 0 : index
    %283 = vector.load %arg14[%c0_120, %c0_121, %c0_122] : memref<2x1x32xf32, #tpu.memory_space<vmem>>, vector<1x1x32xf32>
    %284 = vector.shape_cast %283 : vector<1x1x32xf32> to vector<1x32xf32>
    %285 = vector.broadcast %284 : vector<1x32xf32> to vector<4x32xf32>
    %286 = arith.addf %282, %285 : vector<4x32xf32>
    %287 = arith.addf %231, %286 : vector<4x32xf32>
    %c1_123 = arith.constant 1 : index
    %c0_124 = arith.constant 0 : index
    %c0_125 = arith.constant 0 : index
    %288 = vector.load %arg2[%c1_123, %c0_124, %c0_125] : memref<2x1x32xf32, #tpu.memory_space<vmem>>, vector<1x1x32xf32>
    %289 = vector.shape_cast %288 : vector<1x1x32xf32> to vector<1x32xf32>
    %c1_126 = arith.constant 1 : index
    %c0_127 = arith.constant 0 : index
    %c0_128 = arith.constant 0 : index
    %290 = vector.load %arg3[%c1_126, %c0_127, %c0_128] : memref<2x1x32xf32, #tpu.memory_space<vmem>>, vector<1x1x32xf32>
    %291 = vector.shape_cast %290 : vector<1x1x32xf32> to vector<1x32xf32>
    %cst_129 = arith.constant dense<0.000000e+00> : vector<4xf32>
    %292 = vector.multi_reduction <add>, %287, %cst_129 [1] : vector<4x32xf32> to vector<4xf32>
    %293 = vector.shape_cast %292 : vector<4xf32> to vector<4x1xf32>
    %cst_130 = arith.constant 3.200000e+01 : f32
    %294 = vector.broadcast %cst_130 : f32 to vector<4x1xf32>
    %295 = arith.divf %293, %294 : vector<4x1xf32>
    %296 = vector.broadcast %295 : vector<4x1xf32> to vector<4x32xf32>
    %297 = arith.subf %287, %296 : vector<4x32xf32>
    %298 = arith.mulf %297, %297 : vector<4x32xf32>
    %cst_131 = arith.constant dense<0.000000e+00> : vector<4xf32>
    %299 = vector.multi_reduction <add>, %298, %cst_131 [1] : vector<4x32xf32> to vector<4xf32>
    %300 = vector.shape_cast %299 : vector<4xf32> to vector<4x1xf32>
    %cst_132 = arith.constant 3.200000e+01 : f32
    %301 = vector.broadcast %cst_132 : f32 to vector<4x1xf32>
    %302 = arith.divf %300, %301 : vector<4x1xf32>
    %303 = vector.broadcast %295 : vector<4x1xf32> to vector<4x32xf32>
    %304 = arith.subf %287, %303 : vector<4x32xf32>
    %cst_133 = arith.constant 9.99999974E-6 : f32
    %305 = vector.broadcast %cst_133 : f32 to vector<4x1xf32>
    %306 = arith.addf %302, %305 : vector<4x1xf32>
    %307 = math.rsqrt %306 : vector<4x1xf32>
    %308 = vector.broadcast %307 : vector<4x1xf32> to vector<4x32xf32>
    %309 = arith.mulf %304, %308 : vector<4x32xf32>
    %310 = vector.broadcast %289 : vector<1x32xf32> to vector<4x32xf32>
    %311 = arith.mulf %309, %310 : vector<4x32xf32>
    %312 = vector.broadcast %291 : vector<1x32xf32> to vector<4x32xf32>
    %313 = arith.addf %311, %312 : vector<4x32xf32>
    %314 = arith.truncf %313 : vector<4x32xf32> to vector<4x32xbf16>
    %cst_134 = arith.constant 0.000000e+00 : f32
    %315 = vector.broadcast %cst_134 : f32 to vector<4x32xf32>
    %c1_135 = arith.constant 1 : index
    %c0_136 = arith.constant 0 : index
    %c0_137 = arith.constant 0 : index
    %c0_138 = arith.constant 0 : index
    %316 = vector.load %arg4[%c1_135, %c0_136, %c0_137, %c0_138] : memref<2x2x32x16xbf16, #tpu.memory_space<vmem>>, vector<1x1x32x16xbf16>
    %317 = vector.shape_cast %316 : vector<1x1x32x16xbf16> to vector<32x16xbf16>
    %cst_139 = arith.constant dense<0.000000e+00> : vector<4x16xf32>
    %318 = tpu.matmul %314, %317, %cst_139 {dimension_numbers = #tpu.dot_dimension_numbers<[1], [0], [0], [1], [0, 0, 1, 1], [], []>} : vector<4x32xbf16>, vector<32x16xbf16>, vector<4x16xf32> -> vector<4x16xf32>
    %c1_140 = arith.constant 1 : index
    %c0_141 = arith.constant 0 : index
    %c0_142 = arith.constant 0 : index
    %c0_143 = arith.constant 0 : index
    %319 = vector.load %arg5[%c1_140, %c0_141, %c0_142, %c0_143] : memref<2x2x32x16xbf16, #tpu.memory_space<vmem>>, vector<1x1x32x16xbf16>
    %320 = vector.shape_cast %319 : vector<1x1x32x16xbf16> to vector<32x16xbf16>
    %cst_144 = arith.constant dense<0.000000e+00> : vector<4x16xf32>
    %321 = tpu.matmul %314, %320, %cst_144 {dimension_numbers = #tpu.dot_dimension_numbers<[1], [0], [0], [1], [0, 0, 1, 1], [], []>} : vector<4x32xbf16>, vector<32x16xbf16>, vector<4x16xf32> -> vector<4x16xf32>
    %c1_145 = arith.constant 1 : index
    %c0_146 = arith.constant 0 : index
    %c0_147 = arith.constant 0 : index
    %c0_148 = arith.constant 0 : index
    %322 = vector.load %arg6[%c1_145, %c0_146, %c0_147, %c0_148] : memref<2x2x32x16xbf16, #tpu.memory_space<vmem>>, vector<1x1x32x16xbf16>
    %323 = vector.shape_cast %322 : vector<1x1x32x16xbf16> to vector<32x16xbf16>
    %cst_149 = arith.constant dense<0.000000e+00> : vector<4x16xf32>
    %324 = tpu.matmul %314, %323, %cst_149 {dimension_numbers = #tpu.dot_dimension_numbers<[1], [0], [0], [1], [0, 0, 1, 1], [], []>} : vector<4x32xbf16>, vector<32x16xbf16>, vector<4x16xf32> -> vector<4x16xf32>
    %325 = vector.extract_strided_slice %321 {offsets = [3, 0], sizes = [1, 16], strides = [1, 1]} : vector<4x16xf32> to vector<1x16xf32>
    %326 = vector.extract_strided_slice %321 {offsets = [0, 0], sizes = [3, 16], strides = [1, 1]} : vector<4x16xf32> to vector<3x16xf32>
    %327 = tpu.concatenate %325, %326 in 0 : vector<1x16xf32>, vector<3x16xf32> -> vector<4x16xf32>
    %328 = arith.mulf %318, %327 : vector<4x16xf32>
    %cst_150 = arith.constant dense<0.000000e+00> : vector<4xf32>
    %329 = vector.multi_reduction <add>, %328, %cst_150 [1] : vector<4x16xf32> to vector<4xf32>
    %330 = vector.shape_cast %329 : vector<4xf32> to vector<4x1xf32>
    %cst_151 = arith.constant 2.500000e-01 : f32
    %331 = vector.broadcast %cst_151 : f32 to vector<4x1xf32>
    %332 = arith.mulf %330, %331 : vector<4x1xf32>
    %c-1_i32_152 = arith.constant -1 : i32
    %333 = vector.broadcast %c-1_i32_152 : i32 to vector<4x1xi32>
    %334 = arith.addi %6, %333 : vector<4x1xi32>
    %c0_i32_153 = arith.constant 0 : i32
    %335 = vector.broadcast %c0_i32_153 : i32 to vector<4x1xi32>
    %336 = arith.cmpi sge, %334, %335 : vector<4x1xi32>
    %c-1_i32_154 = arith.constant -1 : i32
    %337 = vector.broadcast %c-1_i32_154 : i32 to vector<4x1xi32>
    %338 = arith.addi %6, %337 : vector<4x1xi32>
    %c2_i32_155 = arith.constant 2 : i32
    %339 = vector.broadcast %c2_i32_155 : i32 to vector<4x1xi32>
    %340 = arith.cmpi slt, %338, %339 : vector<4x1xi32>
    %341 = arith.andi %336, %340 : vector<4x1xi1>
    %cst_156 = arith.constant -1.000000e+30 : f32
    %342 = vector.broadcast %cst_156 : f32 to vector<4x1xf32>
    %343 = arith.select %341, %332, %342 : vector<4x1xi1>, vector<4x1xf32>
    %344 = arith.mulf %318, %321 : vector<4x16xf32>
    %cst_157 = arith.constant dense<0.000000e+00> : vector<4xf32>
    %345 = vector.multi_reduction <add>, %344, %cst_157 [1] : vector<4x16xf32> to vector<4xf32>
    %346 = vector.shape_cast %345 : vector<4xf32> to vector<4x1xf32>
    %cst_158 = arith.constant 2.500000e-01 : f32
    %347 = vector.broadcast %cst_158 : f32 to vector<4x1xf32>
    %348 = arith.mulf %346, %347 : vector<4x1xf32>
    %c0_i32_159 = arith.constant 0 : i32
    %349 = vector.broadcast %c0_i32_159 : i32 to vector<4x1xi32>
    %350 = arith.addi %6, %349 : vector<4x1xi32>
    %c0_i32_160 = arith.constant 0 : i32
    %351 = vector.broadcast %c0_i32_160 : i32 to vector<4x1xi32>
    %352 = arith.cmpi sge, %350, %351 : vector<4x1xi32>
    %c0_i32_161 = arith.constant 0 : i32
    %353 = vector.broadcast %c0_i32_161 : i32 to vector<4x1xi32>
    %354 = arith.addi %6, %353 : vector<4x1xi32>
    %c2_i32_162 = arith.constant 2 : i32
    %355 = vector.broadcast %c2_i32_162 : i32 to vector<4x1xi32>
    %356 = arith.cmpi slt, %354, %355 : vector<4x1xi32>
    %357 = arith.andi %352, %356 : vector<4x1xi1>
    %cst_163 = arith.constant -1.000000e+30 : f32
    %358 = vector.broadcast %cst_163 : f32 to vector<4x1xf32>
    %359 = arith.select %357, %348, %358 : vector<4x1xi1>, vector<4x1xf32>
    %360 = vector.extract_strided_slice %321 {offsets = [1, 0], sizes = [3, 16], strides = [1, 1]} : vector<4x16xf32> to vector<3x16xf32>
    %361 = vector.extract_strided_slice %321 {offsets = [0, 0], sizes = [1, 16], strides = [1, 1]} : vector<4x16xf32> to vector<1x16xf32>
    %362 = tpu.concatenate %360, %361 in 0 : vector<3x16xf32>, vector<1x16xf32> -> vector<4x16xf32>
    %363 = arith.mulf %318, %362 : vector<4x16xf32>
    %cst_164 = arith.constant dense<0.000000e+00> : vector<4xf32>
    %364 = vector.multi_reduction <add>, %363, %cst_164 [1] : vector<4x16xf32> to vector<4xf32>
    %365 = vector.shape_cast %364 : vector<4xf32> to vector<4x1xf32>
    %cst_165 = arith.constant 2.500000e-01 : f32
    %366 = vector.broadcast %cst_165 : f32 to vector<4x1xf32>
    %367 = arith.mulf %365, %366 : vector<4x1xf32>
    %c1_i32_166 = arith.constant 1 : i32
    %368 = vector.broadcast %c1_i32_166 : i32 to vector<4x1xi32>
    %369 = arith.addi %6, %368 : vector<4x1xi32>
    %c0_i32_167 = arith.constant 0 : i32
    %370 = vector.broadcast %c0_i32_167 : i32 to vector<4x1xi32>
    %371 = arith.cmpi sge, %369, %370 : vector<4x1xi32>
    %c1_i32_168 = arith.constant 1 : i32
    %372 = vector.broadcast %c1_i32_168 : i32 to vector<4x1xi32>
    %373 = arith.addi %6, %372 : vector<4x1xi32>
    %c2_i32_169 = arith.constant 2 : i32
    %374 = vector.broadcast %c2_i32_169 : i32 to vector<4x1xi32>
    %375 = arith.cmpi slt, %373, %374 : vector<4x1xi32>
    %376 = arith.andi %371, %375 : vector<4x1xi1>
    %cst_170 = arith.constant -1.000000e+30 : f32
    %377 = vector.broadcast %cst_170 : f32 to vector<4x1xf32>
    %378 = arith.select %376, %367, %377 : vector<4x1xi1>, vector<4x1xf32>
    %379 = arith.maximumf %343, %359 : vector<4x1xf32>
    %380 = arith.maximumf %379, %378 : vector<4x1xf32>
    %381 = arith.subf %343, %380 : vector<4x1xf32>
    %382 = math.exp %381 : vector<4x1xf32>
    %383 = arith.subf %359, %380 : vector<4x1xf32>
    %384 = math.exp %383 : vector<4x1xf32>
    %385 = arith.subf %378, %380 : vector<4x1xf32>
    %386 = math.exp %385 : vector<4x1xf32>
    %387 = arith.addf %382, %384 : vector<4x1xf32>
    %388 = arith.addf %387, %386 : vector<4x1xf32>
    %389 = tpu.reciprocal %388 {approx = true} : vector<4x1xf32> -> vector<4x1xf32>
    %390 = arith.mulf %382, %389 : vector<4x1xf32>
    %391 = vector.extract_strided_slice %324 {offsets = [3, 0], sizes = [1, 16], strides = [1, 1]} : vector<4x16xf32> to vector<1x16xf32>
    %392 = vector.extract_strided_slice %324 {offsets = [0, 0], sizes = [3, 16], strides = [1, 1]} : vector<4x16xf32> to vector<3x16xf32>
    %393 = tpu.concatenate %391, %392 in 0 : vector<1x16xf32>, vector<3x16xf32> -> vector<4x16xf32>
    %394 = vector.broadcast %390 : vector<4x1xf32> to vector<4x16xf32>
    %395 = arith.mulf %394, %393 : vector<4x16xf32>
    %396 = arith.mulf %384, %389 : vector<4x1xf32>
    %397 = vector.broadcast %396 : vector<4x1xf32> to vector<4x16xf32>
    %398 = arith.mulf %397, %324 : vector<4x16xf32>
    %399 = arith.addf %395, %398 : vector<4x16xf32>
    %400 = arith.mulf %386, %389 : vector<4x1xf32>
    %401 = vector.extract_strided_slice %324 {offsets = [1, 0], sizes = [3, 16], strides = [1, 1]} : vector<4x16xf32> to vector<3x16xf32>
    %402 = vector.extract_strided_slice %324 {offsets = [0, 0], sizes = [1, 16], strides = [1, 1]} : vector<4x16xf32> to vector<1x16xf32>
    %403 = tpu.concatenate %401, %402 in 0 : vector<3x16xf32>, vector<1x16xf32> -> vector<4x16xf32>
    %404 = vector.broadcast %400 : vector<4x1xf32> to vector<4x16xf32>
    %405 = arith.mulf %404, %403 : vector<4x16xf32>
    %406 = arith.addf %399, %405 : vector<4x16xf32>
    %407 = arith.truncf %406 : vector<4x16xf32> to vector<4x16xbf16>
    %c1_171 = arith.constant 1 : index
    %c0_172 = arith.constant 0 : index
    %c0_173 = arith.constant 0 : index
    %c0_174 = arith.constant 0 : index
    %408 = vector.load %arg7[%c1_171, %c0_172, %c0_173, %c0_174] : memref<2x2x16x32xbf16, #tpu.memory_space<vmem>>, vector<1x1x16x32xbf16>
    %409 = vector.shape_cast %408 : vector<1x1x16x32xbf16> to vector<16x32xbf16>
    %cst_175 = arith.constant dense<0.000000e+00> : vector<4x32xf32>
    %410 = tpu.matmul %407, %409, %cst_175 {dimension_numbers = #tpu.dot_dimension_numbers<[1], [0], [0], [1], [0, 0, 1, 1], [], []>} : vector<4x16xbf16>, vector<16x32xbf16>, vector<4x32xf32> -> vector<4x32xf32>
    %411 = arith.addf %315, %410 : vector<4x32xf32>
    %c1_176 = arith.constant 1 : index
    %c1_177 = arith.constant 1 : index
    %c0_178 = arith.constant 0 : index
    %c0_179 = arith.constant 0 : index
    %412 = vector.load %arg4[%c1_176, %c1_177, %c0_178, %c0_179] : memref<2x2x32x16xbf16, #tpu.memory_space<vmem>>, vector<1x1x32x16xbf16>
    %413 = vector.shape_cast %412 : vector<1x1x32x16xbf16> to vector<32x16xbf16>
    %cst_180 = arith.constant dense<0.000000e+00> : vector<4x16xf32>
    %414 = tpu.matmul %314, %413, %cst_180 {dimension_numbers = #tpu.dot_dimension_numbers<[1], [0], [0], [1], [0, 0, 1, 1], [], []>} : vector<4x32xbf16>, vector<32x16xbf16>, vector<4x16xf32> -> vector<4x16xf32>
    %c1_181 = arith.constant 1 : index
    %c1_182 = arith.constant 1 : index
    %c0_183 = arith.constant 0 : index
    %c0_184 = arith.constant 0 : index
    %415 = vector.load %arg5[%c1_181, %c1_182, %c0_183, %c0_184] : memref<2x2x32x16xbf16, #tpu.memory_space<vmem>>, vector<1x1x32x16xbf16>
    %416 = vector.shape_cast %415 : vector<1x1x32x16xbf16> to vector<32x16xbf16>
    %cst_185 = arith.constant dense<0.000000e+00> : vector<4x16xf32>
    %417 = tpu.matmul %314, %416, %cst_185 {dimension_numbers = #tpu.dot_dimension_numbers<[1], [0], [0], [1], [0, 0, 1, 1], [], []>} : vector<4x32xbf16>, vector<32x16xbf16>, vector<4x16xf32> -> vector<4x16xf32>
    %c1_186 = arith.constant 1 : index
    %c1_187 = arith.constant 1 : index
    %c0_188 = arith.constant 0 : index
    %c0_189 = arith.constant 0 : index
    %418 = vector.load %arg6[%c1_186, %c1_187, %c0_188, %c0_189] : memref<2x2x32x16xbf16, #tpu.memory_space<vmem>>, vector<1x1x32x16xbf16>
    %419 = vector.shape_cast %418 : vector<1x1x32x16xbf16> to vector<32x16xbf16>
    %cst_190 = arith.constant dense<0.000000e+00> : vector<4x16xf32>
    %420 = tpu.matmul %314, %419, %cst_190 {dimension_numbers = #tpu.dot_dimension_numbers<[1], [0], [0], [1], [0, 0, 1, 1], [], []>} : vector<4x32xbf16>, vector<32x16xbf16>, vector<4x16xf32> -> vector<4x16xf32>
    %421 = vector.extract_strided_slice %417 {offsets = [3, 0], sizes = [1, 16], strides = [1, 1]} : vector<4x16xf32> to vector<1x16xf32>
    %422 = vector.extract_strided_slice %417 {offsets = [0, 0], sizes = [3, 16], strides = [1, 1]} : vector<4x16xf32> to vector<3x16xf32>
    %423 = tpu.concatenate %421, %422 in 0 : vector<1x16xf32>, vector<3x16xf32> -> vector<4x16xf32>
    %424 = arith.mulf %414, %423 : vector<4x16xf32>
    %cst_191 = arith.constant dense<0.000000e+00> : vector<4xf32>
    %425 = vector.multi_reduction <add>, %424, %cst_191 [1] : vector<4x16xf32> to vector<4xf32>
    %426 = vector.shape_cast %425 : vector<4xf32> to vector<4x1xf32>
    %cst_192 = arith.constant 2.500000e-01 : f32
    %427 = vector.broadcast %cst_192 : f32 to vector<4x1xf32>
    %428 = arith.mulf %426, %427 : vector<4x1xf32>
    %c-1_i32_193 = arith.constant -1 : i32
    %429 = vector.broadcast %c-1_i32_193 : i32 to vector<4x1xi32>
    %430 = arith.addi %6, %429 : vector<4x1xi32>
    %c0_i32_194 = arith.constant 0 : i32
    %431 = vector.broadcast %c0_i32_194 : i32 to vector<4x1xi32>
    %432 = arith.cmpi sge, %430, %431 : vector<4x1xi32>
    %c-1_i32_195 = arith.constant -1 : i32
    %433 = vector.broadcast %c-1_i32_195 : i32 to vector<4x1xi32>
    %434 = arith.addi %6, %433 : vector<4x1xi32>
    %c2_i32_196 = arith.constant 2 : i32
    %435 = vector.broadcast %c2_i32_196 : i32 to vector<4x1xi32>
    %436 = arith.cmpi slt, %434, %435 : vector<4x1xi32>
    %437 = arith.andi %432, %436 : vector<4x1xi1>
    %cst_197 = arith.constant -1.000000e+30 : f32
    %438 = vector.broadcast %cst_197 : f32 to vector<4x1xf32>
    %439 = arith.select %437, %428, %438 : vector<4x1xi1>, vector<4x1xf32>
    %440 = arith.mulf %414, %417 : vector<4x16xf32>
    %cst_198 = arith.constant dense<0.000000e+00> : vector<4xf32>
    %441 = vector.multi_reduction <add>, %440, %cst_198 [1] : vector<4x16xf32> to vector<4xf32>
    %442 = vector.shape_cast %441 : vector<4xf32> to vector<4x1xf32>
    %cst_199 = arith.constant 2.500000e-01 : f32
    %443 = vector.broadcast %cst_199 : f32 to vector<4x1xf32>
    %444 = arith.mulf %442, %443 : vector<4x1xf32>
    %c0_i32_200 = arith.constant 0 : i32
    %445 = vector.broadcast %c0_i32_200 : i32 to vector<4x1xi32>
    %446 = arith.addi %6, %445 : vector<4x1xi32>
    %c0_i32_201 = arith.constant 0 : i32
    %447 = vector.broadcast %c0_i32_201 : i32 to vector<4x1xi32>
    %448 = arith.cmpi sge, %446, %447 : vector<4x1xi32>
    %c0_i32_202 = arith.constant 0 : i32
    %449 = vector.broadcast %c0_i32_202 : i32 to vector<4x1xi32>
    %450 = arith.addi %6, %449 : vector<4x1xi32>
    %c2_i32_203 = arith.constant 2 : i32
    %451 = vector.broadcast %c2_i32_203 : i32 to vector<4x1xi32>
    %452 = arith.cmpi slt, %450, %451 : vector<4x1xi32>
    %453 = arith.andi %448, %452 : vector<4x1xi1>
    %cst_204 = arith.constant -1.000000e+30 : f32
    %454 = vector.broadcast %cst_204 : f32 to vector<4x1xf32>
    %455 = arith.select %453, %444, %454 : vector<4x1xi1>, vector<4x1xf32>
    %456 = vector.extract_strided_slice %417 {offsets = [1, 0], sizes = [3, 16], strides = [1, 1]} : vector<4x16xf32> to vector<3x16xf32>
    %457 = vector.extract_strided_slice %417 {offsets = [0, 0], sizes = [1, 16], strides = [1, 1]} : vector<4x16xf32> to vector<1x16xf32>
    %458 = tpu.concatenate %456, %457 in 0 : vector<3x16xf32>, vector<1x16xf32> -> vector<4x16xf32>
    %459 = arith.mulf %414, %458 : vector<4x16xf32>
    %cst_205 = arith.constant dense<0.000000e+00> : vector<4xf32>
    %460 = vector.multi_reduction <add>, %459, %cst_205 [1] : vector<4x16xf32> to vector<4xf32>
    %461 = vector.shape_cast %460 : vector<4xf32> to vector<4x1xf32>
    %cst_206 = arith.constant 2.500000e-01 : f32
    %462 = vector.broadcast %cst_206 : f32 to vector<4x1xf32>
    %463 = arith.mulf %461, %462 : vector<4x1xf32>
    %c1_i32_207 = arith.constant 1 : i32
    %464 = vector.broadcast %c1_i32_207 : i32 to vector<4x1xi32>
    %465 = arith.addi %6, %464 : vector<4x1xi32>
    %c0_i32_208 = arith.constant 0 : i32
    %466 = vector.broadcast %c0_i32_208 : i32 to vector<4x1xi32>
    %467 = arith.cmpi sge, %465, %466 : vector<4x1xi32>
    %c1_i32_209 = arith.constant 1 : i32
    %468 = vector.broadcast %c1_i32_209 : i32 to vector<4x1xi32>
    %469 = arith.addi %6, %468 : vector<4x1xi32>
    %c2_i32_210 = arith.constant 2 : i32
    %470 = vector.broadcast %c2_i32_210 : i32 to vector<4x1xi32>
    %471 = arith.cmpi slt, %469, %470 : vector<4x1xi32>
    %472 = arith.andi %467, %471 : vector<4x1xi1>
    %cst_211 = arith.constant -1.000000e+30 : f32
    %473 = vector.broadcast %cst_211 : f32 to vector<4x1xf32>
    %474 = arith.select %472, %463, %473 : vector<4x1xi1>, vector<4x1xf32>
    %475 = arith.maximumf %439, %455 : vector<4x1xf32>
    %476 = arith.maximumf %475, %474 : vector<4x1xf32>
    %477 = arith.subf %439, %476 : vector<4x1xf32>
    %478 = math.exp %477 : vector<4x1xf32>
    %479 = arith.subf %455, %476 : vector<4x1xf32>
    %480 = math.exp %479 : vector<4x1xf32>
    %481 = arith.subf %474, %476 : vector<4x1xf32>
    %482 = math.exp %481 : vector<4x1xf32>
    %483 = arith.addf %478, %480 : vector<4x1xf32>
    %484 = arith.addf %483, %482 : vector<4x1xf32>
    %485 = tpu.reciprocal %484 {approx = true} : vector<4x1xf32> -> vector<4x1xf32>
    %486 = arith.mulf %478, %485 : vector<4x1xf32>
    %487 = vector.extract_strided_slice %420 {offsets = [3, 0], sizes = [1, 16], strides = [1, 1]} : vector<4x16xf32> to vector<1x16xf32>
    %488 = vector.extract_strided_slice %420 {offsets = [0, 0], sizes = [3, 16], strides = [1, 1]} : vector<4x16xf32> to vector<3x16xf32>
    %489 = tpu.concatenate %487, %488 in 0 : vector<1x16xf32>, vector<3x16xf32> -> vector<4x16xf32>
    %490 = vector.broadcast %486 : vector<4x1xf32> to vector<4x16xf32>
    %491 = arith.mulf %490, %489 : vector<4x16xf32>
    %492 = arith.mulf %480, %485 : vector<4x1xf32>
    %493 = vector.broadcast %492 : vector<4x1xf32> to vector<4x16xf32>
    %494 = arith.mulf %493, %420 : vector<4x16xf32>
    %495 = arith.addf %491, %494 : vector<4x16xf32>
    %496 = arith.mulf %482, %485 : vector<4x1xf32>
    %497 = vector.extract_strided_slice %420 {offsets = [1, 0], sizes = [3, 16], strides = [1, 1]} : vector<4x16xf32> to vector<3x16xf32>
    %498 = vector.extract_strided_slice %420 {offsets = [0, 0], sizes = [1, 16], strides = [1, 1]} : vector<4x16xf32> to vector<1x16xf32>
    %499 = tpu.concatenate %497, %498 in 0 : vector<3x16xf32>, vector<1x16xf32> -> vector<4x16xf32>
    %500 = vector.broadcast %496 : vector<4x1xf32> to vector<4x16xf32>
    %501 = arith.mulf %500, %499 : vector<4x16xf32>
    %502 = arith.addf %495, %501 : vector<4x16xf32>
    %503 = arith.truncf %502 : vector<4x16xf32> to vector<4x16xbf16>
    %c1_212 = arith.constant 1 : index
    %c1_213 = arith.constant 1 : index
    %c0_214 = arith.constant 0 : index
    %c0_215 = arith.constant 0 : index
    %504 = vector.load %arg7[%c1_212, %c1_213, %c0_214, %c0_215] : memref<2x2x16x32xbf16, #tpu.memory_space<vmem>>, vector<1x1x16x32xbf16>
    %505 = vector.shape_cast %504 : vector<1x1x16x32xbf16> to vector<16x32xbf16>
    %cst_216 = arith.constant dense<0.000000e+00> : vector<4x32xf32>
    %506 = tpu.matmul %503, %505, %cst_216 {dimension_numbers = #tpu.dot_dimension_numbers<[1], [0], [0], [1], [0, 0, 1, 1], [], []>} : vector<4x16xbf16>, vector<16x32xbf16>, vector<4x32xf32> -> vector<4x32xf32>
    %507 = arith.addf %411, %506 : vector<4x32xf32>
    %508 = arith.addf %287, %507 : vector<4x32xf32>
    %c1_217 = arith.constant 1 : index
    %c0_218 = arith.constant 0 : index
    %c0_219 = arith.constant 0 : index
    %509 = vector.load %arg8[%c1_217, %c0_218, %c0_219] : memref<2x1x32xf32, #tpu.memory_space<vmem>>, vector<1x1x32xf32>
    %510 = vector.shape_cast %509 : vector<1x1x32xf32> to vector<1x32xf32>
    %511 = vector.broadcast %510 : vector<1x32xf32> to vector<4x32xf32>
    %512 = arith.addf %508, %511 : vector<4x32xf32>
    %c1_220 = arith.constant 1 : index
    %c0_221 = arith.constant 0 : index
    %c0_222 = arith.constant 0 : index
    %513 = vector.load %arg9[%c1_220, %c0_221, %c0_222] : memref<2x1x32xf32, #tpu.memory_space<vmem>>, vector<1x1x32xf32>
    %514 = vector.shape_cast %513 : vector<1x1x32xf32> to vector<1x32xf32>
    %c1_223 = arith.constant 1 : index
    %c0_224 = arith.constant 0 : index
    %c0_225 = arith.constant 0 : index
    %515 = vector.load %arg10[%c1_223, %c0_224, %c0_225] : memref<2x1x32xf32, #tpu.memory_space<vmem>>, vector<1x1x32xf32>
    %516 = vector.shape_cast %515 : vector<1x1x32xf32> to vector<1x32xf32>
    %cst_226 = arith.constant dense<0.000000e+00> : vector<4xf32>
    %517 = vector.multi_reduction <add>, %512, %cst_226 [1] : vector<4x32xf32> to vector<4xf32>
    %518 = vector.shape_cast %517 : vector<4xf32> to vector<4x1xf32>
    %cst_227 = arith.constant 3.200000e+01 : f32
    %519 = vector.broadcast %cst_227 : f32 to vector<4x1xf32>
    %520 = arith.divf %518, %519 : vector<4x1xf32>
    %521 = vector.broadcast %520 : vector<4x1xf32> to vector<4x32xf32>
    %522 = arith.subf %512, %521 : vector<4x32xf32>
    %523 = arith.mulf %522, %522 : vector<4x32xf32>
    %cst_228 = arith.constant dense<0.000000e+00> : vector<4xf32>
    %524 = vector.multi_reduction <add>, %523, %cst_228 [1] : vector<4x32xf32> to vector<4xf32>
    %525 = vector.shape_cast %524 : vector<4xf32> to vector<4x1xf32>
    %cst_229 = arith.constant 3.200000e+01 : f32
    %526 = vector.broadcast %cst_229 : f32 to vector<4x1xf32>
    %527 = arith.divf %525, %526 : vector<4x1xf32>
    %528 = vector.broadcast %520 : vector<4x1xf32> to vector<4x32xf32>
    %529 = arith.subf %512, %528 : vector<4x32xf32>
    %cst_230 = arith.constant 9.99999974E-6 : f32
    %530 = vector.broadcast %cst_230 : f32 to vector<4x1xf32>
    %531 = arith.addf %527, %530 : vector<4x1xf32>
    %532 = math.rsqrt %531 : vector<4x1xf32>
    %533 = vector.broadcast %532 : vector<4x1xf32> to vector<4x32xf32>
    %534 = arith.mulf %529, %533 : vector<4x32xf32>
    %535 = vector.broadcast %514 : vector<1x32xf32> to vector<4x32xf32>
    %536 = arith.mulf %534, %535 : vector<4x32xf32>
    %537 = vector.broadcast %516 : vector<1x32xf32> to vector<4x32xf32>
    %538 = arith.addf %536, %537 : vector<4x32xf32>
    %539 = arith.truncf %538 : vector<4x32xf32> to vector<4x32xbf16>
    %c1_231 = arith.constant 1 : index
    %c0_232 = arith.constant 0 : index
    %c0_233 = arith.constant 0 : index
    %540 = vector.load %arg11[%c1_231, %c0_232, %c0_233] : memref<2x32x64xbf16, #tpu.memory_space<vmem>>, vector<1x32x64xbf16>
    %541 = vector.shape_cast %540 : vector<1x32x64xbf16> to vector<32x64xbf16>
    %cst_234 = arith.constant dense<0.000000e+00> : vector<4x64xf32>
    %542 = tpu.matmul %539, %541, %cst_234 {dimension_numbers = #tpu.dot_dimension_numbers<[1], [0], [0], [1], [0, 0, 1, 1], [], []>} : vector<4x32xbf16>, vector<32x64xbf16>, vector<4x64xf32> -> vector<4x64xf32>
    %c1_235 = arith.constant 1 : index
    %c0_236 = arith.constant 0 : index
    %c0_237 = arith.constant 0 : index
    %543 = vector.load %arg12[%c1_235, %c0_236, %c0_237] : memref<2x1x64xf32, #tpu.memory_space<vmem>>, vector<1x1x64xf32>
    %544 = vector.shape_cast %543 : vector<1x1x64xf32> to vector<1x64xf32>
    %545 = vector.broadcast %544 : vector<1x64xf32> to vector<4x64xf32>
    %546 = arith.addf %542, %545 : vector<4x64xf32>
    %547 = arith.mulf %546, %546 : vector<4x64xf32>
    %548 = arith.mulf %546, %547 : vector<4x64xf32>
    %cst_238 = arith.constant 4.471500e-02 : f32
    %549 = vector.broadcast %cst_238 : f32 to vector<4x64xf32>
    %550 = arith.mulf %549, %548 : vector<4x64xf32>
    %551 = arith.addf %546, %550 : vector<4x64xf32>
    %cst_239 = arith.constant 0.797884583 : f32
    %552 = vector.broadcast %cst_239 : f32 to vector<4x64xf32>
    %553 = arith.mulf %552, %551 : vector<4x64xf32>
    %554 = math.tanh %553 : vector<4x64xf32>
    %cst_240 = arith.constant 1.000000e+00 : f32
    %555 = vector.broadcast %cst_240 : f32 to vector<4x64xf32>
    %556 = arith.addf %555, %554 : vector<4x64xf32>
    %cst_241 = arith.constant 5.000000e-01 : f32
    %557 = vector.broadcast %cst_241 : f32 to vector<4x64xf32>
    %558 = arith.mulf %557, %556 : vector<4x64xf32>
    %559 = arith.mulf %546, %558 : vector<4x64xf32>
    %560 = arith.truncf %559 : vector<4x64xf32> to vector<4x64xbf16>
    %c1_242 = arith.constant 1 : index
    %c0_243 = arith.constant 0 : index
    %c0_244 = arith.constant 0 : index
    %561 = vector.load %arg13[%c1_242, %c0_243, %c0_244] : memref<2x64x32xbf16, #tpu.memory_space<vmem>>, vector<1x64x32xbf16>
    %562 = vector.shape_cast %561 : vector<1x64x32xbf16> to vector<64x32xbf16>
    %cst_245 = arith.constant dense<0.000000e+00> : vector<4x32xf32>
    %563 = tpu.matmul %560, %562, %cst_245 {dimension_numbers = #tpu.dot_dimension_numbers<[1], [0], [0], [1], [0, 0, 1, 1], [], []>} : vector<4x64xbf16>, vector<64x32xbf16>, vector<4x32xf32> -> vector<4x32xf32>
    %c1_246 = arith.constant 1 : index
    %c0_247 = arith.constant 0 : index
    %c0_248 = arith.constant 0 : index
    %564 = vector.load %arg14[%c1_246, %c0_247, %c0_248] : memref<2x1x32xf32, #tpu.memory_space<vmem>>, vector<1x1x32xf32>
    %565 = vector.shape_cast %564 : vector<1x1x32xf32> to vector<1x32xf32>
    %566 = vector.broadcast %565 : vector<1x32xf32> to vector<4x32xf32>
    %567 = arith.addf %563, %566 : vector<4x32xf32>
    %568 = arith.addf %512, %567 : vector<4x32xf32>
    %569 = vector.extract_strided_slice %568 {offsets = [0, 0], sizes = [1, 32], strides = [1, 1]} : vector<4x32xf32> to vector<1x32xf32>
    %570 = vector.extract_strided_slice %568 {offsets = [1, 0], sizes = [1, 32], strides = [1, 1]} : vector<4x32xf32> to vector<1x32xf32>
    %571 = vector.extract_strided_slice %568 {offsets = [2, 0], sizes = [1, 32], strides = [1, 1]} : vector<4x32xf32> to vector<1x32xf32>
    %572 = vector.extract_strided_slice %568 {offsets = [3, 0], sizes = [1, 32], strides = [1, 1]} : vector<4x32xf32> to vector<1x32xf32>
    %573 = tpu.concatenate %569, %570, %571, %572 in 1 : vector<1x32xf32>, vector<1x32xf32>, vector<1x32xf32>, vector<1x32xf32> -> vector<1x128xf32>
    %c0_249 = arith.constant 0 : index
    %c0_250 = arith.constant 0 : index
    %574 = vector.load %arg15[%c0_249, %c0_250] : memref<1x128xf32, #tpu.memory_space<vmem>>, vector<1x128xf32>
    tpu.vector_store %arg15[%c0_249, %c0_250], %573 {strides = array<i32>} : memref<1x128xf32, #tpu.memory_space<vmem>>, vector<1x128xf32>,
    return
  }
  func.func @transform_0(%arg0: i32) -> (i32, i32) {
    %c0_i32 = arith.constant 0 : i32
    %c0_i32_0 = arith.constant 0 : i32
    return %arg0, %c0_i32 : i32, i32
  }
  func.func @transform_1(%arg0: i32) -> (i32, i32, i32) {
    %c0_i32 = arith.constant 0 : i32
    %c0_i32_0 = arith.constant 0 : i32
    %c0_i32_1 = arith.constant 0 : i32
    %c0_i32_2 = arith.constant 0 : i32
    return %c0_i32, %c0_i32_0, %c0_i32_1 : i32, i32, i32
  }
  func.func @transform_2(%arg0: i32) -> (i32, i32, i32) {
    %c0_i32 = arith.constant 0 : i32
    %c0_i32_0 = arith.constant 0 : i32
    %c0_i32_1 = arith.constant 0 : i32
    %c0_i32_2 = arith.constant 0 : i32
    return %c0_i32, %c0_i32_0, %c0_i32_1 : i32, i32, i32
  }
  func.func @transform_3(%arg0: i32) -> (i32, i32, i32, i32) {
    %c0_i32 = arith.constant 0 : i32
    %c0_i32_0 = arith.constant 0 : i32
    %c0_i32_1 = arith.constant 0 : i32
    %c0_i32_2 = arith.constant 0 : i32
    %c0_i32_3 = arith.constant 0 : i32
    return %c0_i32, %c0_i32_0, %c0_i32_1, %c0_i32_2 : i32, i32, i32, i32
  }
  func.func @transform_4(%arg0: i32) -> (i32, i32, i32, i32) {
    %c0_i32 = arith.constant 0 : i32
    %c0_i32_0 = arith.constant 0 : i32
    %c0_i32_1 = arith.constant 0 : i32
    %c0_i32_2 = arith.constant 0 : i32
    %c0_i32_3 = arith.constant 0 : i32
    return %c0_i32, %c0_i32_0, %c0_i32_1, %c0_i32_2 : i32, i32, i32, i32
  }
  func.func @transform_5(%arg0: i32) -> (i32, i32, i32, i32) {
    %c0_i32 = arith.constant 0 : i32
    %c0_i32_0 = arith.constant 0 : i32
    %c0_i32_1 = arith.constant 0 : i32
    %c0_i32_2 = arith.constant 0 : i32
    %c0_i32_3 = arith.constant 0 : i32
    return %c0_i32, %c0_i32_0, %c0_i32_1, %c0_i32_2 : i32, i32, i32, i32
  }
  func.func @transform_6(%arg0: i32) -> (i32, i32, i32, i32) {
    %c0_i32 = arith.constant 0 : i32
    %c0_i32_0 = arith.constant 0 : i32
    %c0_i32_1 = arith.constant 0 : i32
    %c0_i32_2 = arith.constant 0 : i32
    %c0_i32_3 = arith.constant 0 : i32
    return %c0_i32, %c0_i32_0, %c0_i32_1, %c0_i32_2 : i32, i32, i32, i32
  }
  func.func @transform_7(%arg0: i32) -> (i32, i32, i32) {
    %c0_i32 = arith.constant 0 : i32
    %c0_i32_0 = arith.constant 0 : i32
    %c0_i32_1 = arith.constant 0 : i32
    %c0_i32_2 = arith.constant 0 : i32
    return %c0_i32, %c0_i32_0, %c0_i32_1 : i32, i32, i32
  }
  func.func @transform_8(%arg0: i32) -> (i32, i32, i32) {
    %c0_i32 = arith.constant 0 : i32
    %c0_i32_0 = arith.constant 0 : i32
    %c0_i32_1 = arith.constant 0 : i32
    %c0_i32_2 = arith.constant 0 : i32
    return %c0_i32, %c0_i32_0, %c0_i32_1 : i32, i32, i32
  }
  func.func @transform_9(%arg0: i32) -> (i32, i32, i32) {
    %c0_i32 = arith.constant 0 : i32
    %c0_i32_0 = arith.constant 0 : i32
    %c0_i32_1 = arith.constant 0 : i32
    %c0_i32_2 = arith.constant 0 : i32
    return %c0_i32, %c0_i32_0, %c0_i32_1 : i32, i32, i32
  }
  func.func @transform_10(%arg0: i32) -> (i32, i32, i32) {
    %c0_i32 = arith.constant 0 : i32
    %c0_i32_0 = arith.constant 0 : i32
    %c0_i32_1 = arith.constant 0 : i32
    %c0_i32_2 = arith.constant 0 : i32
    return %c0_i32, %c0_i32_0, %c0_i32_1 : i32, i32, i32
  }
  func.func @transform_11(%arg0: i32) -> (i32, i32, i32) {
    %c0_i32 = arith.constant 0 : i32
    %c0_i32_0 = arith.constant 0 : i32
    %c0_i32_1 = arith.constant 0 : i32
    %c0_i32_2 = arith.constant 0 : i32
    return %c0_i32, %c0_i32_0, %c0_i32_1 : i32, i32, i32
  }
  func.func @transform_12(%arg0: i32) -> (i32, i32, i32) {
    %c0_i32 = arith.constant 0 : i32
    %c0_i32_0 = arith.constant 0 : i32
    %c0_i32_1 = arith.constant 0 : i32
    %c0_i32_2 = arith.constant 0 : i32
    return %c0_i32, %c0_i32_0, %c0_i32_1 : i32, i32, i32
  }
  func.func @transform_13(%arg0: i32) -> (i32, i32, i32) {
    %c0_i32 = arith.constant 0 : i32
    %c0_i32_0 = arith.constant 0 : i32
    %c0_i32_1 = arith.constant 0 : i32
    %c0_i32_2 = arith.constant 0 : i32
    return %c0_i32, %c0_i32_0, %c0_i32_1 : i32, i32, i32
  }
  func.func @transform_14(%arg0: i32) -> (i32, i32) {
    %c0_i32 = arith.constant 0 : i32
    %c0_i32_0 = arith.constant 0 : i32
    return %arg0, %c0_i32 : i32, i32
  }
}

</mosaic_0001>

<llo_original>
// kernel: neg.6
$region0: #{neg.6}
  #allocation0 [shape = 's32[1]{0}', space=sflag, size = 0x4, scoped, tag = 'scoped memory for neg.6']
  %s0 = inlined_call_operand.vmem [shape: f32[2,16,64], index: 0, kind: input, shape index: {}]
  %s1 = inlined_call_operand.vmem [shape: f32[2,16,64], index: 1, kind: output, shape index: {}]
  %v2 = vld [vmem:[%s0] sm:$0xff]
  %3 = xla_tuple %v2
  %4 = xla_tuple %3
  %v5 = vxor.u32 %v2, 2147483648
  %6 = xla_tuple %v5
  %7 = vst [vmem:[%s1] sm:$0xff] %v5
  %s8 = scalar_lea.vmem %s0, 16
  %v9 = vld [vmem:[%s8] sm:$0xff]
  %10 = xla_tuple %v9
  %11 = xla_tuple %10
  %v12 = vxor.u32 %v9, 2147483648
  %13 = xla_tuple %v12
  %s14 = scalar_lea.vmem %s1, 16
  %15 = vst [vmem:[%s14] sm:$0xff] %v12
  %s16 = scalar_lea.vmem %s0, 8
  %v17 = vld [vmem:[%s16] sm:$0xff]
  %18 = xla_tuple %v17
  %19 = xla_tuple %18
  %v20 = vxor.u32 %v17, 2147483648
  %21 = xla_tuple %v20
  %s22 = scalar_lea.vmem %s1, 8
  %23 = vst [vmem:[%s22] sm:$0xff] %v20
  %s24 = scalar_lea.vmem %s0, 24
  %v25 = vld [vmem:[%s24] sm:$0xff]
  %26 = xla_tuple %v25
  %27 = xla_tuple %26
  %v28 = vxor.u32 %v25, 2147483648
  %29 = xla_tuple %v28
  %s30 = scalar_lea.vmem %s1, 24
  %31 = vst [vmem:[%s30] sm:$0xff] %v28

// kernel: primitive_transformer_forward.2
$region0: #{primitive_transformer_forward.2}
  #allocation0 [shape = 'u32[]', space=smem, size = 0x4, offset = 0x4, fixed_abs, tag = 'smem constant byte address 0x4 - core index']
  #allocation1 [shape = 'u32[144,128]{1,0:T(1,128)}', space=vmem, size = 0x12000, scoped, tag = 'internal scratch']
  %s0 = inlined_call_operand.vmem [shape: bf16[64,32], index: 0, kind: input, shape index: {}]
  %s1 = inlined_call_operand.vmem [shape: f32[2,1,32], index: 1, kind: input, shape index: {}]
  %s2 = inlined_call_operand.vmem [shape: f32[2,1,32], index: 2, kind: input, shape index: {}]
  %s3 = inlined_call_operand.vmem [shape: bf16[2,2,32,16], index: 3, kind: input, shape index: {}]
  %s4 = inlined_call_operand.vmem [shape: bf16[2,2,32,16], index: 4, kind: input, shape index: {}]
  %s5 = inlined_call_operand.vmem [shape: bf16[2,2,32,16], index: 5, kind: input, shape index: {}]
  %s6 = inlined_call_operand.vmem [shape: bf16[2,2,16,32], index: 6, kind: input, shape index: {}]
  %s7 = inlined_call_operand.vmem [shape: f32[2,1,32], index: 7, kind: input, shape index: {}]
  %s8 = inlined_call_operand.vmem [shape: f32[2,1,32], index: 8, kind: input, shape index: {}]
  %s9 = inlined_call_operand.vmem [shape: f32[2,1,32], index: 9, kind: input, shape index: {}]
  %s10 = inlined_call_operand.vmem [shape: bf16[2,32,64], index: 10, kind: input, shape index: {}]
  %s11 = inlined_call_operand.vmem [shape: f32[2,1,64], index: 11, kind: input, shape index: {}]
  %s12 = inlined_call_operand.vmem [shape: bf16[2,64,32], index: 12, kind: input, shape index: {}]
  %s13 = inlined_call_operand.vmem [shape: f32[2,1,32], index: 13, kind: input, shape index: {}]
  %s14 = inlined_call_operand.vmem [shape: f32[1,128], index: 14, kind: output, shape index: {}]
  %s15 = sld [smem:[#allocation0]]
  $region66: #{primitive_transformer_forward.2} parent=0
    _
  %s17 = ssub.s32 1, %s15
  %s18 = scalar_select 0, %s17, %s15
  // Predicated region
  $region2: #{primitive_transformer_forward.2} parent=0 // pred_check
    _
  $region3: #{primitive_transformer_forward.2} parent=0 // pred_check_branch
    %20 = sbr.rel (0) target = $region5
  $region4: #{primitive_transformer_forward.2} parent=0 // pred_region
    _
  $region5: #{primitive_transformer_forward.2} parent=0 // pred_fallthru
    _
  // Predicated region
  $region6: #{primitive_transformer_forward.2} parent=0 // pred_check
    _
  $region7: #{primitive_transformer_forward.2} parent=0 // pred_check_branch
    %22 = sbr.rel (0) target = $region9
  $region8: #{primitive_transformer_forward.2} parent=0 // pred_region
    _
  $region9: #{primitive_transformer_forward.2} parent=0 // pred_fallthru
    _
  // Predicated region
  $region10: #{primitive_transformer_forward.2} parent=0 // pred_check
    _
  $region11: #{primitive_transformer_forward.2} parent=0 // pred_check_branch
    %24 = sbr.rel (0) target = $region13
  $region12: #{primitive_transformer_forward.2} parent=0 // pred_region
    _
  $region13: #{primitive_transformer_forward.2} parent=0 // pred_fallthru
    _
  // Predicated region
  $region14: #{primitive_transformer_forward.2} parent=0 // pred_check
    _
  $region15: #{primitive_transformer_forward.2} parent=0 // pred_check_branch
    %26 = sbr.rel (0) target = $region17
  $region16: #{primitive_transformer_forward.2} parent=0 // pred_region
    _
  $region17: #{primitive_transformer_forward.2} parent=0 // pred_fallthru
    _
  // Predicated region
  $region18: #{primitive_transformer_forward.2} parent=0 // pred_check
    _
  $region19: #{primitive_transformer_forward.2} parent=0 // pred_check_branch
    %28 = sbr.rel (0) target = $region21
  $region20: #{primitive_transformer_forward.2} parent=0 // pred_region
    _
  $region21: #{primitive_transformer_forward.2} parent=0 // pred_fallthru
    _
  // Predicated region
  $region22: #{primitive_transformer_forward.2} parent=0 // pred_check
    _
  $region23: #{primitive_transformer_forward.2} parent=0 // pred_check_branch
    %30 = sbr.rel (0) target = $region25
  $region24: #{primitive_transformer_forward.2} parent=0 // pred_region
    _
  $region25: #{primitive_transformer_forward.2} parent=0 // pred_fallthru
    _
  // Predicated region
  $region26: #{primitive_transformer_forward.2} parent=0 // pred_check
    _
  $region27: #{primitive_transformer_forward.2} parent=0 // pred_check_branch
    %32 = sbr.rel (0) target = $region29
  $region28: #{primitive_transformer_forward.2} parent=0 // pred_region
    _
  $region29: #{primitive_transformer_forward.2} parent=0 // pred_fallthru
    _
  // Predicated region
  $region30: #{primitive_transformer_forward.2} parent=0 // pred_check
    _
  $region31: #{primitive_transformer_forward.2} parent=0 // pred_check_branch
    %34 = sbr.rel (0) target = $region33
  $region32: #{primitive_transformer_forward.2} parent=0 // pred_region
    _
  $region33: #{primitive_transformer_forward.2} parent=0 // pred_fallthru
    _
  // Predicated region
  $region34: #{primitive_transformer_forward.2} parent=0 // pred_check
    _
  $region35: #{primitive_transformer_forward.2} parent=0 // pred_check_branch
    %36 = sbr.rel (0) target = $region37
  $region36: #{primitive_transformer_forward.2} parent=0 // pred_region
    _
  $region37: #{primitive_transformer_forward.2} parent=0 // pred_fallthru
    _
  // Predicated region
  $region38: #{primitive_transformer_forward.2} parent=0 // pred_check
    _
  $region39: #{primitive_transformer_forward.2} parent=0 // pred_check_branch
    %38 = sbr.rel (0) target = $region41
  $region40: #{primitive_transformer_forward.2} parent=0 // pred_region
    _
  $region41: #{primitive_transformer_forward.2} parent=0 // pred_fallthru
    _
  // Predicated region
  $region42: #{primitive_transformer_forward.2} parent=0 // pred_check
    _
  $region43: #{primitive_transformer_forward.2} parent=0 // pred_check_branch
    %40 = sbr.rel (0) target = $region45
  $region44: #{primitive_transformer_forward.2} parent=0 // pred_region
    _
  $region45: #{primitive_transformer_forward.2} parent=0 // pred_fallthru
    _
  // Predicated region
  $region46: #{primitive_transformer_forward.2} parent=0 // pred_check
    _
  $region47: #{primitive_transformer_forward.2} parent=0 // pred_check_branch
    %42 = sbr.rel (0) target = $region49
  $region48: #{primitive_transformer_forward.2} parent=0 // pred_region
    _
  $region49: #{primitive_transformer_forward.2} parent=0 // pred_fallthru
    _
  // Predicated region
  $region50: #{primitive_transformer_forward.2} parent=0 // pred_check
    _
  $region51: #{primitive_transformer_forward.2} parent=0 // pred_check_branch
    %44 = sbr.rel (0) target = $region53
  $region52: #{primitive_transformer_forward.2} parent=0 // pred_region
    _
  $region53: #{primitive_transformer_forward.2} parent=0 // pred_fallthru
    _
  // Predicated region
  $region54: #{primitive_transformer_forward.2} parent=0 // pred_check
    _
  $region55: #{primitive_transformer_forward.2} parent=0 // pred_check_branch
    %46 = sbr.rel (0) target = $region57
  $region56: #{primitive_transformer_forward.2} parent=0 // pred_region
    _
  $region57: #{primitive_transformer_forward.2} parent=0 // pred_fallthru
    _
  %v48 = vld [vmem:[%s0] sm:$0xf]
  %v49 = vld [vmem:[%s0 + $0x4] sm:$0xf]
  %v50 = vld [vmem:[%s0 + $0x8] sm:$0xf]
  %v51 = vld [vmem:[%s0 + $0xc] sm:$0xf]
  %v52 = vld [vmem:[%s0 + $0x10] sm:$0xf]
  %v53 = vld [vmem:[%s0 + $0x14] sm:$0xf]
  %v54 = vld [vmem:[%s0 + $0x18] sm:$0xf]
  %v55 = vld [vmem:[%s0 + $0x1c] sm:$0xf]
  %v56 = vunpack.c.l.bf16 %v48
  %v57 = vunpack.c.l.bf16 %v49
  %v58 = vunpack.c.l.bf16 %v50
  %v59 = vunpack.c.l.bf16 %v51
  %v60 = vunpack.c.l.bf16 %v52
  %v61 = vunpack.c.l.bf16 %v53
  %v62 = vunpack.c.l.bf16 %v54
  %v63 = vunpack.c.l.bf16 %v55
  %v64 = vmax.f32 %v56, 0.0
  %v65 = vmax.f32 %v57, 0.0
  %v66 = vmax.f32 %v58, 0.0
  %v67 = vmax.f32 %v59, 0.0
  %v68 = vmax.f32 %v60, 0.0
  %v69 = vmax.f32 %v61, 0.0
  %v70 = vmax.f32 %v62, 0.0
  %v71 = vmax.f32 %v63, 0.0
  %v72 = vlaneseq
  %v73 = vshrl.u32 %v72, 7
  %v74 = vadd.s32 %v73, 8
  %v75 = vadd.s32 %v73, 16
  %v76 = vadd.s32 %v73, 24
  %v77 = vadd.s32 %v73, 32
  %v78 = vadd.s32 %v73, 40
  %v79 = vadd.s32 %v73, 48
  %v80 = vadd.s32 %v73, 56
  %v81 = vand.u32 %v73, 1
  %v82 = vand.u32 %v74, 1
  %v83 = vand.u32 %v75, 1
  %v84 = vand.u32 %v76, 1
  %v85 = vand.u32 %v77, 1
  %v86 = vand.u32 %v78, 1
  %v87 = vand.u32 %v79, 1
  %v88 = vand.u32 %v80, 1
  %v89 = vld [vmem:[%s1] sm:$0x1]
  %v90 = vld [vmem:[%s2] sm:$0x1]
  %vm91 = vcmask 261120
  %v92 = vsel %vm91, %v64, 0.0
  %93 = vadd.xlane.f32.xlu0 %v92
  %v94 = vpop.xlane.xlu0 %93
  %v95 = vsel %vm91, %v65, 0.0
  %96 = vadd.xlane.f32.xlu0 %v95
  %v97 = vpop.xlane.xlu0 %96
  %v98 = vsel %vm91, %v66, 0.0
  %99 = vadd.xlane.f32.xlu0 %v98
  %v100 = vpop.xlane.xlu0 %99
  %v101 = vsel %vm91, %v67, 0.0
  %102 = vadd.xlane.f32.xlu0 %v101
  %v103 = vpop.xlane.xlu0 %102
  %v104 = vsel %vm91, %v68, 0.0
  %105 = vadd.xlane.f32.xlu0 %v104
  %v106 = vpop.xlane.xlu0 %105
  %v107 = vsel %vm91, %v69, 0.0
  %108 = vadd.xlane.f32.xlu0 %v107
  %v109 = vpop.xlane.xlu0 %108
  %v110 = vsel %vm91, %v70, 0.0
  %111 = vadd.xlane.f32.xlu0 %v110
  %v112 = vpop.xlane.xlu0 %111
  %v113 = vsel %vm91, %v71, 0.0
  %114 = vadd.xlane.f32.xlu0 %v113
  %v115 = vpop.xlane.xlu0 %114
  %v116 = vrcp.pop 32.0
  %v117 = vmul.f32 %v94, %v116
  %v118 = vmul.f32 %v97, %v116
  %v119 = vmul.f32 %v100, %v116
  %v120 = vmul.f32 %v103, %v116
  %v121 = vmul.f32 %v106, %v116
  %v122 = vmul.f32 %v109, %v116
  %v123 = vmul.f32 %v112, %v116
  %v124 = vmul.f32 %v115, %v116
  %v125 = vsub.f32 %v64, %v117
  %v126 = vsub.f32 %v65, %v118
  %v127 = vsub.f32 %v66, %v119
  %v128 = vsub.f32 %v67, %v120
  %v129 = vsub.f32 %v68, %v121
  %v130 = vsub.f32 %v69, %v122
  %v131 = vsub.f32 %v70, %v123
  %v132 = vsub.f32 %v71, %v124
  %v133 = vmul.f32 %v125, %v125
  %v134 = vmul.f32 %v126, %v126
  %v135 = vmul.f32 %v127, %v127
  %v136 = vmul.f32 %v128, %v128
  %v137 = vmul.f32 %v129, %v129
  %v138 = vmul.f32 %v130, %v130
  %v139 = vmul.f32 %v131, %v131
  %v140 = vmul.f32 %v132, %v132
  %v141 = vsel %vm91, %v133, 0.0
  %142 = vadd.xlane.f32.xlu0 %v141
  %v143 = vpop.xlane.xlu0 %142
  %v144 = vsel %vm91, %v134, 0.0
  %145 = vadd.xlane.f32.xlu0 %v144
  %v146 = vpop.xlane.xlu0 %145
  %v147 = vsel %vm91, %v135, 0.0
  %148 = vadd.xlane.f32.xlu0 %v147
  %v149 = vpop.xlane.xlu0 %148
  %v150 = vsel %vm91, %v136, 0.0
  %151 = vadd.xlane.f32.xlu0 %v150
  %v152 = vpop.xlane.xlu0 %151
  %v153 = vsel %vm91, %v137, 0.0
  %154 = vadd.xlane.f32.xlu0 %v153
  %v155 = vpop.xlane.xlu0 %154
  %v156 = vsel %vm91, %v138, 0.0
  %157 = vadd.xlane.f32.xlu0 %v156
  %v158 = vpop.xlane.xlu0 %157
  %v159 = vsel %vm91, %v139, 0.0
  %160 = vadd.xlane.f32.xlu0 %v159
  %v161 = vpop.xlane.xlu0 %160
  %v162 = vsel %vm91, %v140, 0.0
  %163 = vadd.xlane.f32.xlu0 %v162
  %v164 = vpop.xlane.xlu0 %163
  %v165 = vmul.f32 %v143, %v116
  %v166 = vmul.f32 %v146, %v116
  %v167 = vmul.f32 %v149, %v116
  %v168 = vmul.f32 %v152, %v116
  %v169 = vmul.f32 %v155, %v116
  %v170 = vmul.f32 %v158, %v116
  %v171 = vmul.f32 %v161, %v116
  %v172 = vmul.f32 %v164, %v116
  %v173 = vadd.f32 %v165, 1e-05
  %v174 = vadd.f32 %v166, 1e-05
  %v175 = vadd.f32 %v167, 1e-05
  %v176 = vadd.f32 %v168, 1e-05
  %v177 = vadd.f32 %v169, 1e-05
  %v178 = vadd.f32 %v170, 1e-05
  %v179 = vadd.f32 %v171, 1e-05
  %v180 = vadd.f32 %v172, 1e-05
  %v181 = vrsqrt.pop %v173
  %v182 = vrsqrt.pop %v174
  %v183 = vrsqrt.pop %v175
  %v184 = vrsqrt.pop %v176
  %v185 = vrsqrt.pop %v177
  %v186 = vrsqrt.pop %v178
  %v187 = vrsqrt.pop %v179
  %v188 = vrsqrt.pop %v180
  %v189 = vmul.f32 %v125, %v181
  %v190 = vmul.f32 %v126, %v182
  %v191 = vmul.f32 %v127, %v183
  %v192 = vmul.f32 %v128, %v184
  %v193 = vmul.f32 %v129, %v185
  %v194 = vmul.f32 %v130, %v186
  %v195 = vmul.f32 %v131, %v187
  %v196 = vmul.f32 %v132, %v188
  %v198 = vlaneseq
  %v199 = vshrl.u32 %v198, 7
  %v200 = vsub.s32 0, %v199
  %v201 = vrot.slane %v89, %v200
  %v203 = vmul.f32 %v189, %v201
  %v204 = vmul.f32 %v190, %v201
  %v205 = vmul.f32 %v191, %v201
  %v206 = vmul.f32 %v192, %v201
  %v207 = vmul.f32 %v193, %v201
  %v208 = vmul.f32 %v194, %v201
  %v209 = vmul.f32 %v195, %v201
  %v210 = vmul.f32 %v196, %v201
  %v212 = vlaneseq
  %v213 = vshrl.u32 %v212, 7
  %v214 = vsub.s32 0, %v213
  %v215 = vrot.slane %v90, %v214
  %v217 = vadd.f32 %v203, %v215
  %v218 = vadd.f32 %v204, %v215
  %v219 = vadd.f32 %v205, %v215
  %v220 = vadd.f32 %v206, %v215
  %v221 = vadd.f32 %v207, %v215
  %v222 = vadd.f32 %v208, %v215
  %v223 = vadd.f32 %v209, %v215
  %v224 = vadd.f32 %v210, %v215
  %v225 = vpack.c.bf16 %v218, %v217
  %v226 = vpack.c.bf16 %v220, %v219
  %v227 = vpack.c.bf16 %v222, %v221
  %v228 = vpack.c.bf16 %v224, %v223
  %v229 = vld [vmem:[%s3] sm:$0xf]
  %v230 = vld [vmem:[%s3 + $0x4] sm:$0xf]
  %v231 = vld [vmem:[%s3 + $0x8] sm:$0xf]
  %v232 = vld [vmem:[%s3 + $0xc] sm:$0xf]
  %v237 = vunpack.c.l.b16 %v229
  %v238 = vunpack.c.l.b16 %v230
  %v239 = vunpack.c.l.b16 %v231
  %v240 = vunpack.c.l.b16 %v232
  %v241 = vpack.c.b16 %v238, %v237
  %v242 = vpack.c.b16 %v240, %v239
  %v246 = vsel %vm91, %v225, 0
  %v249 = vsel %vm91, %v226, 0
  %v252 = vsel %vm91, %v227, 0
  %v255 = vsel %vm91, %v228, 0
  %257 = vmatprep.subr.bf16.mxu0 0
  %258 = vmatpush1.bf16.msra.mxu0 %v241
  %259 = vmatprep.subr.bf16.mxu0 0
  %260 = vmatpush1.bf16.msra.mxu0 %v242
  %261 = vmatprep.subr.bf16.mxu0 0
  %262 = vmatpush1.bf16.msra.mxu0 0
  %263 = vmatprep.subr.bf16.mxu0 0
  %264 = vmatpush1.bf16.msra.mxu0 0
  %265 = vmatprep.subr.bf16.mxu0 0
  %266 = vmatpush1.bf16.msra.mxu0 0
  %267 = vmatprep.subr.bf16.mxu0 0
  %268 = vmatpush1.bf16.msra.mxu0 0
  %269 = vmatprep.subr.bf16.mxu0 0
  %270 = vmatpush1.bf16.msra.mxu0 0
  %271 = vmatprep.subr.bf16.mxu0 0
  %272 = vmatpush1.bf16.msra.mxu0 0
  %273 = vmatprep.subr.bf16.mxu0 0
  %274 = vmatpush1.bf16.msra.mxu0 0
  %275 = vmatprep.subr.bf16.mxu0 0
  %276 = vmatpush1.bf16.msra.mxu0 0
  %277 = vmatprep.subr.bf16.mxu0 0
  %278 = vmatpush1.bf16.msra.mxu0 0
  %279 = vmatprep.subr.bf16.mxu0 0
  %280 = vmatpush1.bf16.msra.mxu0 0
  %281 = vmatprep.subr.bf16.mxu0 0
  %282 = vmatpush1.bf16.msra.mxu0 0
  %283 = vmatprep.subr.bf16.mxu0 0
  %284 = vmatpush1.bf16.msra.mxu0 0
  %285 = vmatprep.subr.bf16.mxu0 0
  %286 = vmatpush1.bf16.msra.mxu0 0
  %287 = vmatprep.subr.bf16.mxu0 0
  %288 = vmatpush1.bf16.msra.mxu0 0
  %289 = vmatprep.mubr.bf16.mxu0 0
  %290 = vmatmul.mubr.bf16.gmra.mrb[0].mxu0 %v246
  %v291 = vpop.f32.mrb[0].mxu0
  %v292 = vadd.f32 0.0, %v291
  %v293 = vpop.f32.mrb[0].mxu0
  %v294 = vpop.f32.mrb[0].mxu0
  %v295 = vadd.f32 0.0, %v294
  %v296 = vpop.f32.mrb[0].mxu0
  %297 = vmatprep.mubr.bf16.mxu0 0
  %298 = vmatmul.mubr.bf16.gmra.mrb[0].mxu0 %v249
  %v299 = vpop.f32.mrb[0].mxu0
  %v300 = vadd.f32 0.0, %v299
  %v301 = vpop.f32.mrb[0].mxu0
  %v302 = vpop.f32.mrb[0].mxu0
  %v303 = vadd.f32 0.0, %v302
  %v304 = vpop.f32.mrb[0].mxu0
  %305 = vmatprep.mubr.bf16.mxu0 0
  %306 = vmatmul.mubr.bf16.gmra.mrb[0].mxu0 %v252
  %v307 = vpop.f32.mrb[0].mxu0
  %v308 = vadd.f32 0.0, %v307
  %v309 = vpop.f32.mrb[0].mxu0
  %v310 = vpop.f32.mrb[0].mxu0
  %v311 = vadd.f32 0.0, %v310
  %v312 = vpop.f32.mrb[0].mxu0
  %313 = vmatprep.mubr.bf16.mxu0 0
  %314 = vmatmul.mubr.bf16.gmra.mrb[0].mxu0 %v255
  %v315 = vpop.f32.mrb[0].mxu0
  %v316 = vadd.f32 0.0, %v315
  %v317 = vpop.f32.mrb[0].mxu0
  %v318 = vpop.f32.mrb[0].mxu0
  %v319 = vadd.f32 0.0, %v318
  %v320 = vpop.f32.mrb[0].mxu0
  %321 = vdwg.mxu0
  %v322 = vld [vmem:[%s4] sm:$0xf]
  %v323 = vld [vmem:[%s4 + $0x4] sm:$0xf]
  %v324 = vld [vmem:[%s4 + $0x8] sm:$0xf]
  %v325 = vld [vmem:[%s4 + $0xc] sm:$0xf]
  %v330 = vunpack.c.l.b16 %v322
  %v331 = vunpack.c.l.b16 %v323
  %v332 = vunpack.c.l.b16 %v324
  %v333 = vunpack.c.l.b16 %v325
  %v334 = vpack.c.b16 %v331, %v330
  %v335 = vpack.c.b16 %v333, %v332
  %338 = vmatprep.subr.bf16.mxu0 0
  %339 = vmatpush1.bf16.msra.mxu0 %v334
  %340 = vmatprep.subr.bf16.mxu0 0
  %341 = vmatpush1.bf16.msra.mxu0 %v335
  %342 = vmatprep.subr.bf16.mxu0 0
  %343 = vmatpush1.bf16.msra.mxu0 0
  %344 = vmatprep.subr.bf16.mxu0 0
  %345 = vmatpush1.bf16.msra.mxu0 0
  %346 = vmatprep.subr.bf16.mxu0 0
  %347 = vmatpush1.bf16.msra.mxu0 0
  %348 = vmatprep.subr.bf16.mxu0 0
  %349 = vmatpush1.bf16.msra.mxu0 0
  %350 = vmatprep.subr.bf16.mxu0 0
  %351 = vmatpush1.bf16.msra.mxu0 0
  %352 = vmatprep.subr.bf16.mxu0 0
  %353 = vmatpush1.bf16.msra.mxu0 0
  %354 = vmatprep.subr.bf16.mxu0 0
  %355 = vmatpush1.bf16.msra.mxu0 0
  %356 = vmatprep.subr.bf16.mxu0 0
  %357 = vmatpush1.bf16.msra.mxu0 0
  %358 = vmatprep.subr.bf16.mxu0 0
  %359 = vmatpush1.bf16.msra.mxu0 0
  %360 = vmatprep.subr.bf16.mxu0 0
  %361 = vmatpush1.bf16.msra.mxu0 0
  %362 = vmatprep.subr.bf16.mxu0 0
  %363 = vmatpush1.bf16.msra.mxu0 0
  %364 = vmatprep.subr.bf16.mxu0 0
  %365 = vmatpush1.bf16.msra.mxu0 0
  %366 = vmatprep.subr.bf16.mxu0 0
  %367 = vmatpush1.bf16.msra.mxu0 0
  %368 = vmatprep.subr.bf16.mxu0 0
  %369 = vmatpush1.bf16.msra.mxu0 0
  %370 = vmatprep.mubr.bf16.mxu0 0
  %371 = vmatmul.mubr.bf16.gmra.mrb[0].mxu0 %v246
  %v372 = vpop.f32.mrb[0].mxu0
  %v373 = vadd.f32 0.0, %v372
  %v374 = vpop.f32.mrb[0].mxu0
  %v375 = vpop.f32.mrb[0].mxu0
  %v376 = vadd.f32 0.0, %v375
  %v377 = vpop.f32.mrb[0].mxu0
  %378 = vmatprep.mubr.bf16.mxu0 0
  %379 = vmatmul.mubr.bf16.gmra.mrb[0].mxu0 %v249
  %v380 = vpop.f32.mrb[0].mxu0
  %v381 = vadd.f32 0.0, %v380
  %v382 = vpop.f32.mrb[0].mxu0
  %v383 = vpop.f32.mrb[0].mxu0
  %v384 = vadd.f32 0.0, %v383
  %v385 = vpop.f32.mrb[0].mxu0
  %386 = vmatprep.mubr.bf16.mxu0 0
  %387 = vmatmul.mubr.bf16.gmra.mrb[0].mxu0 %v252
  %v388 = vpop.f32.mrb[0].mxu0
  %v389 = vadd.f32 0.0, %v388
  %v390 = vpop.f32.mrb[0].mxu0
  %v391 = vpop.f32.mrb[0].mxu0
  %v392 = vadd.f32 0.0, %v391
  %v393 = vpop.f32.mrb[0].mxu0
  %394 = vmatprep.mubr.bf16.mxu0 0
  %395 = vmatmul.mubr.bf16.gmra.mrb[0].mxu0 %v255
  %v396 = vpop.f32.mrb[0].mxu0
  %v397 = vadd.f32 0.0, %v396
  %v398 = vpop.f32.mrb[0].mxu0
  %v399 = vpop.f32.mrb[0].mxu0
  %v400 = vadd.f32 0.0, %v399
  %v401 = vpop.f32.mrb[0].mxu0
  %402 = vdwg.mxu0
  %v403 = vld [vmem:[%s5] sm:$0xf]
  %v404 = vld [vmem:[%s5 + $0x4] sm:$0xf]
  %v405 = vld [vmem:[%s5 + $0x8] sm:$0xf]
  %v406 = vld [vmem:[%s5 + $0xc] sm:$0xf]
  %v411 = vunpack.c.l.b16 %v403
  %v412 = vunpack.c.l.b16 %v404
  %v413 = vunpack.c.l.b16 %v405
  %v414 = vunpack.c.l.b16 %v406
  %v415 = vpack.c.b16 %v412, %v411
  %v416 = vpack.c.b16 %v414, %v413
  %419 = vmatprep.subr.bf16.mxu0 0
  %420 = vmatpush1.bf16.msra.mxu0 %v415
  %421 = vmatprep.subr.bf16.mxu0 0
  %422 = vmatpush1.bf16.msra.mxu0 %v416
  %423 = vmatprep.subr.bf16.mxu0 0
  %424 = vmatpush1.bf16.msra.mxu0 0
  %425 = vmatprep.subr.bf16.mxu0 0
  %426 = vmatpush1.bf16.msra.mxu0 0
  %427 = vmatprep.subr.bf16.mxu0 0
  %428 = vmatpush1.bf16.msra.mxu0 0
  %429 = vmatprep.subr.bf16.mxu0 0
  %430 = vmatpush1.bf16.msra.mxu0 0
  %431 = vmatprep.subr.bf16.mxu0 0
  %432 = vmatpush1.bf16.msra.mxu0 0
  %433 = vmatprep.subr.bf16.mxu0 0
  %434 = vmatpush1.bf16.msra.mxu0 0
  %435 = vmatprep.subr.bf16.mxu0 0
  %436 = vmatpush1.bf16.msra.mxu0 0
  %437 = vmatprep.subr.bf16.mxu0 0
  %438 = vmatpush1.bf16.msra.mxu0 0
  %439 = vmatprep.subr.bf16.mxu0 0
  %440 = vmatpush1.bf16.msra.mxu0 0
  %441 = vmatprep.subr.bf16.mxu0 0
  %442 = vmatpush1.bf16.msra.mxu0 0
  %443 = vmatprep.subr.bf16.mxu0 0
  %444 = vmatpush1.bf16.msra.mxu0 0
  %445 = vmatprep.subr.bf16.mxu0 0
  %446 = vmatpush1.bf16.msra.mxu0 0
  %447 = vmatprep.subr.bf16.mxu0 0
  %448 = vmatpush1.bf16.msra.mxu0 0
  %449 = vmatprep.subr.bf16.mxu0 0
  %450 = vmatpush1.bf16.msra.mxu0 0
  %451 = vmatprep.mubr.bf16.mxu0 0
  %452 = vmatmul.mubr.bf16.gmra.mrb[0].mxu0 %v246
  %v453 = vpop.f32.mrb[0].mxu0
  %v454 = vadd.f32 0.0, %v453
  %v455 = vpop.f32.mrb[0].mxu0
  %v456 = vpop.f32.mrb[0].mxu0
  %v457 = vadd.f32 0.0, %v456
  %v458 = vpop.f32.mrb[0].mxu0
  %459 = vmatprep.mubr.bf16.mxu0 0
  %460 = vmatmul.mubr.bf16.gmra.mrb[0].mxu0 %v249
  %v461 = vpop.f32.mrb[0].mxu0
  %v462 = vadd.f32 0.0, %v461
  %v463 = vpop.f32.mrb[0].mxu0
  %v464 = vpop.f32.mrb[0].mxu0
  %v465 = vadd.f32 0.0, %v464
  %v466 = vpop.f32.mrb[0].mxu0
  %467 = vmatprep.mubr.bf16.mxu0 0
  %468 = vmatmul.mubr.bf16.gmra.mrb[0].mxu0 %v252
  %v469 = vpop.f32.mrb[0].mxu0
  %v470 = vadd.f32 0.0, %v469
  %v471 = vpop.f32.mrb[0].mxu0
  %v472 = vpop.f32.mrb[0].mxu0
  %v473 = vadd.f32 0.0, %v472
  %v474 = vpop.f32.mrb[0].mxu0
  %475 = vmatprep.mubr.bf16.mxu0 0
  %476 = vmatmul.mubr.bf16.gmra.mrb[0].mxu0 %v255
  %v477 = vpop.f32.mrb[0].mxu0
  %v478 = vadd.f32 0.0, %v477
  %v479 = vpop.f32.mrb[0].mxu0
  %v480 = vpop.f32.mrb[0].mxu0
  %v481 = vadd.f32 0.0, %v480
  %v482 = vpop.f32.mrb[0].mxu0
  %483 = vdwg.mxu0
  %v485 = vrot.slane %v400, 7
  %vm494 = vcmask 1040384
  %v495 = vrot.slane %v373, 7
  %v496 = vrot.slane %v376, 7
  %v497 = vsel %vm494, %v495, %v496
  %v498 = vrot.slane %v381, 7
  %v499 = vsel %vm494, %v496, %v498
  %v500 = vrot.slane %v384, 7
  %v501 = vsel %vm494, %v498, %v500
  %v502 = vrot.slane %v389, 7
  %v503 = vsel %vm494, %v500, %v502
  %v504 = vrot.slane %v392, 7
  %v505 = vsel %vm494, %v502, %v504
  %v506 = vrot.slane %v397, 7
  %v507 = vsel %vm494, %v504, %v506
  %v508 = vsel %vm494, %v506, %v485
  %v517 = vsel %vm494, %v485, %v495
  %v518 = vmul.f32 %v292, %v517
  %v519 = vmul.f32 %v295, %v497
  %v520 = vmul.f32 %v300, %v499
  %v521 = vmul.f32 %v303, %v501
  %v522 = vmul.f32 %v308, %v503
  %v523 = vmul.f32 %v311, %v505
  %v524 = vmul.f32 %v316, %v507
  %v525 = vmul.f32 %v319, %v508
  %vm526 = vcmask 130048
  %v527 = vsel %vm526, %v518, 0.0
  %528 = vadd.xlane.f32.xlu0 %v527
  %v529 = vpop.xlane.xlu0 %528
  %v530 = vsel %vm526, %v519, 0.0
  %531 = vadd.xlane.f32.xlu0 %v530
  %v532 = vpop.xlane.xlu0 %531
  %v533 = vsel %vm526, %v520, 0.0
  %534 = vadd.xlane.f32.xlu0 %v533
  %v535 = vpop.xlane.xlu0 %534
  %v536 = vsel %vm526, %v521, 0.0
  %537 = vadd.xlane.f32.xlu0 %v536
  %v538 = vpop.xlane.xlu0 %537
  %v539 = vsel %vm526, %v522, 0.0
  %540 = vadd.xlane.f32.xlu0 %v539
  %v541 = vpop.xlane.xlu0 %540
  %v542 = vsel %vm526, %v523, 0.0
  %543 = vadd.xlane.f32.xlu0 %v542
  %v544 = vpop.xlane.xlu0 %543
  %v545 = vsel %vm526, %v524, 0.0
  %546 = vadd.xlane.f32.xlu0 %v545
  %v547 = vpop.xlane.xlu0 %546
  %v548 = vsel %vm526, %v525, 0.0
  %549 = vadd.xlane.f32.xlu0 %v548
  %v550 = vpop.xlane.xlu0 %549
  %v551 = vmul.f32 %v529, 0.25
  %v552 = vmul.f32 %v532, 0.25
  %v553 = vmul.f32 %v535, 0.25
  %v554 = vmul.f32 %v538, 0.25
  %v555 = vmul.f32 %v541, 0.25
  %v556 = vmul.f32 %v544, 0.25
  %v557 = vmul.f32 %v547, 0.25
  %v558 = vmul.f32 %v550, 0.25
  %v559 = vadd.s32 %v81, 4294967295
  %v560 = vadd.s32 %v82, 4294967295
  %v561 = vadd.s32 %v83, 4294967295
  %v562 = vadd.s32 %v84, 4294967295
  %v563 = vadd.s32 %v85, 4294967295
  %v564 = vadd.s32 %v86, 4294967295
  %v565 = vadd.s32 %v87, 4294967295
  %v566 = vadd.s32 %v88, 4294967295
  %vm567 = vcmp.ge.s32.totalorder %v559, 0
  %vm568 = vcmp.ge.s32.totalorder %v560, 0
  %vm569 = vcmp.ge.s32.totalorder %v561, 0
  %vm570 = vcmp.ge.s32.totalorder %v562, 0
  %vm571 = vcmp.ge.s32.totalorder %v563, 0
  %vm572 = vcmp.ge.s32.totalorder %v564, 0
  %vm573 = vcmp.ge.s32.totalorder %v565, 0
  %vm574 = vcmp.ge.s32.totalorder %v566, 0
  %vm575 = vcmp.lt.s32.totalorder %v559, 2
  %vm576 = vcmp.lt.s32.totalorder %v560, 2
  %vm577 = vcmp.lt.s32.totalorder %v561, 2
  %vm578 = vcmp.lt.s32.totalorder %v562, 2
  %vm579 = vcmp.lt.s32.totalorder %v563, 2
  %vm580 = vcmp.lt.s32.totalorder %v564, 2
  %vm581 = vcmp.lt.s32.totalorder %v565, 2
  %vm582 = vcmp.lt.s32.totalorder %v566, 2
  %vm583 = vmand %vm567, %vm575
  %vm584 = vmand %vm568, %vm576
  %vm585 = vmand %vm569, %vm577
  %vm586 = vmand %vm570, %vm578
  %vm587 = vmand %vm571, %vm579
  %vm588 = vmand %vm572, %vm580
  %vm589 = vmand %vm573, %vm581
  %vm590 = vmand %vm574, %vm582
  %v591 = vsel %vm583, %v551, -1e+30
  %v592 = vsel %vm584, %v552, -1e+30
  %v593 = vsel %vm585, %v553, -1e+30
  %v594 = vsel %vm586, %v554, -1e+30
  %v595 = vsel %vm587, %v555, -1e+30
  %v596 = vsel %vm588, %v556, -1e+30
  %v597 = vsel %vm589, %v557, -1e+30
  %v598 = vsel %vm590, %v558, -1e+30
  %v599 = vmul.f32 %v292, %v373
  %v600 = vmul.f32 %v295, %v376
  %v601 = vmul.f32 %v300, %v381
  %v602 = vmul.f32 %v303, %v384
  %v603 = vmul.f32 %v308, %v389
  %v604 = vmul.f32 %v311, %v392
  %v605 = vmul.f32 %v316, %v397
  %v606 = vmul.f32 %v319, %v400
  %v607 = vsel %vm526, %v599, 0.0
  %608 = vadd.xlane.f32.xlu0 %v607
  %v609 = vpop.xlane.xlu0 %608
  %v610 = vsel %vm526, %v600, 0.0
  %611 = vadd.xlane.f32.xlu0 %v610
  %v612 = vpop.xlane.xlu0 %611
  %v613 = vsel %vm526, %v601, 0.0
  %614 = vadd.xlane.f32.xlu0 %v613
  %v615 = vpop.xlane.xlu0 %614
  %v616 = vsel %vm526, %v602, 0.0
  %617 = vadd.xlane.f32.xlu0 %v616
  %v618 = vpop.xlane.xlu0 %617
  %v619 = vsel %vm526, %v603, 0.0
  %620 = vadd.xlane.f32.xlu0 %v619
  %v621 = vpop.xlane.xlu0 %620
  %v622 = vsel %vm526, %v604, 0.0
  %623 = vadd.xlane.f32.xlu0 %v622
  %v624 = vpop.xlane.xlu0 %623
  %v625 = vsel %vm526, %v605, 0.0
  %626 = vadd.xlane.f32.xlu0 %v625
  %v627 = vpop.xlane.xlu0 %626
  %v628 = vsel %vm526, %v606, 0.0
  %629 = vadd.xlane.f32.xlu0 %v628
  %v630 = vpop.xlane.xlu0 %629
  %v631 = vmul.f32 %v609, 0.25
  %v632 = vmul.f32 %v612, 0.25
  %v633 = vmul.f32 %v615, 0.25
  %v634 = vmul.f32 %v618, 0.25
  %v635 = vmul.f32 %v621, 0.25
  %v636 = vmul.f32 %v624, 0.25
  %v637 = vmul.f32 %v627, 0.25
  %v638 = vmul.f32 %v630, 0.25
  %vm639 = vcmp.ge.s32.totalorder %v81, 0
  %vm640 = vcmp.ge.s32.totalorder %v82, 0
  %vm641 = vcmp.ge.s32.totalorder %v83, 0
  %vm642 = vcmp.ge.s32.totalorder %v84, 0
  %vm643 = vcmp.ge.s32.totalorder %v85, 0
  %vm644 = vcmp.ge.s32.totalorder %v86, 0
  %vm645 = vcmp.ge.s32.totalorder %v87, 0
  %vm646 = vcmp.ge.s32.totalorder %v88, 0
  %vm647 = vcmp.lt.s32.totalorder %v81, 2
  %vm648 = vcmp.lt.s32.totalorder %v82, 2
  %vm649 = vcmp.lt.s32.totalorder %v83, 2
  %vm650 = vcmp.lt.s32.totalorder %v84, 2
  %vm651 = vcmp.lt.s32.totalorder %v85, 2
  %vm652 = vcmp.lt.s32.totalorder %v86, 2
  %vm653 = vcmp.lt.s32.totalorder %v87, 2
  %vm654 = vcmp.lt.s32.totalorder %v88, 2
  %vm655 = vmand %vm639, %vm647
  %vm656 = vmand %vm640, %vm648
  %vm657 = vmand %vm641, %vm649
  %vm658 = vmand %vm642, %vm650
  %vm659 = vmand %vm643, %vm651
  %vm660 = vmand %vm644, %vm652
  %vm661 = vmand %vm645, %vm653
  %vm662 = vmand %vm646, %vm654
  %v663 = vsel %vm655, %v631, -1e+30
  %v664 = vsel %vm656, %v632, -1e+30
  %v665 = vsel %vm657, %v633, -1e+30
  %v666 = vsel %vm658, %v634, -1e+30
  %v667 = vsel %vm659, %v635, -1e+30
  %v668 = vsel %vm660, %v636, -1e+30
  %v669 = vsel %vm661, %v637, -1e+30
  %v670 = vsel %vm662, %v638, -1e+30
  %vm671 = vcmask 1046528
  %v672 = vrot.slane %v373, 1
  %v673 = vrot.slane %v376, 1
  %v674 = vsel %vm671, %v672, %v673
  %v675 = vrot.slane %v381, 1
  %v676 = vsel %vm671, %v673, %v675
  %v677 = vrot.slane %v384, 1
  %v678 = vsel %vm671, %v675, %v677
  %v679 = vrot.slane %v389, 1
  %v680 = vsel %vm671, %v677, %v679
  %v681 = vrot.slane %v392, 1
  %v682 = vsel %vm671, %v679, %v681
  %v683 = vrot.slane %v397, 1
  %v684 = vsel %vm671, %v681, %v683
  %v685 = vrot.slane %v400, 1
  %v686 = vsel %vm671, %v683, %v685
  %v696 = vsel %vm671, %v685, %v672
  %v697 = vmul.f32 %v292, %v674
  %v698 = vmul.f32 %v295, %v676
  %v699 = vmul.f32 %v300, %v678
  %v700 = vmul.f32 %v303, %v680
  %v701 = vmul.f32 %v308, %v682
  %v702 = vmul.f32 %v311, %v684
  %v703 = vmul.f32 %v316, %v686
  %v704 = vmul.f32 %v319, %v696
  %v705 = vsel %vm526, %v697, 0.0
  %706 = vadd.xlane.f32.xlu0 %v705
  %v707 = vpop.xlane.xlu0 %706
  %v708 = vsel %vm526, %v698, 0.0
  %709 = vadd.xlane.f32.xlu0 %v708
  %v710 = vpop.xlane.xlu0 %709
  %v711 = vsel %vm526, %v699, 0.0
  %712 = vadd.xlane.f32.xlu0 %v711
  %v713 = vpop.xlane.xlu0 %712
  %v714 = vsel %vm526, %v700, 0.0
  %715 = vadd.xlane.f32.xlu0 %v714
  %v716 = vpop.xlane.xlu0 %715
  %v717 = vsel %vm526, %v701, 0.0
  %718 = vadd.xlane.f32.xlu0 %v717
  %v719 = vpop.xlane.xlu0 %718
  %v720 = vsel %vm526, %v702, 0.0
  %721 = vadd.xlane.f32.xlu0 %v720
  %v722 = vpop.xlane.xlu0 %721
  %v723 = vsel %vm526, %v703, 0.0
  %724 = vadd.xlane.f32.xlu0 %v723
  %v725 = vpop.xlane.xlu0 %724
  %v726 = vsel %vm526, %v704, 0.0
  %727 = vadd.xlane.f32.xlu0 %v726
  %v728 = vpop.xlane.xlu0 %727
  %v729 = vmul.f32 %v707, 0.25
  %v730 = vmul.f32 %v710, 0.25
  %v731 = vmul.f32 %v713, 0.25
  %v732 = vmul.f32 %v716, 0.25
  %v733 = vmul.f32 %v719, 0.25
  %v734 = vmul.f32 %v722, 0.25
  %v735 = vmul.f32 %v725, 0.25
  %v736 = vmul.f32 %v728, 0.25
  %v737 = vadd.s32 %v81, 1
  %v738 = vadd.s32 %v82, 1
  %v739 = vadd.s32 %v83, 1
  %v740 = vadd.s32 %v84, 1
  %v741 = vadd.s32 %v85, 1
  %v742 = vadd.s32 %v86, 1
  %v743 = vadd.s32 %v87, 1
  %v744 = vadd.s32 %v88, 1
  %vm745 = vcmp.ge.s32.totalorder %v737, 0
  %vm746 = vcmp.ge.s32.totalorder %v738, 0
  %vm747 = vcmp.ge.s32.totalorder %v739, 0
  %vm748 = vcmp.ge.s32.totalorder %v740, 0
  %vm749 = vcmp.ge.s32.totalorder %v741, 0
  %vm750 = vcmp.ge.s32.totalorder %v742, 0
  %vm751 = vcmp.ge.s32.totalorder %v743, 0
  %vm752 = vcmp.ge.s32.totalorder %v744, 0
  %vm753 = vcmp.lt.s32.totalorder %v737, 2
  %vm754 = vcmp.lt.s32.totalorder %v738, 2
  %vm755 = vcmp.lt.s32.totalorder %v739, 2
  %vm756 = vcmp.lt.s32.totalorder %v740, 2
  %vm757 = vcmp.lt.s32.totalorder %v741, 2
  %vm758 = vcmp.lt.s32.totalorder %v742, 2
  %vm759 = vcmp.lt.s32.totalorder %v743, 2
  %vm760 = vcmp.lt.s32.totalorder %v744, 2
  %vm761 = vmand %vm745, %vm753
  %vm762 = vmand %vm746, %vm754
  %vm763 = vmand %vm747, %vm755
  %vm764 = vmand %vm748, %vm756
  %vm765 = vmand %vm749, %vm757
  %vm766 = vmand %vm750, %vm758
  %vm767 = vmand %vm751, %vm759
  %vm768 = vmand %vm752, %vm760
  %v769 = vsel %vm761, %v729, -1e+30
  %v770 = vsel %vm762, %v730, -1e+30
  %v771 = vsel %vm763, %v731, -1e+30
  %v772 = vsel %vm764, %v732, -1e+30
  %v773 = vsel %vm765, %v733, -1e+30
  %v774 = vsel %vm766, %v734, -1e+30
  %v775 = vsel %vm767, %v735, -1e+30
  %v776 = vsel %vm768, %v736, -1e+30
  %v777 = vmax.f32 %v591, %v663
  %v778 = vmax.f32 %v592, %v664
  %v779 = vmax.f32 %v593, %v665
  %v780 = vmax.f32 %v594, %v666
  %v781 = vmax.f32 %v595, %v667
  %v782 = vmax.f32 %v596, %v668
  %v783 = vmax.f32 %v597, %v669
  %v784 = vmax.f32 %v598, %v670
  %v785 = vmax.f32 %v777, %v769
  %v786 = vmax.f32 %v778, %v770
  %v787 = vmax.f32 %v779, %v771
  %v788 = vmax.f32 %v780, %v772
  %v789 = vmax.f32 %v781, %v773
  %v790 = vmax.f32 %v782, %v774
  %v791 = vmax.f32 %v783, %v775
  %v792 = vmax.f32 %v784, %v776
  %v793 = vsub.f32 %v591, %v785
  %v794 = vsub.f32 %v592, %v786
  %v795 = vsub.f32 %v593, %v787
  %v796 = vsub.f32 %v594, %v788
  %v797 = vsub.f32 %v595, %v789
  %v798 = vsub.f32 %v596, %v790
  %v799 = vsub.f32 %v597, %v791
  %v800 = vsub.f32 %v598, %v792
  %v801 = vmul.f32 %v793, 1.442695
  %v802 = vpow.pop %v801
  %v803 = vmul.f32 %v794, 1.442695
  %v804 = vpow.pop %v803
  %v805 = vmul.f32 %v795, 1.442695
  %v806 = vpow.pop %v805
  %v807 = vmul.f32 %v796, 1.442695
  %v808 = vpow.pop %v807
  %v809 = vmul.f32 %v797, 1.442695
  %v810 = vpow.pop %v809
  %v811 = vmul.f32 %v798, 1.442695
  %v812 = vpow.pop %v811
  %v813 = vmul.f32 %v799, 1.442695
  %v814 = vpow.pop %v813
  %v815 = vmul.f32 %v800, 1.442695
  %v816 = vpow.pop %v815
  %v817 = vsub.f32 %v663, %v785
  %v818 = vsub.f32 %v664, %v786
  %v819 = vsub.f32 %v665, %v787
  %v820 = vsub.f32 %v666, %v788
  %v821 = vsub.f32 %v667, %v789
  %v822 = vsub.f32 %v668, %v790
  %v823 = vsub.f32 %v669, %v791
  %v824 = vsub.f32 %v670, %v792
  %v825 = vmul.f32 %v817, 1.442695
  %v826 = vpow.pop %v825
  %v827 = vmul.f32 %v818, 1.442695
  %v828 = vpow.pop %v827
  %v829 = vmul.f32 %v819, 1.442695
  %v830 = vpow.pop %v829
  %v831 = vmul.f32 %v820, 1.442695
  %v832 = vpow.pop %v831
  %v833 = vmul.f32 %v821, 1.442695
  %v834 = vpow.pop %v833
  %v835 = vmul.f32 %v822, 1.442695
  %v836 = vpow.pop %v835
  %v837 = vmul.f32 %v823, 1.442695
  %v838 = vpow.pop %v837
  %v839 = vmul.f32 %v824, 1.442695
  %v840 = vpow.pop %v839
  %v841 = vsub.f32 %v769, %v785
  %v842 = vsub.f32 %v770, %v786
  %v843 = vsub.f32 %v771, %v787
  %v844 = vsub.f32 %v772, %v788
  %v845 = vsub.f32 %v773, %v789
  %v846 = vsub.f32 %v774, %v790
  %v847 = vsub.f32 %v775, %v791
  %v848 = vsub.f32 %v776, %v792
  %v849 = vmul.f32 %v841, 1.442695
  %v850 = vpow.pop %v849
  %v851 = vmul.f32 %v842, 1.442695
  %v852 = vpow.pop %v851
  %v853 = vmul.f32 %v843, 1.442695
  %v854 = vpow.pop %v853
  %v855 = vmul.f32 %v844, 1.442695
  %v856 = vpow.pop %v855
  %v857 = vmul.f32 %v845, 1.442695
  %v858 = vpow.pop %v857
  %v859 = vmul.f32 %v846, 1.442695
  %v860 = vpow.pop %v859
  %v861 = vmul.f32 %v847, 1.442695
  %v862 = vpow.pop %v861
  %v863 = vmul.f32 %v848, 1.442695
  %v864 = vpow.pop %v863
  %v865 = vadd.f32 %v802, %v826
  %v866 = vadd.f32 %v804, %v828
  %v867 = vadd.f32 %v806, %v830
  %v868 = vadd.f32 %v808, %v832
  %v869 = vadd.f32 %v810, %v834
  %v870 = vadd.f32 %v812, %v836
  %v871 = vadd.f32 %v814, %v838
  %v872 = vadd.f32 %v816, %v840
  %v873 = vadd.f32 %v865, %v850
  %v874 = vadd.f32 %v866, %v852
  %v875 = vadd.f32 %v867, %v854
  %v876 = vadd.f32 %v868, %v856
  %v877 = vadd.f32 %v869, %v858
  %v878 = vadd.f32 %v870, %v860
  %v879 = vadd.f32 %v871, %v862
  %v880 = vadd.f32 %v872, %v864
  %v881 = vrcp.pop %v873
  %v882 = vrcp.pop %v874
  %v883 = vrcp.pop %v875
  %v884 = vrcp.pop %v876
  %v885 = vrcp.pop %v877
  %v886 = vrcp.pop %v878
  %v887 = vrcp.pop %v879
  %v888 = vrcp.pop %v880
  %v889 = vmul.f32 %v802, %v881
  %v890 = vmul.f32 %v804, %v882
  %v891 = vmul.f32 %v806, %v883
  %v892 = vmul.f32 %v808, %v884
  %v893 = vmul.f32 %v810, %v885
  %v894 = vmul.f32 %v812, %v886
  %v895 = vmul.f32 %v814, %v887
  %v896 = vmul.f32 %v816, %v888
  %v898 = vrot.slane %v481, 7
  %v907 = vrot.slane %v454, 7
  %v908 = vrot.slane %v457, 7
  %v909 = vsel %vm494, %v907, %v908
  %v910 = vrot.slane %v462, 7
  %v911 = vsel %vm494, %v908, %v910
  %v912 = vrot.slane %v465, 7
  %v913 = vsel %vm494, %v910, %v912
  %v914 = vrot.slane %v470, 7
  %v915 = vsel %vm494, %v912, %v914
  %v916 = vrot.slane %v473, 7
  %v917 = vsel %vm494, %v914, %v916
  %v918 = vrot.slane %v478, 7
  %v919 = vsel %vm494, %v916, %v918
  %v920 = vsel %vm494, %v918, %v898
  %v929 = vsel %vm494, %v898, %v907
  %v930 = vmul.f32 %v889, %v929
  %v931 = vmul.f32 %v890, %v909
  %v932 = vmul.f32 %v891, %v911
  %v933 = vmul.f32 %v892, %v913
  %v934 = vmul.f32 %v893, %v915
  %v935 = vmul.f32 %v894, %v917
  %v936 = vmul.f32 %v895, %v919
  %v937 = vmul.f32 %v896, %v920
  %v938 = vmul.f32 %v826, %v881
  %v939 = vmul.f32 %v828, %v882
  %v940 = vmul.f32 %v830, %v883
  %v941 = vmul.f32 %v832, %v884
  %v942 = vmul.f32 %v834, %v885
  %v943 = vmul.f32 %v836, %v886
  %v944 = vmul.f32 %v838, %v887
  %v945 = vmul.f32 %v840, %v888
  %v946 = vmul.f32 %v938, %v454
  %v947 = vmul.f32 %v939, %v457
  %v948 = vmul.f32 %v940, %v462
  %v949 = vmul.f32 %v941, %v465
  %v950 = vmul.f32 %v942, %v470
  %v951 = vmul.f32 %v943, %v473
  %v952 = vmul.f32 %v944, %v478
  %v953 = vmul.f32 %v945, %v481
  %v954 = vadd.f32 %v930, %v946
  %v955 = vadd.f32 %v931, %v947
  %v956 = vadd.f32 %v932, %v948
  %v957 = vadd.f32 %v933, %v949
  %v958 = vadd.f32 %v934, %v950
  %v959 = vadd.f32 %v935, %v951
  %v960 = vadd.f32 %v936, %v952
  %v961 = vadd.f32 %v937, %v953
  %v962 = vmul.f32 %v850, %v881
  %v963 = vmul.f32 %v852, %v882
  %v964 = vmul.f32 %v854, %v883
  %v965 = vmul.f32 %v856, %v884
  %v966 = vmul.f32 %v858, %v885
  %v967 = vmul.f32 %v860, %v886
  %v968 = vmul.f32 %v862, %v887
  %v969 = vmul.f32 %v864, %v888
  %v970 = vrot.slane %v454, 1
  %v971 = vrot.slane %v457, 1
  %v972 = vsel %vm671, %v970, %v971
  %v973 = vrot.slane %v462, 1
  %v974 = vsel %vm671, %v971, %v973
  %v975 = vrot.slane %v465, 1
  %v976 = vsel %vm671, %v973, %v975
  %v977 = vrot.slane %v470, 1
  %v978 = vsel %vm671, %v975, %v977
  %v979 = vrot.slane %v473, 1
  %v980 = vsel %vm671, %v977, %v979
  %v981 = vrot.slane %v478, 1
  %v982 = vsel %vm671, %v979, %v981
  %v983 = vrot.slane %v481, 1
  %v984 = vsel %vm671, %v981, %v983
  %v994 = vsel %vm671, %v983, %v970
  %v995 = vmul.f32 %v962, %v972
  %v996 = vmul.f32 %v963, %v974
  %v997 = vmul.f32 %v964, %v976
  %v998 = vmul.f32 %v965, %v978
  %v999 = vmul.f32 %v966, %v980
  %v1000 = vmul.f32 %v967, %v982
  %v1001 = vmul.f32 %v968, %v984
  %v1002 = vmul.f32 %v969, %v994
  %v1003 = vadd.f32 %v954, %v995
  %v1004 = vadd.f32 %v955, %v996
  %v1005 = vadd.f32 %v956, %v997
  %v1006 = vadd.f32 %v957, %v998
  %v1007 = vadd.f32 %v958, %v999
  %v1008 = vadd.f32 %v959, %v1000
  %v1009 = vadd.f32 %v960, %v1001
  %v1010 = vadd.f32 %v961, %v1002
  %v1011 = vpack.c.bf16 %v1004, %v1003
  %v1012 = vpack.c.bf16 %v1006, %v1005
  %v1013 = vpack.c.bf16 %v1008, %v1007
  %v1014 = vpack.c.bf16 %v1010, %v1009
  %v1015 = vld [vmem:[%s6] sm:$0xf]
  %v1016 = vld [vmem:[%s6 + $0x4] sm:$0xf]
  %s1017 = scalar_lea.vmem %s3, 16
  %v1018 = vld [vmem:[%s1017] sm:$0xf]
  %v1019 = vld [vmem:[%s1017 + $0x4] sm:$0xf]
  %v1020 = vld [vmem:[%s1017 + $0x8] sm:$0xf]
  %v1021 = vld [vmem:[%s1017 + $0xc] sm:$0xf]
  %v1026 = vunpack.c.l.b16 %v1018
  %v1027 = vunpack.c.l.b16 %v1019
  %v1028 = vunpack.c.l.b16 %v1020
  %v1029 = vunpack.c.l.b16 %v1021
  %v1030 = vpack.c.b16 %v1027, %v1026
  %v1031 = vpack.c.b16 %v1029, %v1028
  %1034 = vmatprep.subr.bf16.mxu0 0
  %1035 = vmatpush1.bf16.msra.mxu0 %v1030
  %1036 = vmatprep.subr.bf16.mxu0 0
  %1037 = vmatpush1.bf16.msra.mxu0 %v1031
  %1038 = vmatprep.subr.bf16.mxu0 0
  %1039 = vmatpush1.bf16.msra.mxu0 0
  %1040 = vmatprep.subr.bf16.mxu0 0
  %1041 = vmatpush1.bf16.msra.mxu0 0
  %1042 = vmatprep.subr.bf16.mxu0 0
  %1043 = vmatpush1.bf16.msra.mxu0 0
  %1044 = vmatprep.subr.bf16.mxu0 0
  %1045 = vmatpush1.bf16.msra.mxu0 0
  %1046 = vmatprep.subr.bf16.mxu0 0
  %1047 = vmatpush1.bf16.msra.mxu0 0
  %1048 = vmatprep.subr.bf16.mxu0 0
  %1049 = vmatpush1.bf16.msra.mxu0 0
  %1050 = vmatprep.subr.bf16.mxu0 0
  %1051 = vmatpush1.bf16.msra.mxu0 0
  %1052 = vmatprep.subr.bf16.mxu0 0
  %1053 = vmatpush1.bf16.msra.mxu0 0
  %1054 = vmatprep.subr.bf16.mxu0 0
  %1055 = vmatpush1.bf16.msra.mxu0 0
  %1056 = vmatprep.subr.bf16.mxu0 0
  %1057 = vmatpush1.bf16.msra.mxu0 0
  %1058 = vmatprep.subr.bf16.mxu0 0
  %1059 = vmatpush1.bf16.msra.mxu0 0
  %1060 = vmatprep.subr.bf16.mxu0 0
  %1061 = vmatpush1.bf16.msra.mxu0 0
  %1062 = vmatprep.subr.bf16.mxu0 0
  %1063 = vmatpush1.bf16.msra.mxu0 0
  %1064 = vmatprep.subr.bf16.mxu0 0
  %1065 = vmatpush1.bf16.msra.mxu0 0
  %1066 = vmatprep.mubr.bf16.mxu0 0
  %1067 = vmatmul.mubr.bf16.gmra.mrb[0].mxu0 %v246
  %v1068 = vpop.f32.mrb[0].mxu0
  %v1069 = vadd.f32 0.0, %v1068
  %v1070 = vpop.f32.mrb[0].mxu0
  %v1071 = vpop.f32.mrb[0].mxu0
  %v1072 = vadd.f32 0.0, %v1071
  %v1073 = vpop.f32.mrb[0].mxu0
  %1074 = vmatprep.mubr.bf16.mxu0 0
  %1075 = vmatmul.mubr.bf16.gmra.mrb[0].mxu0 %v249
  %v1076 = vpop.f32.mrb[0].mxu0
  %v1077 = vadd.f32 0.0, %v1076
  %v1078 = vpop.f32.mrb[0].mxu0
  %v1079 = vpop.f32.mrb[0].mxu0
  %v1080 = vadd.f32 0.0, %v1079
  %v1081 = vpop.f32.mrb[0].mxu0
  %1082 = vmatprep.mubr.bf16.mxu0 0
  %1083 = vmatmul.mubr.bf16.gmra.mrb[0].mxu0 %v252
  %v1084 = vpop.f32.mrb[0].mxu0
  %v1085 = vadd.f32 0.0, %v1084
  %v1086 = vpop.f32.mrb[0].mxu0
  %v1087 = vpop.f32.mrb[0].mxu0
  %v1088 = vadd.f32 0.0, %v1087
  %v1089 = vpop.f32.mrb[0].mxu0
  %1090 = vmatprep.mubr.bf16.mxu0 0
  %1091 = vmatmul.mubr.bf16.gmra.mrb[0].mxu0 %v255
  %v1092 = vpop.f32.mrb[0].mxu0
  %v1093 = vadd.f32 0.0, %v1092
  %v1094 = vpop.f32.mrb[0].mxu0
  %v1095 = vpop.f32.mrb[0].mxu0
  %v1096 = vadd.f32 0.0, %v1095
  %v1097 = vpop.f32.mrb[0].mxu0
  %1098 = vdwg.mxu0
  %s1099 = scalar_lea.vmem %s4, 16
  %v1100 = vld [vmem:[%s1099] sm:$0xf]
  %v1101 = vld [vmem:[%s1099 + $0x4] sm:$0xf]
  %v1102 = vld [vmem:[%s1099 + $0x8] sm:$0xf]
  %v1103 = vld [vmem:[%s1099 + $0xc] sm:$0xf]
  %v1108 = vunpack.c.l.b16 %v1100
  %v1109 = vunpack.c.l.b16 %v1101
  %v1110 = vunpack.c.l.b16 %v1102
  %v1111 = vunpack.c.l.b16 %v1103
  %v1112 = vpack.c.b16 %v1109, %v1108
  %v1113 = vpack.c.b16 %v1111, %v1110
  %1116 = vmatprep.subr.bf16.mxu0 0
  %1117 = vmatpush1.bf16.msra.mxu0 %v1112
  %1118 = vmatprep.subr.bf16.mxu0 0
  %1119 = vmatpush1.bf16.msra.mxu0 %v1113
  %1120 = vmatprep.subr.bf16.mxu0 0
  %1121 = vmatpush1.bf16.msra.mxu0 0
  %1122 = vmatprep.subr.bf16.mxu0 0
  %1123 = vmatpush1.bf16.msra.mxu0 0
  %1124 = vmatprep.subr.bf16.mxu0 0
  %1125 = vmatpush1.bf16.msra.mxu0 0
  %1126 = vmatprep.subr.bf16.mxu0 0
  %1127 = vmatpush1.bf16.msra.mxu0 0
  %1128 = vmatprep.subr.bf16.mxu0 0
  %1129 = vmatpush1.bf16.msra.mxu0 0
  %1130 = vmatprep.subr.bf16.mxu0 0
  %1131 = vmatpush1.bf16.msra.mxu0 0
  %1132 = vmatprep.subr.bf16.mxu0 0
  %1133 = vmatpush1.bf16.msra.mxu0 0
  %1134 = vmatprep.subr.bf16.mxu0 0
  %1135 = vmatpush1.bf16.msra.mxu0 0
  %1136 = vmatprep.subr.bf16.mxu0 0
  %1137 = vmatpush1.bf16.msra.mxu0 0
  %1138 = vmatprep.subr.bf16.mxu0 0
  %1139 = vmatpush1.bf16.msra.mxu0 0
  %1140 = vmatprep.subr.bf16.mxu0 0
  %1141 = vmatpush1.bf16.msra.mxu0 0
  %1142 = vmatprep.subr.bf16.mxu0 0
  %1143 = vmatpush1.bf16.msra.mxu0 0
  %1144 = vmatprep.subr.bf16.mxu0 0
  %1145 = vmatpush1.bf16.msra.mxu0 0
  %1146 = vmatprep.subr.bf16.mxu0 0
  %1147 = vmatpush1.bf16.msra.mxu0 0
  %1148 = vmatprep.mubr.bf16.mxu0 0
  %1149 = vmatmul.mubr.bf16.gmra.mrb[0].mxu0 %v246
  %v1150 = vpop.f32.mrb[0].mxu0
  %v1151 = vadd.f32 0.0, %v1150
  %v1152 = vpop.f32.mrb[0].mxu0
  %v1153 = vpop.f32.mrb[0].mxu0
  %v1154 = vadd.f32 0.0, %v1153
  %v1155 = vpop.f32.mrb[0].mxu0
  %1156 = vmatprep.mubr.bf16.mxu0 0
  %1157 = vmatmul.mubr.bf16.gmra.mrb[0].mxu0 %v249
  %v1158 = vpop.f32.mrb[0].mxu0
  %v1159 = vadd.f32 0.0, %v1158
  %v1160 = vpop.f32.mrb[0].mxu0
  %v1161 = vpop.f32.mrb[0].mxu0
  %v1162 = vadd.f32 0.0, %v1161
  %v1163 = vpop.f32.mrb[0].mxu0
  %1164 = vmatprep.mubr.bf16.mxu0 0
  %1165 = vmatmul.mubr.bf16.gmra.mrb[0].mxu0 %v252
  %v1166 = vpop.f32.mrb[0].mxu0
  %v1167 = vadd.f32 0.0, %v1166
  %v1168 = vpop.f32.mrb[0].mxu0
  %v1169 = vpop.f32.mrb[0].mxu0
  %v1170 = vadd.f32 0.0, %v1169
  %v1171 = vpop.f32.mrb[0].mxu0
  %1172 = vmatprep.mubr.bf16.mxu0 0
  %1173 = vmatmul.mubr.bf16.gmra.mrb[0].mxu0 %v255
  %v1174 = vpop.f32.mrb[0].mxu0
  %v1175 = vadd.f32 0.0, %v1174
  %v1176 = vpop.f32.mrb[0].mxu0
  %v1177 = vpop.f32.mrb[0].mxu0
  %v1178 = vadd.f32 0.0, %v1177
  %v1179 = vpop.f32.mrb[0].mxu0
  %1180 = vdwg.mxu0
  %s1181 = scalar_lea.vmem %s5, 16
  %v1182 = vld [vmem:[%s1181] sm:$0xf]
  %v1183 = vld [vmem:[%s1181 + $0x4] sm:$0xf]
  %v1184 = vld [vmem:[%s1181 + $0x8] sm:$0xf]
  %v1185 = vld [vmem:[%s1181 + $0xc] sm:$0xf]
  %v1190 = vunpack.c.l.b16 %v1182
  %v1191 = vunpack.c.l.b16 %v1183
  %v1192 = vunpack.c.l.b16 %v1184
  %v1193 = vunpack.c.l.b16 %v1185
  %v1194 = vpack.c.b16 %v1191, %v1190
  %v1195 = vpack.c.b16 %v1193, %v1192
  %1198 = vmatprep.subr.bf16.mxu0 0
  %1199 = vmatpush1.bf16.msra.mxu0 %v1194
  %1200 = vmatprep.subr.bf16.mxu0 0
  %1201 = vmatpush1.bf16.msra.mxu0 %v1195
  %1202 = vmatprep.subr.bf16.mxu0 0
  %1203 = vmatpush1.bf16.msra.mxu0 0
  %1204 = vmatprep.subr.bf16.mxu0 0
  %1205 = vmatpush1.bf16.msra.mxu0 0
  %1206 = vmatprep.subr.bf16.mxu0 0
  %1207 = vmatpush1.bf16.msra.mxu0 0
  %1208 = vmatprep.subr.bf16.mxu0 0
  %1209 = vmatpush1.bf16.msra.mxu0 0
  %1210 = vmatprep.subr.bf16.mxu0 0
  %1211 = vmatpush1.bf16.msra.mxu0 0
  %1212 = vmatprep.subr.bf16.mxu0 0
  %1213 = vmatpush1.bf16.msra.mxu0 0
  %1214 = vmatprep.subr.bf16.mxu0 0
  %1215 = vmatpush1.bf16.msra.mxu0 0
  %1216 = vmatprep.subr.bf16.mxu0 0
  %1217 = vmatpush1.bf16.msra.mxu0 0
  %1218 = vmatprep.subr.bf16.mxu0 0
  %1219 = vmatpush1.bf16.msra.mxu0 0
  %1220 = vmatprep.subr.bf16.mxu0 0
  %1221 = vmatpush1.bf16.msra.mxu0 0
  %1222 = vmatprep.subr.bf16.mxu0 0
  %1223 = vmatpush1.bf16.msra.mxu0 0
  %1224 = vmatprep.subr.bf16.mxu0 0
  %1225 = vmatpush1.bf16.msra.mxu0 0
  %1226 = vmatprep.subr.bf16.mxu0 0
  %1227 = vmatpush1.bf16.msra.mxu0 0
  %1228 = vmatprep.subr.bf16.mxu0 0
  %1229 = vmatpush1.bf16.msra.mxu0 0
  %1230 = vmatprep.mubr.bf16.mxu0 0
  %1231 = vmatmul.mubr.bf16.gmra.mrb[0].mxu0 %v246
  %v1232 = vpop.f32.mrb[0].mxu0
  %v1233 = vadd.f32 0.0, %v1232
  %v1234 = vpop.f32.mrb[0].mxu0
  %v1235 = vpop.f32.mrb[0].mxu0
  %v1236 = vadd.f32 0.0, %v1235
  %v1237 = vpop.f32.mrb[0].mxu0
  %1238 = vmatprep.mubr.bf16.mxu0 0
  %1239 = vmatmul.mubr.bf16.gmra.mrb[0].mxu0 %v249
  %v1240 = vpop.f32.mrb[0].mxu0
  %v1241 = vadd.f32 0.0, %v1240
  %v1242 = vpop.f32.mrb[0].mxu0
  %v1243 = vpop.f32.mrb[0].mxu0
  %v1244 = vadd.f32 0.0, %v1243
  %v1245 = vpop.f32.mrb[0].mxu0
  %1246 = vmatprep.mubr.bf16.mxu0 0
  %1247 = vmatmul.mubr.bf16.gmra.mrb[0].mxu0 %v252
  %v1248 = vpop.f32.mrb[0].mxu0
  %v1249 = vadd.f32 0.0, %v1248
  %v1250 = vpop.f32.mrb[0].mxu0
  %v1251 = vpop.f32.mrb[0].mxu0
  %v1252 = vadd.f32 0.0, %v1251
  %v1253 = vpop.f32.mrb[0].mxu0
  %1254 = vmatprep.mubr.bf16.mxu0 0
  %1255 = vmatmul.mubr.bf16.gmra.mrb[0].mxu0 %v255
  %v1256 = vpop.f32.mrb[0].mxu0
  %v1257 = vadd.f32 0.0, %v1256
  %v1258 = vpop.f32.mrb[0].mxu0
  %v1259 = vpop.f32.mrb[0].mxu0
  %v1260 = vadd.f32 0.0, %v1259
  %v1261 = vpop.f32.mrb[0].mxu0
  %1262 = vdwg.mxu0
  %v1264 = vrot.slane %v1178, 7
  %v1273 = vrot.slane %v1151, 7
  %v1274 = vrot.slane %v1154, 7
  %v1275 = vsel %vm494, %v1273, %v1274
  %v1276 = vrot.slane %v1159, 7
  %v1277 = vsel %vm494, %v1274, %v1276
  %v1278 = vrot.slane %v1162, 7
  %v1279 = vsel %vm494, %v1276, %v1278
  %v1280 = vrot.slane %v1167, 7
  %v1281 = vsel %vm494, %v1278, %v1280
  %v1282 = vrot.slane %v1170, 7
  %v1283 = vsel %vm494, %v1280, %v1282
  %v1284 = vrot.slane %v1175, 7
  %v1285 = vsel %vm494, %v1282, %v1284
  %v1286 = vsel %vm494, %v1284, %v1264
  %v1295 = vsel %vm494, %v1264, %v1273
  %v1296 = vmul.f32 %v1069, %v1295
  %v1297 = vmul.f32 %v1072, %v1275
  %v1298 = vmul.f32 %v1077, %v1277
  %v1299 = vmul.f32 %v1080, %v1279
  %v1300 = vmul.f32 %v1085, %v1281
  %v1301 = vmul.f32 %v1088, %v1283
  %v1302 = vmul.f32 %v1093, %v1285
  %v1303 = vmul.f32 %v1096, %v1286
  %v1304 = vsel %vm526, %v1296, 0.0
  %1305 = vadd.xlane.f32.xlu0 %v1304
  %v1306 = vpop.xlane.xlu0 %1305
  %v1307 = vsel %vm526, %v1297, 0.0
  %1308 = vadd.xlane.f32.xlu0 %v1307
  %v1309 = vpop.xlane.xlu0 %1308
  %v1310 = vsel %vm526, %v1298, 0.0
  %1311 = vadd.xlane.f32.xlu0 %v1310
  %v1312 = vpop.xlane.xlu0 %1311
  %v1313 = vsel %vm526, %v1299, 0.0
  %1314 = vadd.xlane.f32.xlu0 %v1313
  %v1315 = vpop.xlane.xlu0 %1314
  %v1316 = vsel %vm526, %v1300, 0.0
  %1317 = vadd.xlane.f32.xlu0 %v1316
  %v1318 = vpop.xlane.xlu0 %1317
  %v1319 = vsel %vm526, %v1301, 0.0
  %1320 = vadd.xlane.f32.xlu0 %v1319
  %v1321 = vpop.xlane.xlu0 %1320
  %v1322 = vsel %vm526, %v1302, 0.0
  %1323 = vadd.xlane.f32.xlu0 %v1322
  %v1324 = vpop.xlane.xlu0 %1323
  %v1325 = vsel %vm526, %v1303, 0.0
  %1326 = vadd.xlane.f32.xlu0 %v1325
  %v1327 = vpop.xlane.xlu0 %1326
  %v1328 = vmul.f32 %v1306, 0.25
  %v1329 = vmul.f32 %v1309, 0.25
  %v1330 = vmul.f32 %v1312, 0.25
  %v1331 = vmul.f32 %v1315, 0.25
  %v1332 = vmul.f32 %v1318, 0.25
  %v1333 = vmul.f32 %v1321, 0.25
  %v1334 = vmul.f32 %v1324, 0.25
  %v1335 = vmul.f32 %v1327, 0.25
  %v1336 = vsel %vm583, %v1328, -1e+30
  %v1337 = vsel %vm584, %v1329, -1e+30
  %v1338 = vsel %vm585, %v1330, -1e+30
  %v1339 = vsel %vm586, %v1331, -1e+30
  %v1340 = vsel %vm587, %v1332, -1e+30
  %v1341 = vsel %vm588, %v1333, -1e+30
  %v1342 = vsel %vm589, %v1334, -1e+30
  %v1343 = vsel %vm590, %v1335, -1e+30
  %v1344 = vmul.f32 %v1069, %v1151
  %v1345 = vmul.f32 %v1072, %v1154
  %v1346 = vmul.f32 %v1077, %v1159
  %v1347 = vmul.f32 %v1080, %v1162
  %v1348 = vmul.f32 %v1085, %v1167
  %v1349 = vmul.f32 %v1088, %v1170
  %v1350 = vmul.f32 %v1093, %v1175
  %v1351 = vmul.f32 %v1096, %v1178
  %v1352 = vsel %vm526, %v1344, 0.0
  %1353 = vadd.xlane.f32.xlu0 %v1352
  %v1354 = vpop.xlane.xlu0 %1353
  %v1355 = vsel %vm526, %v1345, 0.0
  %1356 = vadd.xlane.f32.xlu0 %v1355
  %v1357 = vpop.xlane.xlu0 %1356
  %v1358 = vsel %vm526, %v1346, 0.0
  %1359 = vadd.xlane.f32.xlu0 %v1358
  %v1360 = vpop.xlane.xlu0 %1359
  %v1361 = vsel %vm526, %v1347, 0.0
  %1362 = vadd.xlane.f32.xlu0 %v1361
  %v1363 = vpop.xlane.xlu0 %1362
  %v1364 = vsel %vm526, %v1348, 0.0
  %1365 = vadd.xlane.f32.xlu0 %v1364
  %v1366 = vpop.xlane.xlu0 %1365
  %v1367 = vsel %vm526, %v1349, 0.0
  %1368 = vadd.xlane.f32.xlu0 %v1367
  %v1369 = vpop.xlane.xlu0 %1368
  %v1370 = vsel %vm526, %v1350, 0.0
  %1371 = vadd.xlane.f32.xlu0 %v1370
  %v1372 = vpop.xlane.xlu0 %1371
  %v1373 = vsel %vm526, %v1351, 0.0
  %1374 = vadd.xlane.f32.xlu0 %v1373
  %v1375 = vpop.xlane.xlu0 %1374
  %v1376 = vmul.f32 %v1354, 0.25
  %v1377 = vmul.f32 %v1357, 0.25
  %v1378 = vmul.f32 %v1360, 0.25
  %v1379 = vmul.f32 %v1363, 0.25
  %v1380 = vmul.f32 %v1366, 0.25
  %v1381 = vmul.f32 %v1369, 0.25
  %v1382 = vmul.f32 %v1372, 0.25
  %v1383 = vmul.f32 %v1375, 0.25
  %v1384 = vsel %vm655, %v1376, -1e+30
  %v1385 = vsel %vm656, %v1377, -1e+30
  %v1386 = vsel %vm657, %v1378, -1e+30
  %v1387 = vsel %vm658, %v1379, -1e+30
  %v1388 = vsel %vm659, %v1380, -1e+30
  %v1389 = vsel %vm660, %v1381, -1e+30
  %v1390 = vsel %vm661, %v1382, -1e+30
  %v1391 = vsel %vm662, %v1383, -1e+30
  %v1392 = vrot.slane %v1151, 1
  %v1393 = vrot.slane %v1154, 1
  %v1394 = vsel %vm671, %v1392, %v1393
  %v1395 = vrot.slane %v1159, 1
  %v1396 = vsel %vm671, %v1393, %v1395
  %v1397 = vrot.slane %v1162, 1
  %v1398 = vsel %vm671, %v1395, %v1397
  %v1399 = vrot.slane %v1167, 1
  %v1400 = vsel %vm671, %v1397, %v1399
  %v1401 = vrot.slane %v1170, 1
  %v1402 = vsel %vm671, %v1399, %v1401
  %v1403 = vrot.slane %v1175, 1
  %v1404 = vsel %vm671, %v1401, %v1403
  %v1405 = vrot.slane %v1178, 1
  %v1406 = vsel %vm671, %v1403, %v1405
  %v1416 = vsel %vm671, %v1405, %v1392
  %v1417 = vmul.f32 %v1069, %v1394
  %v1418 = vmul.f32 %v1072, %v1396
  %v1419 = vmul.f32 %v1077, %v1398
  %v1420 = vmul.f32 %v1080, %v1400
  %v1421 = vmul.f32 %v1085, %v1402
  %v1422 = vmul.f32 %v1088, %v1404
  %v1423 = vmul.f32 %v1093, %v1406
  %v1424 = vmul.f32 %v1096, %v1416
  %v1425 = vsel %vm526, %v1417, 0.0
  %1426 = vadd.xlane.f32.xlu0 %v1425
  %v1427 = vpop.xlane.xlu0 %1426
  %v1428 = vsel %vm526, %v1418, 0.0
  %1429 = vadd.xlane.f32.xlu0 %v1428
  %v1430 = vpop.xlane.xlu0 %1429
  %v1431 = vsel %vm526, %v1419, 0.0
  %1432 = vadd.xlane.f32.xlu0 %v1431
  %v1433 = vpop.xlane.xlu0 %1432
  %v1434 = vsel %vm526, %v1420, 0.0
  %1435 = vadd.xlane.f32.xlu0 %v1434
  %v1436 = vpop.xlane.xlu0 %1435
  %v1437 = vsel %vm526, %v1421, 0.0
  %1438 = vadd.xlane.f32.xlu0 %v1437
  %v1439 = vpop.xlane.xlu0 %1438
  %v1440 = vsel %vm526, %v1422, 0.0
  %1441 = vadd.xlane.f32.xlu0 %v1440
  %v1442 = vpop.xlane.xlu0 %1441
  %v1443 = vsel %vm526, %v1423, 0.0
  %1444 = vadd.xlane.f32.xlu0 %v1443
  %v1445 = vpop.xlane.xlu0 %1444
  %v1446 = vsel %vm526, %v1424, 0.0
  %1447 = vadd.xlane.f32.xlu0 %v1446
  %v1448 = vpop.xlane.xlu0 %1447
  %v1449 = vmul.f32 %v1427, 0.25
  %v1450 = vmul.f32 %v1430, 0.25
  %v1451 = vmul.f32 %v1433, 0.25
  %v1452 = vmul.f32 %v1436, 0.25
  %v1453 = vmul.f32 %v1439, 0.25
  %v1454 = vmul.f32 %v1442, 0.25
  %v1455 = vmul.f32 %v1445, 0.25
  %v1456 = vmul.f32 %v1448, 0.25
  %v1457 = vsel %vm761, %v1449, -1e+30
  %v1458 = vsel %vm762, %v1450, -1e+30
  %v1459 = vsel %vm763, %v1451, -1e+30
  %v1460 = vsel %vm764, %v1452, -1e+30
  %v1461 = vsel %vm765, %v1453, -1e+30
  %v1462 = vsel %vm766, %v1454, -1e+30
  %v1463 = vsel %vm767, %v1455, -1e+30
  %v1464 = vsel %vm768, %v1456, -1e+30
  %v1465 = vmax.f32 %v1336, %v1384
  %v1466 = vmax.f32 %v1337, %v1385
  %v1467 = vmax.f32 %v1338, %v1386
  %v1468 = vmax.f32 %v1339, %v1387
  %v1469 = vmax.f32 %v1340, %v1388
  %v1470 = vmax.f32 %v1341, %v1389
  %v1471 = vmax.f32 %v1342, %v1390
  %v1472 = vmax.f32 %v1343, %v1391
  %v1473 = vmax.f32 %v1465, %v1457
  %v1474 = vmax.f32 %v1466, %v1458
  %v1475 = vmax.f32 %v1467, %v1459
  %v1476 = vmax.f32 %v1468, %v1460
  %v1477 = vmax.f32 %v1469, %v1461
  %v1478 = vmax.f32 %v1470, %v1462
  %v1479 = vmax.f32 %v1471, %v1463
  %v1480 = vmax.f32 %v1472, %v1464
  %v1481 = vsub.f32 %v1336, %v1473
  %v1482 = vsub.f32 %v1337, %v1474
  %v1483 = vsub.f32 %v1338, %v1475
  %v1484 = vsub.f32 %v1339, %v1476
  %v1485 = vsub.f32 %v1340, %v1477
  %v1486 = vsub.f32 %v1341, %v1478
  %v1487 = vsub.f32 %v1342, %v1479
  %v1488 = vsub.f32 %v1343, %v1480
  %v1489 = vmul.f32 %v1481, 1.442695
  %v1490 = vpow.pop %v1489
  %v1491 = vmul.f32 %v1482, 1.442695
  %v1492 = vpow.pop %v1491
  %v1493 = vmul.f32 %v1483, 1.442695
  %v1494 = vpow.pop %v1493
  %v1495 = vmul.f32 %v1484, 1.442695
  %v1496 = vpow.pop %v1495
  %v1497 = vmul.f32 %v1485, 1.442695
  %v1498 = vpow.pop %v1497
  %v1499 = vmul.f32 %v1486, 1.442695
  %v1500 = vpow.pop %v1499
  %v1501 = vmul.f32 %v1487, 1.442695
  %v1502 = vpow.pop %v1501
  %v1503 = vmul.f32 %v1488, 1.442695
  %v1504 = vpow.pop %v1503
  %v1505 = vsub.f32 %v1384, %v1473
  %v1506 = vsub.f32 %v1385, %v1474
  %v1507 = vsub.f32 %v1386, %v1475
  %v1508 = vsub.f32 %v1387, %v1476
  %v1509 = vsub.f32 %v1388, %v1477
  %v1510 = vsub.f32 %v1389, %v1478
  %v1511 = vsub.f32 %v1390, %v1479
  %v1512 = vsub.f32 %v1391, %v1480
  %v1513 = vmul.f32 %v1505, 1.442695
  %v1514 = vpow.pop %v1513
  %v1515 = vmul.f32 %v1506, 1.442695
  %v1516 = vpow.pop %v1515
  %v1517 = vmul.f32 %v1507, 1.442695
  %v1518 = vpow.pop %v1517
  %v1519 = vmul.f32 %v1508, 1.442695
  %v1520 = vpow.pop %v1519
  %v1521 = vmul.f32 %v1509, 1.442695
  %v1522 = vpow.pop %v1521
  %v1523 = vmul.f32 %v1510, 1.442695
  %v1524 = vpow.pop %v1523
  %v1525 = vmul.f32 %v1511, 1.442695
  %v1526 = vpow.pop %v1525
  %v1527 = vmul.f32 %v1512, 1.442695
  %v1528 = vpow.pop %v1527
  %v1529 = vsub.f32 %v1457, %v1473
  %v1530 = vsub.f32 %v1458, %v1474
  %v1531 = vsub.f32 %v1459, %v1475
  %v1532 = vsub.f32 %v1460, %v1476
  %v1533 = vsub.f32 %v1461, %v1477
  %v1534 = vsub.f32 %v1462, %v1478
  %v1535 = vsub.f32 %v1463, %v1479
  %v1536 = vsub.f32 %v1464, %v1480
  %v1537 = vmul.f32 %v1529, 1.442695
  %v1538 = vpow.pop %v1537
  %v1539 = vmul.f32 %v1530, 1.442695
  %v1540 = vpow.pop %v1539
  %v1541 = vmul.f32 %v1531, 1.442695
  %v1542 = vpow.pop %v1541
  %v1543 = vmul.f32 %v1532, 1.442695
  %v1544 = vpow.pop %v1543
  %v1545 = vmul.f32 %v1533, 1.442695
  %v1546 = vpow.pop %v1545
  %v1547 = vmul.f32 %v1534, 1.442695
  %v1548 = vpow.pop %v1547
  %v1549 = vmul.f32 %v1535, 1.442695
  %v1550 = vpow.pop %v1549
  %v1551 = vmul.f32 %v1536, 1.442695
  %v1552 = vpow.pop %v1551
  %v1553 = vadd.f32 %v1490, %v1514
  %v1554 = vadd.f32 %v1492, %v1516
  %v1555 = vadd.f32 %v1494, %v1518
  %v1556 = vadd.f32 %v1496, %v1520
  %v1557 = vadd.f32 %v1498, %v1522
  %v1558 = vadd.f32 %v1500, %v1524
  %v1559 = vadd.f32 %v1502, %v1526
  %v1560 = vadd.f32 %v1504, %v1528
  %v1561 = vadd.f32 %v1553, %v1538
  %v1562 = vadd.f32 %v1554, %v1540
  %v1563 = vadd.f32 %v1555, %v1542
  %v1564 = vadd.f32 %v1556, %v1544
  %v1565 = vadd.f32 %v1557, %v1546
  %v1566 = vadd.f32 %v1558, %v1548
  %v1567 = vadd.f32 %v1559, %v1550
  %v1568 = vadd.f32 %v1560, %v1552
  %v1569 = vrcp.pop %v1561
  %v1570 = vrcp.pop %v1562
  %v1571 = vrcp.pop %v1563
  %v1572 = vrcp.pop %v1564
  %v1573 = vrcp.pop %v1565
  %v1574 = vrcp.pop %v1566
  %v1575 = vrcp.pop %v1567
  %v1576 = vrcp.pop %v1568
  %v1577 = vmul.f32 %v1490, %v1569
  %v1578 = vmul.f32 %v1492, %v1570
  %v1579 = vmul.f32 %v1494, %v1571
  %v1580 = vmul.f32 %v1496, %v1572
  %v1581 = vmul.f32 %v1498, %v1573
  %v1582 = vmul.f32 %v1500, %v1574
  %v1583 = vmul.f32 %v1502, %v1575
  %v1584 = vmul.f32 %v1504, %v1576
  %v1586 = vrot.slane %v1260, 7
  %v1595 = vrot.slane %v1233, 7
  %v1596 = vrot.slane %v1236, 7
  %v1597 = vsel %vm494, %v1595, %v1596
  %v1598 = vrot.slane %v1241, 7
  %v1599 = vsel %vm494, %v1596, %v1598
  %v1600 = vrot.slane %v1244, 7
  %v1601 = vsel %vm494, %v1598, %v1600
  %v1602 = vrot.slane %v1249, 7
  %v1603 = vsel %vm494, %v1600, %v1602
  %v1604 = vrot.slane %v1252, 7
  %v1605 = vsel %vm494, %v1602, %v1604
  %v1606 = vrot.slane %v1257, 7
  %v1607 = vsel %vm494, %v1604, %v1606
  %v1608 = vsel %vm494, %v1606, %v1586
  %v1617 = vsel %vm494, %v1586, %v1595
  %v1618 = vmul.f32 %v1577, %v1617
  %v1619 = vmul.f32 %v1578, %v1597
  %v1620 = vmul.f32 %v1579, %v1599
  %v1621 = vmul.f32 %v1580, %v1601
  %v1622 = vmul.f32 %v1581, %v1603
  %v1623 = vmul.f32 %v1582, %v1605
  %v1624 = vmul.f32 %v1583, %v1607
  %v1625 = vmul.f32 %v1584, %v1608
  %v1626 = vmul.f32 %v1514, %v1569
  %v1627 = vmul.f32 %v1516, %v1570
  %v1628 = vmul.f32 %v1518, %v1571
  %v1629 = vmul.f32 %v1520, %v1572
  %v1630 = vmul.f32 %v1522, %v1573
  %v1631 = vmul.f32 %v1524, %v1574
  %v1632 = vmul.f32 %v1526, %v1575
  %v1633 = vmul.f32 %v1528, %v1576
  %v1634 = vmul.f32 %v1626, %v1233
  %v1635 = vmul.f32 %v1627, %v1236
  %v1636 = vmul.f32 %v1628, %v1241
  %v1637 = vmul.f32 %v1629, %v1244
  %v1638 = vmul.f32 %v1630, %v1249
  %v1639 = vmul.f32 %v1631, %v1252
  %v1640 = vmul.f32 %v1632, %v1257
  %v1641 = vmul.f32 %v1633, %v1260
  %v1642 = vadd.f32 %v1618, %v1634
  %v1643 = vadd.f32 %v1619, %v1635
  %v1644 = vadd.f32 %v1620, %v1636
  %v1645 = vadd.f32 %v1621, %v1637
  %v1646 = vadd.f32 %v1622, %v1638
  %v1647 = vadd.f32 %v1623, %v1639
  %v1648 = vadd.f32 %v1624, %v1640
  %v1649 = vadd.f32 %v1625, %v1641
  %v1650 = vmul.f32 %v1538, %v1569
  %v1651 = vmul.f32 %v1540, %v1570
  %v1652 = vmul.f32 %v1542, %v1571
  %v1653 = vmul.f32 %v1544, %v1572
  %v1654 = vmul.f32 %v1546, %v1573
  %v1655 = vmul.f32 %v1548, %v1574
  %v1656 = vmul.f32 %v1550, %v1575
  %v1657 = vmul.f32 %v1552, %v1576
  %v1658 = vrot.slane %v1233, 1
  %v1659 = vrot.slane %v1236, 1
  %v1660 = vsel %vm671, %v1658, %v1659
  %v1661 = vrot.slane %v1241, 1
  %v1662 = vsel %vm671, %v1659, %v1661
  %v1663 = vrot.slane %v1244, 1
  %v1664 = vsel %vm671, %v1661, %v1663
  %v1665 = vrot.slane %v1249, 1
  %v1666 = vsel %vm671, %v1663, %v1665
  %v1667 = vrot.slane %v1252, 1
  %v1668 = vsel %vm671, %v1665, %v1667
  %v1669 = vrot.slane %v1257, 1
  %v1670 = vsel %vm671, %v1667, %v1669
  %v1671 = vrot.slane %v1260, 1
  %v1672 = vsel %vm671, %v1669, %v1671
  %v1682 = vsel %vm671, %v1671, %v1658
  %v1683 = vmul.f32 %v1650, %v1660
  %v1684 = vmul.f32 %v1651, %v1662
  %v1685 = vmul.f32 %v1652, %v1664
  %v1686 = vmul.f32 %v1653, %v1666
  %v1687 = vmul.f32 %v1654, %v1668
  %v1688 = vmul.f32 %v1655, %v1670
  %v1689 = vmul.f32 %v1656, %v1672
  %v1690 = vmul.f32 %v1657, %v1682
  %v1691 = vadd.f32 %v1642, %v1683
  %v1692 = vadd.f32 %v1643, %v1684
  %v1693 = vadd.f32 %v1644, %v1685
  %v1694 = vadd.f32 %v1645, %v1686
  %v1695 = vadd.f32 %v1646, %v1687
  %v1696 = vadd.f32 %v1647, %v1688
  %v1697 = vadd.f32 %v1648, %v1689
  %v1698 = vadd.f32 %v1649, %v1690
  %v1699 = vpack.c.bf16 %v1692, %v1691
  %v1700 = vpack.c.bf16 %v1694, %v1693
  %v1701 = vpack.c.bf16 %v1696, %v1695
  %v1702 = vpack.c.bf16 %v1698, %v1697
  %s1703 = scalar_lea.vmem %s6, 8
  %v1704 = vld [vmem:[%s1703] sm:$0xf]
  %v1705 = vld [vmem:[%s1703 + $0x4] sm:$0xf]
  %v1708 = vunpack.c.l.b16 %v1704
  %v1709 = vunpack.c.l.b16 %v1705
  %v1710 = vpack.c.b16 %v1709, %v1708
  %v1713 = vsel %vm526, %v1699, 0
  %v1716 = vsel %vm526, %v1700, 0
  %v1719 = vsel %vm526, %v1701, 0
  %v1722 = vsel %vm526, %v1702, 0
  %1724 = vmatprep.subr.bf16.mxu0 0
  %1725 = vmatpush1.bf16.msra.mxu0 %v1710
  %1726 = vmatprep.subr.bf16.mxu0 0
  %1727 = vmatpush1.bf16.msra.mxu0 0
  %1728 = vmatprep.subr.bf16.mxu0 0
  %1729 = vmatpush1.bf16.msra.mxu0 0
  %1730 = vmatprep.subr.bf16.mxu0 0
  %1731 = vmatpush1.bf16.msra.mxu0 0
  %1732 = vmatprep.subr.bf16.mxu0 0
  %1733 = vmatpush1.bf16.msra.mxu0 0
  %1734 = vmatprep.subr.bf16.mxu0 0
  %1735 = vmatpush1.bf16.msra.mxu0 0
  %1736 = vmatprep.subr.bf16.mxu0 0
  %1737 = vmatpush1.bf16.msra.mxu0 0
  %1738 = vmatprep.subr.bf16.mxu0 0
  %1739 = vmatpush1.bf16.msra.mxu0 0
  %1740 = vmatprep.subr.bf16.mxu0 0
  %1741 = vmatpush1.bf16.msra.mxu0 0
  %1742 = vmatprep.subr.bf16.mxu0 0
  %1743 = vmatpush1.bf16.msra.mxu0 0
  %1744 = vmatprep.subr.bf16.mxu0 0
  %1745 = vmatpush1.bf16.msra.mxu0 0
  %1746 = vmatprep.subr.bf16.mxu0 0
  %1747 = vmatpush1.bf16.msra.mxu0 0
  %1748 = vmatprep.subr.bf16.mxu0 0
  %1749 = vmatpush1.bf16.msra.mxu0 0
  %1750 = vmatprep.subr.bf16.mxu0 0
  %1751 = vmatpush1.bf16.msra.mxu0 0
  %1752 = vmatprep.subr.bf16.mxu0 0
  %1753 = vmatpush1.bf16.msra.mxu0 0
  %1754 = vmatprep.subr.bf16.mxu0 0
  %1755 = vmatpush1.bf16.msra.mxu0 0
  %1756 = vmatprep.mubr.bf16.mxu0 0
  %1757 = vmatmul.mubr.bf16.gmra.mrb[0].mxu0 %v1713
  %v1758 = vpop.f32.mrb[0].mxu0
  %v1759 = vadd.f32 0.0, %v1758
  %v1760 = vpop.f32.mrb[0].mxu0
  %v1761 = vpop.f32.mrb[0].mxu0
  %v1762 = vadd.f32 0.0, %v1761
  %v1763 = vpop.f32.mrb[0].mxu0
  %1764 = vmatprep.mubr.bf16.mxu0 0
  %1765 = vmatmul.mubr.bf16.gmra.mrb[0].mxu0 %v1716
  %v1766 = vpop.f32.mrb[0].mxu0
  %v1767 = vadd.f32 0.0, %v1766
  %v1768 = vpop.f32.mrb[0].mxu0
  %v1769 = vpop.f32.mrb[0].mxu0
  %v1770 = vadd.f32 0.0, %v1769
  %v1771 = vpop.f32.mrb[0].mxu0
  %1772 = vmatprep.mubr.bf16.mxu0 0
  %1773 = vmatmul.mubr.bf16.gmra.mrb[0].mxu0 %v1719
  %v1774 = vpop.f32.mrb[0].mxu0
  %v1775 = vadd.f32 0.0, %v1774
  %v1776 = vpop.f32.mrb[0].mxu0
  %v1777 = vpop.f32.mrb[0].mxu0
  %v1778 = vadd.f32 0.0, %v1777
  %v1779 = vpop.f32.mrb[0].mxu0
  %1780 = vmatprep.mubr.bf16.mxu0 0
  %1781 = vmatmul.mubr.bf16.gmra.mrb[0].mxu0 %v1722
  %v1782 = vpop.f32.mrb[0].mxu0
  %v1783 = vadd.f32 0.0, %v1782
  %v1784 = vpop.f32.mrb[0].mxu0
  %v1785 = vpop.f32.mrb[0].mxu0
  %v1786 = vadd.f32 0.0, %v1785
  %v1787 = vpop.f32.mrb[0].mxu0
  %1788 = vdwg.mxu0
  %v1791 = vunpack.c.l.b16 %v1015
  %v1792 = vunpack.c.l.b16 %v1016
  %v1793 = vpack.c.b16 %v1792, %v1791
  %v1796 = vsel %vm526, %v1011, 0
  %v1799 = vsel %vm526, %v1012, 0
  %v1802 = vsel %vm526, %v1013, 0
  %v1805 = vsel %vm526, %v1014, 0
  %1807 = vmatprep.subr.bf16.mxu0 0
  %1808 = vmatpush1.bf16.msra.mxu0 %v1793
  %1809 = vmatprep.subr.bf16.mxu0 0
  %1810 = vmatpush1.bf16.msra.mxu0 0
  %1811 = vmatprep.subr.bf16.mxu0 0
  %1812 = vmatpush1.bf16.msra.mxu0 0
  %1813 = vmatprep.subr.bf16.mxu0 0
  %1814 = vmatpush1.bf16.msra.mxu0 0
  %1815 = vmatprep.subr.bf16.mxu0 0
  %1816 = vmatpush1.bf16.msra.mxu0 0
  %1817 = vmatprep.subr.bf16.mxu0 0
  %1818 = vmatpush1.bf16.msra.mxu0 0
  %1819 = vmatprep.subr.bf16.mxu0 0
  %1820 = vmatpush1.bf16.msra.mxu0 0
  %1821 = vmatprep.subr.bf16.mxu0 0
  %1822 = vmatpush1.bf16.msra.mxu0 0
  %1823 = vmatprep.subr.bf16.mxu0 0
  %1824 = vmatpush1.bf16.msra.mxu0 0
  %1825 = vmatprep.subr.bf16.mxu0 0
  %1826 = vmatpush1.bf16.msra.mxu0 0
  %1827 = vmatprep.subr.bf16.mxu0 0
  %1828 = vmatpush1.bf16.msra.mxu0 0
  %1829 = vmatprep.subr.bf16.mxu0 0
  %1830 = vmatpush1.bf16.msra.mxu0 0
  %1831 = vmatprep.subr.bf16.mxu0 0
  %1832 = vmatpush1.bf16.msra.mxu0 0
  %1833 = vmatprep.subr.bf16.mxu0 0
  %1834 = vmatpush1.bf16.msra.mxu0 0
  %1835 = vmatprep.subr.bf16.mxu0 0
  %1836 = vmatpush1.bf16.msra.mxu0 0
  %1837 = vmatprep.subr.bf16.mxu0 0
  %1838 = vmatpush1.bf16.msra.mxu0 0
  %1839 = vmatprep.mubr.bf16.mxu0 0
  %1840 = vmatmul.mubr.bf16.gmra.mrb[0].mxu0 %v1796
  %v1841 = vpop.f32.mrb[0].mxu0
  %v1842 = vadd.f32 %v1759, %v1841
  %v1843 = vpop.f32.mrb[0].mxu0
  %v1844 = vpop.f32.mrb[0].mxu0
  %v1845 = vadd.f32 %v1762, %v1844
  %v1846 = vpop.f32.mrb[0].mxu0
  %1847 = vmatprep.mubr.bf16.mxu0 0
  %1848 = vmatmul.mubr.bf16.gmra.mrb[0].mxu0 %v1799
  %v1849 = vpop.f32.mrb[0].mxu0
  %v1850 = vadd.f32 %v1767, %v1849
  %v1851 = vpop.f32.mrb[0].mxu0
  %v1852 = vpop.f32.mrb[0].mxu0
  %v1853 = vadd.f32 %v1770, %v1852
  %v1854 = vpop.f32.mrb[0].mxu0
  %1855 = vmatprep.mubr.bf16.mxu0 0
  %1856 = vmatmul.mubr.bf16.gmra.mrb[0].mxu0 %v1802
  %v1857 = vpop.f32.mrb[0].mxu0
  %v1858 = vadd.f32 %v1775, %v1857
  %v1859 = vpop.f32.mrb[0].mxu0
  %v1860 = vpop.f32.mrb[0].mxu0
  %v1861 = vadd.f32 %v1778, %v1860
  %v1862 = vpop.f32.mrb[0].mxu0
  %1863 = vmatprep.mubr.bf16.mxu0 0
  %1864 = vmatmul.mubr.bf16.gmra.mrb[0].mxu0 %v1805
  %v1865 = vpop.f32.mrb[0].mxu0
  %v1866 = vadd.f32 %v1783, %v1865
  %v1867 = vpop.f32.mrb[0].mxu0
  %v1868 = vpop.f32.mrb[0].mxu0
  %v1869 = vadd.f32 %v1786, %v1868
  %v1870 = vpop.f32.mrb[0].mxu0
  %1871 = vdwg.mxu0
  %v1872 = vadd.f32 %v64, %v1842
  %v1873 = vadd.f32 %v65, %v1845
  %v1874 = vadd.f32 %v66, %v1850
  %v1875 = vadd.f32 %v67, %v1853
  %v1876 = vadd.f32 %v68, %v1858
  %v1877 = vadd.f32 %v69, %v1861
  %v1878 = vadd.f32 %v70, %v1866
  %v1879 = vadd.f32 %v71, %v1869
  %v1880 = vld [vmem:[%s7] sm:$0x1]
  %v1882 = vlaneseq
  %v1883 = vshrl.u32 %v1882, 7
  %v1884 = vsub.s32 0, %v1883
  %v1885 = vrot.slane %v1880, %v1884
  %v1887 = vadd.f32 %v1872, %v1885
  %v1888 = vadd.f32 %v1873, %v1885
  %v1889 = vadd.f32 %v1874, %v1885
  %v1890 = vadd.f32 %v1875, %v1885
  %v1891 = vadd.f32 %v1876, %v1885
  %v1892 = vadd.f32 %v1877, %v1885
  %v1893 = vadd.f32 %v1878, %v1885
  %v1894 = vadd.f32 %v1879, %v1885
  %v1895 = vld [vmem:[%s8] sm:$0x1]
  %v1896 = vld [vmem:[%s9] sm:$0x1]
  %v1897 = vsel %vm91, %v1887, 0.0
  %1898 = vadd.xlane.f32.xlu0 %v1897
  %v1899 = vpop.xlane.xlu0 %1898
  %v1900 = vsel %vm91, %v1888, 0.0
  %1901 = vadd.xlane.f32.xlu0 %v1900
  %v1902 = vpop.xlane.xlu0 %1901
  %v1903 = vsel %vm91, %v1889, 0.0
  %1904 = vadd.xlane.f32.xlu0 %v1903
  %v1905 = vpop.xlane.xlu0 %1904
  %v1906 = vsel %vm91, %v1890, 0.0
  %1907 = vadd.xlane.f32.xlu0 %v1906
  %v1908 = vpop.xlane.xlu0 %1907
  %v1909 = vsel %vm91, %v1891, 0.0
  %1910 = vadd.xlane.f32.xlu0 %v1909
  %v1911 = vpop.xlane.xlu0 %1910
  %v1912 = vsel %vm91, %v1892, 0.0
  %1913 = vadd.xlane.f32.xlu0 %v1912
  %v1914 = vpop.xlane.xlu0 %1913
  %v1915 = vsel %vm91, %v1893, 0.0
  %1916 = vadd.xlane.f32.xlu0 %v1915
  %v1917 = vpop.xlane.xlu0 %1916
  %v1918 = vsel %vm91, %v1894, 0.0
  %1919 = vadd.xlane.f32.xlu0 %v1918
  %v1920 = vpop.xlane.xlu0 %1919
  %v1921 = vmul.f32 %v1899, %v116
  %v1922 = vmul.f32 %v1902, %v116
  %v1923 = vmul.f32 %v1905, %v116
  %v1924 = vmul.f32 %v1908, %v116
  %v1925 = vmul.f32 %v1911, %v116
  %v1926 = vmul.f32 %v1914, %v116
  %v1927 = vmul.f32 %v1917, %v116
  %v1928 = vmul.f32 %v1920, %v116
  %v1929 = vsub.f32 %v1887, %v1921
  %v1930 = vsub.f32 %v1888, %v1922
  %v1931 = vsub.f32 %v1889, %v1923
  %v1932 = vsub.f32 %v1890, %v1924
  %v1933 = vsub.f32 %v1891, %v1925
  %v1934 = vsub.f32 %v1892, %v1926
  %v1935 = vsub.f32 %v1893, %v1927
  %v1936 = vsub.f32 %v1894, %v1928
  %v1937 = vmul.f32 %v1929, %v1929
  %v1938 = vmul.f32 %v1930, %v1930
  %v1939 = vmul.f32 %v1931, %v1931
  %v1940 = vmul.f32 %v1932, %v1932
  %v1941 = vmul.f32 %v1933, %v1933
  %v1942 = vmul.f32 %v1934, %v1934
  %v1943 = vmul.f32 %v1935, %v1935
  %v1944 = vmul.f32 %v1936, %v1936
  %v1945 = vsel %vm91, %v1937, 0.0
  %1946 = vadd.xlane.f32.xlu0 %v1945
  %v1947 = vpop.xlane.xlu0 %1946
  %v1948 = vsel %vm91, %v1938, 0.0
  %1949 = vadd.xlane.f32.xlu0 %v1948
  %v1950 = vpop.xlane.xlu0 %1949
  %v1951 = vsel %vm91, %v1939, 0.0
  %1952 = vadd.xlane.f32.xlu0 %v1951
  %v1953 = vpop.xlane.xlu0 %1952
  %v1954 = vsel %vm91, %v1940, 0.0
  %1955 = vadd.xlane.f32.xlu0 %v1954
  %v1956 = vpop.xlane.xlu0 %1955
  %v1957 = vsel %vm91, %v1941, 0.0
  %1958 = vadd.xlane.f32.xlu0 %v1957
  %v1959 = vpop.xlane.xlu0 %1958
  %v1960 = vsel %vm91, %v1942, 0.0
  %1961 = vadd.xlane.f32.xlu0 %v1960
  %v1962 = vpop.xlane.xlu0 %1961
  %v1963 = vsel %vm91, %v1943, 0.0
  %1964 = vadd.xlane.f32.xlu0 %v1963
  %v1965 = vpop.xlane.xlu0 %1964
  %v1966 = vsel %vm91, %v1944, 0.0
  %1967 = vadd.xlane.f32.xlu0 %v1966
  %v1968 = vpop.xlane.xlu0 %1967
  %v1969 = vmul.f32 %v1947, %v116
  %v1970 = vmul.f32 %v1950, %v116
  %v1971 = vmul.f32 %v1953, %v116
  %v1972 = vmul.f32 %v1956, %v116
  %v1973 = vmul.f32 %v1959, %v116
  %v1974 = vmul.f32 %v1962, %v116
  %v1975 = vmul.f32 %v1965, %v116
  %v1976 = vmul.f32 %v1968, %v116
  %v1977 = vadd.f32 %v1969, 1e-05
  %v1978 = vadd.f32 %v1970, 1e-05
  %v1979 = vadd.f32 %v1971, 1e-05
  %v1980 = vadd.f32 %v1972, 1e-05
  %v1981 = vadd.f32 %v1973, 1e-05
  %v1982 = vadd.f32 %v1974, 1e-05
  %v1983 = vadd.f32 %v1975, 1e-05
  %v1984 = vadd.f32 %v1976, 1e-05
  %v1985 = vrsqrt.pop %v1977
  %v1986 = vrsqrt.pop %v1978
  %v1987 = vrsqrt.pop %v1979
  %v1988 = vrsqrt.pop %v1980
  %v1989 = vrsqrt.pop %v1981
  %v1990 = vrsqrt.pop %v1982
  %v1991 = vrsqrt.pop %v1983
  %v1992 = vrsqrt.pop %v1984
  %v1993 = vmul.f32 %v1929, %v1985
  %v1994 = vmul.f32 %v1930, %v1986
  %v1995 = vmul.f32 %v1931, %v1987
  %v1996 = vmul.f32 %v1932, %v1988
  %v1997 = vmul.f32 %v1933, %v1989
  %v1998 = vmul.f32 %v1934, %v1990
  %v1999 = vmul.f32 %v1935, %v1991
  %v2000 = vmul.f32 %v1936, %v1992
  %v2002 = vlaneseq
  %v2003 = vshrl.u32 %v2002, 7
  %v2004 = vsub.s32 0, %v2003
  %v2005 = vrot.slane %v1895, %v2004
  %v2007 = vmul.f32 %v1993, %v2005
  %v2008 = vmul.f32 %v1994, %v2005
  %v2009 = vmul.f32 %v1995, %v2005
  %v2010 = vmul.f32 %v1996, %v2005
  %v2011 = vmul.f32 %v1997, %v2005
  %v2012 = vmul.f32 %v1998, %v2005
  %v2013 = vmul.f32 %v1999, %v2005
  %v2014 = vmul.f32 %v2000, %v2005
  %v2016 = vlaneseq
  %v2017 = vshrl.u32 %v2016, 7
  %v2018 = vsub.s32 0, %v2017
  %v2019 = vrot.slane %v1896, %v2018
  %v2021 = vadd.f32 %v2007, %v2019
  %v2022 = vadd.f32 %v2008, %v2019
  %v2023 = vadd.f32 %v2009, %v2019
  %v2024 = vadd.f32 %v2010, %v2019
  %v2025 = vadd.f32 %v2011, %v2019
  %v2026 = vadd.f32 %v2012, %v2019
  %v2027 = vadd.f32 %v2013, %v2019
  %v2028 = vadd.f32 %v2014, %v2019
  %v2029 = vpack.c.bf16 %v2022, %v2021
  %v2030 = vpack.c.bf16 %v2024, %v2023
  %v2031 = vpack.c.bf16 %v2026, %v2025
  %v2032 = vpack.c.bf16 %v2028, %v2027
  %v2033 = vld [vmem:[%s10] sm:$0xf]
  %v2034 = vld [vmem:[%s10 + $0x4] sm:$0xf]
  %v2035 = vld [vmem:[%s10 + $0x8] sm:$0xf]
  %v2036 = vld [vmem:[%s10 + $0xc] sm:$0xf]
  %v2037 = vld [vmem:[%s11] sm:$0x1]
  %v2039 = vlaneseq
  %v2040 = vshrl.u32 %v2039, 7
  %v2041 = vsub.s32 0, %v2040
  %v2042 = vrot.slane %v2037, %v2041
  %v2048 = vunpack.c.l.b16 %v2033
  %v2049 = vunpack.c.l.b16 %v2034
  %v2050 = vunpack.c.l.b16 %v2035
  %v2051 = vunpack.c.l.b16 %v2036
  %v2052 = vpack.c.b16 %v2049, %v2048
  %v2053 = vpack.c.b16 %v2051, %v2050
  %v2057 = vsel %vm91, %v2029, 0
  %v2060 = vsel %vm91, %v2030, 0
  %v2063 = vsel %vm91, %v2031, 0
  %v2066 = vsel %vm91, %v2032, 0
  %2068 = vmatprep.subr.bf16.mxu0 0
  %2069 = vmatpush1.bf16.msra.mxu0 %v2052
  %2070 = vmatprep.subr.bf16.mxu0 0
  %2071 = vmatpush1.bf16.msra.mxu0 %v2053
  %2072 = vmatprep.subr.bf16.mxu0 0
  %2073 = vmatpush1.bf16.msra.mxu0 0
  %2074 = vmatprep.subr.bf16.mxu0 0
  %2075 = vmatpush1.bf16.msra.mxu0 0
  %2076 = vmatprep.subr.bf16.mxu0 0
  %2077 = vmatpush1.bf16.msra.mxu0 0
  %2078 = vmatprep.subr.bf16.mxu0 0
  %2079 = vmatpush1.bf16.msra.mxu0 0
  %2080 = vmatprep.subr.bf16.mxu0 0
  %2081 = vmatpush1.bf16.msra.mxu0 0
  %2082 = vmatprep.subr.bf16.mxu0 0
  %2083 = vmatpush1.bf16.msra.mxu0 0
  %2084 = vmatprep.subr.bf16.mxu0 0
  %2085 = vmatpush1.bf16.msra.mxu0 0
  %2086 = vmatprep.subr.bf16.mxu0 0
  %2087 = vmatpush1.bf16.msra.mxu0 0
  %2088 = vmatprep.subr.bf16.mxu0 0
  %2089 = vmatpush1.bf16.msra.mxu0 0
  %2090 = vmatprep.subr.bf16.mxu0 0
  %2091 = vmatpush1.bf16.msra.mxu0 0
  %2092 = vmatprep.subr.bf16.mxu0 0
  %2093 = vmatpush1.bf16.msra.mxu0 0
  %2094 = vmatprep.subr.bf16.mxu0 0
  %2095 = vmatpush1.bf16.msra.mxu0 0
  %2096 = vmatprep.subr.bf16.mxu0 0
  %2097 = vmatpush1.bf16.msra.mxu0 0
  %2098 = vmatprep.subr.bf16.mxu0 0
  %2099 = vmatpush1.bf16.msra.mxu0 0
  %2100 = vmatprep.mubr.bf16.mxu0 0
  %2101 = vmatmul.mubr.bf16.gmra.mrb[0].mxu0 %v2057
  %v2102 = vpop.f32.mrb[0].mxu0
  %v2103 = vadd.f32 %v2042, %v2102
  %v2104 = vpop.f32.mrb[0].mxu0
  %v2105 = vpop.f32.mrb[0].mxu0
  %v2106 = vadd.f32 %v2042, %v2105
  %v2107 = vpop.f32.mrb[0].mxu0
  %2108 = vmatprep.mubr.bf16.mxu0 0
  %2109 = vmatmul.mubr.bf16.gmra.mrb[0].mxu0 %v2060
  %v2110 = vpop.f32.mrb[0].mxu0
  %v2111 = vadd.f32 %v2042, %v2110
  %v2112 = vpop.f32.mrb[0].mxu0
  %v2113 = vpop.f32.mrb[0].mxu0
  %v2114 = vadd.f32 %v2042, %v2113
  %v2115 = vpop.f32.mrb[0].mxu0
  %2116 = vmatprep.mubr.bf16.mxu0 0
  %2117 = vmatmul.mubr.bf16.gmra.mrb[0].mxu0 %v2063
  %v2118 = vpop.f32.mrb[0].mxu0
  %v2119 = vadd.f32 %v2042, %v2118
  %v2120 = vpop.f32.mrb[0].mxu0
  %v2121 = vpop.f32.mrb[0].mxu0
  %v2122 = vadd.f32 %v2042, %v2121
  %v2123 = vpop.f32.mrb[0].mxu0
  %2124 = vmatprep.mubr.bf16.mxu0 0
  %2125 = vmatmul.mubr.bf16.gmra.mrb[0].mxu0 %v2066
  %v2126 = vpop.f32.mrb[0].mxu0
  %v2127 = vadd.f32 %v2042, %v2126
  %v2128 = vpop.f32.mrb[0].mxu0
  %v2129 = vpop.f32.mrb[0].mxu0
  %v2130 = vadd.f32 %v2042, %v2129
  %v2131 = vpop.f32.mrb[0].mxu0
  %2132 = vdwg.mxu0
  %v2133 = vmul.f32 %v2103, %v2103
  %v2134 = vmul.f32 %v2106, %v2106
  %v2135 = vmul.f32 %v2111, %v2111
  %v2136 = vmul.f32 %v2114, %v2114
  %v2137 = vmul.f32 %v2119, %v2119
  %v2138 = vmul.f32 %v2122, %v2122
  %v2139 = vmul.f32 %v2127, %v2127
  %v2140 = vmul.f32 %v2130, %v2130
  %v2141 = vmul.f32 %v2103, %v2133
  %v2142 = vmul.f32 %v2106, %v2134
  %v2143 = vmul.f32 %v2111, %v2135
  %v2144 = vmul.f32 %v2114, %v2136
  %v2145 = vmul.f32 %v2119, %v2137
  %v2146 = vmul.f32 %v2122, %v2138
  %v2147 = vmul.f32 %v2127, %v2139
  %v2148 = vmul.f32 %v2130, %v2140
  %v2149 = vmul.f32 %v2141, 0.044715
  %v2150 = vmul.f32 %v2142, 0.044715
  %v2151 = vmul.f32 %v2143, 0.044715
  %v2152 = vmul.f32 %v2144, 0.044715
  %v2153 = vmul.f32 %v2145, 0.044715
  %v2154 = vmul.f32 %v2146, 0.044715
  %v2155 = vmul.f32 %v2147, 0.044715
  %v2156 = vmul.f32 %v2148, 0.044715
  %v2157 = vadd.f32 %v2103, %v2149
  %v2158 = vadd.f32 %v2106, %v2150
  %v2159 = vadd.f32 %v2111, %v2151
  %v2160 = vadd.f32 %v2114, %v2152
  %v2161 = vadd.f32 %v2119, %v2153
  %v2162 = vadd.f32 %v2122, %v2154
  %v2163 = vadd.f32 %v2127, %v2155
  %v2164 = vadd.f32 %v2130, %v2156
  %v2165 = vmul.f32 %v2157, 0.7978846
  %v2166 = vmul.f32 %v2158, 0.7978846
  %v2167 = vmul.f32 %v2159, 0.7978846
  %v2168 = vmul.f32 %v2160, 0.7978846
  %v2169 = vmul.f32 %v2161, 0.7978846
  %v2170 = vmul.f32 %v2162, 0.7978846
  %v2171 = vmul.f32 %v2163, 0.7978846
  %v2172 = vmul.f32 %v2164, 0.7978846
  %v2173 = vtanh.pop %v2165
  %v2174 = vtanh.pop %v2166
  %v2175 = vtanh.pop %v2167
  %v2176 = vtanh.pop %v2168
  %v2177 = vtanh.pop %v2169
  %v2178 = vtanh.pop %v2170
  %v2179 = vtanh.pop %v2171
  %v2180 = vtanh.pop %v2172
  %v2181 = vadd.f32 %v2173, 1.0
  %v2182 = vadd.f32 %v2174, 1.0
  %v2183 = vadd.f32 %v2175, 1.0
  %v2184 = vadd.f32 %v2176, 1.0
  %v2185 = vadd.f32 %v2177, 1.0
  %v2186 = vadd.f32 %v2178, 1.0
  %v2187 = vadd.f32 %v2179, 1.0
  %v2188 = vadd.f32 %v2180, 1.0
  %v2189 = vmul.f32 %v2181, 0.5
  %v2190 = vmul.f32 %v2182, 0.5
  %v2191 = vmul.f32 %v2183, 0.5
  %v2192 = vmul.f32 %v2184, 0.5
  %v2193 = vmul.f32 %v2185, 0.5
  %v2194 = vmul.f32 %v2186, 0.5
  %v2195 = vmul.f32 %v2187, 0.5
  %v2196 = vmul.f32 %v2188, 0.5
  %v2197 = vmul.f32 %v2103, %v2189
  %v2198 = vmul.f32 %v2106, %v2190
  %v2199 = vmul.f32 %v2111, %v2191
  %v2200 = vmul.f32 %v2114, %v2192
  %v2201 = vmul.f32 %v2119, %v2193
  %v2202 = vmul.f32 %v2122, %v2194
  %v2203 = vmul.f32 %v2127, %v2195
  %v2204 = vmul.f32 %v2130, %v2196
  %v2205 = vpack.c.bf16 %v2198, %v2197
  %v2206 = vpack.c.bf16 %v2200, %v2199
  %v2207 = vpack.c.bf16 %v2202, %v2201
  %v2208 = vpack.c.bf16 %v2204, %v2203
  %v2209 = vld [vmem:[%s12] sm:$0xf]
  %v2210 = vld [vmem:[%s12 + $0x4] sm:$0xf]
  %v2211 = vld [vmem:[%s12 + $0x8] sm:$0xf]
  %v2212 = vld [vmem:[%s12 + $0xc] sm:$0xf]
  %v2213 = vld [vmem:[%s12 + $0x10] sm:$0xf]
  %v2214 = vld [vmem:[%s12 + $0x14] sm:$0xf]
  %v2215 = vld [vmem:[%s12 + $0x18] sm:$0xf]
  %v2216 = vld [vmem:[%s12 + $0x1c] sm:$0xf]
  %v2217 = vld [vmem:[%s13] sm:$0x1]
  %v2219 = vlaneseq
  %v2220 = vshrl.u32 %v2219, 7
  %v2221 = vsub.s32 0, %v2220
  %v2222 = vrot.slane %v2217, %v2221
  %v2232 = vunpack.c.l.b16 %v2209
  %v2233 = vunpack.c.l.b16 %v2210
  %v2234 = vunpack.c.l.b16 %v2211
  %v2235 = vunpack.c.l.b16 %v2212
  %v2236 = vunpack.c.l.b16 %v2213
  %v2237 = vunpack.c.l.b16 %v2214
  %v2238 = vunpack.c.l.b16 %v2215
  %v2239 = vunpack.c.l.b16 %v2216
  %v2240 = vpack.c.b16 %v2233, %v2232
  %v2241 = vpack.c.b16 %v2235, %v2234
  %v2242 = vpack.c.b16 %v2237, %v2236
  %v2243 = vpack.c.b16 %v2239, %v2238
  %vm2248 = vcmask 523264
  %v2250 = vsel %vm2248, %v2205, 0
  %v2253 = vsel %vm2248, %v2206, 0
  %v2256 = vsel %vm2248, %v2207, 0
  %v2259 = vsel %vm2248, %v2208, 0
  %2261 = vmatprep.subr.bf16.mxu0 0
  %2262 = vmatpush1.bf16.msra.mxu0 %v2240
  %2263 = vmatprep.subr.bf16.mxu0 0
  %2264 = vmatpush1.bf16.msra.mxu0 %v2241
  %2265 = vmatprep.subr.bf16.mxu0 0
  %2266 = vmatpush1.bf16.msra.mxu0 %v2242
  %2267 = vmatprep.subr.bf16.mxu0 0
  %2268 = vmatpush1.bf16.msra.mxu0 %v2243
  %2269 = vmatprep.subr.bf16.mxu0 0
  %2270 = vmatpush1.bf16.msra.mxu0 0
  %2271 = vmatprep.subr.bf16.mxu0 0
  %2272 = vmatpush1.bf16.msra.mxu0 0
  %2273 = vmatprep.subr.bf16.mxu0 0
  %2274 = vmatpush1.bf16.msra.mxu0 0
  %2275 = vmatprep.subr.bf16.mxu0 0
  %2276 = vmatpush1.bf16.msra.mxu0 0
  %2277 = vmatprep.subr.bf16.mxu0 0
  %2278 = vmatpush1.bf16.msra.mxu0 0
  %2279 = vmatprep.subr.bf16.mxu0 0
  %2280 = vmatpush1.bf16.msra.mxu0 0
  %2281 = vmatprep.subr.bf16.mxu0 0
  %2282 = vmatpush1.bf16.msra.mxu0 0
  %2283 = vmatprep.subr.bf16.mxu0 0
  %2284 = vmatpush1.bf16.msra.mxu0 0
  %2285 = vmatprep.subr.bf16.mxu0 0
  %2286 = vmatpush1.bf16.msra.mxu0 0
  %2287 = vmatprep.subr.bf16.mxu0 0
  %2288 = vmatpush1.bf16.msra.mxu0 0
  %2289 = vmatprep.subr.bf16.mxu0 0
  %2290 = vmatpush1.bf16.msra.mxu0 0
  %2291 = vmatprep.subr.bf16.mxu0 0
  %2292 = vmatpush1.bf16.msra.mxu0 0
  %2293 = vmatprep.mubr.bf16.mxu0 0
  %2294 = vmatmul.mubr.bf16.gmra.mrb[0].mxu0 %v2250
  %v2295 = vpop.f32.mrb[0].mxu0
  %v2296 = vadd.f32 %v2222, %v2295
  %v2297 = vpop.f32.mrb[0].mxu0
  %v2298 = vpop.f32.mrb[0].mxu0
  %v2299 = vadd.f32 %v2222, %v2298
  %v2300 = vpop.f32.mrb[0].mxu0
  %2301 = vmatprep.mubr.bf16.mxu0 0
  %2302 = vmatmul.mubr.bf16.gmra.mrb[0].mxu0 %v2253
  %v2303 = vpop.f32.mrb[0].mxu0
  %v2304 = vadd.f32 %v2222, %v2303
  %v2305 = vpop.f32.mrb[0].mxu0
  %v2306 = vpop.f32.mrb[0].mxu0
  %v2307 = vadd.f32 %v2222, %v2306
  %v2308 = vpop.f32.mrb[0].mxu0
  %2309 = vmatprep.mubr.bf16.mxu0 0
  %2310 = vmatmul.mubr.bf16.gmra.mrb[0].mxu0 %v2256
  %v2311 = vpop.f32.mrb[0].mxu0
  %v2312 = vadd.f32 %v2222, %v2311
  %v2313 = vpop.f32.mrb[0].mxu0
  %v2314 = vpop.f32.mrb[0].mxu0
  %v2315 = vadd.f32 %v2222, %v2314
  %v2316 = vpop.f32.mrb[0].mxu0
  %2317 = vmatprep.mubr.bf16.mxu0 0
  %2318 = vmatmul.mubr.bf16.gmra.mrb[0].mxu0 %v2259
  %v2319 = vpop.f32.mrb[0].mxu0
  %v2320 = vadd.f32 %v2222, %v2319
  %v2321 = vpop.f32.mrb[0].mxu0
  %v2322 = vpop.f32.mrb[0].mxu0
  %v2323 = vadd.f32 %v2222, %v2322
  %v2324 = vpop.f32.mrb[0].mxu0
  %2325 = vdwg.mxu0
  %v2326 = vadd.f32 %v1887, %v2296
  %v2327 = vadd.f32 %v1888, %v2299
  %v2328 = vadd.f32 %v1889, %v2304
  %v2329 = vadd.f32 %v1890, %v2307
  %v2330 = vadd.f32 %v1891, %v2312
  %v2331 = vadd.f32 %v1892, %v2315
  %v2332 = vadd.f32 %v1893, %v2320
  %v2333 = vadd.f32 %v1894, %v2323
  %s2334 = scalar_lea.vmem %s1, 1
  %v2335 = vld [vmem:[%s2334] sm:$0x1]
  %s2336 = scalar_lea.vmem %s2, 1
  %v2337 = vld [vmem:[%s2336] sm:$0x1]
  %v2338 = vsel %vm91, %v2326, 0.0
  %2339 = vadd.xlane.f32.xlu0 %v2338
  %v2340 = vpop.xlane.xlu0 %2339
  %v2341 = vsel %vm91, %v2327, 0.0
  %2342 = vadd.xlane.f32.xlu0 %v2341
  %v2343 = vpop.xlane.xlu0 %2342
  %v2344 = vsel %vm91, %v2328, 0.0
  %2345 = vadd.xlane.f32.xlu0 %v2344
  %v2346 = vpop.xlane.xlu0 %2345
  %v2347 = vsel %vm91, %v2329, 0.0
  %2348 = vadd.xlane.f32.xlu0 %v2347
  %v2349 = vpop.xlane.xlu0 %2348
  %v2350 = vsel %vm91, %v2330, 0.0
  %2351 = vadd.xlane.f32.xlu0 %v2350
  %v2352 = vpop.xlane.xlu0 %2351
  %v2353 = vsel %vm91, %v2331, 0.0
  %2354 = vadd.xlane.f32.xlu0 %v2353
  %v2355 = vpop.xlane.xlu0 %2354
  %v2356 = vsel %vm91, %v2332, 0.0
  %2357 = vadd.xlane.f32.xlu0 %v2356
  %v2358 = vpop.xlane.xlu0 %2357
  %v2359 = vsel %vm91, %v2333, 0.0
  %2360 = vadd.xlane.f32.xlu0 %v2359
  %v2361 = vpop.xlane.xlu0 %2360
  %v2362 = vmul.f32 %v2340, %v116
  %v2363 = vmul.f32 %v2343, %v116
  %v2364 = vmul.f32 %v2346, %v116
  %v2365 = vmul.f32 %v2349, %v116
  %v2366 = vmul.f32 %v2352, %v116
  %v2367 = vmul.f32 %v2355, %v116
  %v2368 = vmul.f32 %v2358, %v116
  %v2369 = vmul.f32 %v2361, %v116
  %v2370 = vsub.f32 %v2326, %v2362
  %v2371 = vsub.f32 %v2327, %v2363
  %v2372 = vsub.f32 %v2328, %v2364
  %v2373 = vsub.f32 %v2329, %v2365
  %v2374 = vsub.f32 %v2330, %v2366
  %v2375 = vsub.f32 %v2331, %v2367
  %v2376 = vsub.f32 %v2332, %v2368
  %v2377 = vsub.f32 %v2333, %v2369
  %v2378 = vmul.f32 %v2370, %v2370
  %v2379 = vmul.f32 %v2371, %v2371
  %v2380 = vmul.f32 %v2372, %v2372
  %v2381 = vmul.f32 %v2373, %v2373
  %v2382 = vmul.f32 %v2374, %v2374
  %v2383 = vmul.f32 %v2375, %v2375
  %v2384 = vmul.f32 %v2376, %v2376
  %v2385 = vmul.f32 %v2377, %v2377
  %v2386 = vsel %vm91, %v2378, 0.0
  %2387 = vadd.xlane.f32.xlu0 %v2386
  %v2388 = vpop.xlane.xlu0 %2387
  %v2389 = vsel %vm91, %v2379, 0.0
  %2390 = vadd.xlane.f32.xlu0 %v2389
  %v2391 = vpop.xlane.xlu0 %2390
  %v2392 = vsel %vm91, %v2380, 0.0
  %2393 = vadd.xlane.f32.xlu0 %v2392
  %v2394 = vpop.xlane.xlu0 %2393
  %v2395 = vsel %vm91, %v2381, 0.0
  %2396 = vadd.xlane.f32.xlu0 %v2395
  %v2397 = vpop.xlane.xlu0 %2396
  %v2398 = vsel %vm91, %v2382, 0.0
  %2399 = vadd.xlane.f32.xlu0 %v2398
  %v2400 = vpop.xlane.xlu0 %2399
  %v2401 = vsel %vm91, %v2383, 0.0
  %2402 = vadd.xlane.f32.xlu0 %v2401
  %v2403 = vpop.xlane.xlu0 %2402
  %v2404 = vsel %vm91, %v2384, 0.0
  %2405 = vadd.xlane.f32.xlu0 %v2404
  %v2406 = vpop.xlane.xlu0 %2405
  %v2407 = vsel %vm91, %v2385, 0.0
  %2408 = vadd.xlane.f32.xlu0 %v2407
  %v2409 = vpop.xlane.xlu0 %2408
  %v2410 = vmul.f32 %v2388, %v116
  %v2411 = vmul.f32 %v2391, %v116
  %v2412 = vmul.f32 %v2394, %v116
  %v2413 = vmul.f32 %v2397, %v116
  %v2414 = vmul.f32 %v2400, %v116
  %v2415 = vmul.f32 %v2403, %v116
  %v2416 = vmul.f32 %v2406, %v116
  %v2417 = vmul.f32 %v2409, %v116
  %v2418 = vadd.f32 %v2410, 1e-05
  %v2419 = vadd.f32 %v2411, 1e-05
  %v2420 = vadd.f32 %v2412, 1e-05
  %v2421 = vadd.f32 %v2413, 1e-05
  %v2422 = vadd.f32 %v2414, 1e-05
  %v2423 = vadd.f32 %v2415, 1e-05
  %v2424 = vadd.f32 %v2416, 1e-05
  %v2425 = vadd.f32 %v2417, 1e-05
  %v2426 = vrsqrt.pop %v2418
  %v2427 = vrsqrt.pop %v2419
  %v2428 = vrsqrt.pop %v2420
  %v2429 = vrsqrt.pop %v2421
  %v2430 = vrsqrt.pop %v2422
  %v2431 = vrsqrt.pop %v2423
  %v2432 = vrsqrt.pop %v2424
  %v2433 = vrsqrt.pop %v2425
  %v2434 = vmul.f32 %v2370, %v2426
  %v2435 = vmul.f32 %v2371, %v2427
  %v2436 = vmul.f32 %v2372, %v2428
  %v2437 = vmul.f32 %v2373, %v2429
  %v2438 = vmul.f32 %v2374, %v2430
  %v2439 = vmul.f32 %v2375, %v2431
  %v2440 = vmul.f32 %v2376, %v2432
  %v2441 = vmul.f32 %v2377, %v2433
  %v2443 = vlaneseq
  %v2444 = vshrl.u32 %v2443, 7
  %v2445 = vsub.s32 0, %v2444
  %v2446 = vrot.slane %v2335, %v2445
  %v2448 = vmul.f32 %v2434, %v2446
  %v2449 = vmul.f32 %v2435, %v2446
  %v2450 = vmul.f32 %v2436, %v2446
  %v2451 = vmul.f32 %v2437, %v2446
  %v2452 = vmul.f32 %v2438, %v2446
  %v2453 = vmul.f32 %v2439, %v2446
  %v2454 = vmul.f32 %v2440, %v2446
  %v2455 = vmul.f32 %v2441, %v2446
  %v2457 = vlaneseq
  %v2458 = vshrl.u32 %v2457, 7
  %v2459 = vsub.s32 0, %v2458
  %v2460 = vrot.slane %v2337, %v2459
  %v2462 = vadd.f32 %v2448, %v2460
  %v2463 = vadd.f32 %v2449, %v2460
  %v2464 = vadd.f32 %v2450, %v2460
  %v2465 = vadd.f32 %v2451, %v2460
  %v2466 = vadd.f32 %v2452, %v2460
  %v2467 = vadd.f32 %v2453, %v2460
  %v2468 = vadd.f32 %v2454, %v2460
  %v2469 = vadd.f32 %v2455, %v2460
  %v2470 = vpack.c.bf16 %v2463, %v2462
  %v2471 = vpack.c.bf16 %v2465, %v2464
  %v2472 = vpack.c.bf16 %v2467, %v2466
  %v2473 = vpack.c.bf16 %v2469, %v2468
  %s2474 = scalar_lea.vmem %s3, 32
  %v2475 = vld [vmem:[%s2474] sm:$0xf]
  %v2476 = vld [vmem:[%s2474 + $0x4] sm:$0xf]
  %v2477 = vld [vmem:[%s2474 + $0x8] sm:$0xf]
  %v2478 = vld [vmem:[%s2474 + $0xc] sm:$0xf]
  %v2483 = vunpack.c.l.b16 %v2475
  %v2484 = vunpack.c.l.b16 %v2476
  %v2485 = vunpack.c.l.b16 %v2477
  %v2486 = vunpack.c.l.b16 %v2478
  %v2487 = vpack.c.b16 %v2484, %v2483
  %v2488 = vpack.c.b16 %v2486, %v2485
  %v2492 = vsel %vm91, %v2470, 0
  %v2495 = vsel %vm91, %v2471, 0
  %v2498 = vsel %vm91, %v2472, 0
  %v2501 = vsel %vm91, %v2473, 0
  %2503 = vmatprep.subr.bf16.mxu0 0
  %2504 = vmatpush1.bf16.msra.mxu0 %v2487
  %2505 = vmatprep.subr.bf16.mxu0 0
  %2506 = vmatpush1.bf16.msra.mxu0 %v2488
  %2507 = vmatprep.subr.bf16.mxu0 0
  %2508 = vmatpush1.bf16.msra.mxu0 0
  %2509 = vmatprep.subr.bf16.mxu0 0
  %2510 = vmatpush1.bf16.msra.mxu0 0
  %2511 = vmatprep.subr.bf16.mxu0 0
  %2512 = vmatpush1.bf16.msra.mxu0 0
  %2513 = vmatprep.subr.bf16.mxu0 0
  %2514 = vmatpush1.bf16.msra.mxu0 0
  %2515 = vmatprep.subr.bf16.mxu0 0
  %2516 = vmatpush1.bf16.msra.mxu0 0
  %2517 = vmatprep.subr.bf16.mxu0 0
  %2518 = vmatpush1.bf16.msra.mxu0 0
  %2519 = vmatprep.subr.bf16.mxu0 0
  %2520 = vmatpush1.bf16.msra.mxu0 0
  %2521 = vmatprep.subr.bf16.mxu0 0
  %2522 = vmatpush1.bf16.msra.mxu0 0
  %2523 = vmatprep.subr.bf16.mxu0 0
  %2524 = vmatpush1.bf16.msra.mxu0 0
  %2525 = vmatprep.subr.bf16.mxu0 0
  %2526 = vmatpush1.bf16.msra.mxu0 0
  %2527 = vmatprep.subr.bf16.mxu0 0
  %2528 = vmatpush1.bf16.msra.mxu0 0
  %2529 = vmatprep.subr.bf16.mxu0 0
  %2530 = vmatpush1.bf16.msra.mxu0 0
  %2531 = vmatprep.subr.bf16.mxu0 0
  %2532 = vmatpush1.bf16.msra.mxu0 0
  %2533 = vmatprep.subr.bf16.mxu0 0
  %2534 = vmatpush1.bf16.msra.mxu0 0
  %2535 = vmatprep.mubr.bf16.mxu0 0
  %2536 = vmatmul.mubr.bf16.gmra.mrb[0].mxu0 %v2492
  %v2537 = vpop.f32.mrb[0].mxu0
  %v2538 = vadd.f32 0.0, %v2537
  %v2539 = vpop.f32.mrb[0].mxu0
  %v2540 = vpop.f32.mrb[0].mxu0
  %v2541 = vadd.f32 0.0, %v2540
  %v2542 = vpop.f32.mrb[0].mxu0
  %2543 = vmatprep.mubr.bf16.mxu0 0
  %2544 = vmatmul.mubr.bf16.gmra.mrb[0].mxu0 %v2495
  %v2545 = vpop.f32.mrb[0].mxu0
  %v2546 = vadd.f32 0.0, %v2545
  %v2547 = vpop.f32.mrb[0].mxu0
  %v2548 = vpop.f32.mrb[0].mxu0
  %v2549 = vadd.f32 0.0, %v2548
  %v2550 = vpop.f32.mrb[0].mxu0
  %2551 = vmatprep.mubr.bf16.mxu0 0
  %2552 = vmatmul.mubr.bf16.gmra.mrb[0].mxu0 %v2498
  %v2553 = vpop.f32.mrb[0].mxu0
  %v2554 = vadd.f32 0.0, %v2553
  %v2555 = vpop.f32.mrb[0].mxu0
  %v2556 = vpop.f32.mrb[0].mxu0
  %v2557 = vadd.f32 0.0, %v2556
  %v2558 = vpop.f32.mrb[0].mxu0
  %2559 = vmatprep.mubr.bf16.mxu0 0
  %2560 = vmatmul.mubr.bf16.gmra.mrb[0].mxu0 %v2501
  %v2561 = vpop.f32.mrb[0].mxu0
  %v2562 = vadd.f32 0.0, %v2561
  %v2563 = vpop.f32.mrb[0].mxu0
  %v2564 = vpop.f32.mrb[0].mxu0
  %v2565 = vadd.f32 0.0, %v2564
  %v2566 = vpop.f32.mrb[0].mxu0
  %2567 = vdwg.mxu0
  %s2568 = scalar_lea.vmem %s4, 32
  %v2569 = vld [vmem:[%s2568] sm:$0xf]
  %v2570 = vld [vmem:[%s2568 + $0x4] sm:$0xf]
  %v2571 = vld [vmem:[%s2568 + $0x8] sm:$0xf]
  %v2572 = vld [vmem:[%s2568 + $0xc] sm:$0xf]
  %v2577 = vunpack.c.l.b16 %v2569
  %v2578 = vunpack.c.l.b16 %v2570
  %v2579 = vunpack.c.l.b16 %v2571
  %v2580 = vunpack.c.l.b16 %v2572
  %v2581 = vpack.c.b16 %v2578, %v2577
  %v2582 = vpack.c.b16 %v2580, %v2579
  %2585 = vmatprep.subr.bf16.mxu0 0
  %2586 = vmatpush1.bf16.msra.mxu0 %v2581
  %2587 = vmatprep.subr.bf16.mxu0 0
  %2588 = vmatpush1.bf16.msra.mxu0 %v2582
  %2589 = vmatprep.subr.bf16.mxu0 0
  %2590 = vmatpush1.bf16.msra.mxu0 0
  %2591 = vmatprep.subr.bf16.mxu0 0
  %2592 = vmatpush1.bf16.msra.mxu0 0
  %2593 = vmatprep.subr.bf16.mxu0 0
  %2594 = vmatpush1.bf16.msra.mxu0 0
  %2595 = vmatprep.subr.bf16.mxu0 0
  %2596 = vmatpush1.bf16.msra.mxu0 0
  %2597 = vmatprep.subr.bf16.mxu0 0
  %2598 = vmatpush1.bf16.msra.mxu0 0
  %2599 = vmatprep.subr.bf16.mxu0 0
  %2600 = vmatpush1.bf16.msra.mxu0 0
  %2601 = vmatprep.subr.bf16.mxu0 0
  %2602 = vmatpush1.bf16.msra.mxu0 0
  %2603 = vmatprep.subr.bf16.mxu0 0
  %2604 = vmatpush1.bf16.msra.mxu0 0
  %2605 = vmatprep.subr.bf16.mxu0 0
  %2606 = vmatpush1.bf16.msra.mxu0 0
  %2607 = vmatprep.subr.bf16.mxu0 0
  %2608 = vmatpush1.bf16.msra.mxu0 0
  %2609 = vmatprep.subr.bf16.mxu0 0
  %2610 = vmatpush1.bf16.msra.mxu0 0
  %2611 = vmatprep.subr.bf16.mxu0 0
  %2612 = vmatpush1.bf16.msra.mxu0 0
  %2613 = vmatprep.subr.bf16.mxu0 0
  %2614 = vmatpush1.bf16.msra.mxu0 0
  %2615 = vmatprep.subr.bf16.mxu0 0
  %2616 = vmatpush1.bf16.msra.mxu0 0
  %2617 = vmatprep.mubr.bf16.mxu0 0
  %2618 = vmatmul.mubr.bf16.gmra.mrb[0].mxu0 %v2492
  %v2619 = vpop.f32.mrb[0].mxu0
  %v2620 = vadd.f32 0.0, %v2619
  %v2621 = vpop.f32.mrb[0].mxu0
  %v2622 = vpop.f32.mrb[0].mxu0
  %v2623 = vadd.f32 0.0, %v2622
  %v2624 = vpop.f32.mrb[0].mxu0
  %2625 = vmatprep.mubr.bf16.mxu0 0
  %2626 = vmatmul.mubr.bf16.gmra.mrb[0].mxu0 %v2495
  %v2627 = vpop.f32.mrb[0].mxu0
  %v2628 = vadd.f32 0.0, %v2627
  %v2629 = vpop.f32.mrb[0].mxu0
  %v2630 = vpop.f32.mrb[0].mxu0
  %v2631 = vadd.f32 0.0, %v2630
  %v2632 = vpop.f32.mrb[0].mxu0
  %2633 = vmatprep.mubr.bf16.mxu0 0
  %2634 = vmatmul.mubr.bf16.gmra.mrb[0].mxu0 %v2498
  %v2635 = vpop.f32.mrb[0].mxu0
  %v2636 = vadd.f32 0.0, %v2635
  %v2637 = vpop.f32.mrb[0].mxu0
  %v2638 = vpop.f32.mrb[0].mxu0
  %v2639 = vadd.f32 0.0, %v2638
  %v2640 = vpop.f32.mrb[0].mxu0
  %2641 = vmatprep.mubr.bf16.mxu0 0
  %2642 = vmatmul.mubr.bf16.gmra.mrb[0].mxu0 %v2501
  %v2643 = vpop.f32.mrb[0].mxu0
  %v2644 = vadd.f32 0.0, %v2643
  %v2645 = vpop.f32.mrb[0].mxu0
  %v2646 = vpop.f32.mrb[0].mxu0
  %v2647 = vadd.f32 0.0, %v2646
  %v2648 = vpop.f32.mrb[0].mxu0
  %2649 = vdwg.mxu0
  %s2650 = scalar_lea.vmem %s5, 32
  %v2651 = vld [vmem:[%s2650] sm:$0xf]
  %v2652 = vld [vmem:[%s2650 + $0x4] sm:$0xf]
  %v2653 = vld [vmem:[%s2650 + $0x8] sm:$0xf]
  %v2654 = vld [vmem:[%s2650 + $0xc] sm:$0xf]
  %v2659 = vunpack.c.l.b16 %v2651
  %v2660 = vunpack.c.l.b16 %v2652
  %v2661 = vunpack.c.l.b16 %v2653
  %v2662 = vunpack.c.l.b16 %v2654
  %v2663 = vpack.c.b16 %v2660, %v2659
  %v2664 = vpack.c.b16 %v2662, %v2661
  %2667 = vmatprep.subr.bf16.mxu0 0
  %2668 = vmatpush1.bf16.msra.mxu0 %v2663
  %2669 = vmatprep.subr.bf16.mxu0 0
  %2670 = vmatpush1.bf16.msra.mxu0 %v2664
  %2671 = vmatprep.subr.bf16.mxu0 0
  %2672 = vmatpush1.bf16.msra.mxu0 0
  %2673 = vmatprep.subr.bf16.mxu0 0
  %2674 = vmatpush1.bf16.msra.mxu0 0
  %2675 = vmatprep.subr.bf16.mxu0 0
  %2676 = vmatpush1.bf16.msra.mxu0 0
  %2677 = vmatprep.subr.bf16.mxu0 0
  %2678 = vmatpush1.bf16.msra.mxu0 0
  %2679 = vmatprep.subr.bf16.mxu0 0
  %2680 = vmatpush1.bf16.msra.mxu0 0
  %2681 = vmatprep.subr.bf16.mxu0 0
  %2682 = vmatpush1.bf16.msra.mxu0 0
  %2683 = vmatprep.subr.bf16.mxu0 0
  %2684 = vmatpush1.bf16.msra.mxu0 0
  %2685 = vmatprep.subr.bf16.mxu0 0
  %2686 = vmatpush1.bf16.msra.mxu0 0
  %2687 = vmatprep.subr.bf16.mxu0 0
  %2688 = vmatpush1.bf16.msra.mxu0 0
  %2689 = vmatprep.subr.bf16.mxu0 0
  %2690 = vmatpush1.bf16.msra.mxu0 0
  %2691 = vmatprep.subr.bf16.mxu0 0
  %2692 = vmatpush1.bf16.msra.mxu0 0
  %2693 = vmatprep.subr.bf16.mxu0 0
  %2694 = vmatpush1.bf16.msra.mxu0 0
  %2695 = vmatprep.subr.bf16.mxu0 0
  %2696 = vmatpush1.bf16.msra.mxu0 0
  %2697 = vmatprep.subr.bf16.mxu0 0
  %2698 = vmatpush1.bf16.msra.mxu0 0
  %2699 = vmatprep.mubr.bf16.mxu0 0
  %2700 = vmatmul.mubr.bf16.gmra.mrb[0].mxu0 %v2492
  %v2701 = vpop.f32.mrb[0].mxu0
  %v2702 = vadd.f32 0.0, %v2701
  %v2703 = vpop.f32.mrb[0].mxu0
  %v2704 = vpop.f32.mrb[0].mxu0
  %v2705 = vadd.f32 0.0, %v2704
  %v2706 = vpop.f32.mrb[0].mxu0
  %2707 = vmatprep.mubr.bf16.mxu0 0
  %2708 = vmatmul.mubr.bf16.gmra.mrb[0].mxu0 %v2495
  %v2709 = vpop.f32.mrb[0].mxu0
  %v2710 = vadd.f32 0.0, %v2709
  %v2711 = vpop.f32.mrb[0].mxu0
  %v2712 = vpop.f32.mrb[0].mxu0
  %v2713 = vadd.f32 0.0, %v2712
  %v2714 = vpop.f32.mrb[0].mxu0
  %2715 = vmatprep.mubr.bf16.mxu0 0
  %2716 = vmatmul.mubr.bf16.gmra.mrb[0].mxu0 %v2498
  %v2717 = vpop.f32.mrb[0].mxu0
  %v2718 = vadd.f32 0.0, %v2717
  %v2719 = vpop.f32.mrb[0].mxu0
  %v2720 = vpop.f32.mrb[0].mxu0
  %v2721 = vadd.f32 0.0, %v2720
  %v2722 = vpop.f32.mrb[0].mxu0
  %2723 = vmatprep.mubr.bf16.mxu0 0
  %2724 = vmatmul.mubr.bf16.gmra.mrb[0].mxu0 %v2501
  %v2725 = vpop.f32.mrb[0].mxu0
  %v2726 = vadd.f32 0.0, %v2725
  %v2727 = vpop.f32.mrb[0].mxu0
  %v2728 = vpop.f32.mrb[0].mxu0
  %v2729 = vadd.f32 0.0, %v2728
  %v2730 = vpop.f32.mrb[0].mxu0
  %2731 = vdwg.mxu0
  %v2733 = vrot.slane %v2647, 7
  %v2742 = vrot.slane %v2620, 7
  %v2743 = vrot.slane %v2623, 7
  %v2744 = vsel %vm494, %v2742, %v2743
  %v2745 = vrot.slane %v2628, 7
  %v2746 = vsel %vm494, %v2743, %v2745
  %v2747 = vrot.slane %v2631, 7
  %v2748 = vsel %vm494, %v2745, %v2747
  %v2749 = vrot.slane %v2636, 7
  %v2750 = vsel %vm494, %v2747, %v2749
  %v2751 = vrot.slane %v2639, 7
  %v2752 = vsel %vm494, %v2749, %v2751
  %v2753 = vrot.slane %v2644, 7
  %v2754 = vsel %vm494, %v2751, %v2753
  %v2755 = vsel %vm494, %v2753, %v2733
  %v2764 = vsel %vm494, %v2733, %v2742
  %v2765 = vmul.f32 %v2538, %v2764
  %v2766 = vmul.f32 %v2541, %v2744
  %v2767 = vmul.f32 %v2546, %v2746
  %v2768 = vmul.f32 %v2549, %v2748
  %v2769 = vmul.f32 %v2554, %v2750
  %v2770 = vmul.f32 %v2557, %v2752
  %v2771 = vmul.f32 %v2562, %v2754
  %v2772 = vmul.f32 %v2565, %v2755
  %v2773 = vsel %vm526, %v2765, 0.0
  %2774 = vadd.xlane.f32.xlu0 %v2773
  %v2775 = vpop.xlane.xlu0 %2774
  %v2776 = vsel %vm526, %v2766, 0.0
  %2777 = vadd.xlane.f32.xlu0 %v2776
  %v2778 = vpop.xlane.xlu0 %2777
  %v2779 = vsel %vm526, %v2767, 0.0
  %2780 = vadd.xlane.f32.xlu0 %v2779
  %v2781 = vpop.xlane.xlu0 %2780
  %v2782 = vsel %vm526, %v2768, 0.0
  %2783 = vadd.xlane.f32.xlu0 %v2782
  %v2784 = vpop.xlane.xlu0 %2783
  %v2785 = vsel %vm526, %v2769, 0.0
  %2786 = vadd.xlane.f32.xlu0 %v2785
  %v2787 = vpop.xlane.xlu0 %2786
  %v2788 = vsel %vm526, %v2770, 0.0
  %2789 = vadd.xlane.f32.xlu0 %v2788
  %v2790 = vpop.xlane.xlu0 %2789
  %v2791 = vsel %vm526, %v2771, 0.0
  %2792 = vadd.xlane.f32.xlu0 %v2791
  %v2793 = vpop.xlane.xlu0 %2792
  %v2794 = vsel %vm526, %v2772, 0.0
  %2795 = vadd.xlane.f32.xlu0 %v2794
  %v2796 = vpop.xlane.xlu0 %2795
  %v2797 = vmul.f32 %v2775, 0.25
  %v2798 = vmul.f32 %v2778, 0.25
  %v2799 = vmul.f32 %v2781, 0.25
  %v2800 = vmul.f32 %v2784, 0.25
  %v2801 = vmul.f32 %v2787, 0.25
  %v2802 = vmul.f32 %v2790, 0.25
  %v2803 = vmul.f32 %v2793, 0.25
  %v2804 = vmul.f32 %v2796, 0.25
  %v2805 = vsel %vm583, %v2797, -1e+30
  %v2806 = vsel %vm584, %v2798, -1e+30
  %v2807 = vsel %vm585, %v2799, -1e+30
  %v2808 = vsel %vm586, %v2800, -1e+30
  %v2809 = vsel %vm587, %v2801, -1e+30
  %v2810 = vsel %vm588, %v2802, -1e+30
  %v2811 = vsel %vm589, %v2803, -1e+30
  %v2812 = vsel %vm590, %v2804, -1e+30
  %v2813 = vmul.f32 %v2538, %v2620
  %v2814 = vmul.f32 %v2541, %v2623
  %v2815 = vmul.f32 %v2546, %v2628
  %v2816 = vmul.f32 %v2549, %v2631
  %v2817 = vmul.f32 %v2554, %v2636
  %v2818 = vmul.f32 %v2557, %v2639
  %v2819 = vmul.f32 %v2562, %v2644
  %v2820 = vmul.f32 %v2565, %v2647
  %v2821 = vsel %vm526, %v2813, 0.0
  %2822 = vadd.xlane.f32.xlu0 %v2821
  %v2823 = vpop.xlane.xlu0 %2822
  %v2824 = vsel %vm526, %v2814, 0.0
  %2825 = vadd.xlane.f32.xlu0 %v2824
  %v2826 = vpop.xlane.xlu0 %2825
  %v2827 = vsel %vm526, %v2815, 0.0
  %2828 = vadd.xlane.f32.xlu0 %v2827
  %v2829 = vpop.xlane.xlu0 %2828
  %v2830 = vsel %vm526, %v2816, 0.0
  %2831 = vadd.xlane.f32.xlu0 %v2830
  %v2832 = vpop.xlane.xlu0 %2831
  %v2833 = vsel %vm526, %v2817, 0.0
  %2834 = vadd.xlane.f32.xlu0 %v2833
  %v2835 = vpop.xlane.xlu0 %2834
  %v2836 = vsel %vm526, %v2818, 0.0
  %2837 = vadd.xlane.f32.xlu0 %v2836
  %v2838 = vpop.xlane.xlu0 %2837
  %v2839 = vsel %vm526, %v2819, 0.0
  %2840 = vadd.xlane.f32.xlu0 %v2839
  %v2841 = vpop.xlane.xlu0 %2840
  %v2842 = vsel %vm526, %v2820, 0.0
  %2843 = vadd.xlane.f32.xlu0 %v2842
  %v2844 = vpop.xlane.xlu0 %2843
  %v2845 = vmul.f32 %v2823, 0.25
  %v2846 = vmul.f32 %v2826, 0.25
  %v2847 = vmul.f32 %v2829, 0.25
  %v2848 = vmul.f32 %v2832, 0.25
  %v2849 = vmul.f32 %v2835, 0.25
  %v2850 = vmul.f32 %v2838, 0.25
  %v2851 = vmul.f32 %v2841, 0.25
  %v2852 = vmul.f32 %v2844, 0.25
  %v2853 = vsel %vm655, %v2845, -1e+30
  %v2854 = vsel %vm656, %v2846, -1e+30
  %v2855 = vsel %vm657, %v2847, -1e+30
  %v2856 = vsel %vm658, %v2848, -1e+30
  %v2857 = vsel %vm659, %v2849, -1e+30
  %v2858 = vsel %vm660, %v2850, -1e+30
  %v2859 = vsel %vm661, %v2851, -1e+30
  %v2860 = vsel %vm662, %v2852, -1e+30
  %v2861 = vrot.slane %v2620, 1
  %v2862 = vrot.slane %v2623, 1
  %v2863 = vsel %vm671, %v2861, %v2862
  %v2864 = vrot.slane %v2628, 1
  %v2865 = vsel %vm671, %v2862, %v2864
  %v2866 = vrot.slane %v2631, 1
  %v2867 = vsel %vm671, %v2864, %v2866
  %v2868 = vrot.slane %v2636, 1
  %v2869 = vsel %vm671, %v2866, %v2868
  %v2870 = vrot.slane %v2639, 1
  %v2871 = vsel %vm671, %v2868, %v2870
  %v2872 = vrot.slane %v2644, 1
  %v2873 = vsel %vm671, %v2870, %v2872
  %v2874 = vrot.slane %v2647, 1
  %v2875 = vsel %vm671, %v2872, %v2874
  %v2885 = vsel %vm671, %v2874, %v2861
  %v2886 = vmul.f32 %v2538, %v2863
  %v2887 = vmul.f32 %v2541, %v2865
  %v2888 = vmul.f32 %v2546, %v2867
  %v2889 = vmul.f32 %v2549, %v2869
  %v2890 = vmul.f32 %v2554, %v2871
  %v2891 = vmul.f32 %v2557, %v2873
  %v2892 = vmul.f32 %v2562, %v2875
  %v2893 = vmul.f32 %v2565, %v2885
  %v2894 = vsel %vm526, %v2886, 0.0
  %2895 = vadd.xlane.f32.xlu0 %v2894
  %v2896 = vpop.xlane.xlu0 %2895
  %v2897 = vsel %vm526, %v2887, 0.0
  %2898 = vadd.xlane.f32.xlu0 %v2897
  %v2899 = vpop.xlane.xlu0 %2898
  %v2900 = vsel %vm526, %v2888, 0.0
  %2901 = vadd.xlane.f32.xlu0 %v2900
  %v2902 = vpop.xlane.xlu0 %2901
  %v2903 = vsel %vm526, %v2889, 0.0
  %2904 = vadd.xlane.f32.xlu0 %v2903
  %v2905 = vpop.xlane.xlu0 %2904
  %v2906 = vsel %vm526, %v2890, 0.0
  %2907 = vadd.xlane.f32.xlu0 %v2906
  %v2908 = vpop.xlane.xlu0 %2907
  %v2909 = vsel %vm526, %v2891, 0.0
  %2910 = vadd.xlane.f32.xlu0 %v2909
  %v2911 = vpop.xlane.xlu0 %2910
  %v2912 = vsel %vm526, %v2892, 0.0
  %2913 = vadd.xlane.f32.xlu0 %v2912
  %v2914 = vpop.xlane.xlu0 %2913
  %v2915 = vsel %vm526, %v2893, 0.0
  %2916 = vadd.xlane.f32.xlu0 %v2915
  %v2917 = vpop.xlane.xlu0 %2916
  %v2918 = vmul.f32 %v2896, 0.25
  %v2919 = vmul.f32 %v2899, 0.25
  %v2920 = vmul.f32 %v2902, 0.25
  %v2921 = vmul.f32 %v2905, 0.25
  %v2922 = vmul.f32 %v2908, 0.25
  %v2923 = vmul.f32 %v2911, 0.25
  %v2924 = vmul.f32 %v2914, 0.25
  %v2925 = vmul.f32 %v2917, 0.25
  %v2926 = vsel %vm761, %v2918, -1e+30
  %v2927 = vsel %vm762, %v2919, -1e+30
  %v2928 = vsel %vm763, %v2920, -1e+30
  %v2929 = vsel %vm764, %v2921, -1e+30
  %v2930 = vsel %vm765, %v2922, -1e+30
  %v2931 = vsel %vm766, %v2923, -1e+30
  %v2932 = vsel %vm767, %v2924, -1e+30
  %v2933 = vsel %vm768, %v2925, -1e+30
  %v2934 = vmax.f32 %v2805, %v2853
  %v2935 = vmax.f32 %v2806, %v2854
  %v2936 = vmax.f32 %v2807, %v2855
  %v2937 = vmax.f32 %v2808, %v2856
  %v2938 = vmax.f32 %v2809, %v2857
  %v2939 = vmax.f32 %v2810, %v2858
  %v2940 = vmax.f32 %v2811, %v2859
  %v2941 = vmax.f32 %v2812, %v2860
  %v2942 = vmax.f32 %v2934, %v2926
  %v2943 = vmax.f32 %v2935, %v2927
  %v2944 = vmax.f32 %v2936, %v2928
  %v2945 = vmax.f32 %v2937, %v2929
  %v2946 = vmax.f32 %v2938, %v2930
  %v2947 = vmax.f32 %v2939, %v2931
  %v2948 = vmax.f32 %v2940, %v2932
  %v2949 = vmax.f32 %v2941, %v2933
  %v2950 = vsub.f32 %v2805, %v2942
  %v2951 = vsub.f32 %v2806, %v2943
  %v2952 = vsub.f32 %v2807, %v2944
  %v2953 = vsub.f32 %v2808, %v2945
  %v2954 = vsub.f32 %v2809, %v2946
  %v2955 = vsub.f32 %v2810, %v2947
  %v2956 = vsub.f32 %v2811, %v2948
  %v2957 = vsub.f32 %v2812, %v2949
  %v2958 = vmul.f32 %v2950, 1.442695
  %v2959 = vpow.pop %v2958
  %v2960 = vmul.f32 %v2951, 1.442695
  %v2961 = vpow.pop %v2960
  %v2962 = vmul.f32 %v2952, 1.442695
  %v2963 = vpow.pop %v2962
  %v2964 = vmul.f32 %v2953, 1.442695
  %v2965 = vpow.pop %v2964
  %v2966 = vmul.f32 %v2954, 1.442695
  %v2967 = vpow.pop %v2966
  %v2968 = vmul.f32 %v2955, 1.442695
  %v2969 = vpow.pop %v2968
  %v2970 = vmul.f32 %v2956, 1.442695
  %v2971 = vpow.pop %v2970
  %v2972 = vmul.f32 %v2957, 1.442695
  %v2973 = vpow.pop %v2972
  %v2974 = vsub.f32 %v2853, %v2942
  %v2975 = vsub.f32 %v2854, %v2943
  %v2976 = vsub.f32 %v2855, %v2944
  %v2977 = vsub.f32 %v2856, %v2945
  %v2978 = vsub.f32 %v2857, %v2946
  %v2979 = vsub.f32 %v2858, %v2947
  %v2980 = vsub.f32 %v2859, %v2948
  %v2981 = vsub.f32 %v2860, %v2949
  %v2982 = vmul.f32 %v2974, 1.442695
  %v2983 = vpow.pop %v2982
  %v2984 = vmul.f32 %v2975, 1.442695
  %v2985 = vpow.pop %v2984
  %v2986 = vmul.f32 %v2976, 1.442695
  %v2987 = vpow.pop %v2986
  %v2988 = vmul.f32 %v2977, 1.442695
  %v2989 = vpow.pop %v2988
  %v2990 = vmul.f32 %v2978, 1.442695
  %v2991 = vpow.pop %v2990
  %v2992 = vmul.f32 %v2979, 1.442695
  %v2993 = vpow.pop %v2992
  %v2994 = vmul.f32 %v2980, 1.442695
  %v2995 = vpow.pop %v2994
  %v2996 = vmul.f32 %v2981, 1.442695
  %v2997 = vpow.pop %v2996
  %v2998 = vsub.f32 %v2926, %v2942
  %v2999 = vsub.f32 %v2927, %v2943
  %v3000 = vsub.f32 %v2928, %v2944
  %v3001 = vsub.f32 %v2929, %v2945
  %v3002 = vsub.f32 %v2930, %v2946
  %v3003 = vsub.f32 %v2931, %v2947
  %v3004 = vsub.f32 %v2932, %v2948
  %v3005 = vsub.f32 %v2933, %v2949
  %v3006 = vmul.f32 %v2998, 1.442695
  %v3007 = vpow.pop %v3006
  %v3008 = vmul.f32 %v2999, 1.442695
  %v3009 = vpow.pop %v3008
  %v3010 = vmul.f32 %v3000, 1.442695
  %v3011 = vpow.pop %v3010
  %v3012 = vmul.f32 %v3001, 1.442695
  %v3013 = vpow.pop %v3012
  %v3014 = vmul.f32 %v3002, 1.442695
  %v3015 = vpow.pop %v3014
  %v3016 = vmul.f32 %v3003, 1.442695
  %v3017 = vpow.pop %v3016
  %v3018 = vmul.f32 %v3004, 1.442695
  %v3019 = vpow.pop %v3018
  %v3020 = vmul.f32 %v3005, 1.442695
  %v3021 = vpow.pop %v3020
  %v3022 = vadd.f32 %v2959, %v2983
  %v3023 = vadd.f32 %v2961, %v2985
  %v3024 = vadd.f32 %v2963, %v2987
  %v3025 = vadd.f32 %v2965, %v2989
  %v3026 = vadd.f32 %v2967, %v2991
  %v3027 = vadd.f32 %v2969, %v2993
  %v3028 = vadd.f32 %v2971, %v2995
  %v3029 = vadd.f32 %v2973, %v2997
  %v3030 = vadd.f32 %v3022, %v3007
  %v3031 = vadd.f32 %v3023, %v3009
  %v3032 = vadd.f32 %v3024, %v3011
  %v3033 = vadd.f32 %v3025, %v3013
  %v3034 = vadd.f32 %v3026, %v3015
  %v3035 = vadd.f32 %v3027, %v3017
  %v3036 = vadd.f32 %v3028, %v3019
  %v3037 = vadd.f32 %v3029, %v3021
  %v3038 = vrcp.pop %v3030
  %v3039 = vrcp.pop %v3031
  %v3040 = vrcp.pop %v3032
  %v3041 = vrcp.pop %v3033
  %v3042 = vrcp.pop %v3034
  %v3043 = vrcp.pop %v3035
  %v3044 = vrcp.pop %v3036
  %v3045 = vrcp.pop %v3037
  %v3046 = vmul.f32 %v2959, %v3038
  %v3047 = vmul.f32 %v2961, %v3039
  %v3048 = vmul.f32 %v2963, %v3040
  %v3049 = vmul.f32 %v2965, %v3041
  %v3050 = vmul.f32 %v2967, %v3042
  %v3051 = vmul.f32 %v2969, %v3043
  %v3052 = vmul.f32 %v2971, %v3044
  %v3053 = vmul.f32 %v2973, %v3045
  %v3055 = vrot.slane %v2729, 7
  %v3064 = vrot.slane %v2702, 7
  %v3065 = vrot.slane %v2705, 7
  %v3066 = vsel %vm494, %v3064, %v3065
  %v3067 = vrot.slane %v2710, 7
  %v3068 = vsel %vm494, %v3065, %v3067
  %v3069 = vrot.slane %v2713, 7
  %v3070 = vsel %vm494, %v3067, %v3069
  %v3071 = vrot.slane %v2718, 7
  %v3072 = vsel %vm494, %v3069, %v3071
  %v3073 = vrot.slane %v2721, 7
  %v3074 = vsel %vm494, %v3071, %v3073
  %v3075 = vrot.slane %v2726, 7
  %v3076 = vsel %vm494, %v3073, %v3075
  %v3077 = vsel %vm494, %v3075, %v3055
  %v3086 = vsel %vm494, %v3055, %v3064
  %v3087 = vmul.f32 %v3046, %v3086
  %v3088 = vmul.f32 %v3047, %v3066
  %v3089 = vmul.f32 %v3048, %v3068
  %v3090 = vmul.f32 %v3049, %v3070
  %v3091 = vmul.f32 %v3050, %v3072
  %v3092 = vmul.f32 %v3051, %v3074
  %v3093 = vmul.f32 %v3052, %v3076
  %v3094 = vmul.f32 %v3053, %v3077
  %v3095 = vmul.f32 %v2983, %v3038
  %v3096 = vmul.f32 %v2985, %v3039
  %v3097 = vmul.f32 %v2987, %v3040
  %v3098 = vmul.f32 %v2989, %v3041
  %v3099 = vmul.f32 %v2991, %v3042
  %v3100 = vmul.f32 %v2993, %v3043
  %v3101 = vmul.f32 %v2995, %v3044
  %v3102 = vmul.f32 %v2997, %v3045
  %v3103 = vmul.f32 %v3095, %v2702
  %v3104 = vmul.f32 %v3096, %v2705
  %v3105 = vmul.f32 %v3097, %v2710
  %v3106 = vmul.f32 %v3098, %v2713
  %v3107 = vmul.f32 %v3099, %v2718
  %v3108 = vmul.f32 %v3100, %v2721
  %v3109 = vmul.f32 %v3101, %v2726
  %v3110 = vmul.f32 %v3102, %v2729
  %v3111 = vadd.f32 %v3087, %v3103
  %v3112 = vadd.f32 %v3088, %v3104
  %v3113 = vadd.f32 %v3089, %v3105
  %v3114 = vadd.f32 %v3090, %v3106
  %v3115 = vadd.f32 %v3091, %v3107
  %v3116 = vadd.f32 %v3092, %v3108
  %v3117 = vadd.f32 %v3093, %v3109
  %v3118 = vadd.f32 %v3094, %v3110
  %v3119 = vmul.f32 %v3007, %v3038
  %v3120 = vmul.f32 %v3009, %v3039
  %v3121 = vmul.f32 %v3011, %v3040
  %v3122 = vmul.f32 %v3013, %v3041
  %v3123 = vmul.f32 %v3015, %v3042
  %v3124 = vmul.f32 %v3017, %v3043
  %v3125 = vmul.f32 %v3019, %v3044
  %v3126 = vmul.f32 %v3021, %v3045
  %v3127 = vrot.slane %v2702, 1
  %v3128 = vrot.slane %v2705, 1
  %v3129 = vsel %vm671, %v3127, %v3128
  %v3130 = vrot.slane %v2710, 1
  %v3131 = vsel %vm671, %v3128, %v3130
  %v3132 = vrot.slane %v2713, 1
  %v3133 = vsel %vm671, %v3130, %v3132
  %v3134 = vrot.slane %v2718, 1
  %v3135 = vsel %vm671, %v3132, %v3134
  %v3136 = vrot.slane %v2721, 1
  %v3137 = vsel %vm671, %v3134, %v3136
  %v3138 = vrot.slane %v2726, 1
  %v3139 = vsel %vm671, %v3136, %v3138
  %v3140 = vrot.slane %v2729, 1
  %v3141 = vsel %vm671, %v3138, %v3140
  %v3151 = vsel %vm671, %v3140, %v3127
  %v3152 = vmul.f32 %v3119, %v3129
  %v3153 = vmul.f32 %v3120, %v3131
  %v3154 = vmul.f32 %v3121, %v3133
  %v3155 = vmul.f32 %v3122, %v3135
  %v3156 = vmul.f32 %v3123, %v3137
  %v3157 = vmul.f32 %v3124, %v3139
  %v3158 = vmul.f32 %v3125, %v3141
  %v3159 = vmul.f32 %v3126, %v3151
  %v3160 = vadd.f32 %v3111, %v3152
  %v3161 = vadd.f32 %v3112, %v3153
  %v3162 = vadd.f32 %v3113, %v3154
  %v3163 = vadd.f32 %v3114, %v3155
  %v3164 = vadd.f32 %v3115, %v3156
  %v3165 = vadd.f32 %v3116, %v3157
  %v3166 = vadd.f32 %v3117, %v3158
  %v3167 = vadd.f32 %v3118, %v3159
  %v3168 = vpack.c.bf16 %v3161, %v3160
  %v3169 = vpack.c.bf16 %v3163, %v3162
  %v3170 = vpack.c.bf16 %v3165, %v3164
  %v3171 = vpack.c.bf16 %v3167, %v3166
  %s3172 = scalar_lea.vmem %s6, 16
  %v3173 = vld [vmem:[%s3172] sm:$0xf]
  %v3174 = vld [vmem:[%s3172 + $0x4] sm:$0xf]
  %s3175 = scalar_lea.vmem %s3, 48
  %v3176 = vld [vmem:[%s3175] sm:$0xf]
  %v3177 = vld [vmem:[%s3175 + $0x4] sm:$0xf]
  %v3178 = vld [vmem:[%s3175 + $0x8] sm:$0xf]
  %v3179 = vld [vmem:[%s3175 + $0xc] sm:$0xf]
  %v3184 = vunpack.c.l.b16 %v3176
  %v3185 = vunpack.c.l.b16 %v3177
  %v3186 = vunpack.c.l.b16 %v3178
  %v3187 = vunpack.c.l.b16 %v3179
  %v3188 = vpack.c.b16 %v3185, %v3184
  %v3189 = vpack.c.b16 %v3187, %v3186
  %3192 = vmatprep.subr.bf16.mxu0 0
  %3193 = vmatpush1.bf16.msra.mxu0 %v3188
  %3194 = vmatprep.subr.bf16.mxu0 0
  %3195 = vmatpush1.bf16.msra.mxu0 %v3189
  %3196 = vmatprep.subr.bf16.mxu0 0
  %3197 = vmatpush1.bf16.msra.mxu0 0
  %3198 = vmatprep.subr.bf16.mxu0 0
  %3199 = vmatpush1.bf16.msra.mxu0 0
  %3200 = vmatprep.subr.bf16.mxu0 0
  %3201 = vmatpush1.bf16.msra.mxu0 0
  %3202 = vmatprep.subr.bf16.mxu0 0
  %3203 = vmatpush1.bf16.msra.mxu0 0
  %3204 = vmatprep.subr.bf16.mxu0 0
  %3205 = vmatpush1.bf16.msra.mxu0 0
  %3206 = vmatprep.subr.bf16.mxu0 0
  %3207 = vmatpush1.bf16.msra.mxu0 0
  %3208 = vmatprep.subr.bf16.mxu0 0
  %3209 = vmatpush1.bf16.msra.mxu0 0
  %3210 = vmatprep.subr.bf16.mxu0 0
  %3211 = vmatpush1.bf16.msra.mxu0 0
  %3212 = vmatprep.subr.bf16.mxu0 0
  %3213 = vmatpush1.bf16.msra.mxu0 0
  %3214 = vmatprep.subr.bf16.mxu0 0
  %3215 = vmatpush1.bf16.msra.mxu0 0
  %3216 = vmatprep.subr.bf16.mxu0 0
  %3217 = vmatpush1.bf16.msra.mxu0 0
  %3218 = vmatprep.subr.bf16.mxu0 0
  %3219 = vmatpush1.bf16.msra.mxu0 0
  %3220 = vmatprep.subr.bf16.mxu0 0
  %3221 = vmatpush1.bf16.msra.mxu0 0
  %3222 = vmatprep.subr.bf16.mxu0 0
  %3223 = vmatpush1.bf16.msra.mxu0 0
  %3224 = vmatprep.mubr.bf16.mxu0 0
  %3225 = vmatmul.mubr.bf16.gmra.mrb[0].mxu0 %v2492
  %v3226 = vpop.f32.mrb[0].mxu0
  %v3227 = vadd.f32 0.0, %v3226
  %v3228 = vpop.f32.mrb[0].mxu0
  %v3229 = vpop.f32.mrb[0].mxu0
  %v3230 = vadd.f32 0.0, %v3229
  %v3231 = vpop.f32.mrb[0].mxu0
  %3232 = vmatprep.mubr.bf16.mxu0 0
  %3233 = vmatmul.mubr.bf16.gmra.mrb[0].mxu0 %v2495
  %v3234 = vpop.f32.mrb[0].mxu0
  %v3235 = vadd.f32 0.0, %v3234
  %v3236 = vpop.f32.mrb[0].mxu0
  %v3237 = vpop.f32.mrb[0].mxu0
  %v3238 = vadd.f32 0.0, %v3237
  %v3239 = vpop.f32.mrb[0].mxu0
  %3240 = vmatprep.mubr.bf16.mxu0 0
  %3241 = vmatmul.mubr.bf16.gmra.mrb[0].mxu0 %v2498
  %v3242 = vpop.f32.mrb[0].mxu0
  %v3243 = vadd.f32 0.0, %v3242
  %v3244 = vpop.f32.mrb[0].mxu0
  %v3245 = vpop.f32.mrb[0].mxu0
  %v3246 = vadd.f32 0.0, %v3245
  %v3247 = vpop.f32.mrb[0].mxu0
  %3248 = vmatprep.mubr.bf16.mxu0 0
  %3249 = vmatmul.mubr.bf16.gmra.mrb[0].mxu0 %v2501
  %v3250 = vpop.f32.mrb[0].mxu0
  %v3251 = vadd.f32 0.0, %v3250
  %v3252 = vpop.f32.mrb[0].mxu0
  %v3253 = vpop.f32.mrb[0].mxu0
  %v3254 = vadd.f32 0.0, %v3253
  %v3255 = vpop.f32.mrb[0].mxu0
  %3256 = vdwg.mxu0
  %s3257 = scalar_lea.vmem %s4, 48
  %v3258 = vld [vmem:[%s3257] sm:$0xf]
  %v3259 = vld [vmem:[%s3257 + $0x4] sm:$0xf]
  %v3260 = vld [vmem:[%s3257 + $0x8] sm:$0xf]
  %v3261 = vld [vmem:[%s3257 + $0xc] sm:$0xf]
  %v3266 = vunpack.c.l.b16 %v3258
  %v3267 = vunpack.c.l.b16 %v3259
  %v3268 = vunpack.c.l.b16 %v3260
  %v3269 = vunpack.c.l.b16 %v3261
  %v3270 = vpack.c.b16 %v3267, %v3266
  %v3271 = vpack.c.b16 %v3269, %v3268
  %3274 = vmatprep.subr.bf16.mxu0 0
  %3275 = vmatpush1.bf16.msra.mxu0 %v3270
  %3276 = vmatprep.subr.bf16.mxu0 0
  %3277 = vmatpush1.bf16.msra.mxu0 %v3271
  %3278 = vmatprep.subr.bf16.mxu0 0
  %3279 = vmatpush1.bf16.msra.mxu0 0
  %3280 = vmatprep.subr.bf16.mxu0 0
  %3281 = vmatpush1.bf16.msra.mxu0 0
  %3282 = vmatprep.subr.bf16.mxu0 0
  %3283 = vmatpush1.bf16.msra.mxu0 0
  %3284 = vmatprep.subr.bf16.mxu0 0
  %3285 = vmatpush1.bf16.msra.mxu0 0
  %3286 = vmatprep.subr.bf16.mxu0 0
  %3287 = vmatpush1.bf16.msra.mxu0 0
  %3288 = vmatprep.subr.bf16.mxu0 0
  %3289 = vmatpush1.bf16.msra.mxu0 0
  %3290 = vmatprep.subr.bf16.mxu0 0
  %3291 = vmatpush1.bf16.msra.mxu0 0
  %3292 = vmatprep.subr.bf16.mxu0 0
  %3293 = vmatpush1.bf16.msra.mxu0 0
  %3294 = vmatprep.subr.bf16.mxu0 0
  %3295 = vmatpush1.bf16.msra.mxu0 0
  %3296 = vmatprep.subr.bf16.mxu0 0
  %3297 = vmatpush1.bf16.msra.mxu0 0
  %3298 = vmatprep.subr.bf16.mxu0 0
  %3299 = vmatpush1.bf16.msra.mxu0 0
  %3300 = vmatprep.subr.bf16.mxu0 0
  %3301 = vmatpush1.bf16.msra.mxu0 0
  %3302 = vmatprep.subr.bf16.mxu0 0
  %3303 = vmatpush1.bf16.msra.mxu0 0
  %3304 = vmatprep.subr.bf16.mxu0 0
  %3305 = vmatpush1.bf16.msra.mxu0 0
  %3306 = vmatprep.mubr.bf16.mxu0 0
  %3307 = vmatmul.mubr.bf16.gmra.mrb[0].mxu0 %v2492
  %v3308 = vpop.f32.mrb[0].mxu0
  %v3309 = vadd.f32 0.0, %v3308
  %v3310 = vpop.f32.mrb[0].mxu0
  %v3311 = vpop.f32.mrb[0].mxu0
  %v3312 = vadd.f32 0.0, %v3311
  %v3313 = vpop.f32.mrb[0].mxu0
  %3314 = vmatprep.mubr.bf16.mxu0 0
  %3315 = vmatmul.mubr.bf16.gmra.mrb[0].mxu0 %v2495
  %v3316 = vpop.f32.mrb[0].mxu0
  %v3317 = vadd.f32 0.0, %v3316
  %v3318 = vpop.f32.mrb[0].mxu0
  %v3319 = vpop.f32.mrb[0].mxu0
  %v3320 = vadd.f32 0.0, %v3319
  %v3321 = vpop.f32.mrb[0].mxu0
  %3322 = vmatprep.mubr.bf16.mxu0 0
  %3323 = vmatmul.mubr.bf16.gmra.mrb[0].mxu0 %v2498
  %v3324 = vpop.f32.mrb[0].mxu0
  %v3325 = vadd.f32 0.0, %v3324
  %v3326 = vpop.f32.mrb[0].mxu0
  %v3327 = vpop.f32.mrb[0].mxu0
  %v3328 = vadd.f32 0.0, %v3327
  %v3329 = vpop.f32.mrb[0].mxu0
  %3330 = vmatprep.mubr.bf16.mxu0 0
  %3331 = vmatmul.mubr.bf16.gmra.mrb[0].mxu0 %v2501
  %v3332 = vpop.f32.mrb[0].mxu0
  %v3333 = vadd.f32 0.0, %v3332
  %v3334 = vpop.f32.mrb[0].mxu0
  %v3335 = vpop.f32.mrb[0].mxu0
  %v3336 = vadd.f32 0.0, %v3335
  %v3337 = vpop.f32.mrb[0].mxu0
  %3338 = vdwg.mxu0
  %s3339 = scalar_lea.vmem %s5, 48
  %v3340 = vld [vmem:[%s3339] sm:$0xf]
  %v3341 = vld [vmem:[%s3339 + $0x4] sm:$0xf]
  %v3342 = vld [vmem:[%s3339 + $0x8] sm:$0xf]
  %v3343 = vld [vmem:[%s3339 + $0xc] sm:$0xf]
  %v3348 = vunpack.c.l.b16 %v3340
  %v3349 = vunpack.c.l.b16 %v3341
  %v3350 = vunpack.c.l.b16 %v3342
  %v3351 = vunpack.c.l.b16 %v3343
  %v3352 = vpack.c.b16 %v3349, %v3348
  %v3353 = vpack.c.b16 %v3351, %v3350
  %3356 = vmatprep.subr.bf16.mxu0 0
  %3357 = vmatpush1.bf16.msra.mxu0 %v3352
  %3358 = vmatprep.subr.bf16.mxu0 0
  %3359 = vmatpush1.bf16.msra.mxu0 %v3353
  %3360 = vmatprep.subr.bf16.mxu0 0
  %3361 = vmatpush1.bf16.msra.mxu0 0
  %3362 = vmatprep.subr.bf16.mxu0 0
  %3363 = vmatpush1.bf16.msra.mxu0 0
  %3364 = vmatprep.subr.bf16.mxu0 0
  %3365 = vmatpush1.bf16.msra.mxu0 0
  %3366 = vmatprep.subr.bf16.mxu0 0
  %3367 = vmatpush1.bf16.msra.mxu0 0
  %3368 = vmatprep.subr.bf16.mxu0 0
  %3369 = vmatpush1.bf16.msra.mxu0 0
  %3370 = vmatprep.subr.bf16.mxu0 0
  %3371 = vmatpush1.bf16.msra.mxu0 0
  %3372 = vmatprep.subr.bf16.mxu0 0
  %3373 = vmatpush1.bf16.msra.mxu0 0
  %3374 = vmatprep.subr.bf16.mxu0 0
  %3375 = vmatpush1.bf16.msra.mxu0 0
  %3376 = vmatprep.subr.bf16.mxu0 0
  %3377 = vmatpush1.bf16.msra.mxu0 0
  %3378 = vmatprep.subr.bf16.mxu0 0
  %3379 = vmatpush1.bf16.msra.mxu0 0
  %3380 = vmatprep.subr.bf16.mxu0 0
  %3381 = vmatpush1.bf16.msra.mxu0 0
  %3382 = vmatprep.subr.bf16.mxu0 0
  %3383 = vmatpush1.bf16.msra.mxu0 0
  %3384 = vmatprep.subr.bf16.mxu0 0
  %3385 = vmatpush1.bf16.msra.mxu0 0
  %3386 = vmatprep.subr.bf16.mxu0 0
  %3387 = vmatpush1.bf16.msra.mxu0 0
  %3388 = vmatprep.mubr.bf16.mxu0 0
  %3389 = vmatmul.mubr.bf16.gmra.mrb[0].mxu0 %v2492
  %v3390 = vpop.f32.mrb[0].mxu0
  %v3391 = vadd.f32 0.0, %v3390
  %v3392 = vpop.f32.mrb[0].mxu0
  %v3393 = vpop.f32.mrb[0].mxu0
  %v3394 = vadd.f32 0.0, %v3393
  %v3395 = vpop.f32.mrb[0].mxu0
  %3396 = vmatprep.mubr.bf16.mxu0 0
  %3397 = vmatmul.mubr.bf16.gmra.mrb[0].mxu0 %v2495
  %v3398 = vpop.f32.mrb[0].mxu0
  %v3399 = vadd.f32 0.0, %v3398
  %v3400 = vpop.f32.mrb[0].mxu0
  %v3401 = vpop.f32.mrb[0].mxu0
  %v3402 = vadd.f32 0.0, %v3401
  %v3403 = vpop.f32.mrb[0].mxu0
  %3404 = vmatprep.mubr.bf16.mxu0 0
  %3405 = vmatmul.mubr.bf16.gmra.mrb[0].mxu0 %v2498
  %v3406 = vpop.f32.mrb[0].mxu0
  %v3407 = vadd.f32 0.0, %v3406
  %v3408 = vpop.f32.mrb[0].mxu0
  %v3409 = vpop.f32.mrb[0].mxu0
  %v3410 = vadd.f32 0.0, %v3409
  %v3411 = vpop.f32.mrb[0].mxu0
  %3412 = vmatprep.mubr.bf16.mxu0 0
  %3413 = vmatmul.mubr.bf16.gmra.mrb[0].mxu0 %v2501
  %v3414 = vpop.f32.mrb[0].mxu0
  %v3415 = vadd.f32 0.0, %v3414
  %v3416 = vpop.f32.mrb[0].mxu0
  %v3417 = vpop.f32.mrb[0].mxu0
  %v3418 = vadd.f32 0.0, %v3417
  %v3419 = vpop.f32.mrb[0].mxu0
  %3420 = vdwg.mxu0
  %v3422 = vrot.slane %v3336, 7
  %v3431 = vrot.slane %v3309, 7
  %v3432 = vrot.slane %v3312, 7
  %v3433 = vsel %vm494, %v3431, %v3432
  %v3434 = vrot.slane %v3317, 7
  %v3435 = vsel %vm494, %v3432, %v3434
  %v3436 = vrot.slane %v3320, 7
  %v3437 = vsel %vm494, %v3434, %v3436
  %v3438 = vrot.slane %v3325, 7
  %v3439 = vsel %vm494, %v3436, %v3438
  %v3440 = vrot.slane %v3328, 7
  %v3441 = vsel %vm494, %v3438, %v3440
  %v3442 = vrot.slane %v3333, 7
  %v3443 = vsel %vm494, %v3440, %v3442
  %v3444 = vsel %vm494, %v3442, %v3422
  %v3453 = vsel %vm494, %v3422, %v3431
  %v3454 = vmul.f32 %v3227, %v3453
  %v3455 = vmul.f32 %v3230, %v3433
  %v3456 = vmul.f32 %v3235, %v3435
  %v3457 = vmul.f32 %v3238, %v3437
  %v3458 = vmul.f32 %v3243, %v3439
  %v3459 = vmul.f32 %v3246, %v3441
  %v3460 = vmul.f32 %v3251, %v3443
  %v3461 = vmul.f32 %v3254, %v3444
  %v3462 = vsel %vm526, %v3454, 0.0
  %3463 = vadd.xlane.f32.xlu0 %v3462
  %v3464 = vpop.xlane.xlu0 %3463
  %v3465 = vsel %vm526, %v3455, 0.0
  %3466 = vadd.xlane.f32.xlu0 %v3465
  %v3467 = vpop.xlane.xlu0 %3466
  %v3468 = vsel %vm526, %v3456, 0.0
  %3469 = vadd.xlane.f32.xlu0 %v3468
  %v3470 = vpop.xlane.xlu0 %3469
  %v3471 = vsel %vm526, %v3457, 0.0
  %3472 = vadd.xlane.f32.xlu0 %v3471
  %v3473 = vpop.xlane.xlu0 %3472
  %v3474 = vsel %vm526, %v3458, 0.0
  %3475 = vadd.xlane.f32.xlu0 %v3474
  %v3476 = vpop.xlane.xlu0 %3475
  %v3477 = vsel %vm526, %v3459, 0.0
  %3478 = vadd.xlane.f32.xlu0 %v3477
  %v3479 = vpop.xlane.xlu0 %3478
  %v3480 = vsel %vm526, %v3460, 0.0
  %3481 = vadd.xlane.f32.xlu0 %v3480
  %v3482 = vpop.xlane.xlu0 %3481
  %v3483 = vsel %vm526, %v3461, 0.0
  %3484 = vadd.xlane.f32.xlu0 %v3483
  %v3485 = vpop.xlane.xlu0 %3484
  %v3486 = vmul.f32 %v3464, 0.25
  %v3487 = vmul.f32 %v3467, 0.25
  %v3488 = vmul.f32 %v3470, 0.25
  %v3489 = vmul.f32 %v3473, 0.25
  %v3490 = vmul.f32 %v3476, 0.25
  %v3491 = vmul.f32 %v3479, 0.25
  %v3492 = vmul.f32 %v3482, 0.25
  %v3493 = vmul.f32 %v3485, 0.25
  %v3494 = vsel %vm583, %v3486, -1e+30
  %v3495 = vsel %vm584, %v3487, -1e+30
  %v3496 = vsel %vm585, %v3488, -1e+30
  %v3497 = vsel %vm586, %v3489, -1e+30
  %v3498 = vsel %vm587, %v3490, -1e+30
  %v3499 = vsel %vm588, %v3491, -1e+30
  %v3500 = vsel %vm589, %v3492, -1e+30
  %v3501 = vsel %vm590, %v3493, -1e+30
  %v3502 = vmul.f32 %v3227, %v3309
  %v3503 = vmul.f32 %v3230, %v3312
  %v3504 = vmul.f32 %v3235, %v3317
  %v3505 = vmul.f32 %v3238, %v3320
  %v3506 = vmul.f32 %v3243, %v3325
  %v3507 = vmul.f32 %v3246, %v3328
  %v3508 = vmul.f32 %v3251, %v3333
  %v3509 = vmul.f32 %v3254, %v3336
  %v3510 = vsel %vm526, %v3502, 0.0
  %3511 = vadd.xlane.f32.xlu0 %v3510
  %v3512 = vpop.xlane.xlu0 %3511
  %v3513 = vsel %vm526, %v3503, 0.0
  %3514 = vadd.xlane.f32.xlu0 %v3513
  %v3515 = vpop.xlane.xlu0 %3514
  %v3516 = vsel %vm526, %v3504, 0.0
  %3517 = vadd.xlane.f32.xlu0 %v3516
  %v3518 = vpop.xlane.xlu0 %3517
  %v3519 = vsel %vm526, %v3505, 0.0
  %3520 = vadd.xlane.f32.xlu0 %v3519
  %v3521 = vpop.xlane.xlu0 %3520
  %v3522 = vsel %vm526, %v3506, 0.0
  %3523 = vadd.xlane.f32.xlu0 %v3522
  %v3524 = vpop.xlane.xlu0 %3523
  %v3525 = vsel %vm526, %v3507, 0.0
  %3526 = vadd.xlane.f32.xlu0 %v3525
  %v3527 = vpop.xlane.xlu0 %3526
  %v3528 = vsel %vm526, %v3508, 0.0
  %3529 = vadd.xlane.f32.xlu0 %v3528
  %v3530 = vpop.xlane.xlu0 %3529
  %v3531 = vsel %vm526, %v3509, 0.0
  %3532 = vadd.xlane.f32.xlu0 %v3531
  %v3533 = vpop.xlane.xlu0 %3532
  %v3534 = vmul.f32 %v3512, 0.25
  %v3535 = vmul.f32 %v3515, 0.25
  %v3536 = vmul.f32 %v3518, 0.25
  %v3537 = vmul.f32 %v3521, 0.25
  %v3538 = vmul.f32 %v3524, 0.25
  %v3539 = vmul.f32 %v3527, 0.25
  %v3540 = vmul.f32 %v3530, 0.25
  %v3541 = vmul.f32 %v3533, 0.25
  %v3542 = vsel %vm655, %v3534, -1e+30
  %v3543 = vsel %vm656, %v3535, -1e+30
  %v3544 = vsel %vm657, %v3536, -1e+30
  %v3545 = vsel %vm658, %v3537, -1e+30
  %v3546 = vsel %vm659, %v3538, -1e+30
  %v3547 = vsel %vm660, %v3539, -1e+30
  %v3548 = vsel %vm661, %v3540, -1e+30
  %v3549 = vsel %vm662, %v3541, -1e+30
  %v3550 = vrot.slane %v3309, 1
  %v3551 = vrot.slane %v3312, 1
  %v3552 = vsel %vm671, %v3550, %v3551
  %v3553 = vrot.slane %v3317, 1
  %v3554 = vsel %vm671, %v3551, %v3553
  %v3555 = vrot.slane %v3320, 1
  %v3556 = vsel %vm671, %v3553, %v3555
  %v3557 = vrot.slane %v3325, 1
  %v3558 = vsel %vm671, %v3555, %v3557
  %v3559 = vrot.slane %v3328, 1
  %v3560 = vsel %vm671, %v3557, %v3559
  %v3561 = vrot.slane %v3333, 1
  %v3562 = vsel %vm671, %v3559, %v3561
  %v3563 = vrot.slane %v3336, 1
  %v3564 = vsel %vm671, %v3561, %v3563
  %v3574 = vsel %vm671, %v3563, %v3550
  %v3575 = vmul.f32 %v3227, %v3552
  %v3576 = vmul.f32 %v3230, %v3554
  %v3577 = vmul.f32 %v3235, %v3556
  %v3578 = vmul.f32 %v3238, %v3558
  %v3579 = vmul.f32 %v3243, %v3560
  %v3580 = vmul.f32 %v3246, %v3562
  %v3581 = vmul.f32 %v3251, %v3564
  %v3582 = vmul.f32 %v3254, %v3574
  %v3583 = vsel %vm526, %v3575, 0.0
  %3584 = vadd.xlane.f32.xlu0 %v3583
  %v3585 = vpop.xlane.xlu0 %3584
  %v3586 = vsel %vm526, %v3576, 0.0
  %3587 = vadd.xlane.f32.xlu0 %v3586
  %v3588 = vpop.xlane.xlu0 %3587
  %v3589 = vsel %vm526, %v3577, 0.0
  %3590 = vadd.xlane.f32.xlu0 %v3589
  %v3591 = vpop.xlane.xlu0 %3590
  %v3592 = vsel %vm526, %v3578, 0.0
  %3593 = vadd.xlane.f32.xlu0 %v3592
  %v3594 = vpop.xlane.xlu0 %3593
  %v3595 = vsel %vm526, %v3579, 0.0
  %3596 = vadd.xlane.f32.xlu0 %v3595
  %v3597 = vpop.xlane.xlu0 %3596
  %v3598 = vsel %vm526, %v3580, 0.0
  %3599 = vadd.xlane.f32.xlu0 %v3598
  %v3600 = vpop.xlane.xlu0 %3599
  %v3601 = vsel %vm526, %v3581, 0.0
  %3602 = vadd.xlane.f32.xlu0 %v3601
  %v3603 = vpop.xlane.xlu0 %3602
  %v3604 = vsel %vm526, %v3582, 0.0
  %3605 = vadd.xlane.f32.xlu0 %v3604
  %v3606 = vpop.xlane.xlu0 %3605
  %v3607 = vmul.f32 %v3585, 0.25
  %v3608 = vmul.f32 %v3588, 0.25
  %v3609 = vmul.f32 %v3591, 0.25
  %v3610 = vmul.f32 %v3594, 0.25
  %v3611 = vmul.f32 %v3597, 0.25
  %v3612 = vmul.f32 %v3600, 0.25
  %v3613 = vmul.f32 %v3603, 0.25
  %v3614 = vmul.f32 %v3606, 0.25
  %v3615 = vsel %vm761, %v3607, -1e+30
  %v3616 = vsel %vm762, %v3608, -1e+30
  %v3617 = vsel %vm763, %v3609, -1e+30
  %v3618 = vsel %vm764, %v3610, -1e+30
  %v3619 = vsel %vm765, %v3611, -1e+30
  %v3620 = vsel %vm766, %v3612, -1e+30
  %v3621 = vsel %vm767, %v3613, -1e+30
  %v3622 = vsel %vm768, %v3614, -1e+30
  %v3623 = vmax.f32 %v3494, %v3542
  %v3624 = vmax.f32 %v3495, %v3543
  %v3625 = vmax.f32 %v3496, %v3544
  %v3626 = vmax.f32 %v3497, %v3545
  %v3627 = vmax.f32 %v3498, %v3546
  %v3628 = vmax.f32 %v3499, %v3547
  %v3629 = vmax.f32 %v3500, %v3548
  %v3630 = vmax.f32 %v3501, %v3549
  %v3631 = vmax.f32 %v3623, %v3615
  %v3632 = vmax.f32 %v3624, %v3616
  %v3633 = vmax.f32 %v3625, %v3617
  %v3634 = vmax.f32 %v3626, %v3618
  %v3635 = vmax.f32 %v3627, %v3619
  %v3636 = vmax.f32 %v3628, %v3620
  %v3637 = vmax.f32 %v3629, %v3621
  %v3638 = vmax.f32 %v3630, %v3622
  %v3639 = vsub.f32 %v3494, %v3631
  %v3640 = vsub.f32 %v3495, %v3632
  %v3641 = vsub.f32 %v3496, %v3633
  %v3642 = vsub.f32 %v3497, %v3634
  %v3643 = vsub.f32 %v3498, %v3635
  %v3644 = vsub.f32 %v3499, %v3636
  %v3645 = vsub.f32 %v3500, %v3637
  %v3646 = vsub.f32 %v3501, %v3638
  %v3647 = vmul.f32 %v3639, 1.442695
  %v3648 = vpow.pop %v3647
  %v3649 = vmul.f32 %v3640, 1.442695
  %v3650 = vpow.pop %v3649
  %v3651 = vmul.f32 %v3641, 1.442695
  %v3652 = vpow.pop %v3651
  %v3653 = vmul.f32 %v3642, 1.442695
  %v3654 = vpow.pop %v3653
  %v3655 = vmul.f32 %v3643, 1.442695
  %v3656 = vpow.pop %v3655
  %v3657 = vmul.f32 %v3644, 1.442695
  %v3658 = vpow.pop %v3657
  %v3659 = vmul.f32 %v3645, 1.442695
  %v3660 = vpow.pop %v3659
  %v3661 = vmul.f32 %v3646, 1.442695
  %v3662 = vpow.pop %v3661
  %v3663 = vsub.f32 %v3542, %v3631
  %v3664 = vsub.f32 %v3543, %v3632
  %v3665 = vsub.f32 %v3544, %v3633
  %v3666 = vsub.f32 %v3545, %v3634
  %v3667 = vsub.f32 %v3546, %v3635
  %v3668 = vsub.f32 %v3547, %v3636
  %v3669 = vsub.f32 %v3548, %v3637
  %v3670 = vsub.f32 %v3549, %v3638
  %v3671 = vmul.f32 %v3663, 1.442695
  %v3672 = vpow.pop %v3671
  %v3673 = vmul.f32 %v3664, 1.442695
  %v3674 = vpow.pop %v3673
  %v3675 = vmul.f32 %v3665, 1.442695
  %v3676 = vpow.pop %v3675
  %v3677 = vmul.f32 %v3666, 1.442695
  %v3678 = vpow.pop %v3677
  %v3679 = vmul.f32 %v3667, 1.442695
  %v3680 = vpow.pop %v3679
  %v3681 = vmul.f32 %v3668, 1.442695
  %v3682 = vpow.pop %v3681
  %v3683 = vmul.f32 %v3669, 1.442695
  %v3684 = vpow.pop %v3683
  %v3685 = vmul.f32 %v3670, 1.442695
  %v3686 = vpow.pop %v3685
  %v3687 = vsub.f32 %v3615, %v3631
  %v3688 = vsub.f32 %v3616, %v3632
  %v3689 = vsub.f32 %v3617, %v3633
  %v3690 = vsub.f32 %v3618, %v3634
  %v3691 = vsub.f32 %v3619, %v3635
  %v3692 = vsub.f32 %v3620, %v3636
  %v3693 = vsub.f32 %v3621, %v3637
  %v3694 = vsub.f32 %v3622, %v3638
  %v3695 = vmul.f32 %v3687, 1.442695
  %v3696 = vpow.pop %v3695
  %v3697 = vmul.f32 %v3688, 1.442695
  %v3698 = vpow.pop %v3697
  %v3699 = vmul.f32 %v3689, 1.442695
  %v3700 = vpow.pop %v3699
  %v3701 = vmul.f32 %v3690, 1.442695
  %v3702 = vpow.pop %v3701
  %v3703 = vmul.f32 %v3691, 1.442695
  %v3704 = vpow.pop %v3703
  %v3705 = vmul.f32 %v3692, 1.442695
  %v3706 = vpow.pop %v3705
  %v3707 = vmul.f32 %v3693, 1.442695
  %v3708 = vpow.pop %v3707
  %v3709 = vmul.f32 %v3694, 1.442695
  %v3710 = vpow.pop %v3709
  %v3711 = vadd.f32 %v3648, %v3672
  %v3712 = vadd.f32 %v3650, %v3674
  %v3713 = vadd.f32 %v3652, %v3676
  %v3714 = vadd.f32 %v3654, %v3678
  %v3715 = vadd.f32 %v3656, %v3680
  %v3716 = vadd.f32 %v3658, %v3682
  %v3717 = vadd.f32 %v3660, %v3684
  %v3718 = vadd.f32 %v3662, %v3686
  %v3719 = vadd.f32 %v3711, %v3696
  %v3720 = vadd.f32 %v3712, %v3698
  %v3721 = vadd.f32 %v3713, %v3700
  %v3722 = vadd.f32 %v3714, %v3702
  %v3723 = vadd.f32 %v3715, %v3704
  %v3724 = vadd.f32 %v3716, %v3706
  %v3725 = vadd.f32 %v3717, %v3708
  %v3726 = vadd.f32 %v3718, %v3710
  %v3727 = vrcp.pop %v3719
  %v3728 = vrcp.pop %v3720
  %v3729 = vrcp.pop %v3721
  %v3730 = vrcp.pop %v3722
  %v3731 = vrcp.pop %v3723
  %v3732 = vrcp.pop %v3724
  %v3733 = vrcp.pop %v3725
  %v3734 = vrcp.pop %v3726
  %v3735 = vmul.f32 %v3648, %v3727
  %v3736 = vmul.f32 %v3650, %v3728
  %v3737 = vmul.f32 %v3652, %v3729
  %v3738 = vmul.f32 %v3654, %v3730
  %v3739 = vmul.f32 %v3656, %v3731
  %v3740 = vmul.f32 %v3658, %v3732
  %v3741 = vmul.f32 %v3660, %v3733
  %v3742 = vmul.f32 %v3662, %v3734
  %v3744 = vrot.slane %v3418, 7
  %v3753 = vrot.slane %v3391, 7
  %v3754 = vrot.slane %v3394, 7
  %v3755 = vsel %vm494, %v3753, %v3754
  %v3756 = vrot.slane %v3399, 7
  %v3757 = vsel %vm494, %v3754, %v3756
  %v3758 = vrot.slane %v3402, 7
  %v3759 = vsel %vm494, %v3756, %v3758
  %v3760 = vrot.slane %v3407, 7
  %v3761 = vsel %vm494, %v3758, %v3760
  %v3762 = vrot.slane %v3410, 7
  %v3763 = vsel %vm494, %v3760, %v3762
  %v3764 = vrot.slane %v3415, 7
  %v3765 = vsel %vm494, %v3762, %v3764
  %v3766 = vsel %vm494, %v3764, %v3744
  %v3775 = vsel %vm494, %v3744, %v3753
  %v3776 = vmul.f32 %v3735, %v3775
  %v3777 = vmul.f32 %v3736, %v3755
  %v3778 = vmul.f32 %v3737, %v3757
  %v3779 = vmul.f32 %v3738, %v3759
  %v3780 = vmul.f32 %v3739, %v3761
  %v3781 = vmul.f32 %v3740, %v3763
  %v3782 = vmul.f32 %v3741, %v3765
  %v3783 = vmul.f32 %v3742, %v3766
  %v3784 = vmul.f32 %v3672, %v3727
  %v3785 = vmul.f32 %v3674, %v3728
  %v3786 = vmul.f32 %v3676, %v3729
  %v3787 = vmul.f32 %v3678, %v3730
  %v3788 = vmul.f32 %v3680, %v3731
  %v3789 = vmul.f32 %v3682, %v3732
  %v3790 = vmul.f32 %v3684, %v3733
  %v3791 = vmul.f32 %v3686, %v3734
  %v3792 = vmul.f32 %v3784, %v3391
  %v3793 = vmul.f32 %v3785, %v3394
  %v3794 = vmul.f32 %v3786, %v3399
  %v3795 = vmul.f32 %v3787, %v3402
  %v3796 = vmul.f32 %v3788, %v3407
  %v3797 = vmul.f32 %v3789, %v3410
  %v3798 = vmul.f32 %v3790, %v3415
  %v3799 = vmul.f32 %v3791, %v3418
  %v3800 = vadd.f32 %v3776, %v3792
  %v3801 = vadd.f32 %v3777, %v3793
  %v3802 = vadd.f32 %v3778, %v3794
  %v3803 = vadd.f32 %v3779, %v3795
  %v3804 = vadd.f32 %v3780, %v3796
  %v3805 = vadd.f32 %v3781, %v3797
  %v3806 = vadd.f32 %v3782, %v3798
  %v3807 = vadd.f32 %v3783, %v3799
  %v3808 = vmul.f32 %v3696, %v3727
  %v3809 = vmul.f32 %v3698, %v3728
  %v3810 = vmul.f32 %v3700, %v3729
  %v3811 = vmul.f32 %v3702, %v3730
  %v3812 = vmul.f32 %v3704, %v3731
  %v3813 = vmul.f32 %v3706, %v3732
  %v3814 = vmul.f32 %v3708, %v3733
  %v3815 = vmul.f32 %v3710, %v3734
  %v3816 = vrot.slane %v3391, 1
  %v3817 = vrot.slane %v3394, 1
  %v3818 = vsel %vm671, %v3816, %v3817
  %v3819 = vrot.slane %v3399, 1
  %v3820 = vsel %vm671, %v3817, %v3819
  %v3821 = vrot.slane %v3402, 1
  %v3822 = vsel %vm671, %v3819, %v3821
  %v3823 = vrot.slane %v3407, 1
  %v3824 = vsel %vm671, %v3821, %v3823
  %v3825 = vrot.slane %v3410, 1
  %v3826 = vsel %vm671, %v3823, %v3825
  %v3827 = vrot.slane %v3415, 1
  %v3828 = vsel %vm671, %v3825, %v3827
  %v3829 = vrot.slane %v3418, 1
  %v3830 = vsel %vm671, %v3827, %v3829
  %v3840 = vsel %vm671, %v3829, %v3816
  %v3841 = vmul.f32 %v3808, %v3818
  %v3842 = vmul.f32 %v3809, %v3820
  %v3843 = vmul.f32 %v3810, %v3822
  %v3844 = vmul.f32 %v3811, %v3824
  %v3845 = vmul.f32 %v3812, %v3826
  %v3846 = vmul.f32 %v3813, %v3828
  %v3847 = vmul.f32 %v3814, %v3830
  %v3848 = vmul.f32 %v3815, %v3840
  %v3849 = vadd.f32 %v3800, %v3841
  %v3850 = vadd.f32 %v3801, %v3842
  %v3851 = vadd.f32 %v3802, %v3843
  %v3852 = vadd.f32 %v3803, %v3844
  %v3853 = vadd.f32 %v3804, %v3845
  %v3854 = vadd.f32 %v3805, %v3846
  %v3855 = vadd.f32 %v3806, %v3847
  %v3856 = vadd.f32 %v3807, %v3848
  %v3857 = vpack.c.bf16 %v3850, %v3849
  %v3858 = vpack.c.bf16 %v3852, %v3851
  %v3859 = vpack.c.bf16 %v3854, %v3853
  %v3860 = vpack.c.bf16 %v3856, %v3855
  %s3861 = scalar_lea.vmem %s6, 24
  %v3862 = vld [vmem:[%s3861] sm:$0xf]
  %v3863 = vld [vmem:[%s3861 + $0x4] sm:$0xf]
  %v3866 = vunpack.c.l.b16 %v3862
  %v3867 = vunpack.c.l.b16 %v3863
  %v3868 = vpack.c.b16 %v3867, %v3866
  %v3871 = vsel %vm526, %v3857, 0
  %v3874 = vsel %vm526, %v3858, 0
  %v3877 = vsel %vm526, %v3859, 0
  %v3880 = vsel %vm526, %v3860, 0
  %3882 = vmatprep.subr.bf16.mxu0 0
  %3883 = vmatpush1.bf16.msra.mxu0 %v3868
  %3884 = vmatprep.subr.bf16.mxu0 0
  %3885 = vmatpush1.bf16.msra.mxu0 0
  %3886 = vmatprep.subr.bf16.mxu0 0
  %3887 = vmatpush1.bf16.msra.mxu0 0
  %3888 = vmatprep.subr.bf16.mxu0 0
  %3889 = vmatpush1.bf16.msra.mxu0 0
  %3890 = vmatprep.subr.bf16.mxu0 0
  %3891 = vmatpush1.bf16.msra.mxu0 0
  %3892 = vmatprep.subr.bf16.mxu0 0
  %3893 = vmatpush1.bf16.msra.mxu0 0
  %3894 = vmatprep.subr.bf16.mxu0 0
  %3895 = vmatpush1.bf16.msra.mxu0 0
  %3896 = vmatprep.subr.bf16.mxu0 0
  %3897 = vmatpush1.bf16.msra.mxu0 0
  %3898 = vmatprep.subr.bf16.mxu0 0
  %3899 = vmatpush1.bf16.msra.mxu0 0
  %3900 = vmatprep.subr.bf16.mxu0 0
  %3901 = vmatpush1.bf16.msra.mxu0 0
  %3902 = vmatprep.subr.bf16.mxu0 0
  %3903 = vmatpush1.bf16.msra.mxu0 0
  %3904 = vmatprep.subr.bf16.mxu0 0
  %3905 = vmatpush1.bf16.msra.mxu0 0
  %3906 = vmatprep.subr.bf16.mxu0 0
  %3907 = vmatpush1.bf16.msra.mxu0 0
  %3908 = vmatprep.subr.bf16.mxu0 0
  %3909 = vmatpush1.bf16.msra.mxu0 0
  %3910 = vmatprep.subr.bf16.mxu0 0
  %3911 = vmatpush1.bf16.msra.mxu0 0
  %3912 = vmatprep.subr.bf16.mxu0 0
  %3913 = vmatpush1.bf16.msra.mxu0 0
  %3914 = vmatprep.mubr.bf16.mxu0 0
  %3915 = vmatmul.mubr.bf16.gmra.mrb[0].mxu0 %v3871
  %v3916 = vpop.f32.mrb[0].mxu0
  %v3917 = vadd.f32 0.0, %v3916
  %v3918 = vpop.f32.mrb[0].mxu0
  %v3919 = vpop.f32.mrb[0].mxu0
  %v3920 = vadd.f32 0.0, %v3919
  %v3921 = vpop.f32.mrb[0].mxu0
  %3922 = vmatprep.mubr.bf16.mxu0 0
  %3923 = vmatmul.mubr.bf16.gmra.mrb[0].mxu0 %v3874
  %v3924 = vpop.f32.mrb[0].mxu0
  %v3925 = vadd.f32 0.0, %v3924
  %v3926 = vpop.f32.mrb[0].mxu0
  %v3927 = vpop.f32.mrb[0].mxu0
  %v3928 = vadd.f32 0.0, %v3927
  %v3929 = vpop.f32.mrb[0].mxu0
  %3930 = vmatprep.mubr.bf16.mxu0 0
  %3931 = vmatmul.mubr.bf16.gmra.mrb[0].mxu0 %v3877
  %v3932 = vpop.f32.mrb[0].mxu0
  %v3933 = vadd.f32 0.0, %v3932
  %v3934 = vpop.f32.mrb[0].mxu0
  %v3935 = vpop.f32.mrb[0].mxu0
  %v3936 = vadd.f32 0.0, %v3935
  %v3937 = vpop.f32.mrb[0].mxu0
  %3938 = vmatprep.mubr.bf16.mxu0 0
  %3939 = vmatmul.mubr.bf16.gmra.mrb[0].mxu0 %v3880
  %v3940 = vpop.f32.mrb[0].mxu0
  %v3941 = vadd.f32 0.0, %v3940
  %v3942 = vpop.f32.mrb[0].mxu0
  %v3943 = vpop.f32.mrb[0].mxu0
  %v3944 = vadd.f32 0.0, %v3943
  %v3945 = vpop.f32.mrb[0].mxu0
  %3946 = vdwg.mxu0
  %v3949 = vunpack.c.l.b16 %v3173
  %v3950 = vunpack.c.l.b16 %v3174
  %v3951 = vpack.c.b16 %v3950, %v3949
  %v3954 = vsel %vm526, %v3168, 0
  %v3957 = vsel %vm526, %v3169, 0
  %v3960 = vsel %vm526, %v3170, 0
  %v3963 = vsel %vm526, %v3171, 0
  %3965 = vmatprep.subr.bf16.mxu0 0
  %3966 = vmatpush1.bf16.msra.mxu0 %v3951
  %3967 = vmatprep.subr.bf16.mxu0 0
  %3968 = vmatpush1.bf16.msra.mxu0 0
  %3969 = vmatprep.subr.bf16.mxu0 0
  %3970 = vmatpush1.bf16.msra.mxu0 0
  %3971 = vmatprep.subr.bf16.mxu0 0
  %3972 = vmatpush1.bf16.msra.mxu0 0
  %3973 = vmatprep.subr.bf16.mxu0 0
  %3974 = vmatpush1.bf16.msra.mxu0 0
  %3975 = vmatprep.subr.bf16.mxu0 0
  %3976 = vmatpush1.bf16.msra.mxu0 0
  %3977 = vmatprep.subr.bf16.mxu0 0
  %3978 = vmatpush1.bf16.msra.mxu0 0
  %3979 = vmatprep.subr.bf16.mxu0 0
  %3980 = vmatpush1.bf16.msra.mxu0 0
  %3981 = vmatprep.subr.bf16.mxu0 0
  %3982 = vmatpush1.bf16.msra.mxu0 0
  %3983 = vmatprep.subr.bf16.mxu0 0
  %3984 = vmatpush1.bf16.msra.mxu0 0
  %3985 = vmatprep.subr.bf16.mxu0 0
  %3986 = vmatpush1.bf16.msra.mxu0 0
  %3987 = vmatprep.subr.bf16.mxu0 0
  %3988 = vmatpush1.bf16.msra.mxu0 0
  %3989 = vmatprep.subr.bf16.mxu0 0
  %3990 = vmatpush1.bf16.msra.mxu0 0
  %3991 = vmatprep.subr.bf16.mxu0 0
  %3992 = vmatpush1.bf16.msra.mxu0 0
  %3993 = vmatprep.subr.bf16.mxu0 0
  %3994 = vmatpush1.bf16.msra.mxu0 0
  %3995 = vmatprep.subr.bf16.mxu0 0
  %3996 = vmatpush1.bf16.msra.mxu0 0
  %3997 = vmatprep.mubr.bf16.mxu0 0
  %3998 = vmatmul.mubr.bf16.gmra.mrb[0].mxu0 %v3954
  %v3999 = vpop.f32.mrb[0].mxu0
  %v4000 = vadd.f32 %v3917, %v3999
  %v4001 = vpop.f32.mrb[0].mxu0
  %v4002 = vpop.f32.mrb[0].mxu0
  %v4003 = vadd.f32 %v3920, %v4002
  %v4004 = vpop.f32.mrb[0].mxu0
  %4005 = vmatprep.mubr.bf16.mxu0 0
  %4006 = vmatmul.mubr.bf16.gmra.mrb[0].mxu0 %v3957
  %v4007 = vpop.f32.mrb[0].mxu0
  %v4008 = vadd.f32 %v3925, %v4007
  %v4009 = vpop.f32.mrb[0].mxu0
  %v4010 = vpop.f32.mrb[0].mxu0
  %v4011 = vadd.f32 %v3928, %v4010
  %v4012 = vpop.f32.mrb[0].mxu0
  %4013 = vmatprep.mubr.bf16.mxu0 0
  %4014 = vmatmul.mubr.bf16.gmra.mrb[0].mxu0 %v3960
  %v4015 = vpop.f32.mrb[0].mxu0
  %v4016 = vadd.f32 %v3933, %v4015
  %v4017 = vpop.f32.mrb[0].mxu0
  %v4018 = vpop.f32.mrb[0].mxu0
  %v4019 = vadd.f32 %v3936, %v4018
  %v4020 = vpop.f32.mrb[0].mxu0
  %4021 = vmatprep.mubr.bf16.mxu0 0
  %4022 = vmatmul.mubr.bf16.gmra.mrb[0].mxu0 %v3963
  %v4023 = vpop.f32.mrb[0].mxu0
  %v4024 = vadd.f32 %v3941, %v4023
  %v4025 = vpop.f32.mrb[0].mxu0
  %v4026 = vpop.f32.mrb[0].mxu0
  %v4027 = vadd.f32 %v3944, %v4026
  %v4028 = vpop.f32.mrb[0].mxu0
  %4029 = vdwg.mxu0
  %v4030 = vadd.f32 %v2326, %v4000
  %v4031 = vadd.f32 %v2327, %v4003
  %v4032 = vadd.f32 %v2328, %v4008
  %v4033 = vadd.f32 %v2329, %v4011
  %v4034 = vadd.f32 %v2330, %v4016
  %v4035 = vadd.f32 %v2331, %v4019
  %v4036 = vadd.f32 %v2332, %v4024
  %v4037 = vadd.f32 %v2333, %v4027
  %s4038 = scalar_lea.vmem %s7, 1
  %v4039 = vld [vmem:[%s4038] sm:$0x1]
  %v4041 = vlaneseq
  %v4042 = vshrl.u32 %v4041, 7
  %v4043 = vsub.s32 0, %v4042
  %v4044 = vrot.slane %v4039, %v4043
  %v4046 = vadd.f32 %v4030, %v4044
  %v4047 = vadd.f32 %v4031, %v4044
  %v4048 = vadd.f32 %v4032, %v4044
  %v4049 = vadd.f32 %v4033, %v4044
  %v4050 = vadd.f32 %v4034, %v4044
  %v4051 = vadd.f32 %v4035, %v4044
  %v4052 = vadd.f32 %v4036, %v4044
  %v4053 = vadd.f32 %v4037, %v4044
  %s4054 = scalar_lea.vmem %s8, 1
  %v4055 = vld [vmem:[%s4054] sm:$0x1]
  %s4056 = scalar_lea.vmem %s9, 1
  %v4057 = vld [vmem:[%s4056] sm:$0x1]
  %v4058 = vsel %vm91, %v4046, 0.0
  %4059 = vadd.xlane.f32.xlu0 %v4058
  %v4060 = vpop.xlane.xlu0 %4059
  %v4061 = vsel %vm91, %v4047, 0.0
  %4062 = vadd.xlane.f32.xlu0 %v4061
  %v4063 = vpop.xlane.xlu0 %4062
  %v4064 = vsel %vm91, %v4048, 0.0
  %4065 = vadd.xlane.f32.xlu0 %v4064
  %v4066 = vpop.xlane.xlu0 %4065
  %v4067 = vsel %vm91, %v4049, 0.0
  %4068 = vadd.xlane.f32.xlu0 %v4067
  %v4069 = vpop.xlane.xlu0 %4068
  %v4070 = vsel %vm91, %v4050, 0.0
  %4071 = vadd.xlane.f32.xlu0 %v4070
  %v4072 = vpop.xlane.xlu0 %4071
  %v4073 = vsel %vm91, %v4051, 0.0
  %4074 = vadd.xlane.f32.xlu0 %v4073
  %v4075 = vpop.xlane.xlu0 %4074
  %v4076 = vsel %vm91, %v4052, 0.0
  %4077 = vadd.xlane.f32.xlu0 %v4076
  %v4078 = vpop.xlane.xlu0 %4077
  %v4079 = vsel %vm91, %v4053, 0.0
  %4080 = vadd.xlane.f32.xlu0 %v4079
  %v4081 = vpop.xlane.xlu0 %4080
  %v4082 = vmul.f32 %v4060, %v116
  %v4083 = vmul.f32 %v4063, %v116
  %v4084 = vmul.f32 %v4066, %v116
  %v4085 = vmul.f32 %v4069, %v116
  %v4086 = vmul.f32 %v4072, %v116
  %v4087 = vmul.f32 %v4075, %v116
  %v4088 = vmul.f32 %v4078, %v116
  %v4089 = vmul.f32 %v4081, %v116
  %v4090 = vsub.f32 %v4046, %v4082
  %v4091 = vsub.f32 %v4047, %v4083
  %v4092 = vsub.f32 %v4048, %v4084
  %v4093 = vsub.f32 %v4049, %v4085
  %v4094 = vsub.f32 %v4050, %v4086
  %v4095 = vsub.f32 %v4051, %v4087
  %v4096 = vsub.f32 %v4052, %v4088
  %v4097 = vsub.f32 %v4053, %v4089
  %v4098 = vmul.f32 %v4090, %v4090
  %v4099 = vmul.f32 %v4091, %v4091
  %v4100 = vmul.f32 %v4092, %v4092
  %v4101 = vmul.f32 %v4093, %v4093
  %v4102 = vmul.f32 %v4094, %v4094
  %v4103 = vmul.f32 %v4095, %v4095
  %v4104 = vmul.f32 %v4096, %v4096
  %v4105 = vmul.f32 %v4097, %v4097
  %v4106 = vsel %vm91, %v4098, 0.0
  %4107 = vadd.xlane.f32.xlu0 %v4106
  %v4108 = vpop.xlane.xlu0 %4107
  %v4109 = vsel %vm91, %v4099, 0.0
  %4110 = vadd.xlane.f32.xlu0 %v4109
  %v4111 = vpop.xlane.xlu0 %4110
  %v4112 = vsel %vm91, %v4100, 0.0
  %4113 = vadd.xlane.f32.xlu0 %v4112
  %v4114 = vpop.xlane.xlu0 %4113
  %v4115 = vsel %vm91, %v4101, 0.0
  %4116 = vadd.xlane.f32.xlu0 %v4115
  %v4117 = vpop.xlane.xlu0 %4116
  %v4118 = vsel %vm91, %v4102, 0.0
  %4119 = vadd.xlane.f32.xlu0 %v4118
  %v4120 = vpop.xlane.xlu0 %4119
  %v4121 = vsel %vm91, %v4103, 0.0
  %4122 = vadd.xlane.f32.xlu0 %v4121
  %v4123 = vpop.xlane.xlu0 %4122
  %v4124 = vsel %vm91, %v4104, 0.0
  %4125 = vadd.xlane.f32.xlu0 %v4124
  %v4126 = vpop.xlane.xlu0 %4125
  %v4127 = vsel %vm91, %v4105, 0.0
  %4128 = vadd.xlane.f32.xlu0 %v4127
  %v4129 = vpop.xlane.xlu0 %4128
  %v4130 = vmul.f32 %v4108, %v116
  %v4131 = vmul.f32 %v4111, %v116
  %v4132 = vmul.f32 %v4114, %v116
  %v4133 = vmul.f32 %v4117, %v116
  %v4134 = vmul.f32 %v4120, %v116
  %v4135 = vmul.f32 %v4123, %v116
  %v4136 = vmul.f32 %v4126, %v116
  %v4137 = vmul.f32 %v4129, %v116
  %v4138 = vadd.f32 %v4130, 1e-05
  %v4139 = vadd.f32 %v4131, 1e-05
  %v4140 = vadd.f32 %v4132, 1e-05
  %v4141 = vadd.f32 %v4133, 1e-05
  %v4142 = vadd.f32 %v4134, 1e-05
  %v4143 = vadd.f32 %v4135, 1e-05
  %v4144 = vadd.f32 %v4136, 1e-05
  %v4145 = vadd.f32 %v4137, 1e-05
  %v4146 = vrsqrt.pop %v4138
  %v4147 = vrsqrt.pop %v4139
  %v4148 = vrsqrt.pop %v4140
  %v4149 = vrsqrt.pop %v4141
  %v4150 = vrsqrt.pop %v4142
  %v4151 = vrsqrt.pop %v4143
  %v4152 = vrsqrt.pop %v4144
  %v4153 = vrsqrt.pop %v4145
  %v4154 = vmul.f32 %v4090, %v4146
  %v4155 = vmul.f32 %v4091, %v4147
  %v4156 = vmul.f32 %v4092, %v4148
  %v4157 = vmul.f32 %v4093, %v4149
  %v4158 = vmul.f32 %v4094, %v4150
  %v4159 = vmul.f32 %v4095, %v4151
  %v4160 = vmul.f32 %v4096, %v4152
  %v4161 = vmul.f32 %v4097, %v4153
  %v4163 = vlaneseq
  %v4164 = vshrl.u32 %v4163, 7
  %v4165 = vsub.s32 0, %v4164
  %v4166 = vrot.slane %v4055, %v4165
  %v4168 = vmul.f32 %v4154, %v4166
  %v4169 = vmul.f32 %v4155, %v4166
  %v4170 = vmul.f32 %v4156, %v4166
  %v4171 = vmul.f32 %v4157, %v4166
  %v4172 = vmul.f32 %v4158, %v4166
  %v4173 = vmul.f32 %v4159, %v4166
  %v4174 = vmul.f32 %v4160, %v4166
  %v4175 = vmul.f32 %v4161, %v4166
  %v4177 = vlaneseq
  %v4178 = vshrl.u32 %v4177, 7
  %v4179 = vsub.s32 0, %v4178
  %v4180 = vrot.slane %v4057, %v4179
  %v4182 = vadd.f32 %v4168, %v4180
  %v4183 = vadd.f32 %v4169, %v4180
  %v4184 = vadd.f32 %v4170, %v4180
  %v4185 = vadd.f32 %v4171, %v4180
  %v4186 = vadd.f32 %v4172, %v4180
  %v4187 = vadd.f32 %v4173, %v4180
  %v4188 = vadd.f32 %v4174, %v4180
  %v4189 = vadd.f32 %v4175, %v4180
  %v4190 = vpack.c.bf16 %v4183, %v4182
  %v4191 = vpack.c.bf16 %v4185, %v4184
  %v4192 = vpack.c.bf16 %v4187, %v4186
  %v4193 = vpack.c.bf16 %v4189, %v4188
  %s4194 = scalar_lea.vmem %s10, 16
  %v4195 = vld [vmem:[%s4194] sm:$0xf]
  %v4196 = vld [vmem:[%s4194 + $0x4] sm:$0xf]
  %v4197 = vld [vmem:[%s4194 + $0x8] sm:$0xf]
  %v4198 = vld [vmem:[%s4194 + $0xc] sm:$0xf]
  %s4199 = scalar_lea.vmem %s11, 1
  %v4200 = vld [vmem:[%s4199] sm:$0x1]
  %v4202 = vlaneseq
  %v4203 = vshrl.u32 %v4202, 7
  %v4204 = vsub.s32 0, %v4203
  %v4205 = vrot.slane %v4200, %v4204
  %v4211 = vunpack.c.l.b16 %v4195
  %v4212 = vunpack.c.l.b16 %v4196
  %v4213 = vunpack.c.l.b16 %v4197
  %v4214 = vunpack.c.l.b16 %v4198
  %v4215 = vpack.c.b16 %v4212, %v4211
  %v4216 = vpack.c.b16 %v4214, %v4213
  %v4220 = vsel %vm91, %v4190, 0
  %v4223 = vsel %vm91, %v4191, 0
  %v4226 = vsel %vm91, %v4192, 0
  %v4229 = vsel %vm91, %v4193, 0
  %4231 = vmatprep.subr.bf16.mxu0 0
  %4232 = vmatpush1.bf16.msra.mxu0 %v4215
  %4233 = vmatprep.subr.bf16.mxu0 0
  %4234 = vmatpush1.bf16.msra.mxu0 %v4216
  %4235 = vmatprep.subr.bf16.mxu0 0
  %4236 = vmatpush1.bf16.msra.mxu0 0
  %4237 = vmatprep.subr.bf16.mxu0 0
  %4238 = vmatpush1.bf16.msra.mxu0 0
  %4239 = vmatprep.subr.bf16.mxu0 0
  %4240 = vmatpush1.bf16.msra.mxu0 0
  %4241 = vmatprep.subr.bf16.mxu0 0
  %4242 = vmatpush1.bf16.msra.mxu0 0
  %4243 = vmatprep.subr.bf16.mxu0 0
  %4244 = vmatpush1.bf16.msra.mxu0 0
  %4245 = vmatprep.subr.bf16.mxu0 0
  %4246 = vmatpush1.bf16.msra.mxu0 0
  %4247 = vmatprep.subr.bf16.mxu0 0
  %4248 = vmatpush1.bf16.msra.mxu0 0
  %4249 = vmatprep.subr.bf16.mxu0 0
  %4250 = vmatpush1.bf16.msra.mxu0 0
  %4251 = vmatprep.subr.bf16.mxu0 0
  %4252 = vmatpush1.bf16.msra.mxu0 0
  %4253 = vmatprep.subr.bf16.mxu0 0
  %4254 = vmatpush1.bf16.msra.mxu0 0
  %4255 = vmatprep.subr.bf16.mxu0 0
  %4256 = vmatpush1.bf16.msra.mxu0 0
  %4257 = vmatprep.subr.bf16.mxu0 0
  %4258 = vmatpush1.bf16.msra.mxu0 0
  %4259 = vmatprep.subr.bf16.mxu0 0
  %4260 = vmatpush1.bf16.msra.mxu0 0
  %4261 = vmatprep.subr.bf16.mxu0 0
  %4262 = vmatpush1.bf16.msra.mxu0 0
  %4263 = vmatprep.mubr.bf16.mxu0 0
  %4264 = vmatmul.mubr.bf16.gmra.mrb[0].mxu0 %v4220
  %v4265 = vpop.f32.mrb[0].mxu0
  %v4266 = vadd.f32 %v4205, %v4265
  %v4267 = vpop.f32.mrb[0].mxu0
  %v4268 = vpop.f32.mrb[0].mxu0
  %v4269 = vadd.f32 %v4205, %v4268
  %v4270 = vpop.f32.mrb[0].mxu0
  %4271 = vmatprep.mubr.bf16.mxu0 0
  %4272 = vmatmul.mubr.bf16.gmra.mrb[0].mxu0 %v4223
  %v4273 = vpop.f32.mrb[0].mxu0
  %v4274 = vadd.f32 %v4205, %v4273
  %v4275 = vpop.f32.mrb[0].mxu0
  %v4276 = vpop.f32.mrb[0].mxu0
  %v4277 = vadd.f32 %v4205, %v4276
  %v4278 = vpop.f32.mrb[0].mxu0
  %4279 = vmatprep.mubr.bf16.mxu0 0
  %4280 = vmatmul.mubr.bf16.gmra.mrb[0].mxu0 %v4226
  %v4281 = vpop.f32.mrb[0].mxu0
  %v4282 = vadd.f32 %v4205, %v4281
  %v4283 = vpop.f32.mrb[0].mxu0
  %v4284 = vpop.f32.mrb[0].mxu0
  %v4285 = vadd.f32 %v4205, %v4284
  %v4286 = vpop.f32.mrb[0].mxu0
  %4287 = vmatprep.mubr.bf16.mxu0 0
  %4288 = vmatmul.mubr.bf16.gmra.mrb[0].mxu0 %v4229
  %v4289 = vpop.f32.mrb[0].mxu0
  %v4290 = vadd.f32 %v4205, %v4289
  %v4291 = vpop.f32.mrb[0].mxu0
  %v4292 = vpop.f32.mrb[0].mxu0
  %v4293 = vadd.f32 %v4205, %v4292
  %v4294 = vpop.f32.mrb[0].mxu0
  %4295 = vdwg.mxu0
  %v4296 = vmul.f32 %v4266, %v4266
  %v4297 = vmul.f32 %v4269, %v4269
  %v4298 = vmul.f32 %v4274, %v4274
  %v4299 = vmul.f32 %v4277, %v4277
  %v4300 = vmul.f32 %v4282, %v4282
  %v4301 = vmul.f32 %v4285, %v4285
  %v4302 = vmul.f32 %v4290, %v4290
  %v4303 = vmul.f32 %v4293, %v4293
  %v4304 = vmul.f32 %v4266, %v4296
  %v4305 = vmul.f32 %v4269, %v4297
  %v4306 = vmul.f32 %v4274, %v4298
  %v4307 = vmul.f32 %v4277, %v4299
  %v4308 = vmul.f32 %v4282, %v4300
  %v4309 = vmul.f32 %v4285, %v4301
  %v4310 = vmul.f32 %v4290, %v4302
  %v4311 = vmul.f32 %v4293, %v4303
  %v4312 = vmul.f32 %v4304, 0.044715
  %v4313 = vmul.f32 %v4305, 0.044715
  %v4314 = vmul.f32 %v4306, 0.044715
  %v4315 = vmul.f32 %v4307, 0.044715
  %v4316 = vmul.f32 %v4308, 0.044715
  %v4317 = vmul.f32 %v4309, 0.044715
  %v4318 = vmul.f32 %v4310, 0.044715
  %v4319 = vmul.f32 %v4311, 0.044715
  %v4320 = vadd.f32 %v4266, %v4312
  %v4321 = vadd.f32 %v4269, %v4313
  %v4322 = vadd.f32 %v4274, %v4314
  %v4323 = vadd.f32 %v4277, %v4315
  %v4324 = vadd.f32 %v4282, %v4316
  %v4325 = vadd.f32 %v4285, %v4317
  %v4326 = vadd.f32 %v4290, %v4318
  %v4327 = vadd.f32 %v4293, %v4319
  %v4328 = vmul.f32 %v4320, 0.7978846
  %v4329 = vmul.f32 %v4321, 0.7978846
  %v4330 = vmul.f32 %v4322, 0.7978846
  %v4331 = vmul.f32 %v4323, 0.7978846
  %v4332 = vmul.f32 %v4324, 0.7978846
  %v4333 = vmul.f32 %v4325, 0.7978846
  %v4334 = vmul.f32 %v4326, 0.7978846
  %v4335 = vmul.f32 %v4327, 0.7978846
  %v4336 = vtanh.pop %v4328
  %v4337 = vtanh.pop %v4329
  %v4338 = vtanh.pop %v4330
  %v4339 = vtanh.pop %v4331
  %v4340 = vtanh.pop %v4332
  %v4341 = vtanh.pop %v4333
  %v4342 = vtanh.pop %v4334
  %v4343 = vtanh.pop %v4335
  %v4344 = vadd.f32 %v4336, 1.0
  %v4345 = vadd.f32 %v4337, 1.0
  %v4346 = vadd.f32 %v4338, 1.0
  %v4347 = vadd.f32 %v4339, 1.0
  %v4348 = vadd.f32 %v4340, 1.0
  %v4349 = vadd.f32 %v4341, 1.0
  %v4350 = vadd.f32 %v4342, 1.0
  %v4351 = vadd.f32 %v4343, 1.0
  %v4352 = vmul.f32 %v4344, 0.5
  %v4353 = vmul.f32 %v4345, 0.5
  %v4354 = vmul.f32 %v4346, 0.5
  %v4355 = vmul.f32 %v4347, 0.5
  %v4356 = vmul.f32 %v4348, 0.5
  %v4357 = vmul.f32 %v4349, 0.5
  %v4358 = vmul.f32 %v4350, 0.5
  %v4359 = vmul.f32 %v4351, 0.5
  %v4360 = vmul.f32 %v4266, %v4352
  %v4361 = vmul.f32 %v4269, %v4353
  %v4362 = vmul.f32 %v4274, %v4354
  %v4363 = vmul.f32 %v4277, %v4355
  %v4364 = vmul.f32 %v4282, %v4356
  %v4365 = vmul.f32 %v4285, %v4357
  %v4366 = vmul.f32 %v4290, %v4358
  %v4367 = vmul.f32 %v4293, %v4359
  %v4368 = vpack.c.bf16 %v4361, %v4360
  %v4369 = vpack.c.bf16 %v4363, %v4362
  %v4370 = vpack.c.bf16 %v4365, %v4364
  %v4371 = vpack.c.bf16 %v4367, %v4366
  %s4372 = scalar_lea.vmem %s12, 32
  %v4373 = vld [vmem:[%s4372] sm:$0xf]
  %v4374 = vld [vmem:[%s4372 + $0x4] sm:$0xf]
  %v4375 = vld [vmem:[%s4372 + $0x8] sm:$0xf]
  %v4376 = vld [vmem:[%s4372 + $0xc] sm:$0xf]
  %v4377 = vld [vmem:[%s4372 + $0x10] sm:$0xf]
  %v4378 = vld [vmem:[%s4372 + $0x14] sm:$0xf]
  %v4379 = vld [vmem:[%s4372 + $0x18] sm:$0xf]
  %v4380 = vld [vmem:[%s4372 + $0x1c] sm:$0xf]
  %s4381 = scalar_lea.vmem %s13, 1
  %v4382 = vld [vmem:[%s4381] sm:$0x1]
  %v4384 = vlaneseq
  %v4385 = vshrl.u32 %v4384, 7
  %v4386 = vsub.s32 0, %v4385
  %v4387 = vrot.slane %v4382, %v4386
  %v4397 = vunpack.c.l.b16 %v4373
  %v4398 = vunpack.c.l.b16 %v4374
  %v4399 = vunpack.c.l.b16 %v4375
  %v4400 = vunpack.c.l.b16 %v4376
  %v4401 = vunpack.c.l.b16 %v4377
  %v4402 = vunpack.c.l.b16 %v4378
  %v4403 = vunpack.c.l.b16 %v4379
  %v4404 = vunpack.c.l.b16 %v4380
  %v4405 = vpack.c.b16 %v4398, %v4397
  %v4406 = vpack.c.b16 %v4400, %v4399
  %v4407 = vpack.c.b16 %v4402, %v4401
  %v4408 = vpack.c.b16 %v4404, %v4403
  %v4414 = vsel %vm2248, %v4368, 0
  %v4417 = vsel %vm2248, %v4369, 0
  %v4420 = vsel %vm2248, %v4370, 0
  %v4423 = vsel %vm2248, %v4371, 0
  %4425 = vmatprep.subr.bf16.mxu0 0
  %4426 = vmatpush1.bf16.msra.mxu0 %v4405
  %4427 = vmatprep.subr.bf16.mxu0 0
  %4428 = vmatpush1.bf16.msra.mxu0 %v4406
  %4429 = vmatprep.subr.bf16.mxu0 0
  %4430 = vmatpush1.bf16.msra.mxu0 %v4407
  %4431 = vmatprep.subr.bf16.mxu0 0
  %4432 = vmatpush1.bf16.msra.mxu0 %v4408
  %4433 = vmatprep.subr.bf16.mxu0 0
  %4434 = vmatpush1.bf16.msra.mxu0 0
  %4435 = vmatprep.subr.bf16.mxu0 0
  %4436 = vmatpush1.bf16.msra.mxu0 0
  %4437 = vmatprep.subr.bf16.mxu0 0
  %4438 = vmatpush1.bf16.msra.mxu0 0
  %4439 = vmatprep.subr.bf16.mxu0 0
  %4440 = vmatpush1.bf16.msra.mxu0 0
  %4441 = vmatprep.subr.bf16.mxu0 0
  %4442 = vmatpush1.bf16.msra.mxu0 0
  %4443 = vmatprep.subr.bf16.mxu0 0
  %4444 = vmatpush1.bf16.msra.mxu0 0
  %4445 = vmatprep.subr.bf16.mxu0 0
  %4446 = vmatpush1.bf16.msra.mxu0 0
  %4447 = vmatprep.subr.bf16.mxu0 0
  %4448 = vmatpush1.bf16.msra.mxu0 0
  %4449 = vmatprep.subr.bf16.mxu0 0
  %4450 = vmatpush1.bf16.msra.mxu0 0
  %4451 = vmatprep.subr.bf16.mxu0 0
  %4452 = vmatpush1.bf16.msra.mxu0 0
  %4453 = vmatprep.subr.bf16.mxu0 0
  %4454 = vmatpush1.bf16.msra.mxu0 0
  %4455 = vmatprep.subr.bf16.mxu0 0
  %4456 = vmatpush1.bf16.msra.mxu0 0
  %4457 = vmatprep.mubr.bf16.mxu0 0
  %4458 = vmatmul.mubr.bf16.gmra.mrb[0].mxu0 %v4414
  %v4459 = vpop.f32.mrb[0].mxu0
  %v4460 = vadd.f32 %v4387, %v4459
  %v4461 = vpop.f32.mrb[0].mxu0
  %v4462 = vpop.f32.mrb[0].mxu0
  %v4463 = vadd.f32 %v4387, %v4462
  %v4464 = vpop.f32.mrb[0].mxu0
  %4465 = vmatprep.mubr.bf16.mxu0 0
  %4466 = vmatmul.mubr.bf16.gmra.mrb[0].mxu0 %v4417
  %v4467 = vpop.f32.mrb[0].mxu0
  %v4468 = vadd.f32 %v4387, %v4467
  %v4469 = vpop.f32.mrb[0].mxu0
  %v4470 = vpop.f32.mrb[0].mxu0
  %v4471 = vadd.f32 %v4387, %v4470
  %v4472 = vpop.f32.mrb[0].mxu0
  %4473 = vmatprep.mubr.bf16.mxu0 0
  %4474 = vmatmul.mubr.bf16.gmra.mrb[0].mxu0 %v4420
  %v4475 = vpop.f32.mrb[0].mxu0
  %v4476 = vadd.f32 %v4387, %v4475
  %v4477 = vpop.f32.mrb[0].mxu0
  %v4478 = vpop.f32.mrb[0].mxu0
  %v4479 = vadd.f32 %v4387, %v4478
  %v4480 = vpop.f32.mrb[0].mxu0
  %4481 = vmatprep.mubr.bf16.mxu0 0
  %4482 = vmatmul.mubr.bf16.gmra.mrb[0].mxu0 %v4423
  %v4483 = vpop.f32.mrb[0].mxu0
  %v4484 = vadd.f32 %v4387, %v4483
  %v4485 = vpop.f32.mrb[0].mxu0
  %v4486 = vpop.f32.mrb[0].mxu0
  %v4487 = vadd.f32 %v4387, %v4486
  %v4488 = vpop.f32.mrb[0].mxu0
  %4489 = vdwg.mxu0
  %v4490 = vadd.f32 %v4046, %v4460
  %v4491 = vadd.f32 %v4047, %v4463
  %v4492 = vadd.f32 %v4048, %v4468
  %v4493 = vadd.f32 %v4049, %v4471
  %v4494 = vadd.f32 %v4050, %v4476
  %v4495 = vadd.f32 %v4051, %v4479
  %v4496 = vadd.f32 %v4052, %v4484
  %v4497 = vadd.f32 %v4053, %v4487
  %v4498 = vsel %vm91, %v4490, -inf
  %v4499 = vsel %vm91, %v4491, -inf
  %v4500 = vmax.f32 %v4498, %v4499
  %v4501 = vrot.slane %v4500, 4
  %v4502 = vmax.f32 %v4500, %v4501
  %v4503 = vrot.slane %v4502, 2
  %v4504 = vmax.f32 %v4502, %v4503
  %v4505 = vrot.slane %v4504, 1
  %v4506 = vmax.f32 %v4504, %v4505
  %v4507 = vsel %vm91, %v4492, -inf
  %v4508 = vsel %vm91, %v4493, -inf
  %v4509 = vmax.f32 %v4507, %v4508
  %v4510 = vrot.slane %v4509, 4
  %v4511 = vmax.f32 %v4509, %v4510
  %v4512 = vrot.slane %v4511, 2
  %v4513 = vmax.f32 %v4511, %v4512
  %v4514 = vrot.slane %v4513, 1
  %v4515 = vmax.f32 %v4513, %v4514
  %v4516 = vsel %vm91, %v4494, -inf
  %v4517 = vsel %vm91, %v4495, -inf
  %v4518 = vmax.f32 %v4516, %v4517
  %v4519 = vrot.slane %v4518, 4
  %v4520 = vmax.f32 %v4518, %v4519
  %v4521 = vrot.slane %v4520, 2
  %v4522 = vmax.f32 %v4520, %v4521
  %v4523 = vrot.slane %v4522, 1
  %v4524 = vmax.f32 %v4522, %v4523
  %v4525 = vsel %vm91, %v4496, -inf
  %v4526 = vsel %vm91, %v4497, -inf
  %v4527 = vmax.f32 %v4525, %v4526
  %v4528 = vrot.slane %v4527, 4
  %v4529 = vmax.f32 %v4527, %v4528
  %v4530 = vrot.slane %v4529, 2
  %v4531 = vmax.f32 %v4529, %v4530
  %v4532 = vrot.slane %v4531, 1
  %v4533 = vmax.f32 %v4531, %v4532
  %4535 = vrot.lane.b32.xlu0 %v4515, 32
  %v4536 = vpop.permute.xlu0 %4535
  %4539 = vrot.lane.b32.xlu0 %v4524, 64
  %v4540 = vpop.permute.xlu0 %4539
  %4543 = vrot.lane.b32.xlu0 %v4533, 96
  %v4544 = vpop.permute.xlu0 %4543
  %v4546 = vsel %vm91, %v4506, %v4536
  %v4547 = vsel %vm2248, %v4546, %v4540
  %vm4548 = vcmask 785408
  %v4549 = vsel %vm4548, %v4547, %v4544
  %4550 = vst [vmem:[%s14] sm:$0x1] %v4549
  // Predicated region
  $region58: #{primitive_transformer_forward.2} parent=0 // pred_check
    _
  $region59: #{primitive_transformer_forward.2} parent=0 // pred_check_branch
    %4552 = sbr.rel (0) target = $region61
  $region60: #{primitive_transformer_forward.2} parent=0 // pred_region
    _
  $region61: #{primitive_transformer_forward.2} parent=0 // pred_fallthru
    _
  // Predicated region
  $region62: #{primitive_transformer_forward.2} parent=0 // pred_check
    _
  $region63: #{primitive_transformer_forward.2} parent=0 // pred_check_branch
    %4554 = sbr.rel (0) target = $region65
  $region64: #{primitive_transformer_forward.2} parent=0 // pred_region
    _
  $region65: #{primitive_transformer_forward.2} parent=0 // pred_fallthru
    _

// kernel: primitive_transformer_forward.3
$region0: #{primitive_transformer_forward.3}
  #allocation0 [shape = 'u32[]', space=smem, size = 0x4, offset = 0x4, fixed_abs, tag = 'smem constant byte address 0x4 - core index']
  #allocation1 [shape = 'u32[144,128]{1,0:T(1,128)}', space=vmem, size = 0x12000, scoped, tag = 'internal scratch']
  %s0 = inlined_call_operand.vmem [shape: bf16[4,32], index: 0, kind: input, shape index: {}]
  %s1 = inlined_call_operand.vmem [shape: f32[2,1,32], index: 1, kind: input, shape index: {}]
  %s2 = inlined_call_operand.vmem [shape: f32[2,1,32], index: 2, kind: input, shape index: {}]
  %s3 = inlined_call_operand.vmem [shape: bf16[2,2,32,16], index: 3, kind: input, shape index: {}]
  %s4 = inlined_call_operand.vmem [shape: bf16[2,2,32,16], index: 4, kind: input, shape index: {}]
  %s5 = inlined_call_operand.vmem [shape: bf16[2,2,32,16], index: 5, kind: input, shape index: {}]
  %s6 = inlined_call_operand.vmem [shape: bf16[2,2,16,32], index: 6, kind: input, shape index: {}]
  %s7 = inlined_call_operand.vmem [shape: f32[2,1,32], index: 7, kind: input, shape index: {}]
  %s8 = inlined_call_operand.vmem [shape: f32[2,1,32], index: 8, kind: input, shape index: {}]
  %s9 = inlined_call_operand.vmem [shape: f32[2,1,32], index: 9, kind: input, shape index: {}]
  %s10 = inlined_call_operand.vmem [shape: bf16[2,32,64], index: 10, kind: input, shape index: {}]
  %s11 = inlined_call_operand.vmem [shape: f32[2,1,64], index: 11, kind: input, shape index: {}]
  %s12 = inlined_call_operand.vmem [shape: bf16[2,64,32], index: 12, kind: input, shape index: {}]
  %s13 = inlined_call_operand.vmem [shape: f32[2,1,32], index: 13, kind: input, shape index: {}]
  %s14 = inlined_call_operand.vmem [shape: f32[1,128], index: 14, kind: output, shape index: {}]
  %s15 = sld [smem:[#allocation0]]
  $region66: #{primitive_transformer_forward.3} parent=0
    _
  %s17 = ssub.s32 1, %s15
  %s18 = scalar_select 0, %s17, %s15
  // Predicated region
  $region2: #{primitive_transformer_forward.3} parent=0 // pred_check
    _
  $region3: #{primitive_transformer_forward.3} parent=0 // pred_check_branch
    %20 = sbr.rel (0) target = $region5
  $region4: #{primitive_transformer_forward.3} parent=0 // pred_region
    _
  $region5: #{primitive_transformer_forward.3} parent=0 // pred_fallthru
    _
  // Predicated region
  $region6: #{primitive_transformer_forward.3} parent=0 // pred_check
    _
  $region7: #{primitive_transformer_forward.3} parent=0 // pred_check_branch
    %22 = sbr.rel (0) target = $region9
  $region8: #{primitive_transformer_forward.3} parent=0 // pred_region
    _
  $region9: #{primitive_transformer_forward.3} parent=0 // pred_fallthru
    _
  // Predicated region
  $region10: #{primitive_transformer_forward.3} parent=0 // pred_check
    _
  $region11: #{primitive_transformer_forward.3} parent=0 // pred_check_branch
    %24 = sbr.rel (0) target = $region13
  $region12: #{primitive_transformer_forward.3} parent=0 // pred_region
    _
  $region13: #{primitive_transformer_forward.3} parent=0 // pred_fallthru
    _
  // Predicated region
  $region14: #{primitive_transformer_forward.3} parent=0 // pred_check
    _
  $region15: #{primitive_transformer_forward.3} parent=0 // pred_check_branch
    %26 = sbr.rel (0) target = $region17
  $region16: #{primitive_transformer_forward.3} parent=0 // pred_region
    _
  $region17: #{primitive_transformer_forward.3} parent=0 // pred_fallthru
    _
  // Predicated region
  $region18: #{primitive_transformer_forward.3} parent=0 // pred_check
    _
  $region19: #{primitive_transformer_forward.3} parent=0 // pred_check_branch
    %28 = sbr.rel (0) target = $region21
  $region20: #{primitive_transformer_forward.3} parent=0 // pred_region
    _
  $region21: #{primitive_transformer_forward.3} parent=0 // pred_fallthru
    _
  // Predicated region
  $region22: #{primitive_transformer_forward.3} parent=0 // pred_check
    _
  $region23: #{primitive_transformer_forward.3} parent=0 // pred_check_branch
    %30 = sbr.rel (0) target = $region25
  $region24: #{primitive_transformer_forward.3} parent=0 // pred_region
    _
  $region25: #{primitive_transformer_forward.3} parent=0 // pred_fallthru
    _
  // Predicated region
  $region26: #{primitive_transformer_forward.3} parent=0 // pred_check
    _
  $region27: #{primitive_transformer_forward.3} parent=0 // pred_check_branch
    %32 = sbr.rel (0) target = $region29
  $region28: #{primitive_transformer_forward.3} parent=0 // pred_region
    _
  $region29: #{primitive_transformer_forward.3} parent=0 // pred_fallthru
    _
  // Predicated region
  $region30: #{primitive_transformer_forward.3} parent=0 // pred_check
    _
  $region31: #{primitive_transformer_forward.3} parent=0 // pred_check_branch
    %34 = sbr.rel (0) target = $region33
  $region32: #{primitive_transformer_forward.3} parent=0 // pred_region
    _
  $region33: #{primitive_transformer_forward.3} parent=0 // pred_fallthru
    _
  // Predicated region
  $region34: #{primitive_transformer_forward.3} parent=0 // pred_check
    _
  $region35: #{primitive_transformer_forward.3} parent=0 // pred_check_branch
    %36 = sbr.rel (0) target = $region37
  $region36: #{primitive_transformer_forward.3} parent=0 // pred_region
    _
  $region37: #{primitive_transformer_forward.3} parent=0 // pred_fallthru
    _
  // Predicated region
  $region38: #{primitive_transformer_forward.3} parent=0 // pred_check
    _
  $region39: #{primitive_transformer_forward.3} parent=0 // pred_check_branch
    %38 = sbr.rel (0) target = $region41
  $region40: #{primitive_transformer_forward.3} parent=0 // pred_region
    _
  $region41: #{primitive_transformer_forward.3} parent=0 // pred_fallthru
    _
  // Predicated region
  $region42: #{primitive_transformer_forward.3} parent=0 // pred_check
    _
  $region43: #{primitive_transformer_forward.3} parent=0 // pred_check_branch
    %40 = sbr.rel (0) target = $region45
  $region44: #{primitive_transformer_forward.3} parent=0 // pred_region
    _
  $region45: #{primitive_transformer_forward.3} parent=0 // pred_fallthru
    _
  // Predicated region
  $region46: #{primitive_transformer_forward.3} parent=0 // pred_check
    _
  $region47: #{primitive_transformer_forward.3} parent=0 // pred_check_branch
    %42 = sbr.rel (0) target = $region49
  $region48: #{primitive_transformer_forward.3} parent=0 // pred_region
    _
  $region49: #{primitive_transformer_forward.3} parent=0 // pred_fallthru
    _
  // Predicated region
  $region50: #{primitive_transformer_forward.3} parent=0 // pred_check
    _
  $region51: #{primitive_transformer_forward.3} parent=0 // pred_check_branch
    %44 = sbr.rel (0) target = $region53
  $region52: #{primitive_transformer_forward.3} parent=0 // pred_region
    _
  $region53: #{primitive_transformer_forward.3} parent=0 // pred_fallthru
    _
  // Predicated region
  $region54: #{primitive_transformer_forward.3} parent=0 // pred_check
    _
  $region55: #{primitive_transformer_forward.3} parent=0 // pred_check_branch
    %46 = sbr.rel (0) target = $region57
  $region56: #{primitive_transformer_forward.3} parent=0 // pred_region
    _
  $region57: #{primitive_transformer_forward.3} parent=0 // pred_fallthru
    _
  %v48 = vld [vmem:[%s0] sm:$0x3]
  %v49 = vunpack.c.l.bf16 %v48
  %v50 = vmax.f32 %v49, 0.0
  %v51 = vlaneseq
  %v52 = vshrl.u32 %v51, 7
  %v53 = vand.u32 %v52, 1
  %v54 = vld [vmem:[%s1] sm:$0x1]
  %v55 = vld [vmem:[%s2] sm:$0x1]
  %vm56 = vcmask 257024
  %v57 = vsel %vm56, %v50, 0.0
  %58 = vadd.xlane.f32.xlu0 %v57
  %v59 = vpop.xlane.xlu0 %58
  %v60 = vrcp.pop 32.0
  %v61 = vmul.f32 %v59, %v60
  %v62 = vsub.f32 %v50, %v61
  %v63 = vmul.f32 %v62, %v62
  %v64 = vsel %vm56, %v63, 0.0
  %65 = vadd.xlane.f32.xlu0 %v64
  %v66 = vpop.xlane.xlu0 %65
  %v67 = vmul.f32 %v66, %v60
  %v68 = vadd.f32 %v67, 1e-05
  %v69 = vrsqrt.pop %v68
  %v70 = vmul.f32 %v62, %v69
  %v72 = vlaneseq
  %v73 = vshrl.u32 %v72, 7
  %v74 = vsub.s32 0, %v73
  %v75 = vrot.slane %v54, %v74
  %v77 = vmul.f32 %v70, %v75
  %v79 = vlaneseq
  %v80 = vshrl.u32 %v79, 7
  %v81 = vsub.s32 0, %v80
  %v82 = vrot.slane %v55, %v81
  %v84 = vadd.f32 %v77, %v82
  %v85 = vpack.c.bf16 %v84, %v84
  %v86 = vld [vmem:[%s3] sm:$0xf]
  %v87 = vld [vmem:[%s3 + $0x4] sm:$0xf]
  %v88 = vld [vmem:[%s3 + $0x8] sm:$0xf]
  %v89 = vld [vmem:[%s3 + $0xc] sm:$0xf]
  %v94 = vunpack.c.l.b16 %v86
  %v95 = vunpack.c.l.b16 %v87
  %v96 = vunpack.c.l.b16 %v88
  %v97 = vunpack.c.l.b16 %v89
  %v98 = vpack.c.b16 %v95, %v94
  %v99 = vpack.c.b16 %v97, %v96
  %vm102 = vcmask 261120
  %v104 = vsel %vm102, %v85, 0
  %106 = vmatprep.subr.bf16.mxu0 0
  %107 = vmatpush1.bf16.msra.mxu0 %v98
  %108 = vmatprep.subr.bf16.mxu0 0
  %109 = vmatpush1.bf16.msra.mxu0 %v99
  %110 = vmatprep.subr.bf16.mxu0 0
  %111 = vmatpush1.bf16.msra.mxu0 0
  %112 = vmatprep.subr.bf16.mxu0 0
  %113 = vmatpush1.bf16.msra.mxu0 0
  %114 = vmatprep.subr.bf16.mxu0 0
  %115 = vmatpush1.bf16.msra.mxu0 0
  %116 = vmatprep.subr.bf16.mxu0 0
  %117 = vmatpush1.bf16.msra.mxu0 0
  %118 = vmatprep.subr.bf16.mxu0 0
  %119 = vmatpush1.bf16.msra.mxu0 0
  %120 = vmatprep.subr.bf16.mxu0 0
  %121 = vmatpush1.bf16.msra.mxu0 0
  %122 = vmatprep.subr.bf16.mxu0 0
  %123 = vmatpush1.bf16.msra.mxu0 0
  %124 = vmatprep.subr.bf16.mxu0 0
  %125 = vmatpush1.bf16.msra.mxu0 0
  %126 = vmatprep.subr.bf16.mxu0 0
  %127 = vmatpush1.bf16.msra.mxu0 0
  %128 = vmatprep.subr.bf16.mxu0 0
  %129 = vmatpush1.bf16.msra.mxu0 0
  %130 = vmatprep.subr.bf16.mxu0 0
  %131 = vmatpush1.bf16.msra.mxu0 0
  %132 = vmatprep.subr.bf16.mxu0 0
  %133 = vmatpush1.bf16.msra.mxu0 0
  %134 = vmatprep.subr.bf16.mxu0 0
  %135 = vmatpush1.bf16.msra.mxu0 0
  %136 = vmatprep.subr.bf16.mxu0 0
  %137 = vmatpush1.bf16.msra.mxu0 0
  %138 = vmatprep.mubr.bf16.mxu0 0
  %139 = vmatmul.mubr.bf16.gmra.mrb[0].mxu0 %v104
  %v140 = vpop.f32.mrb[0].mxu0
  %v141 = vadd.f32 0.0, %v140
  %v142 = vpop.f32.mrb[0].mxu0
  %v143 = vpop.f32.mrb[0].mxu0
  %v144 = vpop.f32.mrb[0].mxu0
  %145 = vdwg.mxu0
  %v146 = vld [vmem:[%s4] sm:$0xf]
  %v147 = vld [vmem:[%s4 + $0x4] sm:$0xf]
  %v148 = vld [vmem:[%s4 + $0x8] sm:$0xf]
  %v149 = vld [vmem:[%s4 + $0xc] sm:$0xf]
  %v154 = vunpack.c.l.b16 %v146
  %v155 = vunpack.c.l.b16 %v147
  %v156 = vunpack.c.l.b16 %v148
  %v157 = vunpack.c.l.b16 %v149
  %v158 = vpack.c.b16 %v155, %v154
  %v159 = vpack.c.b16 %v157, %v156
  %162 = vmatprep.subr.bf16.mxu0 0
  %163 = vmatpush1.bf16.msra.mxu0 %v158
  %164 = vmatprep.subr.bf16.mxu0 0
  %165 = vmatpush1.bf16.msra.mxu0 %v159
  %166 = vmatprep.subr.bf16.mxu0 0
  %167 = vmatpush1.bf16.msra.mxu0 0
  %168 = vmatprep.subr.bf16.mxu0 0
  %169 = vmatpush1.bf16.msra.mxu0 0
  %170 = vmatprep.subr.bf16.mxu0 0
  %171 = vmatpush1.bf16.msra.mxu0 0
  %172 = vmatprep.subr.bf16.mxu0 0
  %173 = vmatpush1.bf16.msra.mxu0 0
  %174 = vmatprep.subr.bf16.mxu0 0
  %175 = vmatpush1.bf16.msra.mxu0 0
  %176 = vmatprep.subr.bf16.mxu0 0
  %177 = vmatpush1.bf16.msra.mxu0 0
  %178 = vmatprep.subr.bf16.mxu0 0
  %179 = vmatpush1.bf16.msra.mxu0 0
  %180 = vmatprep.subr.bf16.mxu0 0
  %181 = vmatpush1.bf16.msra.mxu0 0
  %182 = vmatprep.subr.bf16.mxu0 0
  %183 = vmatpush1.bf16.msra.mxu0 0
  %184 = vmatprep.subr.bf16.mxu0 0
  %185 = vmatpush1.bf16.msra.mxu0 0
  %186 = vmatprep.subr.bf16.mxu0 0
  %187 = vmatpush1.bf16.msra.mxu0 0
  %188 = vmatprep.subr.bf16.mxu0 0
  %189 = vmatpush1.bf16.msra.mxu0 0
  %190 = vmatprep.subr.bf16.mxu0 0
  %191 = vmatpush1.bf16.msra.mxu0 0
  %192 = vmatprep.subr.bf16.mxu0 0
  %193 = vmatpush1.bf16.msra.mxu0 0
  %194 = vmatprep.mubr.bf16.mxu0 0
  %195 = vmatmul.mubr.bf16.gmra.mrb[0].mxu0 %v104
  %v196 = vpop.f32.mrb[0].mxu0
  %v197 = vadd.f32 0.0, %v196
  %v198 = vpop.f32.mrb[0].mxu0
  %v199 = vpop.f32.mrb[0].mxu0
  %v200 = vpop.f32.mrb[0].mxu0
  %201 = vdwg.mxu0
  %v202 = vld [vmem:[%s5] sm:$0xf]
  %v203 = vld [vmem:[%s5 + $0x4] sm:$0xf]
  %v204 = vld [vmem:[%s5 + $0x8] sm:$0xf]
  %v205 = vld [vmem:[%s5 + $0xc] sm:$0xf]
  %v210 = vunpack.c.l.b16 %v202
  %v211 = vunpack.c.l.b16 %v203
  %v212 = vunpack.c.l.b16 %v204
  %v213 = vunpack.c.l.b16 %v205
  %v214 = vpack.c.b16 %v211, %v210
  %v215 = vpack.c.b16 %v213, %v212
  %218 = vmatprep.subr.bf16.mxu0 0
  %219 = vmatpush1.bf16.msra.mxu0 %v214
  %220 = vmatprep.subr.bf16.mxu0 0
  %221 = vmatpush1.bf16.msra.mxu0 %v215
  %222 = vmatprep.subr.bf16.mxu0 0
  %223 = vmatpush1.bf16.msra.mxu0 0
  %224 = vmatprep.subr.bf16.mxu0 0
  %225 = vmatpush1.bf16.msra.mxu0 0
  %226 = vmatprep.subr.bf16.mxu0 0
  %227 = vmatpush1.bf16.msra.mxu0 0
  %228 = vmatprep.subr.bf16.mxu0 0
  %229 = vmatpush1.bf16.msra.mxu0 0
  %230 = vmatprep.subr.bf16.mxu0 0
  %231 = vmatpush1.bf16.msra.mxu0 0
  %232 = vmatprep.subr.bf16.mxu0 0
  %233 = vmatpush1.bf16.msra.mxu0 0
  %234 = vmatprep.subr.bf16.mxu0 0
  %235 = vmatpush1.bf16.msra.mxu0 0
  %236 = vmatprep.subr.bf16.mxu0 0
  %237 = vmatpush1.bf16.msra.mxu0 0
  %238 = vmatprep.subr.bf16.mxu0 0
  %239 = vmatpush1.bf16.msra.mxu0 0
  %240 = vmatprep.subr.bf16.mxu0 0
  %241 = vmatpush1.bf16.msra.mxu0 0
  %242 = vmatprep.subr.bf16.mxu0 0
  %243 = vmatpush1.bf16.msra.mxu0 0
  %244 = vmatprep.subr.bf16.mxu0 0
  %245 = vmatpush1.bf16.msra.mxu0 0
  %246 = vmatprep.subr.bf16.mxu0 0
  %247 = vmatpush1.bf16.msra.mxu0 0
  %248 = vmatprep.subr.bf16.mxu0 0
  %249 = vmatpush1.bf16.msra.mxu0 0
  %250 = vmatprep.mubr.bf16.mxu0 0
  %251 = vmatmul.mubr.bf16.gmra.mrb[0].mxu0 %v104
  %v252 = vpop.f32.mrb[0].mxu0
  %v253 = vadd.f32 0.0, %v252
  %v254 = vpop.f32.mrb[0].mxu0
  %v255 = vpop.f32.mrb[0].mxu0
  %v256 = vpop.f32.mrb[0].mxu0
  %257 = vdwg.mxu0
  %v259 = vrot.slane %v197, 3
  %v261 = vrot.slane %v197, 7
  %vm263 = vcmask 1040384
  %v264 = vsel %vm263, %v259, %v261
  %v265 = vmul.f32 %v141, %v264
  %vm266 = vcmask 125952
  %v267 = vsel %vm266, %v265, 0.0
  %268 = vadd.xlane.f32.xlu0 %v267
  %v269 = vpop.xlane.xlu0 %268
  %v270 = vmul.f32 %v269, 0.25
  %v271 = vadd.s32 %v53, 4294967295
  %vm272 = vcmp.ge.s32.totalorder %v271, 0
  %vm273 = vcmp.lt.s32.totalorder %v271, 2
  %vm274 = vmand %vm272, %vm273
  %v275 = vsel %vm274, %v270, -1e+30
  %v276 = vmul.f32 %v141, %v197
  %v277 = vsel %vm266, %v276, 0.0
  %278 = vadd.xlane.f32.xlu0 %v277
  %v279 = vpop.xlane.xlu0 %278
  %v280 = vmul.f32 %v279, 0.25
  %vm281 = vcmp.ge.s32.totalorder %v53, 0
  %vm282 = vcmp.lt.s32.totalorder %v53, 2
  %vm283 = vmand %vm281, %vm282
  %v284 = vsel %vm283, %v280, -1e+30
  %v285 = vrot.slane %v197, 1
  %v287 = vrot.slane %v197, 5
  %vm289 = vcmask 1042432
  %v290 = vsel %vm289, %v285, %v287
  %v291 = vmul.f32 %v141, %v290
  %v292 = vsel %vm266, %v291, 0.0
  %293 = vadd.xlane.f32.xlu0 %v292
  %v294 = vpop.xlane.xlu0 %293
  %v295 = vmul.f32 %v294, 0.25
  %v296 = vadd.s32 %v53, 1
  %vm297 = vcmp.ge.s32.totalorder %v296, 0
  %vm298 = vcmp.lt.s32.totalorder %v296, 2
  %vm299 = vmand %vm297, %vm298
  %v300 = vsel %vm299, %v295, -1e+30
  %v301 = vmax.f32 %v275, %v284
  %v302 = vmax.f32 %v301, %v300
  %v303 = vsub.f32 %v275, %v302
  %v304 = vmul.f32 %v303, 1.442695
  %v305 = vpow.pop %v304
  %v306 = vsub.f32 %v284, %v302
  %v307 = vmul.f32 %v306, 1.442695
  %v308 = vpow.pop %v307
  %v309 = vsub.f32 %v300, %v302
  %v310 = vmul.f32 %v309, 1.442695
  %v311 = vpow.pop %v310
  %v312 = vadd.f32 %v305, %v308
  %v313 = vadd.f32 %v312, %v311
  %v314 = vrcp.pop %v313
  %v315 = vmul.f32 %v305, %v314
  %v317 = vrot.slane %v253, 3
  %v319 = vrot.slane %v253, 7
  %v321 = vsel %vm263, %v317, %v319
  %v322 = vmul.f32 %v315, %v321
  %v323 = vmul.f32 %v308, %v314
  %v324 = vmul.f32 %v323, %v253
  %v325 = vadd.f32 %v322, %v324
  %v326 = vmul.f32 %v311, %v314
  %v327 = vrot.slane %v253, 1
  %v329 = vrot.slane %v253, 5
  %v331 = vsel %vm289, %v327, %v329
  %v332 = vmul.f32 %v326, %v331
  %v333 = vadd.f32 %v325, %v332
  %v334 = vpack.c.bf16 %v333, %v333
  %v335 = vld [vmem:[%s6] sm:$0xf]
  %v336 = vld [vmem:[%s6 + $0x4] sm:$0xf]
  %s337 = scalar_lea.vmem %s3, 16
  %v338 = vld [vmem:[%s337] sm:$0xf]
  %v339 = vld [vmem:[%s337 + $0x4] sm:$0xf]
  %v340 = vld [vmem:[%s337 + $0x8] sm:$0xf]
  %v341 = vld [vmem:[%s337 + $0xc] sm:$0xf]
  %v346 = vunpack.c.l.b16 %v338
  %v347 = vunpack.c.l.b16 %v339
  %v348 = vunpack.c.l.b16 %v340
  %v349 = vunpack.c.l.b16 %v341
  %v350 = vpack.c.b16 %v347, %v346
  %v351 = vpack.c.b16 %v349, %v348
  %354 = vmatprep.subr.bf16.mxu0 0
  %355 = vmatpush1.bf16.msra.mxu0 %v350
  %356 = vmatprep.subr.bf16.mxu0 0
  %357 = vmatpush1.bf16.msra.mxu0 %v351
  %358 = vmatprep.subr.bf16.mxu0 0
  %359 = vmatpush1.bf16.msra.mxu0 0
  %360 = vmatprep.subr.bf16.mxu0 0
  %361 = vmatpush1.bf16.msra.mxu0 0
  %362 = vmatprep.subr.bf16.mxu0 0
  %363 = vmatpush1.bf16.msra.mxu0 0
  %364 = vmatprep.subr.bf16.mxu0 0
  %365 = vmatpush1.bf16.msra.mxu0 0
  %366 = vmatprep.subr.bf16.mxu0 0
  %367 = vmatpush1.bf16.msra.mxu0 0
  %368 = vmatprep.subr.bf16.mxu0 0
  %369 = vmatpush1.bf16.msra.mxu0 0
  %370 = vmatprep.subr.bf16.mxu0 0
  %371 = vmatpush1.bf16.msra.mxu0 0
  %372 = vmatprep.subr.bf16.mxu0 0
  %373 = vmatpush1.bf16.msra.mxu0 0
  %374 = vmatprep.subr.bf16.mxu0 0
  %375 = vmatpush1.bf16.msra.mxu0 0
  %376 = vmatprep.subr.bf16.mxu0 0
  %377 = vmatpush1.bf16.msra.mxu0 0
  %378 = vmatprep.subr.bf16.mxu0 0
  %379 = vmatpush1.bf16.msra.mxu0 0
  %380 = vmatprep.subr.bf16.mxu0 0
  %381 = vmatpush1.bf16.msra.mxu0 0
  %382 = vmatprep.subr.bf16.mxu0 0
  %383 = vmatpush1.bf16.msra.mxu0 0
  %384 = vmatprep.subr.bf16.mxu0 0
  %385 = vmatpush1.bf16.msra.mxu0 0
  %386 = vmatprep.mubr.bf16.mxu0 0
  %387 = vmatmul.mubr.bf16.gmra.mrb[0].mxu0 %v104
  %v388 = vpop.f32.mrb[0].mxu0
  %v389 = vadd.f32 0.0, %v388
  %v390 = vpop.f32.mrb[0].mxu0
  %v391 = vpop.f32.mrb[0].mxu0
  %v392 = vpop.f32.mrb[0].mxu0
  %393 = vdwg.mxu0
  %s394 = scalar_lea.vmem %s4, 16
  %v395 = vld [vmem:[%s394] sm:$0xf]
  %v396 = vld [vmem:[%s394 + $0x4] sm:$0xf]
  %v397 = vld [vmem:[%s394 + $0x8] sm:$0xf]
  %v398 = vld [vmem:[%s394 + $0xc] sm:$0xf]
  %v403 = vunpack.c.l.b16 %v395
  %v404 = vunpack.c.l.b16 %v396
  %v405 = vunpack.c.l.b16 %v397
  %v406 = vunpack.c.l.b16 %v398
  %v407 = vpack.c.b16 %v404, %v403
  %v408 = vpack.c.b16 %v406, %v405
  %411 = vmatprep.subr.bf16.mxu0 0
  %412 = vmatpush1.bf16.msra.mxu0 %v407
  %413 = vmatprep.subr.bf16.mxu0 0
  %414 = vmatpush1.bf16.msra.mxu0 %v408
  %415 = vmatprep.subr.bf16.mxu0 0
  %416 = vmatpush1.bf16.msra.mxu0 0
  %417 = vmatprep.subr.bf16.mxu0 0
  %418 = vmatpush1.bf16.msra.mxu0 0
  %419 = vmatprep.subr.bf16.mxu0 0
  %420 = vmatpush1.bf16.msra.mxu0 0
  %421 = vmatprep.subr.bf16.mxu0 0
  %422 = vmatpush1.bf16.msra.mxu0 0
  %423 = vmatprep.subr.bf16.mxu0 0
  %424 = vmatpush1.bf16.msra.mxu0 0
  %425 = vmatprep.subr.bf16.mxu0 0
  %426 = vmatpush1.bf16.msra.mxu0 0
  %427 = vmatprep.subr.bf16.mxu0 0
  %428 = vmatpush1.bf16.msra.mxu0 0
  %429 = vmatprep.subr.bf16.mxu0 0
  %430 = vmatpush1.bf16.msra.mxu0 0
  %431 = vmatprep.subr.bf16.mxu0 0
  %432 = vmatpush1.bf16.msra.mxu0 0
  %433 = vmatprep.subr.bf16.mxu0 0
  %434 = vmatpush1.bf16.msra.mxu0 0
  %435 = vmatprep.subr.bf16.mxu0 0
  %436 = vmatpush1.bf16.msra.mxu0 0
  %437 = vmatprep.subr.bf16.mxu0 0
  %438 = vmatpush1.bf16.msra.mxu0 0
  %439 = vmatprep.subr.bf16.mxu0 0
  %440 = vmatpush1.bf16.msra.mxu0 0
  %441 = vmatprep.subr.bf16.mxu0 0
  %442 = vmatpush1.bf16.msra.mxu0 0
  %443 = vmatprep.mubr.bf16.mxu0 0
  %444 = vmatmul.mubr.bf16.gmra.mrb[0].mxu0 %v104
  %v445 = vpop.f32.mrb[0].mxu0
  %v446 = vadd.f32 0.0, %v445
  %v447 = vpop.f32.mrb[0].mxu0
  %v448 = vpop.f32.mrb[0].mxu0
  %v449 = vpop.f32.mrb[0].mxu0
  %450 = vdwg.mxu0
  %s451 = scalar_lea.vmem %s5, 16
  %v452 = vld [vmem:[%s451] sm:$0xf]
  %v453 = vld [vmem:[%s451 + $0x4] sm:$0xf]
  %v454 = vld [vmem:[%s451 + $0x8] sm:$0xf]
  %v455 = vld [vmem:[%s451 + $0xc] sm:$0xf]
  %v460 = vunpack.c.l.b16 %v452
  %v461 = vunpack.c.l.b16 %v453
  %v462 = vunpack.c.l.b16 %v454
  %v463 = vunpack.c.l.b16 %v455
  %v464 = vpack.c.b16 %v461, %v460
  %v465 = vpack.c.b16 %v463, %v462
  %468 = vmatprep.subr.bf16.mxu0 0
  %469 = vmatpush1.bf16.msra.mxu0 %v464
  %470 = vmatprep.subr.bf16.mxu0 0
  %471 = vmatpush1.bf16.msra.mxu0 %v465
  %472 = vmatprep.subr.bf16.mxu0 0
  %473 = vmatpush1.bf16.msra.mxu0 0
  %474 = vmatprep.subr.bf16.mxu0 0
  %475 = vmatpush1.bf16.msra.mxu0 0
  %476 = vmatprep.subr.bf16.mxu0 0
  %477 = vmatpush1.bf16.msra.mxu0 0
  %478 = vmatprep.subr.bf16.mxu0 0
  %479 = vmatpush1.bf16.msra.mxu0 0
  %480 = vmatprep.subr.bf16.mxu0 0
  %481 = vmatpush1.bf16.msra.mxu0 0
  %482 = vmatprep.subr.bf16.mxu0 0
  %483 = vmatpush1.bf16.msra.mxu0 0
  %484 = vmatprep.subr.bf16.mxu0 0
  %485 = vmatpush1.bf16.msra.mxu0 0
  %486 = vmatprep.subr.bf16.mxu0 0
  %487 = vmatpush1.bf16.msra.mxu0 0
  %488 = vmatprep.subr.bf16.mxu0 0
  %489 = vmatpush1.bf16.msra.mxu0 0
  %490 = vmatprep.subr.bf16.mxu0 0
  %491 = vmatpush1.bf16.msra.mxu0 0
  %492 = vmatprep.subr.bf16.mxu0 0
  %493 = vmatpush1.bf16.msra.mxu0 0
  %494 = vmatprep.subr.bf16.mxu0 0
  %495 = vmatpush1.bf16.msra.mxu0 0
  %496 = vmatprep.subr.bf16.mxu0 0
  %497 = vmatpush1.bf16.msra.mxu0 0
  %498 = vmatprep.subr.bf16.mxu0 0
  %499 = vmatpush1.bf16.msra.mxu0 0
  %500 = vmatprep.mubr.bf16.mxu0 0
  %501 = vmatmul.mubr.bf16.gmra.mrb[0].mxu0 %v104
  %v502 = vpop.f32.mrb[0].mxu0
  %v503 = vadd.f32 0.0, %v502
  %v504 = vpop.f32.mrb[0].mxu0
  %v505 = vpop.f32.mrb[0].mxu0
  %v506 = vpop.f32.mrb[0].mxu0
  %507 = vdwg.mxu0
  %v509 = vrot.slane %v446, 3
  %v511 = vrot.slane %v446, 7
  %v513 = vsel %vm263, %v509, %v511
  %v514 = vmul.f32 %v389, %v513
  %v515 = vsel %vm266, %v514, 0.0
  %516 = vadd.xlane.f32.xlu0 %v515
  %v517 = vpop.xlane.xlu0 %516
  %v518 = vmul.f32 %v517, 0.25
  %v519 = vsel %vm274, %v518, -1e+30
  %v520 = vmul.f32 %v389, %v446
  %v521 = vsel %vm266, %v520, 0.0
  %522 = vadd.xlane.f32.xlu0 %v521
  %v523 = vpop.xlane.xlu0 %522
  %v524 = vmul.f32 %v523, 0.25
  %v525 = vsel %vm283, %v524, -1e+30
  %v526 = vrot.slane %v446, 1
  %v528 = vrot.slane %v446, 5
  %v530 = vsel %vm289, %v526, %v528
  %v531 = vmul.f32 %v389, %v530
  %v532 = vsel %vm266, %v531, 0.0
  %533 = vadd.xlane.f32.xlu0 %v532
  %v534 = vpop.xlane.xlu0 %533
  %v535 = vmul.f32 %v534, 0.25
  %v536 = vsel %vm299, %v535, -1e+30
  %v537 = vmax.f32 %v519, %v525
  %v538 = vmax.f32 %v537, %v536
  %v539 = vsub.f32 %v519, %v538
  %v540 = vmul.f32 %v539, 1.442695
  %v541 = vpow.pop %v540
  %v542 = vsub.f32 %v525, %v538
  %v543 = vmul.f32 %v542, 1.442695
  %v544 = vpow.pop %v543
  %v545 = vsub.f32 %v536, %v538
  %v546 = vmul.f32 %v545, 1.442695
  %v547 = vpow.pop %v546
  %v548 = vadd.f32 %v541, %v544
  %v549 = vadd.f32 %v548, %v547
  %v550 = vrcp.pop %v549
  %v551 = vmul.f32 %v541, %v550
  %v553 = vrot.slane %v503, 3
  %v555 = vrot.slane %v503, 7
  %v557 = vsel %vm263, %v553, %v555
  %v558 = vmul.f32 %v551, %v557
  %v559 = vmul.f32 %v544, %v550
  %v560 = vmul.f32 %v559, %v503
  %v561 = vadd.f32 %v558, %v560
  %v562 = vmul.f32 %v547, %v550
  %v563 = vrot.slane %v503, 1
  %v565 = vrot.slane %v503, 5
  %v567 = vsel %vm289, %v563, %v565
  %v568 = vmul.f32 %v562, %v567
  %v569 = vadd.f32 %v561, %v568
  %v570 = vpack.c.bf16 %v569, %v569
  %s571 = scalar_lea.vmem %s6, 8
  %v572 = vld [vmem:[%s571] sm:$0xf]
  %v573 = vld [vmem:[%s571 + $0x4] sm:$0xf]
  %v576 = vunpack.c.l.b16 %v572
  %v577 = vunpack.c.l.b16 %v573
  %v578 = vpack.c.b16 %v577, %v576
  %vm580 = vcmask 130048
  %v582 = vsel %vm580, %v570, 0
  %584 = vmatprep.subr.bf16.mxu0 0
  %585 = vmatpush1.bf16.msra.mxu0 %v578
  %586 = vmatprep.subr.bf16.mxu0 0
  %587 = vmatpush1.bf16.msra.mxu0 0
  %588 = vmatprep.subr.bf16.mxu0 0
  %589 = vmatpush1.bf16.msra.mxu0 0
  %590 = vmatprep.subr.bf16.mxu0 0
  %591 = vmatpush1.bf16.msra.mxu0 0
  %592 = vmatprep.subr.bf16.mxu0 0
  %593 = vmatpush1.bf16.msra.mxu0 0
  %594 = vmatprep.subr.bf16.mxu0 0
  %595 = vmatpush1.bf16.msra.mxu0 0
  %596 = vmatprep.subr.bf16.mxu0 0
  %597 = vmatpush1.bf16.msra.mxu0 0
  %598 = vmatprep.subr.bf16.mxu0 0
  %599 = vmatpush1.bf16.msra.mxu0 0
  %600 = vmatprep.subr.bf16.mxu0 0
  %601 = vmatpush1.bf16.msra.mxu0 0
  %602 = vmatprep.subr.bf16.mxu0 0
  %603 = vmatpush1.bf16.msra.mxu0 0
  %604 = vmatprep.subr.bf16.mxu0 0
  %605 = vmatpush1.bf16.msra.mxu0 0
  %606 = vmatprep.subr.bf16.mxu0 0
  %607 = vmatpush1.bf16.msra.mxu0 0
  %608 = vmatprep.subr.bf16.mxu0 0
  %609 = vmatpush1.bf16.msra.mxu0 0
  %610 = vmatprep.subr.bf16.mxu0 0
  %611 = vmatpush1.bf16.msra.mxu0 0
  %612 = vmatprep.subr.bf16.mxu0 0
  %613 = vmatpush1.bf16.msra.mxu0 0
  %614 = vmatprep.subr.bf16.mxu0 0
  %615 = vmatpush1.bf16.msra.mxu0 0
  %616 = vmatprep.mubr.bf16.mxu0 0
  %617 = vmatmul.mubr.bf16.gmra.mrb[0].mxu0 %v582
  %v618 = vpop.f32.mrb[0].mxu0
  %v619 = vadd.f32 0.0, %v618
  %v620 = vpop.f32.mrb[0].mxu0
  %v621 = vpop.f32.mrb[0].mxu0
  %v622 = vpop.f32.mrb[0].mxu0
  %623 = vdwg.mxu0
  %v626 = vunpack.c.l.b16 %v335
  %v627 = vunpack.c.l.b16 %v336
  %v628 = vpack.c.b16 %v627, %v626
  %v631 = vsel %vm580, %v334, 0
  %633 = vmatprep.subr.bf16.mxu0 0
  %634 = vmatpush1.bf16.msra.mxu0 %v628
  %635 = vmatprep.subr.bf16.mxu0 0
  %636 = vmatpush1.bf16.msra.mxu0 0
  %637 = vmatprep.subr.bf16.mxu0 0
  %638 = vmatpush1.bf16.msra.mxu0 0
  %639 = vmatprep.subr.bf16.mxu0 0
  %640 = vmatpush1.bf16.msra.mxu0 0
  %641 = vmatprep.subr.bf16.mxu0 0
  %642 = vmatpush1.bf16.msra.mxu0 0
  %643 = vmatprep.subr.bf16.mxu0 0
  %644 = vmatpush1.bf16.msra.mxu0 0
  %645 = vmatprep.subr.bf16.mxu0 0
  %646 = vmatpush1.bf16.msra.mxu0 0
  %647 = vmatprep.subr.bf16.mxu0 0
  %648 = vmatpush1.bf16.msra.mxu0 0
  %649 = vmatprep.subr.bf16.mxu0 0
  %650 = vmatpush1.bf16.msra.mxu0 0
  %651 = vmatprep.subr.bf16.mxu0 0
  %652 = vmatpush1.bf16.msra.mxu0 0
  %653 = vmatprep.subr.bf16.mxu0 0
  %654 = vmatpush1.bf16.msra.mxu0 0
  %655 = vmatprep.subr.bf16.mxu0 0
  %656 = vmatpush1.bf16.msra.mxu0 0
  %657 = vmatprep.subr.bf16.mxu0 0
  %658 = vmatpush1.bf16.msra.mxu0 0
  %659 = vmatprep.subr.bf16.mxu0 0
  %660 = vmatpush1.bf16.msra.mxu0 0
  %661 = vmatprep.subr.bf16.mxu0 0
  %662 = vmatpush1.bf16.msra.mxu0 0
  %663 = vmatprep.subr.bf16.mxu0 0
  %664 = vmatpush1.bf16.msra.mxu0 0
  %665 = vmatprep.mubr.bf16.mxu0 0
  %666 = vmatmul.mubr.bf16.gmra.mrb[0].mxu0 %v631
  %v667 = vpop.f32.mrb[0].mxu0
  %v668 = vadd.f32 %v619, %v667
  %v669 = vpop.f32.mrb[0].mxu0
  %v670 = vpop.f32.mrb[0].mxu0
  %v671 = vpop.f32.mrb[0].mxu0
  %672 = vdwg.mxu0
  %v673 = vadd.f32 %v50, %v668
  %v674 = vld [vmem:[%s7] sm:$0x1]
  %v676 = vlaneseq
  %v677 = vshrl.u32 %v676, 7
  %v678 = vsub.s32 0, %v677
  %v679 = vrot.slane %v674, %v678
  %v681 = vadd.f32 %v673, %v679
  %v682 = vld [vmem:[%s8] sm:$0x1]
  %v683 = vld [vmem:[%s9] sm:$0x1]
  %v684 = vsel %vm56, %v681, 0.0
  %685 = vadd.xlane.f32.xlu0 %v684
  %v686 = vpop.xlane.xlu0 %685
  %v687 = vmul.f32 %v686, %v60
  %v688 = vsub.f32 %v681, %v687
  %v689 = vmul.f32 %v688, %v688
  %v690 = vsel %vm56, %v689, 0.0
  %691 = vadd.xlane.f32.xlu0 %v690
  %v692 = vpop.xlane.xlu0 %691
  %v693 = vmul.f32 %v692, %v60
  %v694 = vadd.f32 %v693, 1e-05
  %v695 = vrsqrt.pop %v694
  %v696 = vmul.f32 %v688, %v695
  %v698 = vlaneseq
  %v699 = vshrl.u32 %v698, 7
  %v700 = vsub.s32 0, %v699
  %v701 = vrot.slane %v682, %v700
  %v703 = vmul.f32 %v696, %v701
  %v705 = vlaneseq
  %v706 = vshrl.u32 %v705, 7
  %v707 = vsub.s32 0, %v706
  %v708 = vrot.slane %v683, %v707
  %v710 = vadd.f32 %v703, %v708
  %v711 = vpack.c.bf16 %v710, %v710
  %v712 = vld [vmem:[%s10] sm:$0xf]
  %v713 = vld [vmem:[%s10 + $0x4] sm:$0xf]
  %v714 = vld [vmem:[%s10 + $0x8] sm:$0xf]
  %v715 = vld [vmem:[%s10 + $0xc] sm:$0xf]
  %v716 = vld [vmem:[%s11] sm:$0x1]
  %v718 = vlaneseq
  %v719 = vshrl.u32 %v718, 7
  %v720 = vsub.s32 0, %v719
  %v721 = vrot.slane %v716, %v720
  %v727 = vunpack.c.l.b16 %v712
  %v728 = vunpack.c.l.b16 %v713
  %v729 = vunpack.c.l.b16 %v714
  %v730 = vunpack.c.l.b16 %v715
  %v731 = vpack.c.b16 %v728, %v727
  %v732 = vpack.c.b16 %v730, %v729
  %v736 = vsel %vm102, %v711, 0
  %738 = vmatprep.subr.bf16.mxu0 0
  %739 = vmatpush1.bf16.msra.mxu0 %v731
  %740 = vmatprep.subr.bf16.mxu0 0
  %741 = vmatpush1.bf16.msra.mxu0 %v732
  %742 = vmatprep.subr.bf16.mxu0 0
  %743 = vmatpush1.bf16.msra.mxu0 0
  %744 = vmatprep.subr.bf16.mxu0 0
  %745 = vmatpush1.bf16.msra.mxu0 0
  %746 = vmatprep.subr.bf16.mxu0 0
  %747 = vmatpush1.bf16.msra.mxu0 0
  %748 = vmatprep.subr.bf16.mxu0 0
  %749 = vmatpush1.bf16.msra.mxu0 0
  %750 = vmatprep.subr.bf16.mxu0 0
  %751 = vmatpush1.bf16.msra.mxu0 0
  %752 = vmatprep.subr.bf16.mxu0 0
  %753 = vmatpush1.bf16.msra.mxu0 0
  %754 = vmatprep.subr.bf16.mxu0 0
  %755 = vmatpush1.bf16.msra.mxu0 0
  %756 = vmatprep.subr.bf16.mxu0 0
  %757 = vmatpush1.bf16.msra.mxu0 0
  %758 = vmatprep.subr.bf16.mxu0 0
  %759 = vmatpush1.bf16.msra.mxu0 0
  %760 = vmatprep.subr.bf16.mxu0 0
  %761 = vmatpush1.bf16.msra.mxu0 0
  %762 = vmatprep.subr.bf16.mxu0 0
  %763 = vmatpush1.bf16.msra.mxu0 0
  %764 = vmatprep.subr.bf16.mxu0 0
  %765 = vmatpush1.bf16.msra.mxu0 0
  %766 = vmatprep.subr.bf16.mxu0 0
  %767 = vmatpush1.bf16.msra.mxu0 0
  %768 = vmatprep.subr.bf16.mxu0 0
  %769 = vmatpush1.bf16.msra.mxu0 0
  %770 = vmatprep.mubr.bf16.mxu0 0
  %771 = vmatmul.mubr.bf16.gmra.mrb[0].mxu0 %v736
  %v772 = vpop.f32.mrb[0].mxu0
  %v773 = vadd.f32 %v721, %v772
  %v774 = vpop.f32.mrb[0].mxu0
  %v775 = vpop.f32.mrb[0].mxu0
  %v776 = vpop.f32.mrb[0].mxu0
  %777 = vdwg.mxu0
  %v778 = vmul.f32 %v773, %v773
  %v779 = vmul.f32 %v773, %v778
  %v780 = vmul.f32 %v779, 0.044715
  %v781 = vadd.f32 %v773, %v780
  %v782 = vmul.f32 %v781, 0.7978846
  %v783 = vtanh.pop %v782
  %v784 = vadd.f32 %v783, 1.0
  %v785 = vmul.f32 %v784, 0.5
  %v786 = vmul.f32 %v773, %v785
  %v787 = vpack.c.bf16 %v786, %v786
  %v788 = vld [vmem:[%s12] sm:$0xf]
  %v789 = vld [vmem:[%s12 + $0x4] sm:$0xf]
  %v790 = vld [vmem:[%s12 + $0x8] sm:$0xf]
  %v791 = vld [vmem:[%s12 + $0xc] sm:$0xf]
  %v792 = vld [vmem:[%s12 + $0x10] sm:$0xf]
  %v793 = vld [vmem:[%s12 + $0x14] sm:$0xf]
  %v794 = vld [vmem:[%s12 + $0x18] sm:$0xf]
  %v795 = vld [vmem:[%s12 + $0x1c] sm:$0xf]
  %v796 = vld [vmem:[%s13] sm:$0x1]
  %v798 = vlaneseq
  %v799 = vshrl.u32 %v798, 7
  %v800 = vsub.s32 0, %v799
  %v801 = vrot.slane %v796, %v800
  %v811 = vunpack.c.l.b16 %v788
  %v812 = vunpack.c.l.b16 %v789
  %v813 = vunpack.c.l.b16 %v790
  %v814 = vunpack.c.l.b16 %v791
  %v815 = vunpack.c.l.b16 %v792
  %v816 = vunpack.c.l.b16 %v793
  %v817 = vunpack.c.l.b16 %v794
  %v818 = vunpack.c.l.b16 %v795
  %v819 = vpack.c.b16 %v812, %v811
  %v820 = vpack.c.b16 %v814, %v813
  %v821 = vpack.c.b16 %v816, %v815
  %v822 = vpack.c.b16 %v818, %v817
  %vm827 = vcmask 523264
  %v829 = vsel %vm827, %v787, 0
  %831 = vmatprep.subr.bf16.mxu0 0
  %832 = vmatpush1.bf16.msra.mxu0 %v819
  %833 = vmatprep.subr.bf16.mxu0 0
  %834 = vmatpush1.bf16.msra.mxu0 %v820
  %835 = vmatprep.subr.bf16.mxu0 0
  %836 = vmatpush1.bf16.msra.mxu0 %v821
  %837 = vmatprep.subr.bf16.mxu0 0
  %838 = vmatpush1.bf16.msra.mxu0 %v822
  %839 = vmatprep.subr.bf16.mxu0 0
  %840 = vmatpush1.bf16.msra.mxu0 0
  %841 = vmatprep.subr.bf16.mxu0 0
  %842 = vmatpush1.bf16.msra.mxu0 0
  %843 = vmatprep.subr.bf16.mxu0 0
  %844 = vmatpush1.bf16.msra.mxu0 0
  %845 = vmatprep.subr.bf16.mxu0 0
  %846 = vmatpush1.bf16.msra.mxu0 0
  %847 = vmatprep.subr.bf16.mxu0 0
  %848 = vmatpush1.bf16.msra.mxu0 0
  %849 = vmatprep.subr.bf16.mxu0 0
  %850 = vmatpush1.bf16.msra.mxu0 0
  %851 = vmatprep.subr.bf16.mxu0 0
  %852 = vmatpush1.bf16.msra.mxu0 0
  %853 = vmatprep.subr.bf16.mxu0 0
  %854 = vmatpush1.bf16.msra.mxu0 0
  %855 = vmatprep.subr.bf16.mxu0 0
  %856 = vmatpush1.bf16.msra.mxu0 0
  %857 = vmatprep.subr.bf16.mxu0 0
  %858 = vmatpush1.bf16.msra.mxu0 0
  %859 = vmatprep.subr.bf16.mxu0 0
  %860 = vmatpush1.bf16.msra.mxu0 0
  %861 = vmatprep.subr.bf16.mxu0 0
  %862 = vmatpush1.bf16.msra.mxu0 0
  %863 = vmatprep.mubr.bf16.mxu0 0
  %864 = vmatmul.mubr.bf16.gmra.mrb[0].mxu0 %v829
  %v865 = vpop.f32.mrb[0].mxu0
  %v866 = vadd.f32 %v801, %v865
  %v867 = vpop.f32.mrb[0].mxu0
  %v868 = vpop.f32.mrb[0].mxu0
  %v869 = vpop.f32.mrb[0].mxu0
  %870 = vdwg.mxu0
  %v871 = vadd.f32 %v681, %v866
  %s872 = scalar_lea.vmem %s1, 1
  %v873 = vld [vmem:[%s872] sm:$0x1]
  %s874 = scalar_lea.vmem %s2, 1
  %v875 = vld [vmem:[%s874] sm:$0x1]
  %v876 = vsel %vm56, %v871, 0.0
  %877 = vadd.xlane.f32.xlu0 %v876
  %v878 = vpop.xlane.xlu0 %877
  %v879 = vmul.f32 %v878, %v60
  %v880 = vsub.f32 %v871, %v879
  %v881 = vmul.f32 %v880, %v880
  %v882 = vsel %vm56, %v881, 0.0
  %883 = vadd.xlane.f32.xlu0 %v882
  %v884 = vpop.xlane.xlu0 %883
  %v885 = vmul.f32 %v884, %v60
  %v886 = vadd.f32 %v885, 1e-05
  %v887 = vrsqrt.pop %v886
  %v888 = vmul.f32 %v880, %v887
  %v890 = vlaneseq
  %v891 = vshrl.u32 %v890, 7
  %v892 = vsub.s32 0, %v891
  %v893 = vrot.slane %v873, %v892
  %v895 = vmul.f32 %v888, %v893
  %v897 = vlaneseq
  %v898 = vshrl.u32 %v897, 7
  %v899 = vsub.s32 0, %v898
  %v900 = vrot.slane %v875, %v899
  %v902 = vadd.f32 %v895, %v900
  %v903 = vpack.c.bf16 %v902, %v902
  %s904 = scalar_lea.vmem %s3, 32
  %v905 = vld [vmem:[%s904] sm:$0xf]
  %v906 = vld [vmem:[%s904 + $0x4] sm:$0xf]
  %v907 = vld [vmem:[%s904 + $0x8] sm:$0xf]
  %v908 = vld [vmem:[%s904 + $0xc] sm:$0xf]
  %v913 = vunpack.c.l.b16 %v905
  %v914 = vunpack.c.l.b16 %v906
  %v915 = vunpack.c.l.b16 %v907
  %v916 = vunpack.c.l.b16 %v908
  %v917 = vpack.c.b16 %v914, %v913
  %v918 = vpack.c.b16 %v916, %v915
  %v922 = vsel %vm102, %v903, 0
  %924 = vmatprep.subr.bf16.mxu0 0
  %925 = vmatpush1.bf16.msra.mxu0 %v917
  %926 = vmatprep.subr.bf16.mxu0 0
  %927 = vmatpush1.bf16.msra.mxu0 %v918
  %928 = vmatprep.subr.bf16.mxu0 0
  %929 = vmatpush1.bf16.msra.mxu0 0
  %930 = vmatprep.subr.bf16.mxu0 0
  %931 = vmatpush1.bf16.msra.mxu0 0
  %932 = vmatprep.subr.bf16.mxu0 0
  %933 = vmatpush1.bf16.msra.mxu0 0
  %934 = vmatprep.subr.bf16.mxu0 0
  %935 = vmatpush1.bf16.msra.mxu0 0
  %936 = vmatprep.subr.bf16.mxu0 0
  %937 = vmatpush1.bf16.msra.mxu0 0
  %938 = vmatprep.subr.bf16.mxu0 0
  %939 = vmatpush1.bf16.msra.mxu0 0
  %940 = vmatprep.subr.bf16.mxu0 0
  %941 = vmatpush1.bf16.msra.mxu0 0
  %942 = vmatprep.subr.bf16.mxu0 0
  %943 = vmatpush1.bf16.msra.mxu0 0
  %944 = vmatprep.subr.bf16.mxu0 0
  %945 = vmatpush1.bf16.msra.mxu0 0
  %946 = vmatprep.subr.bf16.mxu0 0
  %947 = vmatpush1.bf16.msra.mxu0 0
  %948 = vmatprep.subr.bf16.mxu0 0
  %949 = vmatpush1.bf16.msra.mxu0 0
  %950 = vmatprep.subr.bf16.mxu0 0
  %951 = vmatpush1.bf16.msra.mxu0 0
  %952 = vmatprep.subr.bf16.mxu0 0
  %953 = vmatpush1.bf16.msra.mxu0 0
  %954 = vmatprep.subr.bf16.mxu0 0
  %955 = vmatpush1.bf16.msra.mxu0 0
  %956 = vmatprep.mubr.bf16.mxu0 0
  %957 = vmatmul.mubr.bf16.gmra.mrb[0].mxu0 %v922
  %v958 = vpop.f32.mrb[0].mxu0
  %v959 = vadd.f32 0.0, %v958
  %v960 = vpop.f32.mrb[0].mxu0
  %v961 = vpop.f32.mrb[0].mxu0
  %v962 = vpop.f32.mrb[0].mxu0
  %963 = vdwg.mxu0
  %s964 = scalar_lea.vmem %s4, 32
  %v965 = vld [vmem:[%s964] sm:$0xf]
  %v966 = vld [vmem:[%s964 + $0x4] sm:$0xf]
  %v967 = vld [vmem:[%s964 + $0x8] sm:$0xf]
  %v968 = vld [vmem:[%s964 + $0xc] sm:$0xf]
  %v973 = vunpack.c.l.b16 %v965
  %v974 = vunpack.c.l.b16 %v966
  %v975 = vunpack.c.l.b16 %v967
  %v976 = vunpack.c.l.b16 %v968
  %v977 = vpack.c.b16 %v974, %v973
  %v978 = vpack.c.b16 %v976, %v975
  %981 = vmatprep.subr.bf16.mxu0 0
  %982 = vmatpush1.bf16.msra.mxu0 %v977
  %983 = vmatprep.subr.bf16.mxu0 0
  %984 = vmatpush1.bf16.msra.mxu0 %v978
  %985 = vmatprep.subr.bf16.mxu0 0
  %986 = vmatpush1.bf16.msra.mxu0 0
  %987 = vmatprep.subr.bf16.mxu0 0
  %988 = vmatpush1.bf16.msra.mxu0 0
  %989 = vmatprep.subr.bf16.mxu0 0
  %990 = vmatpush1.bf16.msra.mxu0 0
  %991 = vmatprep.subr.bf16.mxu0 0
  %992 = vmatpush1.bf16.msra.mxu0 0
  %993 = vmatprep.subr.bf16.mxu0 0
  %994 = vmatpush1.bf16.msra.mxu0 0
  %995 = vmatprep.subr.bf16.mxu0 0
  %996 = vmatpush1.bf16.msra.mxu0 0
  %997 = vmatprep.subr.bf16.mxu0 0
  %998 = vmatpush1.bf16.msra.mxu0 0
  %999 = vmatprep.subr.bf16.mxu0 0
  %1000 = vmatpush1.bf16.msra.mxu0 0
  %1001 = vmatprep.subr.bf16.mxu0 0
  %1002 = vmatpush1.bf16.msra.mxu0 0
  %1003 = vmatprep.subr.bf16.mxu0 0
  %1004 = vmatpush1.bf16.msra.mxu0 0
  %1005 = vmatprep.subr.bf16.mxu0 0
  %1006 = vmatpush1.bf16.msra.mxu0 0
  %1007 = vmatprep.subr.bf16.mxu0 0
  %1008 = vmatpush1.bf16.msra.mxu0 0
  %1009 = vmatprep.subr.bf16.mxu0 0
  %1010 = vmatpush1.bf16.msra.mxu0 0
  %1011 = vmatprep.subr.bf16.mxu0 0
  %1012 = vmatpush1.bf16.msra.mxu0 0
  %1013 = vmatprep.mubr.bf16.mxu0 0
  %1014 = vmatmul.mubr.bf16.gmra.mrb[0].mxu0 %v922
  %v1015 = vpop.f32.mrb[0].mxu0
  %v1016 = vadd.f32 0.0, %v1015
  %v1017 = vpop.f32.mrb[0].mxu0
  %v1018 = vpop.f32.mrb[0].mxu0
  %v1019 = vpop.f32.mrb[0].mxu0
  %1020 = vdwg.mxu0
  %s1021 = scalar_lea.vmem %s5, 32
  %v1022 = vld [vmem:[%s1021] sm:$0xf]
  %v1023 = vld [vmem:[%s1021 + $0x4] sm:$0xf]
  %v1024 = vld [vmem:[%s1021 + $0x8] sm:$0xf]
  %v1025 = vld [vmem:[%s1021 + $0xc] sm:$0xf]
  %v1030 = vunpack.c.l.b16 %v1022
  %v1031 = vunpack.c.l.b16 %v1023
  %v1032 = vunpack.c.l.b16 %v1024
  %v1033 = vunpack.c.l.b16 %v1025
  %v1034 = vpack.c.b16 %v1031, %v1030
  %v1035 = vpack.c.b16 %v1033, %v1032
  %1038 = vmatprep.subr.bf16.mxu0 0
  %1039 = vmatpush1.bf16.msra.mxu0 %v1034
  %1040 = vmatprep.subr.bf16.mxu0 0
  %1041 = vmatpush1.bf16.msra.mxu0 %v1035
  %1042 = vmatprep.subr.bf16.mxu0 0
  %1043 = vmatpush1.bf16.msra.mxu0 0
  %1044 = vmatprep.subr.bf16.mxu0 0
  %1045 = vmatpush1.bf16.msra.mxu0 0
  %1046 = vmatprep.subr.bf16.mxu0 0
  %1047 = vmatpush1.bf16.msra.mxu0 0
  %1048 = vmatprep.subr.bf16.mxu0 0
  %1049 = vmatpush1.bf16.msra.mxu0 0
  %1050 = vmatprep.subr.bf16.mxu0 0
  %1051 = vmatpush1.bf16.msra.mxu0 0
  %1052 = vmatprep.subr.bf16.mxu0 0
  %1053 = vmatpush1.bf16.msra.mxu0 0
  %1054 = vmatprep.subr.bf16.mxu0 0
  %1055 = vmatpush1.bf16.msra.mxu0 0
  %1056 = vmatprep.subr.bf16.mxu0 0
  %1057 = vmatpush1.bf16.msra.mxu0 0
  %1058 = vmatprep.subr.bf16.mxu0 0
  %1059 = vmatpush1.bf16.msra.mxu0 0
  %1060 = vmatprep.subr.bf16.mxu0 0
  %1061 = vmatpush1.bf16.msra.mxu0 0
  %1062 = vmatprep.subr.bf16.mxu0 0
  %1063 = vmatpush1.bf16.msra.mxu0 0
  %1064 = vmatprep.subr.bf16.mxu0 0
  %1065 = vmatpush1.bf16.msra.mxu0 0
  %1066 = vmatprep.subr.bf16.mxu0 0
  %1067 = vmatpush1.bf16.msra.mxu0 0
  %1068 = vmatprep.subr.bf16.mxu0 0
  %1069 = vmatpush1.bf16.msra.mxu0 0
  %1070 = vmatprep.mubr.bf16.mxu0 0
  %1071 = vmatmul.mubr.bf16.gmra.mrb[0].mxu0 %v922
  %v1072 = vpop.f32.mrb[0].mxu0
  %v1073 = vadd.f32 0.0, %v1072
  %v1074 = vpop.f32.mrb[0].mxu0
  %v1075 = vpop.f32.mrb[0].mxu0
  %v1076 = vpop.f32.mrb[0].mxu0
  %1077 = vdwg.mxu0
  %v1079 = vrot.slane %v1016, 3
  %v1081 = vrot.slane %v1016, 7
  %v1083 = vsel %vm263, %v1079, %v1081
  %v1084 = vmul.f32 %v959, %v1083
  %v1085 = vsel %vm266, %v1084, 0.0
  %1086 = vadd.xlane.f32.xlu0 %v1085
  %v1087 = vpop.xlane.xlu0 %1086
  %v1088 = vmul.f32 %v1087, 0.25
  %v1089 = vsel %vm274, %v1088, -1e+30
  %v1090 = vmul.f32 %v959, %v1016
  %v1091 = vsel %vm266, %v1090, 0.0
  %1092 = vadd.xlane.f32.xlu0 %v1091
  %v1093 = vpop.xlane.xlu0 %1092
  %v1094 = vmul.f32 %v1093, 0.25
  %v1095 = vsel %vm283, %v1094, -1e+30
  %v1096 = vrot.slane %v1016, 1
  %v1098 = vrot.slane %v1016, 5
  %v1100 = vsel %vm289, %v1096, %v1098
  %v1101 = vmul.f32 %v959, %v1100
  %v1102 = vsel %vm266, %v1101, 0.0
  %1103 = vadd.xlane.f32.xlu0 %v1102
  %v1104 = vpop.xlane.xlu0 %1103
  %v1105 = vmul.f32 %v1104, 0.25
  %v1106 = vsel %vm299, %v1105, -1e+30
  %v1107 = vmax.f32 %v1089, %v1095
  %v1108 = vmax.f32 %v1107, %v1106
  %v1109 = vsub.f32 %v1089, %v1108
  %v1110 = vmul.f32 %v1109, 1.442695
  %v1111 = vpow.pop %v1110
  %v1112 = vsub.f32 %v1095, %v1108
  %v1113 = vmul.f32 %v1112, 1.442695
  %v1114 = vpow.pop %v1113
  %v1115 = vsub.f32 %v1106, %v1108
  %v1116 = vmul.f32 %v1115, 1.442695
  %v1117 = vpow.pop %v1116
  %v1118 = vadd.f32 %v1111, %v1114
  %v1119 = vadd.f32 %v1118, %v1117
  %v1120 = vrcp.pop %v1119
  %v1121 = vmul.f32 %v1111, %v1120
  %v1123 = vrot.slane %v1073, 3
  %v1125 = vrot.slane %v1073, 7
  %v1127 = vsel %vm263, %v1123, %v1125
  %v1128 = vmul.f32 %v1121, %v1127
  %v1129 = vmul.f32 %v1114, %v1120
  %v1130 = vmul.f32 %v1129, %v1073
  %v1131 = vadd.f32 %v1128, %v1130
  %v1132 = vmul.f32 %v1117, %v1120
  %v1133 = vrot.slane %v1073, 1
  %v1135 = vrot.slane %v1073, 5
  %v1137 = vsel %vm289, %v1133, %v1135
  %v1138 = vmul.f32 %v1132, %v1137
  %v1139 = vadd.f32 %v1131, %v1138
  %v1140 = vpack.c.bf16 %v1139, %v1139
  %s1141 = scalar_lea.vmem %s6, 16
  %v1142 = vld [vmem:[%s1141] sm:$0xf]
  %v1143 = vld [vmem:[%s1141 + $0x4] sm:$0xf]
  %s1144 = scalar_lea.vmem %s3, 48
  %v1145 = vld [vmem:[%s1144] sm:$0xf]
  %v1146 = vld [vmem:[%s1144 + $0x4] sm:$0xf]
  %v1147 = vld [vmem:[%s1144 + $0x8] sm:$0xf]
  %v1148 = vld [vmem:[%s1144 + $0xc] sm:$0xf]
  %v1153 = vunpack.c.l.b16 %v1145
  %v1154 = vunpack.c.l.b16 %v1146
  %v1155 = vunpack.c.l.b16 %v1147
  %v1156 = vunpack.c.l.b16 %v1148
  %v1157 = vpack.c.b16 %v1154, %v1153
  %v1158 = vpack.c.b16 %v1156, %v1155
  %1161 = vmatprep.subr.bf16.mxu0 0
  %1162 = vmatpush1.bf16.msra.mxu0 %v1157
  %1163 = vmatprep.subr.bf16.mxu0 0
  %1164 = vmatpush1.bf16.msra.mxu0 %v1158
  %1165 = vmatprep.subr.bf16.mxu0 0
  %1166 = vmatpush1.bf16.msra.mxu0 0
  %1167 = vmatprep.subr.bf16.mxu0 0
  %1168 = vmatpush1.bf16.msra.mxu0 0
  %1169 = vmatprep.subr.bf16.mxu0 0
  %1170 = vmatpush1.bf16.msra.mxu0 0
  %1171 = vmatprep.subr.bf16.mxu0 0
  %1172 = vmatpush1.bf16.msra.mxu0 0
  %1173 = vmatprep.subr.bf16.mxu0 0
  %1174 = vmatpush1.bf16.msra.mxu0 0
  %1175 = vmatprep.subr.bf16.mxu0 0
  %1176 = vmatpush1.bf16.msra.mxu0 0
  %1177 = vmatprep.subr.bf16.mxu0 0
  %1178 = vmatpush1.bf16.msra.mxu0 0
  %1179 = vmatprep.subr.bf16.mxu0 0
  %1180 = vmatpush1.bf16.msra.mxu0 0
  %1181 = vmatprep.subr.bf16.mxu0 0
  %1182 = vmatpush1.bf16.msra.mxu0 0
  %1183 = vmatprep.subr.bf16.mxu0 0
  %1184 = vmatpush1.bf16.msra.mxu0 0
  %1185 = vmatprep.subr.bf16.mxu0 0
  %1186 = vmatpush1.bf16.msra.mxu0 0
  %1187 = vmatprep.subr.bf16.mxu0 0
  %1188 = vmatpush1.bf16.msra.mxu0 0
  %1189 = vmatprep.subr.bf16.mxu0 0
  %1190 = vmatpush1.bf16.msra.mxu0 0
  %1191 = vmatprep.subr.bf16.mxu0 0
  %1192 = vmatpush1.bf16.msra.mxu0 0
  %1193 = vmatprep.mubr.bf16.mxu0 0
  %1194 = vmatmul.mubr.bf16.gmra.mrb[0].mxu0 %v922
  %v1195 = vpop.f32.mrb[0].mxu0
  %v1196 = vadd.f32 0.0, %v1195
  %v1197 = vpop.f32.mrb[0].mxu0
  %v1198 = vpop.f32.mrb[0].mxu0
  %v1199 = vpop.f32.mrb[0].mxu0
  %1200 = vdwg.mxu0
  %s1201 = scalar_lea.vmem %s4, 48
  %v1202 = vld [vmem:[%s1201] sm:$0xf]
  %v1203 = vld [vmem:[%s1201 + $0x4] sm:$0xf]
  %v1204 = vld [vmem:[%s1201 + $0x8] sm:$0xf]
  %v1205 = vld [vmem:[%s1201 + $0xc] sm:$0xf]
  %v1210 = vunpack.c.l.b16 %v1202
  %v1211 = vunpack.c.l.b16 %v1203
  %v1212 = vunpack.c.l.b16 %v1204
  %v1213 = vunpack.c.l.b16 %v1205
  %v1214 = vpack.c.b16 %v1211, %v1210
  %v1215 = vpack.c.b16 %v1213, %v1212
  %1218 = vmatprep.subr.bf16.mxu0 0
  %1219 = vmatpush1.bf16.msra.mxu0 %v1214
  %1220 = vmatprep.subr.bf16.mxu0 0
  %1221 = vmatpush1.bf16.msra.mxu0 %v1215
  %1222 = vmatprep.subr.bf16.mxu0 0
  %1223 = vmatpush1.bf16.msra.mxu0 0
  %1224 = vmatprep.subr.bf16.mxu0 0
  %1225 = vmatpush1.bf16.msra.mxu0 0
  %1226 = vmatprep.subr.bf16.mxu0 0
  %1227 = vmatpush1.bf16.msra.mxu0 0
  %1228 = vmatprep.subr.bf16.mxu0 0
  %1229 = vmatpush1.bf16.msra.mxu0 0
  %1230 = vmatprep.subr.bf16.mxu0 0
  %1231 = vmatpush1.bf16.msra.mxu0 0
  %1232 = vmatprep.subr.bf16.mxu0 0
  %1233 = vmatpush1.bf16.msra.mxu0 0
  %1234 = vmatprep.subr.bf16.mxu0 0
  %1235 = vmatpush1.bf16.msra.mxu0 0
  %1236 = vmatprep.subr.bf16.mxu0 0
  %1237 = vmatpush1.bf16.msra.mxu0 0
  %1238 = vmatprep.subr.bf16.mxu0 0
  %1239 = vmatpush1.bf16.msra.mxu0 0
  %1240 = vmatprep.subr.bf16.mxu0 0
  %1241 = vmatpush1.bf16.msra.mxu0 0
  %1242 = vmatprep.subr.bf16.mxu0 0
  %1243 = vmatpush1.bf16.msra.mxu0 0
  %1244 = vmatprep.subr.bf16.mxu0 0
  %1245 = vmatpush1.bf16.msra.mxu0 0
  %1246 = vmatprep.subr.bf16.mxu0 0
  %1247 = vmatpush1.bf16.msra.mxu0 0
  %1248 = vmatprep.subr.bf16.mxu0 0
  %1249 = vmatpush1.bf16.msra.mxu0 0
  %1250 = vmatprep.mubr.bf16.mxu0 0
  %1251 = vmatmul.mubr.bf16.gmra.mrb[0].mxu0 %v922
  %v1252 = vpop.f32.mrb[0].mxu0
  %v1253 = vadd.f32 0.0, %v1252
  %v1254 = vpop.f32.mrb[0].mxu0
  %v1255 = vpop.f32.mrb[0].mxu0
  %v1256 = vpop.f32.mrb[0].mxu0
  %1257 = vdwg.mxu0
  %s1258 = scalar_lea.vmem %s5, 48
  %v1259 = vld [vmem:[%s1258] sm:$0xf]
  %v1260 = vld [vmem:[%s1258 + $0x4] sm:$0xf]
  %v1261 = vld [vmem:[%s1258 + $0x8] sm:$0xf]
  %v1262 = vld [vmem:[%s1258 + $0xc] sm:$0xf]
  %v1267 = vunpack.c.l.b16 %v1259
  %v1268 = vunpack.c.l.b16 %v1260
  %v1269 = vunpack.c.l.b16 %v1261
  %v1270 = vunpack.c.l.b16 %v1262
  %v1271 = vpack.c.b16 %v1268, %v1267
  %v1272 = vpack.c.b16 %v1270, %v1269
  %1275 = vmatprep.subr.bf16.mxu0 0
  %1276 = vmatpush1.bf16.msra.mxu0 %v1271
  %1277 = vmatprep.subr.bf16.mxu0 0
  %1278 = vmatpush1.bf16.msra.mxu0 %v1272
  %1279 = vmatprep.subr.bf16.mxu0 0
  %1280 = vmatpush1.bf16.msra.mxu0 0
  %1281 = vmatprep.subr.bf16.mxu0 0
  %1282 = vmatpush1.bf16.msra.mxu0 0
  %1283 = vmatprep.subr.bf16.mxu0 0
  %1284 = vmatpush1.bf16.msra.mxu0 0
  %1285 = vmatprep.subr.bf16.mxu0 0
  %1286 = vmatpush1.bf16.msra.mxu0 0
  %1287 = vmatprep.subr.bf16.mxu0 0
  %1288 = vmatpush1.bf16.msra.mxu0 0
  %1289 = vmatprep.subr.bf16.mxu0 0
  %1290 = vmatpush1.bf16.msra.mxu0 0
  %1291 = vmatprep.subr.bf16.mxu0 0
  %1292 = vmatpush1.bf16.msra.mxu0 0
  %1293 = vmatprep.subr.bf16.mxu0 0
  %1294 = vmatpush1.bf16.msra.mxu0 0
  %1295 = vmatprep.subr.bf16.mxu0 0
  %1296 = vmatpush1.bf16.msra.mxu0 0
  %1297 = vmatprep.subr.bf16.mxu0 0
  %1298 = vmatpush1.bf16.msra.mxu0 0
  %1299 = vmatprep.subr.bf16.mxu0 0
  %1300 = vmatpush1.bf16.msra.mxu0 0
  %1301 = vmatprep.subr.bf16.mxu0 0
  %1302 = vmatpush1.bf16.msra.mxu0 0
  %1303 = vmatprep.subr.bf16.mxu0 0
  %1304 = vmatpush1.bf16.msra.mxu0 0
  %1305 = vmatprep.subr.bf16.mxu0 0
  %1306 = vmatpush1.bf16.msra.mxu0 0
  %1307 = vmatprep.mubr.bf16.mxu0 0
  %1308 = vmatmul.mubr.bf16.gmra.mrb[0].mxu0 %v922
  %v1309 = vpop.f32.mrb[0].mxu0
  %v1310 = vadd.f32 0.0, %v1309
  %v1311 = vpop.f32.mrb[0].mxu0
  %v1312 = vpop.f32.mrb[0].mxu0
  %v1313 = vpop.f32.mrb[0].mxu0
  %1314 = vdwg.mxu0
  %v1316 = vrot.slane %v1253, 3
  %v1318 = vrot.slane %v1253, 7
  %v1320 = vsel %vm263, %v1316, %v1318
  %v1321 = vmul.f32 %v1196, %v1320
  %v1322 = vsel %vm266, %v1321, 0.0
  %1323 = vadd.xlane.f32.xlu0 %v1322
  %v1324 = vpop.xlane.xlu0 %1323
  %v1325 = vmul.f32 %v1324, 0.25
  %v1326 = vsel %vm274, %v1325, -1e+30
  %v1327 = vmul.f32 %v1196, %v1253
  %v1328 = vsel %vm266, %v1327, 0.0
  %1329 = vadd.xlane.f32.xlu0 %v1328
  %v1330 = vpop.xlane.xlu0 %1329
  %v1331 = vmul.f32 %v1330, 0.25
  %v1332 = vsel %vm283, %v1331, -1e+30
  %v1333 = vrot.slane %v1253, 1
  %v1335 = vrot.slane %v1253, 5
  %v1337 = vsel %vm289, %v1333, %v1335
  %v1338 = vmul.f32 %v1196, %v1337
  %v1339 = vsel %vm266, %v1338, 0.0
  %1340 = vadd.xlane.f32.xlu0 %v1339
  %v1341 = vpop.xlane.xlu0 %1340
  %v1342 = vmul.f32 %v1341, 0.25
  %v1343 = vsel %vm299, %v1342, -1e+30
  %v1344 = vmax.f32 %v1326, %v1332
  %v1345 = vmax.f32 %v1344, %v1343
  %v1346 = vsub.f32 %v1326, %v1345
  %v1347 = vmul.f32 %v1346, 1.442695
  %v1348 = vpow.pop %v1347
  %v1349 = vsub.f32 %v1332, %v1345
  %v1350 = vmul.f32 %v1349, 1.442695
  %v1351 = vpow.pop %v1350
  %v1352 = vsub.f32 %v1343, %v1345
  %v1353 = vmul.f32 %v1352, 1.442695
  %v1354 = vpow.pop %v1353
  %v1355 = vadd.f32 %v1348, %v1351
  %v1356 = vadd.f32 %v1355, %v1354
  %v1357 = vrcp.pop %v1356
  %v1358 = vmul.f32 %v1348, %v1357
  %v1360 = vrot.slane %v1310, 3
  %v1362 = vrot.slane %v1310, 7
  %v1364 = vsel %vm263, %v1360, %v1362
  %v1365 = vmul.f32 %v1358, %v1364
  %v1366 = vmul.f32 %v1351, %v1357
  %v1367 = vmul.f32 %v1366, %v1310
  %v1368 = vadd.f32 %v1365, %v1367
  %v1369 = vmul.f32 %v1354, %v1357
  %v1370 = vrot.slane %v1310, 1
  %v1372 = vrot.slane %v1310, 5
  %v1374 = vsel %vm289, %v1370, %v1372
  %v1375 = vmul.f32 %v1369, %v1374
  %v1376 = vadd.f32 %v1368, %v1375
  %v1377 = vpack.c.bf16 %v1376, %v1376
  %s1378 = scalar_lea.vmem %s6, 24
  %v1379 = vld [vmem:[%s1378] sm:$0xf]
  %v1380 = vld [vmem:[%s1378 + $0x4] sm:$0xf]
  %v1383 = vunpack.c.l.b16 %v1379
  %v1384 = vunpack.c.l.b16 %v1380
  %v1385 = vpack.c.b16 %v1384, %v1383
  %v1388 = vsel %vm580, %v1377, 0
  %1390 = vmatprep.subr.bf16.mxu0 0
  %1391 = vmatpush1.bf16.msra.mxu0 %v1385
  %1392 = vmatprep.subr.bf16.mxu0 0
  %1393 = vmatpush1.bf16.msra.mxu0 0
  %1394 = vmatprep.subr.bf16.mxu0 0
  %1395 = vmatpush1.bf16.msra.mxu0 0
  %1396 = vmatprep.subr.bf16.mxu0 0
  %1397 = vmatpush1.bf16.msra.mxu0 0
  %1398 = vmatprep.subr.bf16.mxu0 0
  %1399 = vmatpush1.bf16.msra.mxu0 0
  %1400 = vmatprep.subr.bf16.mxu0 0
  %1401 = vmatpush1.bf16.msra.mxu0 0
  %1402 = vmatprep.subr.bf16.mxu0 0
  %1403 = vmatpush1.bf16.msra.mxu0 0
  %1404 = vmatprep.subr.bf16.mxu0 0
  %1405 = vmatpush1.bf16.msra.mxu0 0
  %1406 = vmatprep.subr.bf16.mxu0 0
  %1407 = vmatpush1.bf16.msra.mxu0 0
  %1408 = vmatprep.subr.bf16.mxu0 0
  %1409 = vmatpush1.bf16.msra.mxu0 0
  %1410 = vmatprep.subr.bf16.mxu0 0
  %1411 = vmatpush1.bf16.msra.mxu0 0
  %1412 = vmatprep.subr.bf16.mxu0 0
  %1413 = vmatpush1.bf16.msra.mxu0 0
  %1414 = vmatprep.subr.bf16.mxu0 0
  %1415 = vmatpush1.bf16.msra.mxu0 0
  %1416 = vmatprep.subr.bf16.mxu0 0
  %1417 = vmatpush1.bf16.msra.mxu0 0
  %1418 = vmatprep.subr.bf16.mxu0 0
  %1419 = vmatpush1.bf16.msra.mxu0 0
  %1420 = vmatprep.subr.bf16.mxu0 0
  %1421 = vmatpush1.bf16.msra.mxu0 0
  %1422 = vmatprep.mubr.bf16.mxu0 0
  %1423 = vmatmul.mubr.bf16.gmra.mrb[0].mxu0 %v1388
  %v1424 = vpop.f32.mrb[0].mxu0
  %v1425 = vadd.f32 0.0, %v1424
  %v1426 = vpop.f32.mrb[0].mxu0
  %v1427 = vpop.f32.mrb[0].mxu0
  %v1428 = vpop.f32.mrb[0].mxu0
  %1429 = vdwg.mxu0
  %v1432 = vunpack.c.l.b16 %v1142
  %v1433 = vunpack.c.l.b16 %v1143
  %v1434 = vpack.c.b16 %v1433, %v1432
  %v1437 = vsel %vm580, %v1140, 0
  %1439 = vmatprep.subr.bf16.mxu0 0
  %1440 = vmatpush1.bf16.msra.mxu0 %v1434
  %1441 = vmatprep.subr.bf16.mxu0 0
  %1442 = vmatpush1.bf16.msra.mxu0 0
  %1443 = vmatprep.subr.bf16.mxu0 0
  %1444 = vmatpush1.bf16.msra.mxu0 0
  %1445 = vmatprep.subr.bf16.mxu0 0
  %1446 = vmatpush1.bf16.msra.mxu0 0
  %1447 = vmatprep.subr.bf16.mxu0 0
  %1448 = vmatpush1.bf16.msra.mxu0 0
  %1449 = vmatprep.subr.bf16.mxu0 0
  %1450 = vmatpush1.bf16.msra.mxu0 0
  %1451 = vmatprep.subr.bf16.mxu0 0
  %1452 = vmatpush1.bf16.msra.mxu0 0
  %1453 = vmatprep.subr.bf16.mxu0 0
  %1454 = vmatpush1.bf16.msra.mxu0 0
  %1455 = vmatprep.subr.bf16.mxu0 0
  %1456 = vmatpush1.bf16.msra.mxu0 0
  %1457 = vmatprep.subr.bf16.mxu0 0
  %1458 = vmatpush1.bf16.msra.mxu0 0
  %1459 = vmatprep.subr.bf16.mxu0 0
  %1460 = vmatpush1.bf16.msra.mxu0 0
  %1461 = vmatprep.subr.bf16.mxu0 0
  %1462 = vmatpush1.bf16.msra.mxu0 0
  %1463 = vmatprep.subr.bf16.mxu0 0
  %1464 = vmatpush1.bf16.msra.mxu0 0
  %1465 = vmatprep.subr.bf16.mxu0 0
  %1466 = vmatpush1.bf16.msra.mxu0 0
  %1467 = vmatprep.subr.bf16.mxu0 0
  %1468 = vmatpush1.bf16.msra.mxu0 0
  %1469 = vmatprep.subr.bf16.mxu0 0
  %1470 = vmatpush1.bf16.msra.mxu0 0
  %1471 = vmatprep.mubr.bf16.mxu0 0
  %1472 = vmatmul.mubr.bf16.gmra.mrb[0].mxu0 %v1437
  %v1473 = vpop.f32.mrb[0].mxu0
  %v1474 = vadd.f32 %v1425, %v1473
  %v1475 = vpop.f32.mrb[0].mxu0
  %v1476 = vpop.f32.mrb[0].mxu0
  %v1477 = vpop.f32.mrb[0].mxu0
  %1478 = vdwg.mxu0
  %v1479 = vadd.f32 %v871, %v1474
  %s1480 = scalar_lea.vmem %s7, 1
  %v1481 = vld [vmem:[%s1480] sm:$0x1]
  %v1483 = vlaneseq
  %v1484 = vshrl.u32 %v1483, 7
  %v1485 = vsub.s32 0, %v1484
  %v1486 = vrot.slane %v1481, %v1485
  %v1488 = vadd.f32 %v1479, %v1486
  %s1489 = scalar_lea.vmem %s8, 1
  %v1490 = vld [vmem:[%s1489] sm:$0x1]
  %s1491 = scalar_lea.vmem %s9, 1
  %v1492 = vld [vmem:[%s1491] sm:$0x1]
  %v1493 = vsel %vm56, %v1488, 0.0
  %1494 = vadd.xlane.f32.xlu0 %v1493
  %v1495 = vpop.xlane.xlu0 %1494
  %v1496 = vmul.f32 %v1495, %v60
  %v1497 = vsub.f32 %v1488, %v1496
  %v1498 = vmul.f32 %v1497, %v1497
  %v1499 = vsel %vm56, %v1498, 0.0
  %1500 = vadd.xlane.f32.xlu0 %v1499
  %v1501 = vpop.xlane.xlu0 %1500
  %v1502 = vmul.f32 %v1501, %v60
  %v1503 = vadd.f32 %v1502, 1e-05
  %v1504 = vrsqrt.pop %v1503
  %v1505 = vmul.f32 %v1497, %v1504
  %v1507 = vlaneseq
  %v1508 = vshrl.u32 %v1507, 7
  %v1509 = vsub.s32 0, %v1508
  %v1510 = vrot.slane %v1490, %v1509
  %v1512 = vmul.f32 %v1505, %v1510
  %v1514 = vlaneseq
  %v1515 = vshrl.u32 %v1514, 7
  %v1516 = vsub.s32 0, %v1515
  %v1517 = vrot.slane %v1492, %v1516
  %v1519 = vadd.f32 %v1512, %v1517
  %v1520 = vpack.c.bf16 %v1519, %v1519
  %s1521 = scalar_lea.vmem %s10, 16
  %v1522 = vld [vmem:[%s1521] sm:$0xf]
  %v1523 = vld [vmem:[%s1521 + $0x4] sm:$0xf]
  %v1524 = vld [vmem:[%s1521 + $0x8] sm:$0xf]
  %v1525 = vld [vmem:[%s1521 + $0xc] sm:$0xf]
  %s1526 = scalar_lea.vmem %s11, 1
  %v1527 = vld [vmem:[%s1526] sm:$0x1]
  %v1529 = vlaneseq
  %v1530 = vshrl.u32 %v1529, 7
  %v1531 = vsub.s32 0, %v1530
  %v1532 = vrot.slane %v1527, %v1531
  %v1538 = vunpack.c.l.b16 %v1522
  %v1539 = vunpack.c.l.b16 %v1523
  %v1540 = vunpack.c.l.b16 %v1524
  %v1541 = vunpack.c.l.b16 %v1525
  %v1542 = vpack.c.b16 %v1539, %v1538
  %v1543 = vpack.c.b16 %v1541, %v1540
  %v1547 = vsel %vm102, %v1520, 0
  %1549 = vmatprep.subr.bf16.mxu0 0
  %1550 = vmatpush1.bf16.msra.mxu0 %v1542
  %1551 = vmatprep.subr.bf16.mxu0 0
  %1552 = vmatpush1.bf16.msra.mxu0 %v1543
  %1553 = vmatprep.subr.bf16.mxu0 0
  %1554 = vmatpush1.bf16.msra.mxu0 0
  %1555 = vmatprep.subr.bf16.mxu0 0
  %1556 = vmatpush1.bf16.msra.mxu0 0
  %1557 = vmatprep.subr.bf16.mxu0 0
  %1558 = vmatpush1.bf16.msra.mxu0 0
  %1559 = vmatprep.subr.bf16.mxu0 0
  %1560 = vmatpush1.bf16.msra.mxu0 0
  %1561 = vmatprep.subr.bf16.mxu0 0
  %1562 = vmatpush1.bf16.msra.mxu0 0
  %1563 = vmatprep.subr.bf16.mxu0 0
  %1564 = vmatpush1.bf16.msra.mxu0 0
  %1565 = vmatprep.subr.bf16.mxu0 0
  %1566 = vmatpush1.bf16.msra.mxu0 0
  %1567 = vmatprep.subr.bf16.mxu0 0
  %1568 = vmatpush1.bf16.msra.mxu0 0
  %1569 = vmatprep.subr.bf16.mxu0 0
  %1570 = vmatpush1.bf16.msra.mxu0 0
  %1571 = vmatprep.subr.bf16.mxu0 0
  %1572 = vmatpush1.bf16.msra.mxu0 0
  %1573 = vmatprep.subr.bf16.mxu0 0
  %1574 = vmatpush1.bf16.msra.mxu0 0
  %1575 = vmatprep.subr.bf16.mxu0 0
  %1576 = vmatpush1.bf16.msra.mxu0 0
  %1577 = vmatprep.subr.bf16.mxu0 0
  %1578 = vmatpush1.bf16.msra.mxu0 0
  %1579 = vmatprep.subr.bf16.mxu0 0
  %1580 = vmatpush1.bf16.msra.mxu0 0
  %1581 = vmatprep.mubr.bf16.mxu0 0
  %1582 = vmatmul.mubr.bf16.gmra.mrb[0].mxu0 %v1547
  %v1583 = vpop.f32.mrb[0].mxu0
  %v1584 = vadd.f32 %v1532, %v1583
  %v1585 = vpop.f32.mrb[0].mxu0
  %v1586 = vpop.f32.mrb[0].mxu0
  %v1587 = vpop.f32.mrb[0].mxu0
  %1588 = vdwg.mxu0
  %v1589 = vmul.f32 %v1584, %v1584
  %v1590 = vmul.f32 %v1584, %v1589
  %v1591 = vmul.f32 %v1590, 0.044715
  %v1592 = vadd.f32 %v1584, %v1591
  %v1593 = vmul.f32 %v1592, 0.7978846
  %v1594 = vtanh.pop %v1593
  %v1595 = vadd.f32 %v1594, 1.0
  %v1596 = vmul.f32 %v1595, 0.5
  %v1597 = vmul.f32 %v1584, %v1596
  %v1598 = vpack.c.bf16 %v1597, %v1597
  %s1599 = scalar_lea.vmem %s12, 32
  %v1600 = vld [vmem:[%s1599] sm:$0xf]
  %v1601 = vld [vmem:[%s1599 + $0x4] sm:$0xf]
  %v1602 = vld [vmem:[%s1599 + $0x8] sm:$0xf]
  %v1603 = vld [vmem:[%s1599 + $0xc] sm:$0xf]
  %v1604 = vld [vmem:[%s1599 + $0x10] sm:$0xf]
  %v1605 = vld [vmem:[%s1599 + $0x14] sm:$0xf]
  %v1606 = vld [vmem:[%s1599 + $0x18] sm:$0xf]
  %v1607 = vld [vmem:[%s1599 + $0x1c] sm:$0xf]
  %s1608 = scalar_lea.vmem %s13, 1
  %v1609 = vld [vmem:[%s1608] sm:$0x1]
  %v1611 = vlaneseq
  %v1612 = vshrl.u32 %v1611, 7
  %v1613 = vsub.s32 0, %v1612
  %v1614 = vrot.slane %v1609, %v1613
  %v1624 = vunpack.c.l.b16 %v1600
  %v1625 = vunpack.c.l.b16 %v1601
  %v1626 = vunpack.c.l.b16 %v1602
  %v1627 = vunpack.c.l.b16 %v1603
  %v1628 = vunpack.c.l.b16 %v1604
  %v1629 = vunpack.c.l.b16 %v1605
  %v1630 = vunpack.c.l.b16 %v1606
  %v1631 = vunpack.c.l.b16 %v1607
  %v1632 = vpack.c.b16 %v1625, %v1624
  %v1633 = vpack.c.b16 %v1627, %v1626
  %v1634 = vpack.c.b16 %v1629, %v1628
  %v1635 = vpack.c.b16 %v1631, %v1630
  %v1641 = vsel %vm827, %v1598, 0
  %1643 = vmatprep.subr.bf16.mxu0 0
  %1644 = vmatpush1.bf16.msra.mxu0 %v1632
  %1645 = vmatprep.subr.bf16.mxu0 0
  %1646 = vmatpush1.bf16.msra.mxu0 %v1633
  %1647 = vmatprep.subr.bf16.mxu0 0
  %1648 = vmatpush1.bf16.msra.mxu0 %v1634
  %1649 = vmatprep.subr.bf16.mxu0 0
  %1650 = vmatpush1.bf16.msra.mxu0 %v1635
  %1651 = vmatprep.subr.bf16.mxu0 0
  %1652 = vmatpush1.bf16.msra.mxu0 0
  %1653 = vmatprep.subr.bf16.mxu0 0
  %1654 = vmatpush1.bf16.msra.mxu0 0
  %1655 = vmatprep.subr.bf16.mxu0 0
  %1656 = vmatpush1.bf16.msra.mxu0 0
  %1657 = vmatprep.subr.bf16.mxu0 0
  %1658 = vmatpush1.bf16.msra.mxu0 0
  %1659 = vmatprep.subr.bf16.mxu0 0
  %1660 = vmatpush1.bf16.msra.mxu0 0
  %1661 = vmatprep.subr.bf16.mxu0 0
  %1662 = vmatpush1.bf16.msra.mxu0 0
  %1663 = vmatprep.subr.bf16.mxu0 0
  %1664 = vmatpush1.bf16.msra.mxu0 0
  %1665 = vmatprep.subr.bf16.mxu0 0
  %1666 = vmatpush1.bf16.msra.mxu0 0
  %1667 = vmatprep.subr.bf16.mxu0 0
  %1668 = vmatpush1.bf16.msra.mxu0 0
  %1669 = vmatprep.subr.bf16.mxu0 0
  %1670 = vmatpush1.bf16.msra.mxu0 0
  %1671 = vmatprep.subr.bf16.mxu0 0
  %1672 = vmatpush1.bf16.msra.mxu0 0
  %1673 = vmatprep.subr.bf16.mxu0 0
  %1674 = vmatpush1.bf16.msra.mxu0 0
  %1675 = vmatprep.mubr.bf16.mxu0 0
  %1676 = vmatmul.mubr.bf16.gmra.mrb[0].mxu0 %v1641
  %v1677 = vpop.f32.mrb[0].mxu0
  %v1678 = vadd.f32 %v1614, %v1677
  %v1679 = vpop.f32.mrb[0].mxu0
  %v1680 = vpop.f32.mrb[0].mxu0
  %v1681 = vpop.f32.mrb[0].mxu0
  %1682 = vdwg.mxu0
  %v1683 = vadd.f32 %v1488, %v1678
  %v1685 = vlaneseq
  %v1686 = vshrl.u32 %v1685, 7
  %v1687 = vsub.s32 1, %v1686
  %v1688 = vrot.slane %v1683, %v1687
  %1689 = vrot.lane.b32.xlu0 %v1688, 32
  %v1690 = vpop.permute.xlu0 %1689
  %v1692 = vlaneseq
  %v1693 = vshrl.u32 %v1692, 7
  %v1694 = vsub.s32 2, %v1693
  %v1695 = vrot.slane %v1683, %v1694
  %1696 = vrot.lane.b32.xlu0 %v1695, 64
  %v1697 = vpop.permute.xlu0 %1696
  %v1699 = vlaneseq
  %v1700 = vshrl.u32 %v1699, 7
  %v1701 = vsub.s32 3, %v1700
  %v1702 = vrot.slane %v1683, %v1701
  %1703 = vrot.lane.b32.xlu0 %v1702, 96
  %v1704 = vpop.permute.xlu0 %1703
  %v1706 = vsel %vm102, %v1683, %v1690
  %v1707 = vsel %vm827, %v1706, %v1697
  %vm1708 = vcmask 785408
  %v1709 = vsel %vm1708, %v1707, %v1704
  %1710 = vst [vmem:[%s14] sm:$0x1] %v1709
  // Predicated region
  $region58: #{primitive_transformer_forward.3} parent=0 // pred_check
    _
  $region59: #{primitive_transformer_forward.3} parent=0 // pred_check_branch
    %1712 = sbr.rel (0) target = $region61
  $region60: #{primitive_transformer_forward.3} parent=0 // pred_region
    _
  $region61: #{primitive_transformer_forward.3} parent=0 // pred_fallthru
    _
  // Predicated region
  $region62: #{primitive_transformer_forward.3} parent=0 // pred_check
    _
  $region63: #{primitive_transformer_forward.3} parent=0 // pred_check_branch
    %1714 = sbr.rel (0) target = $region65
  $region64: #{primitive_transformer_forward.3} parent=0 // pred_region
    _
  $region65: #{primitive_transformer_forward.3} parent=0 // pred_fallthru
    _

</llo_original>
